<compile_context>
chip_gen: v5e
topology: v5e:2x2
jax: 0.10.0
libtpu: 0.0.40
codegen_flags: <defaults>
</compile_context>

<pallas_src>
import functools
import numpy as np
import jax
import jax.numpy as jnp
from jax.experimental import pallas as pl
from jax.experimental.pallas import tpu as pltpu

# ----------------------------- config ---------------------------------------
DIM = 32
NUM_HEADS = 4
WINDOW_SIZE = (2, 4, 4)
SHIFT_SIZE = (1, 2, 2)
MLP_RATIO = 4.0
LN_EPS = 1e-5


# ----------------------- in-kernel math helpers ------------------------------
def _erf_f32(x):
    # Abramowitz & Stegun 7.1.26, |err| <= 1.5e-7 (float32-accurate erf).
    a1, a2, a3, a4, a5 = 0.254829592, -0.284496736, 1.421413741, -1.453152027, 1.061405429
    p = 0.3275911
    sgn = jnp.where(x >= 0.0, 1.0, -1.0)
    ax = jnp.abs(x)
    t = 1.0 / (1.0 + p * ax)
    poly = ((((a5 * t + a4) * t + a3) * t + a2) * t + a1) * t
    return sgn * (1.0 - poly * jnp.exp(-ax * ax))


def _gelu_exact(x):
    # matches torch.nn.GELU() default (erf formulation)
    return 0.5 * x * (1.0 + _erf_f32(x * 0.7071067811865476))


def _layernorm_rows(x, g, b):
    # LN over the last (channel) axis; x:(rows, C), g/b:(1, C)
    mu = jnp.mean(x, axis=-1, keepdims=True)
    xc = x - mu
    var = jnp.mean(xc * xc, axis=-1, keepdims=True)
    return xc * jax.lax.rsqrt(var + LN_EPS) * g + b


# ----------------------------- Pallas kernels --------------------------------
def _ln_kernel(x_ref, g_ref, b_ref, o_ref):
    # standalone LN (only used when spatial zero-padding is required)
    o_ref[...] = _layernorm_rows(x_ref[...], g_ref[...], b_ref[...]).astype(o_ref.dtype)


def _attn_kernel(*refs, num_heads, w_blk, seq, has_mask, fused_ln):
    """Fused [LN1 ->] QKV -> batched-head attention -> proj -> +residual for a
    group of `w_blk` windows per grid step."""
    o_ref = refs[-1]
    it = iter(refs[:-1])
    x_ref = next(it)
    res_ref = None if fused_ln else next(it)
    g_ref = next(it) if fused_ln else None
    b_ref = next(it) if fused_ln else None
    wqkv_ref = next(it)
    bqkv_ref = next(it)
    wproj_ref = next(it)
    bproj_ref = next(it)
    bm_ref = next(it)

    C = x_ref.shape[-1]
    H = num_heads
    hd = C // H
    rows = w_blk * seq

    x = x_ref[...].reshape(rows, C)
    if fused_ln:
        xn = _layernorm_rows(x, g_ref[...], b_ref[...])
        res = x                                   # residual-1: x + attn(LN(x))
    else:
        xn = x                                    # LN already applied (padded path)
        res = res_ref[...].reshape(rows, C)       # pre-LN residual, windowed

    # One lane-dense QKV matmul (K=C, N=3C); attention scale pre-folded into Wq/bq.
    qkv = jnp.dot(xn, wqkv_ref[...], preferred_element_type=jnp.float32) + bqkv_ref[...]

    # Head split: static lane slices stacked onto a leading batch axis so that
    # scores, bias+mask, softmax and AV each run ONCE over all heads*windows.
    def _split(base):
        parts = [qkv[:, base + h * hd: base + (h + 1) * hd] for h in range(H)]
        return jnp.stack(parts, axis=0).reshape(H * w_blk, seq, hd)

    q = _split(0)
    k = _split(C)
    v = _split(2 * C)

    s = jnp.einsum('bnd,bmd->bnm', q, k, preferred_element_type=jnp.float32)
    if has_mask:
        # rel-pos bias + shift mask pre-combined host-side -> single VPU add
        s = s + bm_ref[...].reshape(H * w_blk, seq, seq)
    else:
        # bias only (heads, N, N), broadcast over windows -> single add
        s = (s.reshape(H, w_blk, seq, seq) + bm_ref[...][:, None]
             ).reshape(H * w_blk, seq, seq)

    s = s - jnp.max(s, axis=-1, keepdims=True)    # one stable softmax for all heads
    e = jnp.exp(s)
    p = e / jnp.sum(e, axis=-1, keepdims=True)    # exact division (torch parity)

    o = jnp.einsum('bnm,bmd->bnd', p, v, preferred_element_type=jnp.float32)
    o = o.reshape(H, rows, hd)

    # concat_h(o_h) @ Wproj == sum_h o_h @ Wproj[h] : accumulate per head instead
    # of a lane-axis concatenate; MXU has slack for the small K=hd dots.
    wproj = wproj_ref[...]
    acc = jnp.zeros((rows, C), jnp.float32)
    for h in range(H):
        acc = acc + jnp.dot(o[h], wproj[h * hd:(h + 1) * hd, :],
                            preferred_element_type=jnp.float32)

    out = acc + bproj_ref[...] + res
    o_ref[...] = out.reshape(w_blk, seq, C).astype(o_ref.dtype)


def _mlp_kernel(x_ref, g_ref, b_ref, w1t_ref, b1_ref, w2t_ref, b2_ref, o_ref):
    # Tokens-on-lanes layout: x is (C, tm).  All stores are full-lane (tm>=128)
    # and both matmul output-N dims are the token axis.  LN reduces over the C
    # sublanes.  Residual-2 fused; output aliases the input.
    x = x_ref[...]
    mu = jnp.mean(x, axis=0, keepdims=True)
    xc = x - mu
    var = jnp.mean(xc * xc, axis=0, keepdims=True)
    xn = xc * jax.lax.rsqrt(var + LN_EPS) * g_ref[...] + b_ref[...]
    h = jnp.dot(w1t_ref[...], xn, preferred_element_type=jnp.float32) + b1_ref[...]
    h = _gelu_exact(h)
    y = jnp.dot(w2t_ref[...], h, preferred_element_type=jnp.float32) + b2_ref[...]
    o_ref[...] = (x + y).astype(o_ref.dtype)


# ----------------------------- Pallas wrappers --------------------------------
_VMEM_LIMIT = 32 * 1024 * 1024  # explicit (raises v5e's 16 MiB scoped default)


def _row_tile(M):
    for t in (512, 256, 128, 64, 32, 16, 8):
        if M % t == 0:
            return t
    return M


def _col_tile(M):
    """Token tile for the lane-dense MLP: multiple of 128 lanes, >=4 grid steps
    when possible (2 per TensorCore on v7x), else the largest divisor."""
    if M % 128 != 0:
        return M
    for t in (512, 256, 128):
        if M % t == 0 and M // t >= 4:
            return t
    for t in (1024, 512, 256, 128):
        if M % t == 0:
            return t
    return M


def _pick_w_blk(n_win, seq, num_heads):
    """~128 rows per attention step keeps the batched (heads*w_blk, N, N) score
    tensor within ~64 KiB of vregs and leaves >=2 grid steps per TensorCore on
    v7x.  (Single-TC v5e/v6e tolerate a larger cap; this is a safe default.)"""
    best = 1
    for cand in range(1, n_win + 1):
        if (n_win % cand == 0 and cand * seq <= 128
                and num_heads * cand * seq * seq * 4 <= 64 * 1024):
            best = cand
    return best


def layernorm_pallas(x, g, b):
    # Only used on the (rare) zero-padding path, where LN1 must run pre-pad.
    M, C = x.shape
    tm = _row_tile(M)
    return pl.pallas_call(
        _ln_kernel,
        out_shape=jax.ShapeDtypeStruct((M, C), x.dtype),
        grid=(M // tm,),
        in_specs=[pl.BlockSpec((tm, C), lambda i: (i, 0)),
                  pl.BlockSpec((1, C), lambda i: (0, 0)),
                  pl.BlockSpec((1, C), lambda i: (0, 0))],
        out_specs=pl.BlockSpec((tm, C), lambda i: (i, 0)),
        compiler_params=pltpu.CompilerParams(
            dimension_semantics=("parallel",), vmem_limit_bytes=_VMEM_LIMIT),
    )(x, g.reshape(1, C), b.reshape(1, C))


def window_attention_pallas(x_win, res_win, ln_g, ln_b, wqkv, bqkv, wproj, bproj,
                            bias_or_bm, *, num_heads, n_win_per_batch,
                            has_mask, fused_ln):
    Bw, N, C = x_win.shape
    B = Bw // n_win_per_batch
    w_blk = _pick_w_blk(n_win_per_batch, N, num_heads)
    n_groups = n_win_per_batch // w_blk

    kernel = functools.partial(_attn_kernel, num_heads=num_heads, w_blk=w_blk,
                               seq=N, has_mask=has_mask, fused_ln=fused_ln)

    win_spec = pl.BlockSpec((w_blk, N, C), lambda b, w: (b * n_groups + w, 0, 0))
    args = [x_win]
    specs = [win_spec]
    if fused_ln:
        args += [ln_g.reshape(1, C), ln_b.reshape(1, C)]
        specs += [pl.BlockSpec((1, C), lambda b, w: (0, 0)),
                  pl.BlockSpec((1, C), lambda b, w: (0, 0))]
    else:
        args.append(res_win)
        specs.append(win_spec)

    args += [wqkv, bqkv.reshape(1, 3 * C), wproj, bproj.reshape(1, C), bias_or_bm]
    specs += [pl.BlockSpec((C, 3 * C), lambda b, w: (0, 0)),
              pl.BlockSpec((1, 3 * C), lambda b, w: (0, 0)),
              pl.BlockSpec((C, C), lambda b, w: (0, 0)),
              pl.BlockSpec((1, C), lambda b, w: (0, 0))]
    if has_mask:
        # combined (heads, nW, N, N) bias+mask, sliced by window-group index
        specs.append(pl.BlockSpec((num_heads, w_blk, N, N),
                                  lambda b, w: (0, w, 0, 0)))
    else:
        specs.append(pl.BlockSpec((num_heads, N, N), lambda b, w: (0, 0, 0)))

    return pl.pallas_call(
        kernel,
        out_shape=jax.ShapeDtypeStruct((Bw, N, C), x_win.dtype),
        grid=(B, n_groups),
        in_specs=specs,
        out_specs=win_spec,
        compiler_params=pltpu.CompilerParams(
            dimension_semantics=("parallel", "parallel"),
            vmem_limit_bytes=_VMEM_LIMIT),
    )(*args)


def mlp_block_pallas(x_cf, g_col, b_col, w1t, b1_col, w2t, b2_col):
    C, M = x_cf.shape
    Hd = w1t.shape[0]
    tm = _col_tile(M)
    return pl.pallas_call(
        _mlp_kernel,
        out_shape=jax.ShapeDtypeStruct((C, M), x_cf.dtype),
        grid=(M // tm,),
        in_specs=[pl.BlockSpec((C, tm), lambda i: (0, i)),
                  pl.BlockSpec((C, 1), lambda i: (0, 0)),
                  pl.BlockSpec((C, 1), lambda i: (0, 0)),
                  pl.BlockSpec((Hd, C), lambda i: (0, 0)),
                  pl.BlockSpec((Hd, 1), lambda i: (0, 0)),
                  pl.BlockSpec((C, Hd), lambda i: (0, 0)),
                  pl.BlockSpec((C, 1), lambda i: (0, 0))],
        out_specs=pl.BlockSpec((C, tm), lambda i: (0, i)),
        input_output_aliases={0: 0},              # in-place x + mlp(norm2(x))
        compiler_params=pltpu.CompilerParams(
            dimension_semantics=("parallel",), vmem_limit_bytes=_VMEM_LIMIT),
    )(x_cf, g_col, b_col, w1t, b1_col, w2t, b2_col)


# ----------------------------- glue helpers (host) ----------------------------
def get_window_size(x_size, window_size, shift_size=None):
    ws = list(window_size)
    ss = list(shift_size) if shift_size is not None else None
    for i in range(len(x_size)):
        if x_size[i] <= window_size[i]:
            ws[i] = x_size[i]
            if ss is not None:
                ss[i] = 0
    return tuple(ws), (tuple(ss) if ss is not None else None)


def window_partition_cl(x, ws):
    # x: (B, Dp, Hp, Wp, C) channels-last  ->  (B*nW, N, C), C stays on lanes
    B, Dp, Hp, Wp, C = x.shape
    wd, wh, ww = ws
    x = x.reshape(B, Dp // wd, wd, Hp // wh, wh, Wp // ww, ww, C)
    x = x.transpose(0, 1, 3, 5, 2, 4, 6, 7)
    return x.reshape(-1, wd * wh * ww, C)


def window_reverse_cl(wins, ws, sp, B, C):
    Dp, Hp, Wp = sp
    wd, wh, ww = ws
    x = wins.reshape(B, Dp // wd, Hp // wh, Wp // ww, wd, wh, ww, C)
    x = x.transpose(0, 1, 4, 2, 5, 3, 6, 7)
    return x.reshape(B, Dp, Hp, Wp, C)


def compute_mask_np(sp, ws, ss):
    # TODO(synk): mirrors the PyTorch video-Swin idiom including slice(-0)
    # behaviour when a shift component is zeroed by small inputs.
    Dp, Hp, Wp = sp
    img = np.zeros((Dp, Hp, Wp), np.float32)
    cnt = 0
    for d in (slice(-ws[0]), slice(-ws[0], -ss[0]), slice(-ss[0], None)):
        for h in (slice(-ws[1]), slice(-ws[1], -ss[1]), slice(-ss[1], None)):
            for w in (slice(-ws[2]), slice(-ws[2], -ss[2]), slice(-ss[2], None)):
                img[d, h, w] = cnt
                cnt += 1
    wd, wh, ww = ws
    m = img.reshape(Dp // wd, wd, Hp // wh, wh, Wp // ww, ww)
    m = m.transpose(0, 2, 4, 1, 3, 5).reshape(-1, wd * wh * ww)
    attn_mask = m[:, None, :] - m[:, :, None]
    return np.where(attn_mask != 0, -100.0, 0.0).astype(np.float32)


def relative_position_index_np(window_size):
    coords = np.stack(np.meshgrid(*[np.arange(w) for w in window_size], indexing='ij'))
    coords_flat = coords.reshape(len(window_size), -1)
    rel = coords_flat[:, :, None] - coords_flat[:, None, :]
    rel = np.transpose(rel, (1, 2, 0)).copy()
    for i in range(len(window_size)):
        rel[..., i] += window_size[i] - 1
    multipliers = [1]
    for w in window_size[:-1][::-1]:
        multipliers.insert(0, multipliers[0] * (2 * w - 1))
    index = rel[..., 0] * multipliers[0]
    for i in range(1, len(window_size)):
        index = index + rel[..., i] * multipliers[i]
    return index.astype(np.int32)


# ----------------------------- forward ----------------------------------------
def swin_block_forward(x, params, *, window_size, shift_size, num_heads):
    B, C, D, H, W = x.shape
    sp0 = (D, H, W)

    # one transpose to channels-last; everything until the exit is reshapes/rolls
    xcl = jnp.transpose(x, (0, 2, 3, 4, 1))                         # (B, D, H, W, C)

    ws0, _ = get_window_size(sp0, window_size, None)
    pads = [(0, (w - s % w) % w) for s, w in zip(sp0, ws0)]
    needs_pad = any(p[1] for p in pads)
    fused_ln = not needs_pad

    # If zero-padding is needed, LN1 must run BEFORE padding to match the
    # reference exactly; the residual is still fused in-kernel via res_win.
    if fused_ln:
        x_attn = xcl
    else:
        tok = xcl.reshape(B * D * H * W, C)
        tok = layernorm_pallas(tok, params['ln1_g'], params['ln1_b'])
        x_attn = tok.reshape(B, D, H, W, C)

    def _pad(t):
        return jnp.pad(t, [(0, 0)] + pads + [(0, 0)]) if needs_pad else t

    xp = _pad(x_attn)
    spp = tuple(xp.shape[1:4])
    ws, ss = get_window_size(spp, window_size, shift_size)
    do_shift = any(ss)

    def _roll_neg(t):
        return jnp.roll(t, shift=tuple(-s for s in ss), axis=(1, 2, 3)) if do_shift else t

    x_win = window_partition_cl(_roll_neg(xp), ws)                  # (B*nW, N, C)
    res_win = None
    if not fused_ln:
        res_win = window_partition_cl(_roll_neg(_pad(xcl)), ws)     # pre-LN residual

    N = ws[0] * ws[1] * ws[2]
    nW = (spp[0] // ws[0]) * (spp[1] // ws[1]) * (spp[2] // ws[2])

    # TODO(synk): attn_bias assumes the effective window is never capped by
    # small inputs (the PyTorch module has the same implicit assumption).
    if do_shift:
        mask = jnp.asarray(compute_mask_np(spp, ws, ss))            # (nW, N, N)
        bias_or_bm = params['attn_bias'][:, None, :, :] + mask[None, :, :, :]
    else:
        bias_or_bm = params['attn_bias']                            # (heads, N, N)

    attn = window_attention_pallas(
        x_win, res_win, params['ln1_g'], params['ln1_b'],
        params['wqkv_scaled'], params['bqkv_scaled'],
        params['wproj'], params['bproj'], bias_or_bm,
        num_heads=num_heads, n_win_per_batch=nW,
        has_mask=do_shift, fused_ln=fused_ln)

    x_rev = window_reverse_cl(attn, ws, spp, B, C)
    if do_shift:
        x_rev = jnp.roll(x_rev, shift=ss, axis=(1, 2, 3))
    x1 = x_rev[:, :D, :H, :W, :]                 # residual-1 already added in-kernel

    # norm2 + MLP + residual 2, fused, in tokens-on-lanes (C, M) layout
    x_cf = jnp.transpose(x1, (4, 0, 1, 2, 3)).reshape(C, B * D * H * W)
    y_cf = mlp_block_pallas(x_cf, params['ln2_g_col'], params['ln2_b_col'],
                            params['w1t'], params['b1_col'],
                            params['w2t'], params['b2_col'])
    return jnp.transpose(y_cf.reshape(C, B, D, H, W), (1, 0, 2, 3, 4))   # NCDHW


# ----------------------------- params -----------------------------------------
def init_params(key, dim, num_heads, window_size, mlp_ratio):
    hidden = int(dim * mlp_ratio)
    rel_size = 1
    for w in window_size:
        rel_size *= 2 * w - 1
    ks = jax.random.split(key, 8)

    def rnd(k, shape, scale=0.02):
        return scale * jax.random.normal(k, shape, jnp.float32)

    return dict(
        ln1_g=jnp.ones((dim,), jnp.float32),
        ln1_b=jnp.zeros((dim,), jnp.float32),
        wqkv=rnd(ks[0], (dim, 3 * dim)),
        bqkv=rnd(ks[1], (3 * dim,)),
        # module zero-inits the table; small randoms exercise the bias path
        rpb_table=rnd(ks[2], (rel_size, num_heads)),
        wproj=rnd(ks[3], (dim, dim)),
        bproj=rnd(ks[4], (dim,)),
        ln2_g=jnp.ones((dim,), jnp.float32),
        ln2_b=jnp.zeros((dim,), jnp.float32),
        w1=rnd(ks[5], (dim, hidden)),
        b1=rnd(ks[6], (hidden,)),
        w2=rnd(ks[7], (hidden, dim)),
        b2=jnp.zeros((dim,), jnp.float32),
    )


def prepare_params(params, *, dim, num_heads, window_size):
    """One-time host-side prep: fold attention scale into the Q columns of
    wqkv/bqkv, pre-gather the relative-position bias to (heads, N, N), and
    pack the MLP weights for the lane-dense (tokens-on-lanes) kernel."""
    head_dim = dim // num_heads
    scale = head_dim ** (-0.5)

    wqkv = np.array(params['wqkv'], np.float32)
    bqkv = np.array(params['bqkv'], np.float32)
    wqkv[:, :dim] *= scale
    bqkv[:dim] *= scale

    N = 1
    for w in window_size:
        N *= w
    rel_index = relative_position_index_np(window_size)
    table = np.array(params['rpb_table'], np.float32)
    bias = table[rel_index.reshape(-1)].reshape(N, N, num_heads)
    bias = np.transpose(bias, (2, 0, 1)).astype(np.float32)         # (heads, N, N)

    out = dict(params)
    out['wqkv_scaled'] = jnp.asarray(wqkv)
    out['bqkv_scaled'] = jnp.asarray(bqkv)
    out['attn_bias'] = jnp.asarray(bias)
    out['w1t'] = jnp.asarray(np.array(params['w1'], np.float32).T)          # (hidden, C)
    out['w2t'] = jnp.asarray(np.array(params['w2'], np.float32).T)          # (C, hidden)
    out['b1_col'] = jnp.asarray(np.array(params['b1'], np.float32).reshape(-1, 1))
    out['b2_col'] = jnp.asarray(np.array(params['b2'], np.float32).reshape(-1, 1))
    out['ln2_g_col'] = jnp.asarray(np.array(params['ln2_g'], np.float32).reshape(-1, 1))
    out['ln2_b_col'] = jnp.asarray(np.array(params['ln2_b'], np.float32).reshape(-1, 1))
    return out


# ----------------------------- main --------------------------------------------
if __name__ == "__main__":
    key = jax.random.PRNGKey(0)
    kx, kp = jax.random.split(key)
    B, C, D, H, W = 2, DIM, 4, 8, 8
    x = jax.random.normal(kx, (B, C, D, H, W), jnp.float32)
    params = init_params(kp, DIM, NUM_HEADS, WINDOW_SIZE, MLP_RATIO)
    params = prepare_params(params, dim=DIM, num_heads=NUM_HEADS, window_size=WINDOW_SIZE)

    fwd = jax.jit(functools.partial(swin_block_forward,
                                    window_size=WINDOW_SIZE,
                                    shift_size=SHIFT_SIZE,
                                    num_heads=NUM_HEADS))
    out = fwd(x, params)
    jax.block_until_ready(out)
    assert out.shape == (B, C, D, H, W) and out.dtype == jnp.float32
    assert bool(jnp.all(jnp.isfinite(out)))
    print("KERNEL_OK")
</pallas_src>

<mosaic_0001>
module attributes {stable_mosaic.version = 11 : i64} {
  func.func @_attn_kernel(%arg0: i32, %arg1: i32, %arg2: memref<4x32x32xf32, #tpu.memory_space<vmem>>, %arg3: memref<1x32xf32, #tpu.memory_space<vmem>>, %arg4: memref<1x32xf32, #tpu.memory_space<vmem>>, %arg5: memref<32x96xf32, #tpu.memory_space<vmem>>, %arg6: memref<1x96xf32, #tpu.memory_space<vmem>>, %arg7: memref<32x32xf32, #tpu.memory_space<vmem>>, %arg8: memref<1x32xf32, #tpu.memory_space<vmem>>, %arg9: memref<4x4x32x32xf32, #tpu.memory_space<vmem>>, %arg10: memref<4x32x32xf32, #tpu.memory_space<vmem>>) attributes {dimension_semantics = [#tpu.dimension_semantics<parallel>, #tpu.dimension_semantics<parallel>], iteration_bounds = array<i64: 2, 2>, scalar_prefetch = 0 : i64, scratch_operands = 0 : i64, tpu.core_type = #tpu.core_type<tc>, window_params = [{transform_indices = @transform_0, window_bounds = array<i64: 4, 32, 32>}, {pipeline_mode = #tpu.pipeline_mode<synchronous>, transform_indices = @transform_1, window_bounds = array<i64: 1, 32>}, {pipeline_mode = #tpu.pipeline_mode<synchronous>, transform_indices = @transform_2, window_bounds = array<i64: 1, 32>}, {pipeline_mode = #tpu.pipeline_mode<synchronous>, transform_indices = @transform_3, window_bounds = array<i64: 32, 96>}, {pipeline_mode = #tpu.pipeline_mode<synchronous>, transform_indices = @transform_4, window_bounds = array<i64: 1, 96>}, {pipeline_mode = #tpu.pipeline_mode<synchronous>, transform_indices = @transform_5, window_bounds = array<i64: 32, 32>}, {pipeline_mode = #tpu.pipeline_mode<synchronous>, transform_indices = @transform_6, window_bounds = array<i64: 1, 32>}, {transform_indices = @transform_7, window_bounds = array<i64: 4, 4, 32, 32>}, {transform_indices = @transform_8, window_bounds = array<i64: 4, 32, 32>}]} {
    %c0 = arith.constant 0 : index
    %c0_0 = arith.constant 0 : index
    %c0_1 = arith.constant 0 : index
    %0 = vector.load %arg2[%c0, %c0_0, %c0_1] : memref<4x32x32xf32, #tpu.memory_space<vmem>>, vector<4x32x32xf32>
    %1 = vector.shape_cast %0 : vector<4x32x32xf32> to vector<128x32xf32>
    %c0_2 = arith.constant 0 : index
    %c0_3 = arith.constant 0 : index
    %2 = vector.load %arg3[%c0_2, %c0_3] : memref<1x32xf32, #tpu.memory_space<vmem>>, vector<1x32xf32>
    %c0_4 = arith.constant 0 : index
    %c0_5 = arith.constant 0 : index
    %3 = vector.load %arg4[%c0_4, %c0_5] : memref<1x32xf32, #tpu.memory_space<vmem>>, vector<1x32xf32>
    %cst = arith.constant dense<0.000000e+00> : vector<128xf32>
    %4 = vector.multi_reduction <add>, %1, %cst [1] : vector<128x32xf32> to vector<128xf32>
    %5 = vector.shape_cast %4 : vector<128xf32> to vector<128x1xf32>
    %cst_6 = arith.constant 3.200000e+01 : f32
    %6 = vector.broadcast %cst_6 : f32 to vector<128x1xf32>
    %7 = arith.divf %5, %6 : vector<128x1xf32>
    %8 = vector.broadcast %7 : vector<128x1xf32> to vector<128x32xf32>
    %9 = arith.subf %1, %8 : vector<128x32xf32>
    %10 = arith.mulf %9, %9 : vector<128x32xf32>
    %cst_7 = arith.constant dense<0.000000e+00> : vector<128xf32>
    %11 = vector.multi_reduction <add>, %10, %cst_7 [1] : vector<128x32xf32> to vector<128xf32>
    %12 = vector.shape_cast %11 : vector<128xf32> to vector<128x1xf32>
    %cst_8 = arith.constant 3.200000e+01 : f32
    %13 = vector.broadcast %cst_8 : f32 to vector<128x1xf32>
    %14 = arith.divf %12, %13 : vector<128x1xf32>
    %cst_9 = arith.constant 9.99999974E-6 : f32
    %15 = vector.broadcast %cst_9 : f32 to vector<128x1xf32>
    %16 = arith.addf %14, %15 : vector<128x1xf32>
    %17 = math.rsqrt %16 : vector<128x1xf32>
    %18 = vector.broadcast %17 : vector<128x1xf32> to vector<128x32xf32>
    %19 = arith.mulf %9, %18 : vector<128x32xf32>
    %20 = vector.broadcast %2 : vector<1x32xf32> to vector<128x32xf32>
    %21 = arith.mulf %19, %20 : vector<128x32xf32>
    %22 = vector.broadcast %3 : vector<1x32xf32> to vector<128x32xf32>
    %23 = arith.addf %21, %22 : vector<128x32xf32>
    %c0_10 = arith.constant 0 : index
    %c0_11 = arith.constant 0 : index
    %24 = vector.load %arg5[%c0_10, %c0_11] : memref<32x96xf32, #tpu.memory_space<vmem>>, vector<32x96xf32>
    %cst_12 = arith.constant dense<0.000000e+00> : vector<128x96xf32>
    %25 = tpu.matmul %23, %24, %cst_12 {dimension_numbers = #tpu.dot_dimension_numbers<[1], [0], [0], [1], [0, 0, 1, 1], [], []>} : vector<128x32xf32>, vector<32x96xf32>, vector<128x96xf32> -> vector<128x96xf32>
    %c0_13 = arith.constant 0 : index
    %c0_14 = arith.constant 0 : index
    %26 = vector.load %arg6[%c0_13, %c0_14] : memref<1x96xf32, #tpu.memory_space<vmem>>, vector<1x96xf32>
    %27 = vector.broadcast %26 : vector<1x96xf32> to vector<128x96xf32>
    %28 = arith.addf %25, %27 : vector<128x96xf32>
    %29 = vector.extract_strided_slice %28 {offsets = [0, 0], sizes = [128, 8], strides = [1, 1]} : vector<128x96xf32> to vector<128x8xf32>
    %30 = vector.extract_strided_slice %28 {offsets = [0, 8], sizes = [128, 8], strides = [1, 1]} : vector<128x96xf32> to vector<128x8xf32>
    %31 = vector.extract_strided_slice %28 {offsets = [0, 16], sizes = [128, 8], strides = [1, 1]} : vector<128x96xf32> to vector<128x8xf32>
    %32 = vector.extract_strided_slice %28 {offsets = [0, 24], sizes = [128, 8], strides = [1, 1]} : vector<128x96xf32> to vector<128x8xf32>
    %33 = vector.shape_cast %29 : vector<128x8xf32> to vector<1x128x8xf32>
    %34 = vector.shape_cast %30 : vector<128x8xf32> to vector<1x128x8xf32>
    %35 = vector.shape_cast %31 : vector<128x8xf32> to vector<1x128x8xf32>
    %36 = vector.shape_cast %32 : vector<128x8xf32> to vector<1x128x8xf32>
    %37 = tpu.concatenate %33, %34, %35, %36 in 0 : vector<1x128x8xf32>, vector<1x128x8xf32>, vector<1x128x8xf32>, vector<1x128x8xf32> -> vector<4x128x8xf32>
    %38 = vector.shape_cast %37 : vector<4x128x8xf32> to vector<16x32x8xf32>
    %39 = vector.extract_strided_slice %28 {offsets = [0, 32], sizes = [128, 8], strides = [1, 1]} : vector<128x96xf32> to vector<128x8xf32>
    %40 = vector.extract_strided_slice %28 {offsets = [0, 40], sizes = [128, 8], strides = [1, 1]} : vector<128x96xf32> to vector<128x8xf32>
    %41 = vector.extract_strided_slice %28 {offsets = [0, 48], sizes = [128, 8], strides = [1, 1]} : vector<128x96xf32> to vector<128x8xf32>
    %42 = vector.extract_strided_slice %28 {offsets = [0, 56], sizes = [128, 8], strides = [1, 1]} : vector<128x96xf32> to vector<128x8xf32>
    %43 = vector.shape_cast %39 : vector<128x8xf32> to vector<1x128x8xf32>
    %44 = vector.shape_cast %40 : vector<128x8xf32> to vector<1x128x8xf32>
    %45 = vector.shape_cast %41 : vector<128x8xf32> to vector<1x128x8xf32>
    %46 = vector.shape_cast %42 : vector<128x8xf32> to vector<1x128x8xf32>
    %47 = tpu.concatenate %43, %44, %45, %46 in 0 : vector<1x128x8xf32>, vector<1x128x8xf32>, vector<1x128x8xf32>, vector<1x128x8xf32> -> vector<4x128x8xf32>
    %48 = vector.shape_cast %47 : vector<4x128x8xf32> to vector<16x32x8xf32>
    %49 = vector.extract_strided_slice %28 {offsets = [0, 64], sizes = [128, 8], strides = [1, 1]} : vector<128x96xf32> to vector<128x8xf32>
    %50 = vector.extract_strided_slice %28 {offsets = [0, 72], sizes = [128, 8], strides = [1, 1]} : vector<128x96xf32> to vector<128x8xf32>
    %51 = vector.extract_strided_slice %28 {offsets = [0, 80], sizes = [128, 8], strides = [1, 1]} : vector<128x96xf32> to vector<128x8xf32>
    %52 = vector.extract_strided_slice %28 {offsets = [0, 88], sizes = [128, 8], strides = [1, 1]} : vector<128x96xf32> to vector<128x8xf32>
    %53 = vector.shape_cast %49 : vector<128x8xf32> to vector<1x128x8xf32>
    %54 = vector.shape_cast %50 : vector<128x8xf32> to vector<1x128x8xf32>
    %55 = vector.shape_cast %51 : vector<128x8xf32> to vector<1x128x8xf32>
    %56 = vector.shape_cast %52 : vector<128x8xf32> to vector<1x128x8xf32>
    %57 = tpu.concatenate %53, %54, %55, %56 in 0 : vector<1x128x8xf32>, vector<1x128x8xf32>, vector<1x128x8xf32>, vector<1x128x8xf32> -> vector<4x128x8xf32>
    %58 = vector.shape_cast %57 : vector<4x128x8xf32> to vector<16x32x8xf32>
    "tpu.trace_start"() <{level = 10 : i32, message = "bnd,bmd->bnm"}> : () -> ()
    %cst_15 = arith.constant dense<0.000000e+00> : vector<16x32x32xf32>
    %59 = tpu.matmul %38, %48, %cst_15 {dimension_numbers = #tpu.dot_dimension_numbers<[2], [2], [1], [1], [0, 0, 0, 1, 1, 1], [0], [0]>} : vector<16x32x8xf32>, vector<16x32x8xf32>, vector<16x32x32xf32> -> vector<16x32x32xf32>
    "tpu.trace_stop"() : () -> ()
    %c0_16 = arith.constant 0 : index
    %c0_17 = arith.constant 0 : index
    %c0_18 = arith.constant 0 : index
    %c0_19 = arith.constant 0 : index
    %60 = vector.load %arg9[%c0_16, %c0_17, %c0_18, %c0_19] : memref<4x4x32x32xf32, #tpu.memory_space<vmem>>, vector<4x4x32x32xf32>
    %61 = vector.shape_cast %60 : vector<4x4x32x32xf32> to vector<16x32x32xf32>
    %62 = arith.addf %59, %61 : vector<16x32x32xf32>
    %cst_20 = arith.constant dense<0xFF800000> : vector<16x32xf32>
    %63 = vector.multi_reduction <maximumf>, %62, %cst_20 [2] : vector<16x32x32xf32> to vector<16x32xf32>
    %64 = vector.shape_cast %63 : vector<16x32xf32> to vector<16x32x1xf32>
    %65 = vector.broadcast %64 : vector<16x32x1xf32> to vector<16x32x32xf32>
    %66 = arith.subf %62, %65 : vector<16x32x32xf32>
    %67 = math.exp %66 : vector<16x32x32xf32>
    %cst_21 = arith.constant dense<0.000000e+00> : vector<16x32xf32>
    %68 = vector.multi_reduction <add>, %67, %cst_21 [2] : vector<16x32x32xf32> to vector<16x32xf32>
    %69 = vector.shape_cast %68 : vector<16x32xf32> to vector<16x32x1xf32>
    %70 = vector.broadcast %69 : vector<16x32x1xf32> to vector<16x32x32xf32>
    %71 = arith.divf %67, %70 : vector<16x32x32xf32>
    "tpu.trace_start"() <{level = 10 : i32, message = "bnm,bmd->bnd"}> : () -> ()
    %cst_22 = arith.constant dense<0.000000e+00> : vector<16x32x8xf32>
    %72 = tpu.matmul %71, %58, %cst_22 {dimension_numbers = #tpu.dot_dimension_numbers<[2], [1], [1], [2], [0, 0, 0, 1, 1, 2], [0], [0]>} : vector<16x32x32xf32>, vector<16x32x8xf32>, vector<16x32x8xf32> -> vector<16x32x8xf32>
    "tpu.trace_stop"() : () -> ()
    %73 = vector.shape_cast %72 : vector<16x32x8xf32> to vector<4x128x8xf32>
    %c0_23 = arith.constant 0 : index
    %c0_24 = arith.constant 0 : index
    %74 = vector.load %arg7[%c0_23, %c0_24] : memref<32x32xf32, #tpu.memory_space<vmem>>, vector<32x32xf32>
    %cst_25 = arith.constant 0.000000e+00 : f32
    %75 = vector.broadcast %cst_25 : f32 to vector<128x32xf32>
    %76 = vector.extract_strided_slice %73 {offsets = [0, 0, 0], sizes = [1, 128, 8], strides = [1, 1, 1]} : vector<4x128x8xf32> to vector<1x128x8xf32>
    %77 = vector.shape_cast %76 : vector<1x128x8xf32> to vector<128x8xf32>
    %78 = vector.extract_strided_slice %74 {offsets = [0, 0], sizes = [8, 32], strides = [1, 1]} : vector<32x32xf32> to vector<8x32xf32>
    %cst_26 = arith.constant dense<0.000000e+00> : vector<128x32xf32>
    %79 = tpu.matmul %77, %78, %cst_26 {dimension_numbers = #tpu.dot_dimension_numbers<[1], [0], [0], [1], [0, 0, 1, 1], [], []>} : vector<128x8xf32>, vector<8x32xf32>, vector<128x32xf32> -> vector<128x32xf32>
    %80 = arith.addf %75, %79 : vector<128x32xf32>
    %81 = vector.extract_strided_slice %73 {offsets = [1, 0, 0], sizes = [1, 128, 8], strides = [1, 1, 1]} : vector<4x128x8xf32> to vector<1x128x8xf32>
    %82 = vector.shape_cast %81 : vector<1x128x8xf32> to vector<128x8xf32>
    %83 = vector.extract_strided_slice %74 {offsets = [8, 0], sizes = [8, 32], strides = [1, 1]} : vector<32x32xf32> to vector<8x32xf32>
    %cst_27 = arith.constant dense<0.000000e+00> : vector<128x32xf32>
    %84 = tpu.matmul %82, %83, %cst_27 {dimension_numbers = #tpu.dot_dimension_numbers<[1], [0], [0], [1], [0, 0, 1, 1], [], []>} : vector<128x8xf32>, vector<8x32xf32>, vector<128x32xf32> -> vector<128x32xf32>
    %85 = arith.addf %80, %84 : vector<128x32xf32>
    %86 = vector.extract_strided_slice %73 {offsets = [2, 0, 0], sizes = [1, 128, 8], strides = [1, 1, 1]} : vector<4x128x8xf32> to vector<1x128x8xf32>
    %87 = vector.shape_cast %86 : vector<1x128x8xf32> to vector<128x8xf32>
    %88 = vector.extract_strided_slice %74 {offsets = [16, 0], sizes = [8, 32], strides = [1, 1]} : vector<32x32xf32> to vector<8x32xf32>
    %cst_28 = arith.constant dense<0.000000e+00> : vector<128x32xf32>
    %89 = tpu.matmul %87, %88, %cst_28 {dimension_numbers = #tpu.dot_dimension_numbers<[1], [0], [0], [1], [0, 0, 1, 1], [], []>} : vector<128x8xf32>, vector<8x32xf32>, vector<128x32xf32> -> vector<128x32xf32>
    %90 = arith.addf %85, %89 : vector<128x32xf32>
    %91 = vector.extract_strided_slice %73 {offsets = [3, 0, 0], sizes = [1, 128, 8], strides = [1, 1, 1]} : vector<4x128x8xf32> to vector<1x128x8xf32>
    %92 = vector.shape_cast %91 : vector<1x128x8xf32> to vector<128x8xf32>
    %93 = vector.extract_strided_slice %74 {offsets = [24, 0], sizes = [8, 32], strides = [1, 1]} : vector<32x32xf32> to vector<8x32xf32>
    %cst_29 = arith.constant dense<0.000000e+00> : vector<128x32xf32>
    %94 = tpu.matmul %92, %93, %cst_29 {dimension_numbers = #tpu.dot_dimension_numbers<[1], [0], [0], [1], [0, 0, 1, 1], [], []>} : vector<128x8xf32>, vector<8x32xf32>, vector<128x32xf32> -> vector<128x32xf32>
    %95 = arith.addf %90, %94 : vector<128x32xf32>
    %c0_30 = arith.constant 0 : index
    %c0_31 = arith.constant 0 : index
    %96 = vector.load %arg8[%c0_30, %c0_31] : memref<1x32xf32, #tpu.memory_space<vmem>>, vector<1x32xf32>
    %97 = vector.broadcast %96 : vector<1x32xf32> to vector<128x32xf32>
    %98 = arith.addf %95, %97 : vector<128x32xf32>
    %99 = arith.addf %98, %1 : vector<128x32xf32>
    %100 = vector.shape_cast %99 : vector<128x32xf32> to vector<4x32x32xf32>
    %c0_32 = arith.constant 0 : index
    %c0_33 = arith.constant 0 : index
    %c0_34 = arith.constant 0 : index
    %101 = vector.load %arg10[%c0_32, %c0_33, %c0_34] : memref<4x32x32xf32, #tpu.memory_space<vmem>>, vector<4x32x32xf32>
    tpu.vector_store %arg10[%c0_32, %c0_33, %c0_34], %100 {strides = array<i32>} : memref<4x32x32xf32, #tpu.memory_space<vmem>>, vector<4x32x32xf32>,
    return
  }
  func.func @transform_0(%arg0: i32, %arg1: i32) -> (i32, i32, i32) {
    %c2_i32 = arith.constant 2 : i32
    %0 = arith.muli %arg0, %c2_i32 : i32
    %1 = arith.addi %0, %arg1 : i32
    %c0_i32 = arith.constant 0 : i32
    %c0_i32_0 = arith.constant 0 : i32
    %c0_i32_1 = arith.constant 0 : i32
    return %1, %c0_i32, %c0_i32_0 : i32, i32, i32
  }
  func.func @transform_1(%arg0: i32, %arg1: i32) -> (i32, i32) {
    %c0_i32 = arith.constant 0 : i32
    %c0_i32_0 = arith.constant 0 : i32
    %c0_i32_1 = arith.constant 0 : i32
    return %c0_i32, %c0_i32_0 : i32, i32
  }
  func.func @transform_2(%arg0: i32, %arg1: i32) -> (i32, i32) {
    %c0_i32 = arith.constant 0 : i32
    %c0_i32_0 = arith.constant 0 : i32
    %c0_i32_1 = arith.constant 0 : i32
    return %c0_i32, %c0_i32_0 : i32, i32
  }
  func.func @transform_3(%arg0: i32, %arg1: i32) -> (i32, i32) {
    %c0_i32 = arith.constant 0 : i32
    %c0_i32_0 = arith.constant 0 : i32
    %c0_i32_1 = arith.constant 0 : i32
    return %c0_i32, %c0_i32_0 : i32, i32
  }
  func.func @transform_4(%arg0: i32, %arg1: i32) -> (i32, i32) {
    %c0_i32 = arith.constant 0 : i32
    %c0_i32_0 = arith.constant 0 : i32
    %c0_i32_1 = arith.constant 0 : i32
    return %c0_i32, %c0_i32_0 : i32, i32
  }
  func.func @transform_5(%arg0: i32, %arg1: i32) -> (i32, i32) {
    %c0_i32 = arith.constant 0 : i32
    %c0_i32_0 = arith.constant 0 : i32
    %c0_i32_1 = arith.constant 0 : i32
    return %c0_i32, %c0_i32_0 : i32, i32
  }
  func.func @transform_6(%arg0: i32, %arg1: i32) -> (i32, i32) {
    %c0_i32 = arith.constant 0 : i32
    %c0_i32_0 = arith.constant 0 : i32
    %c0_i32_1 = arith.constant 0 : i32
    return %c0_i32, %c0_i32_0 : i32, i32
  }
  func.func @transform_7(%arg0: i32, %arg1: i32) -> (i32, i32, i32, i32) {
    %c0_i32 = arith.constant 0 : i32
    %c0_i32_0 = arith.constant 0 : i32
    %c0_i32_1 = arith.constant 0 : i32
    %c0_i32_2 = arith.constant 0 : i32
    return %c0_i32, %arg1, %c0_i32_0, %c0_i32_1 : i32, i32, i32, i32
  }
  func.func @transform_8(%arg0: i32, %arg1: i32) -> (i32, i32, i32) {
    %c2_i32 = arith.constant 2 : i32
    %0 = arith.muli %arg0, %c2_i32 : i32
    %1 = arith.addi %0, %arg1 : i32
    %c0_i32 = arith.constant 0 : i32
    %c0_i32_0 = arith.constant 0 : i32
    %c0_i32_1 = arith.constant 0 : i32
    return %1, %c0_i32, %c0_i32_0 : i32, i32, i32
  }
}

module attributes {stable_mosaic.version = 11 : i64} {
  func.func @_mlp_kernel(%arg0: i32, %arg1: memref<32x128xf32, #tpu.memory_space<vmem>>, %arg2: memref<32x1xf32, #tpu.memory_space<vmem>>, %arg3: memref<32x1xf32, #tpu.memory_space<vmem>>, %arg4: memref<128x32xf32, #tpu.memory_space<vmem>>, %arg5: memref<128x1xf32, #tpu.memory_space<vmem>>, %arg6: memref<32x128xf32, #tpu.memory_space<vmem>>, %arg7: memref<32x1xf32, #tpu.memory_space<vmem>>, %arg8: memref<32x128xf32, #tpu.memory_space<vmem>>) attributes {dimension_semantics = [#tpu.dimension_semantics<parallel>], iteration_bounds = array<i64: 4>, scalar_prefetch = 0 : i64, scratch_operands = 0 : i64, tpu.core_type = #tpu.core_type<tc>, window_params = [{transform_indices = @transform_0, window_bounds = array<i64: 32, 128>}, {pipeline_mode = #tpu.pipeline_mode<synchronous>, transform_indices = @transform_1, window_bounds = array<i64: 32, 1>}, {pipeline_mode = #tpu.pipeline_mode<synchronous>, transform_indices = @transform_2, window_bounds = array<i64: 32, 1>}, {pipeline_mode = #tpu.pipeline_mode<synchronous>, transform_indices = @transform_3, window_bounds = array<i64: 128, 32>}, {pipeline_mode = #tpu.pipeline_mode<synchronous>, transform_indices = @transform_4, window_bounds = array<i64: 128, 1>}, {pipeline_mode = #tpu.pipeline_mode<synchronous>, transform_indices = @transform_5, window_bounds = array<i64: 32, 128>}, {pipeline_mode = #tpu.pipeline_mode<synchronous>, transform_indices = @transform_6, window_bounds = array<i64: 32, 1>}, {transform_indices = @transform_7, window_bounds = array<i64: 32, 128>}]} {
    %c0 = arith.constant 0 : index
    %c0_0 = arith.constant 0 : index
    %0 = vector.load %arg1[%c0, %c0_0] : memref<32x128xf32, #tpu.memory_space<vmem>>, vector<32x128xf32>
    %cst = arith.constant dense<0.000000e+00> : vector<128xf32>
    %1 = vector.multi_reduction <add>, %0, %cst [0] : vector<32x128xf32> to vector<128xf32>
    %2 = vector.shape_cast %1 : vector<128xf32> to vector<1x128xf32>
    %cst_1 = arith.constant 3.200000e+01 : f32
    %3 = vector.broadcast %cst_1 : f32 to vector<1x128xf32>
    %4 = arith.divf %2, %3 : vector<1x128xf32>
    %5 = vector.broadcast %4 : vector<1x128xf32> to vector<32x128xf32>
    %6 = arith.subf %0, %5 : vector<32x128xf32>
    %7 = arith.mulf %6, %6 : vector<32x128xf32>
    %cst_2 = arith.constant dense<0.000000e+00> : vector<128xf32>
    %8 = vector.multi_reduction <add>, %7, %cst_2 [0] : vector<32x128xf32> to vector<128xf32>
    %9 = vector.shape_cast %8 : vector<128xf32> to vector<1x128xf32>
    %cst_3 = arith.constant 3.200000e+01 : f32
    %10 = vector.broadcast %cst_3 : f32 to vector<1x128xf32>
    %11 = arith.divf %9, %10 : vector<1x128xf32>
    %cst_4 = arith.constant 9.99999974E-6 : f32
    %12 = vector.broadcast %cst_4 : f32 to vector<1x128xf32>
    %13 = arith.addf %11, %12 : vector<1x128xf32>
    %14 = math.rsqrt %13 : vector<1x128xf32>
    %15 = vector.broadcast %14 : vector<1x128xf32> to vector<32x128xf32>
    %16 = arith.mulf %6, %15 : vector<32x128xf32>
    %c0_5 = arith.constant 0 : index
    %c0_6 = arith.constant 0 : index
    %17 = vector.load %arg2[%c0_5, %c0_6] : memref<32x1xf32, #tpu.memory_space<vmem>>, vector<32x1xf32>
    %18 = vector.broadcast %17 : vector<32x1xf32> to vector<32x128xf32>
    %19 = arith.mulf %16, %18 : vector<32x128xf32>
    %c0_7 = arith.constant 0 : index
    %c0_8 = arith.constant 0 : index
    %20 = vector.load %arg3[%c0_7, %c0_8] : memref<32x1xf32, #tpu.memory_space<vmem>>, vector<32x1xf32>
    %21 = vector.broadcast %20 : vector<32x1xf32> to vector<32x128xf32>
    %22 = arith.addf %19, %21 : vector<32x128xf32>
    %c0_9 = arith.constant 0 : index
    %c0_10 = arith.constant 0 : index
    %23 = vector.load %arg4[%c0_9, %c0_10] : memref<128x32xf32, #tpu.memory_space<vmem>>, vector<128x32xf32>
    %cst_11 = arith.constant dense<0.000000e+00> : vector<128x128xf32>
    %24 = tpu.matmul %23, %22, %cst_11 {dimension_numbers = #tpu.dot_dimension_numbers<[1], [0], [0], [1], [0, 0, 1, 1], [], []>} : vector<128x32xf32>, vector<32x128xf32>, vector<128x128xf32> -> vector<128x128xf32>
    %c0_12 = arith.constant 0 : index
    %c0_13 = arith.constant 0 : index
    %25 = vector.load %arg5[%c0_12, %c0_13] : memref<128x1xf32, #tpu.memory_space<vmem>>, vector<128x1xf32>
    %26 = vector.broadcast %25 : vector<128x1xf32> to vector<128x128xf32>
    %27 = arith.addf %24, %26 : vector<128x128xf32>
    %cst_14 = arith.constant 5.000000e-01 : f32
    %28 = vector.broadcast %cst_14 : f32 to vector<128x128xf32>
    %29 = arith.mulf %28, %27 : vector<128x128xf32>
    %cst_15 = arith.constant 0.707106769 : f32
    %30 = vector.broadcast %cst_15 : f32 to vector<128x128xf32>
    %31 = arith.mulf %27, %30 : vector<128x128xf32>
    %cst_16 = arith.constant 0.000000e+00 : f32
    %32 = vector.broadcast %cst_16 : f32 to vector<128x128xf32>
    %33 = arith.cmpf oge, %31, %32 : vector<128x128xf32>
    %cst_17 = arith.constant 1.000000e+00 : f32
    %cst_18 = arith.constant -1.000000e+00 : f32
    %34 = vector.broadcast %cst_17 : f32 to vector<128x128xf32>
    %35 = vector.broadcast %cst_18 : f32 to vector<128x128xf32>
    %36 = arith.select %33, %34, %35 : vector<128x128xi1>, vector<128x128xf32>
    %37 = math.absf %31 : vector<128x128xf32>
    %cst_19 = arith.constant 0.327591091 : f32
    %38 = vector.broadcast %cst_19 : f32 to vector<128x128xf32>
    %39 = arith.mulf %38, %37 : vector<128x128xf32>
    %cst_20 = arith.constant 1.000000e+00 : f32
    %40 = vector.broadcast %cst_20 : f32 to vector<128x128xf32>
    %41 = arith.addf %40, %39 : vector<128x128xf32>
    %cst_21 = arith.constant 1.000000e+00 : f32
    %42 = vector.broadcast %cst_21 : f32 to vector<128x128xf32>
    %43 = arith.divf %42, %41 : vector<128x128xf32>
    %cst_22 = arith.constant 1.06140542 : f32
    %44 = vector.broadcast %cst_22 : f32 to vector<128x128xf32>
    %45 = arith.mulf %44, %43 : vector<128x128xf32>
    %cst_23 = arith.constant -1.45315206 : f32
    %46 = vector.broadcast %cst_23 : f32 to vector<128x128xf32>
    %47 = arith.addf %45, %46 : vector<128x128xf32>
    %48 = arith.mulf %47, %43 : vector<128x128xf32>
    %cst_24 = arith.constant 1.42141378 : f32
    %49 = vector.broadcast %cst_24 : f32 to vector<128x128xf32>
    %50 = arith.addf %48, %49 : vector<128x128xf32>
    %51 = arith.mulf %50, %43 : vector<128x128xf32>
    %cst_25 = arith.constant -0.284496725 : f32
    %52 = vector.broadcast %cst_25 : f32 to vector<128x128xf32>
    %53 = arith.addf %51, %52 : vector<128x128xf32>
    %54 = arith.mulf %53, %43 : vector<128x128xf32>
    %cst_26 = arith.constant 0.254829586 : f32
    %55 = vector.broadcast %cst_26 : f32 to vector<128x128xf32>
    %56 = arith.addf %54, %55 : vector<128x128xf32>
    %57 = arith.mulf %56, %43 : vector<128x128xf32>
    %cst_27 = arith.constant 0.000000e+00 : f32
    %58 = vector.broadcast %cst_27 : f32 to vector<128x128xf32>
    %59 = arith.subf %58, %37 : vector<128x128xf32>
    %60 = arith.mulf %59, %37 : vector<128x128xf32>
    %61 = math.exp %60 : vector<128x128xf32>
    %62 = arith.mulf %57, %61 : vector<128x128xf32>
    %cst_28 = arith.constant 1.000000e+00 : f32
    %63 = vector.broadcast %cst_28 : f32 to vector<128x128xf32>
    %64 = arith.subf %63, %62 : vector<128x128xf32>
    %65 = arith.mulf %36, %64 : vector<128x128xf32>
    %cst_29 = arith.constant 1.000000e+00 : f32
    %66 = vector.broadcast %cst_29 : f32 to vector<128x128xf32>
    %67 = arith.addf %66, %65 : vector<128x128xf32>
    %68 = arith.mulf %29, %67 : vector<128x128xf32>
    %c0_30 = arith.constant 0 : index
    %c0_31 = arith.constant 0 : index
    %69 = vector.load %arg6[%c0_30, %c0_31] : memref<32x128xf32, #tpu.memory_space<vmem>>, vector<32x128xf32>
    %cst_32 = arith.constant dense<0.000000e+00> : vector<32x128xf32>
    %70 = tpu.matmul %69, %68, %cst_32 {dimension_numbers = #tpu.dot_dimension_numbers<[1], [0], [0], [1], [0, 0, 1, 1], [], []>} : vector<32x128xf32>, vector<128x128xf32>, vector<32x128xf32> -> vector<32x128xf32>
    %c0_33 = arith.constant 0 : index
    %c0_34 = arith.constant 0 : index
    %71 = vector.load %arg7[%c0_33, %c0_34] : memref<32x1xf32, #tpu.memory_space<vmem>>, vector<32x1xf32>
    %72 = vector.broadcast %71 : vector<32x1xf32> to vector<32x128xf32>
    %73 = arith.addf %70, %72 : vector<32x128xf32>
    %74 = arith.addf %0, %73 : vector<32x128xf32>
    %c0_35 = arith.constant 0 : index
    %c0_36 = arith.constant 0 : index
    %75 = vector.load %arg8[%c0_35, %c0_36] : memref<32x128xf32, #tpu.memory_space<vmem>>, vector<32x128xf32>
    tpu.vector_store %arg8[%c0_35, %c0_36], %74 {strides = array<i32>} : memref<32x128xf32, #tpu.memory_space<vmem>>, vector<32x128xf32>,
    return
  }
  func.func @transform_0(%arg0: i32) -> (i32, i32) {
    %c0_i32 = arith.constant 0 : i32
    %c0_i32_0 = arith.constant 0 : i32
    return %c0_i32, %arg0 : i32, i32
  }
  func.func @transform_1(%arg0: i32) -> (i32, i32) {
    %c0_i32 = arith.constant 0 : i32
    %c0_i32_0 = arith.constant 0 : i32
    %c0_i32_1 = arith.constant 0 : i32
    return %c0_i32, %c0_i32_0 : i32, i32
  }
  func.func @transform_2(%arg0: i32) -> (i32, i32) {
    %c0_i32 = arith.constant 0 : i32
    %c0_i32_0 = arith.constant 0 : i32
    %c0_i32_1 = arith.constant 0 : i32
    return %c0_i32, %c0_i32_0 : i32, i32
  }
  func.func @transform_3(%arg0: i32) -> (i32, i32) {
    %c0_i32 = arith.constant 0 : i32
    %c0_i32_0 = arith.constant 0 : i32
    %c0_i32_1 = arith.constant 0 : i32
    return %c0_i32, %c0_i32_0 : i32, i32
  }
  func.func @transform_4(%arg0: i32) -> (i32, i32) {
    %c0_i32 = arith.constant 0 : i32
    %c0_i32_0 = arith.constant 0 : i32
    %c0_i32_1 = arith.constant 0 : i32
    return %c0_i32, %c0_i32_0 : i32, i32
  }
  func.func @transform_5(%arg0: i32) -> (i32, i32) {
    %c0_i32 = arith.constant 0 : i32
    %c0_i32_0 = arith.constant 0 : i32
    %c0_i32_1 = arith.constant 0 : i32
    return %c0_i32, %c0_i32_0 : i32, i32
  }
  func.func @transform_6(%arg0: i32) -> (i32, i32) {
    %c0_i32 = arith.constant 0 : i32
    %c0_i32_0 = arith.constant 0 : i32
    %c0_i32_1 = arith.constant 0 : i32
    return %c0_i32, %c0_i32_0 : i32, i32
  }
  func.func @transform_7(%arg0: i32) -> (i32, i32) {
    %c0_i32 = arith.constant 0 : i32
    %c0_i32_0 = arith.constant 0 : i32
    return %c0_i32, %arg0 : i32, i32
  }
}

</mosaic_0001>

<llo_original>
// kernel: swin_block_forward.3
$region0: #{swin_block_forward.3}
  #allocation0 [shape = 'u32[]', space=smem, size = 0x4, offset = 0x4, fixed_abs, tag = 'smem constant byte address 0x4 - core index']
  #allocation1 [shape = 'u32[72,128]{1,0:T(1,128)}', space=vmem, size = 0x9000, scoped, tag = 'internal scratch']
  %s0 = inlined_call_operand.vmem [shape: f32[32,512], index: 0, kind: input, shape index: {}, may-alias: {0,7}]
  %s1 = inlined_call_operand.vmem [shape: f32[32,1], index: 1, kind: input, shape index: {}]
  %s2 = inlined_call_operand.vmem [shape: f32[32,1], index: 2, kind: input, shape index: {}]
  %s3 = inlined_call_operand.vmem [shape: f32[128,32], index: 3, kind: input, shape index: {}]
  %s4 = inlined_call_operand.vmem [shape: f32[128,1], index: 4, kind: input, shape index: {}]
  %s5 = inlined_call_operand.vmem [shape: f32[32,128], index: 5, kind: input, shape index: {}]
  %s6 = inlined_call_operand.vmem [shape: f32[32,1], index: 6, kind: input, shape index: {}]
  %s7 = inlined_call_operand.vmem [shape: f32[32,512], index: 7, kind: output, shape index: {}, may-alias: {0,7}]
  %s8 = sld [smem:[#allocation0]]
  $region133: #{swin_block_forward.3} parent=0
    _
  %s10 = ssub.s32 1, %s8
  %s11 = scalar_select 0, %s10, %s8
  $region1: #{swin_block_forward.3} parent=0
    #allocation2 [shape = 'u8[32768]{0}', space=vmem, size = 0x8000, scoped, tag = 'input window, operand 0']
    #allocation3 [shape = 'u8[32768]{0}', space=vmem, size = 0x8000, scoped, tag = 'output window, operand 0']
    loop: start=0, step=1, limit=6
    $region2: #{swin_block_forward.3} parent=1 // loop_pre_header
      _
    $region3: #{swin_block_forward.3} parent=1 // loop_header
      %s13 = sphi 0, %s17
      %p14 = scmp.ge.s32.totalorder %s13, 6
      %s23 = sphi 0, %s25
      %s26 = sphi 0, %s23
      %s27 = sphi 0, %s26
      %s43 = sphi 0, %s27
      %s47 = sphi 0, %s47
      %s49 = sphi 0, %s47
      %s50 = sphi 0, %s49
      %s64 = sphi 0, %s50
      %s68 = sphi 0, %s68
      %s70 = sphi 0, %s68
      %s71 = sphi 0, %s70
      %s85 = sphi 0, %s71
      %s89 = sphi 0, %s89
      %s91 = sphi 0, %s89
      %s92 = sphi 0, %s91
      %s106 = sphi 0, %s92
      %s110 = sphi 0, %s110
      %s112 = sphi 0, %s110
      %s113 = sphi 0, %s112
      %s127 = sphi 0, %s113
      %s131 = sphi 0, %s131
      %s133 = sphi 0, %s131
      %s134 = sphi 0, %s133
      %s148 = sphi 0, %s134
      %s152 = sphi 0, %s152
      %s154 = sphi 0, %s152
      %s155 = sphi 0, %s154
      %s169 = sphi 0, %s155
      %s175 = sphi 0, %s177
      %s178 = sphi 0, %s175
      %s179 = sphi 0, %s178
      %s195 = sphi 0, %s179
    $region4: #{swin_block_forward.3} parent=1 // loop_header_branch
      %16 = sbr.rel (%p14) target = $region8
    $region5: #{swin_block_forward.3} parent=1 // loop_body
      %s18 = ssub.s32 %s13, 1
      %s19 = ssub.s32 %s13, 2
      %s20 = sadd.s32 %s13, 1
      %s21 = ssub.s32 %s13, %s20
      %p22 = scmp.eq.s32.totalorder %s21, 0
      %s24 = sadd.s32 %s23, 1
      %s25 = scalar_select %p22, %s23, %s24
      %p28 = pneg %p22
      %p29 = scmp.eq.s32.totalorder %s13, 3
      %p30 = por %p28, %p29
      %p31 = scmp.ne.s32.totalorder %s23, %s26
      %p32 = scmp.eq.s32.totalorder %s13, 0
      %p33 = por %p31, %p32
      %p34 = scmp.ne.s32.totalorder %s23, %s26
      %p35 = scmp.eq.s32.totalorder %s18, 3
      %p36 = por %p34, %p35
      %p37 = scmp.ne.s32.totalorder %s26, %s27
      %p38 = scmp.eq.s32.totalorder %s18, 0
      %p39 = por %p37, %p38
      %p40 = scmp.ne.s32.totalorder %s26, %s27
      %p41 = scmp.eq.s32.totalorder %s19, 3
      %p42 = por %p40, %p41
      %p44 = scmp.ne.s32.totalorder %s27, %s43
      %p45 = scmp.eq.s32.totalorder %s19, 0
      %p46 = por %p44, %p45
      %s48 = sadd.s32 %s47, 1
      %p51 = scmp.eq.s32.totalorder %s13, 3
      %p52 = scmp.ne.s32.totalorder %s47, %s49
      %p53 = scmp.eq.s32.totalorder %s13, 0
      %p54 = por %p52, %p53
      %p55 = scmp.ne.s32.totalorder %s47, %s49
      %p56 = scmp.eq.s32.totalorder %s18, 3
      %p57 = por %p55, %p56
      %p58 = scmp.ne.s32.totalorder %s49, %s50
      %p59 = scmp.eq.s32.totalorder %s18, 0
      %p60 = por %p58, %p59
      %p61 = scmp.ne.s32.totalorder %s49, %s50
      %p62 = scmp.eq.s32.totalorder %s19, 3
      %p63 = por %p61, %p62
      %p65 = scmp.ne.s32.totalorder %s50, %s64
      %p66 = scmp.eq.s32.totalorder %s19, 0
      %p67 = por %p65, %p66
      %s69 = sadd.s32 %s68, 1
      %p72 = scmp.eq.s32.totalorder %s13, 3
      %p73 = scmp.ne.s32.totalorder %s68, %s70
      %p74 = scmp.eq.s32.totalorder %s13, 0
      %p75 = por %p73, %p74
      %p76 = scmp.ne.s32.totalorder %s68, %s70
      %p77 = scmp.eq.s32.totalorder %s18, 3
      %p78 = por %p76, %p77
      %p79 = scmp.ne.s32.totalorder %s70, %s71
      %p80 = scmp.eq.s32.totalorder %s18, 0
      %p81 = por %p79, %p80
      %p82 = scmp.ne.s32.totalorder %s70, %s71
      %p83 = scmp.eq.s32.totalorder %s19, 3
      %p84 = por %p82, %p83
      %p86 = scmp.ne.s32.totalorder %s71, %s85
      %p87 = scmp.eq.s32.totalorder %s19, 0
      %p88 = por %p86, %p87
      %s90 = sadd.s32 %s89, 1
      %p93 = scmp.eq.s32.totalorder %s13, 3
      %p94 = scmp.ne.s32.totalorder %s89, %s91
      %p95 = scmp.eq.s32.totalorder %s13, 0
      %p96 = por %p94, %p95
      %p97 = scmp.ne.s32.totalorder %s89, %s91
      %p98 = scmp.eq.s32.totalorder %s18, 3
      %p99 = por %p97, %p98
      %p100 = scmp.ne.s32.totalorder %s91, %s92
      %p101 = scmp.eq.s32.totalorder %s18, 0
      %p102 = por %p100, %p101
      %p103 = scmp.ne.s32.totalorder %s91, %s92
      %p104 = scmp.eq.s32.totalorder %s19, 3
      %p105 = por %p103, %p104
      %p107 = scmp.ne.s32.totalorder %s92, %s106
      %p108 = scmp.eq.s32.totalorder %s19, 0
      %p109 = por %p107, %p108
      %s111 = sadd.s32 %s110, 1
      %p114 = scmp.eq.s32.totalorder %s13, 3
      %p115 = scmp.ne.s32.totalorder %s110, %s112
      %p116 = scmp.eq.s32.totalorder %s13, 0
      %p117 = por %p115, %p116
      %p118 = scmp.ne.s32.totalorder %s110, %s112
      %p119 = scmp.eq.s32.totalorder %s18, 3
      %p120 = por %p118, %p119
      %p121 = scmp.ne.s32.totalorder %s112, %s113
      %p122 = scmp.eq.s32.totalorder %s18, 0
      %p123 = por %p121, %p122
      %p124 = scmp.ne.s32.totalorder %s112, %s113
      %p125 = scmp.eq.s32.totalorder %s19, 3
      %p126 = por %p124, %p125
      %p128 = scmp.ne.s32.totalorder %s113, %s127
      %p129 = scmp.eq.s32.totalorder %s19, 0
      %p130 = por %p128, %p129
      %s132 = sadd.s32 %s131, 1
      %p135 = scmp.eq.s32.totalorder %s13, 3
      %p136 = scmp.ne.s32.totalorder %s131, %s133
      %p137 = scmp.eq.s32.totalorder %s13, 0
      %p138 = por %p136, %p137
      %p139 = scmp.ne.s32.totalorder %s131, %s133
      %p140 = scmp.eq.s32.totalorder %s18, 3
      %p141 = por %p139, %p140
      %p142 = scmp.ne.s32.totalorder %s133, %s134
      %p143 = scmp.eq.s32.totalorder %s18, 0
      %p144 = por %p142, %p143
      %p145 = scmp.ne.s32.totalorder %s133, %s134
      %p146 = scmp.eq.s32.totalorder %s19, 3
      %p147 = por %p145, %p146
      %p149 = scmp.ne.s32.totalorder %s134, %s148
      %p150 = scmp.eq.s32.totalorder %s19, 0
      %p151 = por %p149, %p150
      %s153 = sadd.s32 %s152, 1
      %p156 = scmp.eq.s32.totalorder %s13, 3
      %p157 = scmp.ne.s32.totalorder %s152, %s154
      %p158 = scmp.eq.s32.totalorder %s13, 0
      %p159 = por %p157, %p158
      %p160 = scmp.ne.s32.totalorder %s152, %s154
      %p161 = scmp.eq.s32.totalorder %s18, 3
      %p162 = por %p160, %p161
      %p163 = scmp.ne.s32.totalorder %s154, %s155
      %p164 = scmp.eq.s32.totalorder %s18, 0
      %p165 = por %p163, %p164
      %p166 = scmp.ne.s32.totalorder %s154, %s155
      %p167 = scmp.eq.s32.totalorder %s19, 3
      %p168 = por %p166, %p167
      %p170 = scmp.ne.s32.totalorder %s155, %s169
      %p171 = scmp.eq.s32.totalorder %s19, 0
      %p172 = por %p170, %p171
      %s173 = ssub.s32 %s13, %s20
      %p174 = scmp.eq.s32.totalorder %s173, 0
      %s176 = sadd.s32 %s175, 1
      %s177 = scalar_select %p174, %s175, %s176
      %p180 = pneg %p174
      %p181 = scmp.eq.s32.totalorder %s13, 3
      %p182 = por %p180, %p181
      %p183 = scmp.ne.s32.totalorder %s175, %s178
      %p184 = scmp.eq.s32.totalorder %s13, 0
      %p185 = por %p183, %p184
      %p186 = scmp.ne.s32.totalorder %s175, %s178
      %p187 = scmp.eq.s32.totalorder %s18, 3
      %p188 = por %p186, %p187
      %p189 = scmp.ne.s32.totalorder %s178, %s179
      %p190 = scmp.eq.s32.totalorder %s18, 0
      %p191 = por %p189, %p190
      %p192 = scmp.ne.s32.totalorder %s178, %s179
      %p193 = scmp.eq.s32.totalorder %s19, 3
      %p194 = por %p192, %p193
      %p196 = scmp.ne.s32.totalorder %s179, %s195
      %p197 = scmp.eq.s32.totalorder %s19, 0
      %p198 = por %p196, %p197
      %p199 = scmp.le.s32.totalorder 1, %s13
      %p200 = scmp.lt.s32.totalorder %s13, 5
      %p201 = pnand %p199, %p200
      %p202 = pneg %p201
      // Predicated region
      $region9: #{swin_block_forward.3} parent=5 // pred_check
        _
      $region10: #{swin_block_forward.3} parent=5 // pred_check_branch
        %204 = sbr.rel (%p201) target = $region12
      $region11: #{swin_block_forward.3} parent=5 // pred_region
        %s205 = ssub.s32 %s13, 1
        // Predicated region
        $region13: #{swin_block_forward.3} parent=11 // pred_check
          %p206 = pneg %p60
        $region14: #{swin_block_forward.3} parent=11 // pred_check_branch
          %208 = sbr.rel (%p206) target = $region16
        $region15: #{swin_block_forward.3} parent=11 // pred_region
          _
        $region16: #{swin_block_forward.3} parent=11 // pred_fallthru
          _
        // Predicated region
        $region17: #{swin_block_forward.3} parent=11 // pred_check
          %p209 = pneg %p81
        $region18: #{swin_block_forward.3} parent=11 // pred_check_branch
          %211 = sbr.rel (%p209) target = $region20
        $region19: #{swin_block_forward.3} parent=11 // pred_region
          _
        $region20: #{swin_block_forward.3} parent=11 // pred_fallthru
          _
        // Predicated region
        $region21: #{swin_block_forward.3} parent=11 // pred_check
          %p212 = pneg %p102
        $region22: #{swin_block_forward.3} parent=11 // pred_check_branch
          %214 = sbr.rel (%p212) target = $region24
        $region23: #{swin_block_forward.3} parent=11 // pred_region
          _
        $region24: #{swin_block_forward.3} parent=11 // pred_fallthru
          _
        // Predicated region
        $region25: #{swin_block_forward.3} parent=11 // pred_check
          %p215 = pneg %p123
        $region26: #{swin_block_forward.3} parent=11 // pred_check_branch
          %217 = sbr.rel (%p215) target = $region28
        $region27: #{swin_block_forward.3} parent=11 // pred_region
          _
        $region28: #{swin_block_forward.3} parent=11 // pred_fallthru
          _
        // Predicated region
        $region29: #{swin_block_forward.3} parent=11 // pred_check
          %p218 = pneg %p144
        $region30: #{swin_block_forward.3} parent=11 // pred_check_branch
          %220 = sbr.rel (%p218) target = $region32
        $region31: #{swin_block_forward.3} parent=11 // pred_region
          _
        $region32: #{swin_block_forward.3} parent=11 // pred_fallthru
          _
        // Predicated region
        $region33: #{swin_block_forward.3} parent=11 // pred_check
          %p221 = pneg %p165
        $region34: #{swin_block_forward.3} parent=11 // pred_check_branch
          %223 = sbr.rel (%p221) target = $region36
        $region35: #{swin_block_forward.3} parent=11 // pred_region
          _
        $region36: #{swin_block_forward.3} parent=11 // pred_fallthru
          _
      $region12: #{swin_block_forward.3} parent=5 // pred_fallthru
        _
      %p224 = scmp.lt.s32.totalorder %s13, 4
      // Predicated region
      $region37: #{swin_block_forward.3} parent=5 // pred_check
        %p225 = pneg %p224
      $region38: #{swin_block_forward.3} parent=5 // pred_check_branch
        %227 = sbr.rel (%p225) target = $region40
      $region39: #{swin_block_forward.3} parent=5 // pred_region
        // Predicated region
        $region41: #{swin_block_forward.3} parent=39 // pred_check
          %p228 = pneg %p33
        $region42: #{swin_block_forward.3} parent=39 // pred_check_branch
          %230 = sbr.rel (%p228) target = $region44
        $region43: #{swin_block_forward.3} parent=39 // pred_region
          %s231 = sand.u32 %s23, 1
          %s232 = sand.u32 %s23, 1
          %s233 = smul.addr %s232, 32
          %s234 = scalar_lea.vmem [#allocation2], %s233
          %s235 = smul.addr %s13, 8
          %s236 = scalar_lea.vmem %s0, %s235
          // Predicated region
          $region45: #{swin_block_forward.3} parent=43 // pred_check
            _
          $region46: #{swin_block_forward.3} parent=43 // pred_check_branch
            %238 = sbr.rel (0) target = $region48
          $region47: #{swin_block_forward.3} parent=43 // pred_region
            // Predicated region
            $region49: #{swin_block_forward.3} parent=47 // pred_check
              _
            $region50: #{swin_block_forward.3} parent=47 // pred_check_branch
              %240 = sbr.rel (0) target = $region52
            $region51: #{swin_block_forward.3} parent=47 // pred_region
              // Predicated region
              $region64: #{swin_block_forward.3} parent=51 // pred_check
                _
              $region65: #{swin_block_forward.3} parent=51 // pred_check_branch
                %262 = sbr.rel (0) target = $region67
              $region66: #{swin_block_forward.3} parent=51 // pred_region
                loop: start=0, step=1, limit=1
                $region68: #{swin_block_forward.3} parent=66 // loop_pre_header
                  _
                $region69: #{swin_block_forward.3} parent=66 // loop_header
                  %s264 = sphi 0, %s268
                  %p265 = scmp.ge.s32.totalorder %s264, 1
                  %s269 = sphi %s236, %s236
                  %s270 = sphi %s234, %s234
                $region70: #{swin_block_forward.3} parent=66 // loop_header_branch
                  %267 = sbr.rel (%p265) target = $region74
                $region71: #{swin_block_forward.3} parent=66 // loop_body
                  %v271 = vld [vmem:[%s269] sm:$0xff]
                  %272 = vst [vmem:[%s270] sm:$0xff] %v271
                  %v273 = vld [vmem:[%s269 + $0x20] sm:$0xff]
                  %274 = vst [vmem:[%s270 + $0x8] sm:$0xff] %v273
                  %v275 = vld [vmem:[%s269 + $0x40] sm:$0xff]
                  %276 = vst [vmem:[%s270 + $0x10] sm:$0xff] %v275
                  %v277 = vld [vmem:[%s269 + $0x60] sm:$0xff]
                  %278 = vst [vmem:[%s270 + $0x18] sm:$0xff] %v277
                $region72: #{swin_block_forward.3} parent=66 // loop_footer
                  %s268 = sadd.s32 1, %s264
                $region73: #{swin_block_forward.3} parent=66 // loop_footer_branch
                  %263 = sbr.rel target = $region69
                $region74: #{swin_block_forward.3} parent=66 // loop_exit
                  _
              $region67: #{swin_block_forward.3} parent=51 // pred_fallthru
                _
              // Predicated region
              $region75: #{swin_block_forward.3} parent=51 // pred_check
                _
              $region76: #{swin_block_forward.3} parent=51 // pred_check_branch
                %280 = sbr.rel target = $region78
              $region77: #{swin_block_forward.3} parent=51 // pred_region
                _
              $region78: #{swin_block_forward.3} parent=51 // pred_fallthru
                _
            $region52: #{swin_block_forward.3} parent=47 // pred_fallthru
              _
            // Predicated region
            $region53: #{swin_block_forward.3} parent=47 // pred_check
              _
            $region54: #{swin_block_forward.3} parent=47 // pred_check_branch
              %242 = sbr.rel target = $region56
            $region55: #{swin_block_forward.3} parent=47 // pred_region
              %s244 = ssub.s32 256, 1
              loop: start=0, step=1, limit=1
              $region57: #{swin_block_forward.3} parent=55 // loop_pre_header
                _
              $region58: #{swin_block_forward.3} parent=55 // loop_header
                %s246 = sphi 0, %s250
                %p247 = scmp.ge.s32.totalorder %s246, 1
                %s251 = sphi %s236, %s236
                %s252 = sphi %s234, %s234
              $region59: #{swin_block_forward.3} parent=55 // loop_header_branch
                %249 = sbr.rel (%p247) target = $region63
              $region60: #{swin_block_forward.3} parent=55 // loop_body
                %v253 = vld [vmem:[%s251] sm:%s244]
                %254 = vst [vmem:[%s252] sm:%s244] %v253
                %v255 = vld [vmem:[%s251 + $0x20] sm:%s244]
                %256 = vst [vmem:[%s252 + $0x8] sm:%s244] %v255
                %v257 = vld [vmem:[%s251 + $0x40] sm:%s244]
                %258 = vst [vmem:[%s252 + $0x10] sm:%s244] %v257
                %v259 = vld [vmem:[%s251 + $0x60] sm:%s244]
                %260 = vst [vmem:[%s252 + $0x18] sm:%s244] %v259
              $region61: #{swin_block_forward.3} parent=55 // loop_footer
                %s250 = sadd.s32 1, %s246
              $region62: #{swin_block_forward.3} parent=55 // loop_footer_branch
                %245 = sbr.rel target = $region58
              $region63: #{swin_block_forward.3} parent=55 // loop_exit
                _
            $region56: #{swin_block_forward.3} parent=47 // pred_fallthru
              _
          $region48: #{swin_block_forward.3} parent=43 // pred_fallthru
            _
          %281 = vnop
        $region44: #{swin_block_forward.3} parent=39 // pred_fallthru
          _
      $region40: #{swin_block_forward.3} parent=5 // pred_fallthru
        _
      %p282 = scmp.le.s32.totalorder 1, %s13
      %p283 = scmp.lt.s32.totalorder %s13, 5
      %p284 = pnand %p282, %p283
      %p285 = pneg %p284
      // Predicated region
      $region79: #{swin_block_forward.3} parent=5 // pred_check
        _
      $region80: #{swin_block_forward.3} parent=5 // pred_check_branch
        %287 = sbr.rel (%p284) target = $region82
      $region81: #{swin_block_forward.3} parent=5 // pred_region
        %s288 = ssub.s32 %s13, 1
        %s289 = sand.u32 %s26, 1
        %s290 = sand.u32 %s26, 1
        %s291 = smul.addr %s290, 32
        %s292 = scalar_lea.vmem [#allocation2], %s291
        // Predicated region
        $region83: #{swin_block_forward.3} parent=81 // pred_check
          %p293 = pneg %p39
        $region84: #{swin_block_forward.3} parent=81 // pred_check_branch
          %295 = sbr.rel (%p293) target = $region86
        $region85: #{swin_block_forward.3} parent=81 // pred_region
          _
        $region86: #{swin_block_forward.3} parent=81 // pred_fallthru
          _
        %s296 = sand.u32 %s26, 1
        %s297 = sand.u32 %s26, 1
        %s298 = smul.addr %s297, 32
        %s299 = scalar_lea.vmem [#allocation2], %s298
        %p300 = pneg %p39
        %p301 = pneg %p36
        %p302 = pneg %p60
        %p303 = pneg %p57
        %p304 = pneg %p81
        %p305 = pneg %p78
        %p306 = pneg %p102
        %p307 = pneg %p99
        %p308 = pneg %p123
        %p309 = pneg %p120
        %p310 = pneg %p144
        %p311 = pneg %p141
        %p312 = pneg %p165
        %p313 = pneg %p162
        %p314 = pneg %p191
        %p315 = pneg %p188
        %s316 = sand.u32 %s178, 1
        %s317 = sand.u32 %s178, 1
        %s318 = smul.addr %s317, 32
        %s319 = scalar_lea.vmem [#allocation3], %s318
        %v320 = vld [vmem:[%s292] sm:$0xff]
        %v321 = vld [vmem:[%s292 + $0x8] sm:$0xff]
        %v322 = vld [vmem:[%s292 + $0x10] sm:$0xff]
        %v323 = vld [vmem:[%s292 + $0x18] sm:$0xff]
        %v324 = vadd.f32 %v320, %v321
        %v325 = vadd.f32 %v324, %v322
        %v326 = vadd.f32 %v325, %v323
        %v327 = vrot.slane %v326, 4
        %v328 = vadd.f32 %v326, %v327
        %v329 = vrot.slane %v328, 2
        %v330 = vadd.f32 %v328, %v329
        %v331 = vrot.slane %v330, 1
        %v332 = vadd.f32 %v330, %v331
        %v333 = vrcp.pop 32.0
        %v334 = vmul.f32 32.0, %v333
        %v335 = vsub.f32 1.0, %v334
        %v336 = vmul.f32 %v333, %v335
        %v337 = vadd.f32 %v333, %v336
        %vm338 = vweird.f32 %v333
        %v339 = vsel %vm338, %v333, %v337
        %v340 = vmul.f32 %v332, %v339
        %v341 = vsub.f32 %v320, %v340
        %v342 = vsub.f32 %v321, %v340
        %v343 = vsub.f32 %v322, %v340
        %v344 = vsub.f32 %v323, %v340
        %v345 = vmul.f32 %v341, %v341
        %v346 = vmul.f32 %v342, %v342
        %v347 = vmul.f32 %v343, %v343
        %v348 = vmul.f32 %v344, %v344
        %v349 = vadd.f32 %v345, %v346
        %v350 = vadd.f32 %v349, %v347
        %v351 = vadd.f32 %v350, %v348
        %v352 = vrot.slane %v351, 4
        %v353 = vadd.f32 %v351, %v352
        %v354 = vrot.slane %v353, 2
        %v355 = vadd.f32 %v353, %v354
        %v356 = vrot.slane %v355, 1
        %v357 = vadd.f32 %v355, %v356
        %v358 = vmul.f32 %v357, %v339
        %v359 = vadd.f32 %v358, 1e-05
        %v360 = vrsqrt.pop %v359
        %v361 = vmul.f32 %v360, %v359
        %v362 = vmul.f32 %v361, %v360
        %v363 = vmul.f32 0.5, %v362
        %v364 = vsub.f32 1.5, %v363
        %v365 = vmul.f32 %v360, %v364
        %vm366 = vweird.f32 %v359
        %vm367 = vweird.f32 %v360
        %vm368 = vmor %vm366, %vm367
        %v369 = vsel %vm368, %v360, %v365
        %v370 = vmul.f32 %v341, %v369
        %v371 = vmul.f32 %v342, %v369
        %v372 = vmul.f32 %v343, %v369
        %v373 = vmul.f32 %v344, %v369
        %v374 = vld [vmem:[%s1] sm:$0xff]
        %v375 = vld [vmem:[%s1 + $0x8] sm:$0xff]
        %v376 = vld [vmem:[%s1 + $0x10] sm:$0xff]
        %v377 = vld [vmem:[%s1 + $0x18] sm:$0xff]
        %379 = vset.pattern.permute.xlu0 0
        %380 = vperm.xlu0 %379, %v374
        %v381 = vpop.permute.xlu0 %380
        %384 = vset.pattern.permute.xlu0 0
        %385 = vperm.xlu0 %384, %v375
        %v386 = vpop.permute.xlu0 %385
        %389 = vset.pattern.permute.xlu0 0
        %390 = vperm.xlu0 %389, %v376
        %v391 = vpop.permute.xlu0 %390
        %394 = vset.pattern.permute.xlu0 0
        %395 = vperm.xlu0 %394, %v377
        %v396 = vpop.permute.xlu0 %395
        %v398 = vmul.f32 %v370, %v381
        %v399 = vmul.f32 %v371, %v386
        %v400 = vmul.f32 %v372, %v391
        %v401 = vmul.f32 %v373, %v396
        %v402 = vld [vmem:[%s2] sm:$0xff]
        %v403 = vld [vmem:[%s2 + $0x8] sm:$0xff]
        %v404 = vld [vmem:[%s2 + $0x10] sm:$0xff]
        %v405 = vld [vmem:[%s2 + $0x18] sm:$0xff]
        %407 = vset.pattern.permute.xlu0 0
        %408 = vperm.xlu0 %407, %v402
        %v409 = vpop.permute.xlu0 %408
        %412 = vset.pattern.permute.xlu0 0
        %413 = vperm.xlu0 %412, %v403
        %v414 = vpop.permute.xlu0 %413
        %417 = vset.pattern.permute.xlu0 0
        %418 = vperm.xlu0 %417, %v404
        %v419 = vpop.permute.xlu0 %418
        %422 = vset.pattern.permute.xlu0 0
        %423 = vperm.xlu0 %422, %v405
        %v424 = vpop.permute.xlu0 %423
        %v426 = vadd.f32 %v398, %v409
        %v427 = vadd.f32 %v399, %v414
        %v428 = vadd.f32 %v400, %v419
        %v429 = vadd.f32 %v401, %v424
        %v430 = vld [vmem:[%s3] sm:$0xff]
        %v431 = vld [vmem:[%s3 + $0x8] sm:$0xff]
        %v432 = vld [vmem:[%s3 + $0x10] sm:$0xff]
        %v433 = vld [vmem:[%s3 + $0x18] sm:$0xff]
        %v434 = vld [vmem:[%s3 + $0x20] sm:$0xff]
        %v435 = vld [vmem:[%s3 + $0x28] sm:$0xff]
        %v436 = vld [vmem:[%s3 + $0x30] sm:$0xff]
        %v437 = vld [vmem:[%s3 + $0x38] sm:$0xff]
        %v438 = vld [vmem:[%s3 + $0x40] sm:$0xff]
        %v439 = vld [vmem:[%s3 + $0x48] sm:$0xff]
        %v440 = vld [vmem:[%s3 + $0x50] sm:$0xff]
        %v441 = vld [vmem:[%s3 + $0x58] sm:$0xff]
        %v442 = vld [vmem:[%s3 + $0x60] sm:$0xff]
        %v443 = vld [vmem:[%s3 + $0x68] sm:$0xff]
        %v444 = vld [vmem:[%s3 + $0x70] sm:$0xff]
        %v445 = vld [vmem:[%s3 + $0x78] sm:$0xff]
        %v446 = vld [vmem:[%s4] sm:$0xff]
        %v447 = vld [vmem:[%s4 + $0x8] sm:$0xff]
        %v448 = vld [vmem:[%s4 + $0x10] sm:$0xff]
        %v449 = vld [vmem:[%s4 + $0x18] sm:$0xff]
        %v450 = vld [vmem:[%s4 + $0x20] sm:$0xff]
        %v451 = vld [vmem:[%s4 + $0x28] sm:$0xff]
        %v452 = vld [vmem:[%s4 + $0x30] sm:$0xff]
        %v453 = vld [vmem:[%s4 + $0x38] sm:$0xff]
        %v454 = vld [vmem:[%s4 + $0x40] sm:$0xff]
        %v455 = vld [vmem:[%s4 + $0x48] sm:$0xff]
        %v456 = vld [vmem:[%s4 + $0x50] sm:$0xff]
        %v457 = vld [vmem:[%s4 + $0x58] sm:$0xff]
        %v458 = vld [vmem:[%s4 + $0x60] sm:$0xff]
        %v459 = vld [vmem:[%s4 + $0x68] sm:$0xff]
        %v460 = vld [vmem:[%s4 + $0x70] sm:$0xff]
        %v461 = vld [vmem:[%s4 + $0x78] sm:$0xff]
        %463 = vset.pattern.permute.xlu0 0
        %464 = vperm.xlu0 %463, %v446
        %v465 = vpop.permute.xlu0 %464
        %468 = vset.pattern.permute.xlu0 0
        %469 = vperm.xlu0 %468, %v447
        %v470 = vpop.permute.xlu0 %469
        %473 = vset.pattern.permute.xlu0 0
        %474 = vperm.xlu0 %473, %v448
        %v475 = vpop.permute.xlu0 %474
        %478 = vset.pattern.permute.xlu0 0
        %479 = vperm.xlu0 %478, %v449
        %v480 = vpop.permute.xlu0 %479
        %483 = vset.pattern.permute.xlu0 0
        %484 = vperm.xlu0 %483, %v450
        %v485 = vpop.permute.xlu0 %484
        %488 = vset.pattern.permute.xlu0 0
        %489 = vperm.xlu0 %488, %v451
        %v490 = vpop.permute.xlu0 %489
        %493 = vset.pattern.permute.xlu0 0
        %494 = vperm.xlu0 %493, %v452
        %v495 = vpop.permute.xlu0 %494
        %498 = vset.pattern.permute.xlu0 0
        %499 = vperm.xlu0 %498, %v453
        %v500 = vpop.permute.xlu0 %499
        %503 = vset.pattern.permute.xlu0 0
        %504 = vperm.xlu0 %503, %v454
        %v505 = vpop.permute.xlu0 %504
        %508 = vset.pattern.permute.xlu0 0
        %509 = vperm.xlu0 %508, %v455
        %v510 = vpop.permute.xlu0 %509
        %513 = vset.pattern.permute.xlu0 0
        %514 = vperm.xlu0 %513, %v456
        %v515 = vpop.permute.xlu0 %514
        %518 = vset.pattern.permute.xlu0 0
        %519 = vperm.xlu0 %518, %v457
        %v520 = vpop.permute.xlu0 %519
        %523 = vset.pattern.permute.xlu0 0
        %524 = vperm.xlu0 %523, %v458
        %v525 = vpop.permute.xlu0 %524
        %528 = vset.pattern.permute.xlu0 0
        %529 = vperm.xlu0 %528, %v459
        %v530 = vpop.permute.xlu0 %529
        %533 = vset.pattern.permute.xlu0 0
        %534 = vperm.xlu0 %533, %v460
        %v535 = vpop.permute.xlu0 %534
        %538 = vset.pattern.permute.xlu0 0
        %539 = vperm.xlu0 %538, %v461
        %v540 = vpop.permute.xlu0 %539
        %vm542 = vcmask 261120
        %v544 = vsel %vm542, %v430, 0
        %v547 = vsel %vm542, %v431, 0
        %v550 = vsel %vm542, %v432, 0
        %v553 = vsel %vm542, %v433, 0
        %v556 = vsel %vm542, %v434, 0
        %v559 = vsel %vm542, %v435, 0
        %v562 = vsel %vm542, %v436, 0
        %v565 = vsel %vm542, %v437, 0
        %v568 = vsel %vm542, %v438, 0
        %v571 = vsel %vm542, %v439, 0
        %v574 = vsel %vm542, %v440, 0
        %v577 = vsel %vm542, %v441, 0
        %v580 = vsel %vm542, %v442, 0
        %v583 = vsel %vm542, %v443, 0
        %v586 = vsel %vm542, %v444, 0
        %v589 = vsel %vm542, %v445, 0
        %591 = vmatpush.msra.mxu0 0.0
        %592 = vmatpush.msra.mxu0 0.0
        %593 = vmatpush.msra.mxu0 0.0
        %594 = vmatpush.msra.mxu0 0.0
        %595 = vmatpush.msra.mxu0 0.0
        %596 = vmatpush.msra.mxu0 0.0
        %597 = vmatpush.msra.mxu0 0.0
        %598 = vmatpush.msra.mxu0 0.0
        %599 = vmatpush.msra.mxu0 0.0
        %600 = vmatpush.msra.mxu0 0.0
        %601 = vmatpush.msra.mxu0 0.0
        %602 = vmatpush.msra.mxu0 0.0
        %603 = vmatpush.msra.mxu0 %v429
        %604 = vmatpush.msra.mxu0 %v428
        %605 = vmatpush.msra.mxu0 %v427
        %606 = vmatpush.msra.mxu0 %v426
        %607 = vmatmul.f32.gmra.mxu0 %v544
        %v608 = vpop.f32.mrf.mxu0
        %v609 = vadd.f32 %v465, %v608
        %610 = vmatmul.f32.gmra.mxu0 %v547
        %v611 = vpop.f32.mrf.mxu0
        %v612 = vadd.f32 %v470, %v611
        %613 = vmatmul.f32.gmra.mxu0 %v550
        %v614 = vpop.f32.mrf.mxu0
        %v615 = vadd.f32 %v475, %v614
        %616 = vmatmul.f32.gmra.mxu0 %v553
        %v617 = vpop.f32.mrf.mxu0
        %v618 = vadd.f32 %v480, %v617
        %619 = vmatmul.f32.gmra.mxu0 %v556
        %v620 = vpop.f32.mrf.mxu0
        %v621 = vadd.f32 %v485, %v620
        %622 = vmatmul.f32.gmra.mxu0 %v559
        %v623 = vpop.f32.mrf.mxu0
        %v624 = vadd.f32 %v490, %v623
        %625 = vmatmul.f32.gmra.mxu0 %v562
        %v626 = vpop.f32.mrf.mxu0
        %v627 = vadd.f32 %v495, %v626
        %628 = vmatmul.f32.gmra.mxu0 %v565
        %v629 = vpop.f32.mrf.mxu0
        %v630 = vadd.f32 %v500, %v629
        %631 = vmatmul.f32.gmra.mxu0 %v568
        %v632 = vpop.f32.mrf.mxu0
        %v633 = vadd.f32 %v505, %v632
        %634 = vmatmul.f32.gmra.mxu0 %v571
        %v635 = vpop.f32.mrf.mxu0
        %v636 = vadd.f32 %v510, %v635
        %637 = vmatmul.f32.gmra.mxu0 %v574
        %v638 = vpop.f32.mrf.mxu0
        %v639 = vadd.f32 %v515, %v638
        %640 = vmatmul.f32.gmra.mxu0 %v577
        %v641 = vpop.f32.mrf.mxu0
        %v642 = vadd.f32 %v520, %v641
        %643 = vmatmul.f32.gmra.mxu0 %v580
        %v644 = vpop.f32.mrf.mxu0
        %v645 = vadd.f32 %v525, %v644
        %646 = vmatmul.f32.gmra.mxu0 %v583
        %v647 = vpop.f32.mrf.mxu0
        %v648 = vadd.f32 %v530, %v647
        %649 = vmatmul.f32.gmra.mxu0 %v586
        %v650 = vpop.f32.mrf.mxu0
        %v651 = vadd.f32 %v535, %v650
        %652 = vmatmul.f32.gmra.mxu0 %v589
        %v653 = vpop.f32.mrf.mxu0
        %v654 = vadd.f32 %v540, %v653
        %655 = vdwg.mxu0
        %v656 = vmul.f32 %v609, 0.5
        %v657 = vmul.f32 %v612, 0.5
        %v658 = vmul.f32 %v615, 0.5
        %v659 = vmul.f32 %v618, 0.5
        %v660 = vmul.f32 %v621, 0.5
        %v661 = vmul.f32 %v624, 0.5
        %v662 = vmul.f32 %v627, 0.5
        %v663 = vmul.f32 %v630, 0.5
        %v664 = vmul.f32 %v633, 0.5
        %v665 = vmul.f32 %v636, 0.5
        %v666 = vmul.f32 %v639, 0.5
        %v667 = vmul.f32 %v642, 0.5
        %v668 = vmul.f32 %v645, 0.5
        %v669 = vmul.f32 %v648, 0.5
        %v670 = vmul.f32 %v651, 0.5
        %v671 = vmul.f32 %v654, 0.5
        %v672 = vmul.f32 %v609, 0.70710677
        %v673 = vmul.f32 %v612, 0.70710677
        %v674 = vmul.f32 %v615, 0.70710677
        %v675 = vmul.f32 %v618, 0.70710677
        %v676 = vmul.f32 %v621, 0.70710677
        %v677 = vmul.f32 %v624, 0.70710677
        %v678 = vmul.f32 %v627, 0.70710677
        %v679 = vmul.f32 %v630, 0.70710677
        %v680 = vmul.f32 %v633, 0.70710677
        %v681 = vmul.f32 %v636, 0.70710677
        %v682 = vmul.f32 %v639, 0.70710677
        %v683 = vmul.f32 %v642, 0.70710677
        %v684 = vmul.f32 %v645, 0.70710677
        %v685 = vmul.f32 %v648, 0.70710677
        %v686 = vmul.f32 %v651, 0.70710677
        %v687 = vmul.f32 %v654, 0.70710677
        %vm688 = vcmp.ge.f32.partialorder %v672, 0.0
        %vm689 = vcmp.ge.f32.partialorder %v673, 0.0
        %vm690 = vcmp.ge.f32.partialorder %v674, 0.0
        %vm691 = vcmp.ge.f32.partialorder %v675, 0.0
        %vm692 = vcmp.ge.f32.partialorder %v676, 0.0
        %vm693 = vcmp.ge.f32.partialorder %v677, 0.0
        %vm694 = vcmp.ge.f32.partialorder %v678, 0.0
        %vm695 = vcmp.ge.f32.partialorder %v679, 0.0
        %vm696 = vcmp.ge.f32.partialorder %v680, 0.0
        %vm697 = vcmp.ge.f32.partialorder %v681, 0.0
        %vm698 = vcmp.ge.f32.partialorder %v682, 0.0
        %vm699 = vcmp.ge.f32.partialorder %v683, 0.0
        %vm700 = vcmp.ge.f32.partialorder %v684, 0.0
        %vm701 = vcmp.ge.f32.partialorder %v685, 0.0
        %vm702 = vcmp.ge.f32.partialorder %v686, 0.0
        %vm703 = vcmp.ge.f32.partialorder %v687, 0.0
        %v704 = vsel %vm688, 1.0, -1.0
        %v705 = vsel %vm689, 1.0, -1.0
        %v706 = vsel %vm690, 1.0, -1.0
        %v707 = vsel %vm691, 1.0, -1.0
        %v708 = vsel %vm692, 1.0, -1.0
        %v709 = vsel %vm693, 1.0, -1.0
        %v710 = vsel %vm694, 1.0, -1.0
        %v711 = vsel %vm695, 1.0, -1.0
        %v712 = vsel %vm696, 1.0, -1.0
        %v713 = vsel %vm697, 1.0, -1.0
        %v714 = vsel %vm698, 1.0, -1.0
        %v715 = vsel %vm699, 1.0, -1.0
        %v716 = vsel %vm700, 1.0, -1.0
        %v717 = vsel %vm701, 1.0, -1.0
        %v718 = vsel %vm702, 1.0, -1.0
        %v719 = vsel %vm703, 1.0, -1.0
        %v720 = vand.u32 2147483647, %v672
        %v721 = vand.u32 2147483647, %v673
        %v722 = vand.u32 2147483647, %v674
        %v723 = vand.u32 2147483647, %v675
        %v724 = vand.u32 2147483647, %v676
        %v725 = vand.u32 2147483647, %v677
        %v726 = vand.u32 2147483647, %v678
        %v727 = vand.u32 2147483647, %v679
        %v728 = vand.u32 2147483647, %v680
        %v729 = vand.u32 2147483647, %v681
        %v730 = vand.u32 2147483647, %v682
        %v731 = vand.u32 2147483647, %v683
        %v732 = vand.u32 2147483647, %v684
        %v733 = vand.u32 2147483647, %v685
        %v734 = vand.u32 2147483647, %v686
        %v735 = vand.u32 2147483647, %v687
        %v736 = vmul.f32 %v720, 0.3275911
        %v737 = vmul.f32 %v721, 0.3275911
        %v738 = vmul.f32 %v722, 0.3275911
        %v739 = vmul.f32 %v723, 0.3275911
        %v740 = vmul.f32 %v724, 0.3275911
        %v741 = vmul.f32 %v725, 0.3275911
        %v742 = vmul.f32 %v726, 0.3275911
        %v743 = vmul.f32 %v727, 0.3275911
        %v744 = vmul.f32 %v728, 0.3275911
        %v745 = vmul.f32 %v729, 0.3275911
        %v746 = vmul.f32 %v730, 0.3275911
        %v747 = vmul.f32 %v731, 0.3275911
        %v748 = vmul.f32 %v732, 0.3275911
        %v749 = vmul.f32 %v733, 0.3275911
        %v750 = vmul.f32 %v734, 0.3275911
        %v751 = vmul.f32 %v735, 0.3275911
        %v752 = vadd.f32 %v736, 1.0
        %v753 = vadd.f32 %v737, 1.0
        %v754 = vadd.f32 %v738, 1.0
        %v755 = vadd.f32 %v739, 1.0
        %v756 = vadd.f32 %v740, 1.0
        %v757 = vadd.f32 %v741, 1.0
        %v758 = vadd.f32 %v742, 1.0
        %v759 = vadd.f32 %v743, 1.0
        %v760 = vadd.f32 %v744, 1.0
        %v761 = vadd.f32 %v745, 1.0
        %v762 = vadd.f32 %v746, 1.0
        %v763 = vadd.f32 %v747, 1.0
        %v764 = vadd.f32 %v748, 1.0
        %v765 = vadd.f32 %v749, 1.0
        %v766 = vadd.f32 %v750, 1.0
        %v767 = vadd.f32 %v751, 1.0
        %v768 = vrcp.pop %v752
        %v769 = vmul.f32 %v752, %v768
        %v770 = vsub.f32 1.0, %v769
        %v771 = vmul.f32 %v768, %v770
        %v772 = vadd.f32 %v768, %v771
        %vm773 = vweird.f32 %v752
        %vm774 = vweird.f32 %v768
        %vm775 = vmor %vm773, %vm774
        %v776 = vsel %vm775, %v768, %v772
        %v777 = vand.u32 2147483647, %v752
        %vm778 = vcmp.eq.f32.partialorder %v777, 8.507059e+37
        %v779 = vand.u32 %v752, 2147483648
        %v780 = vor.u32 1.1754944e-38, %v779
        %v781 = vsel %vm778, %v780, %v776
        %v782 = vmul.f32 1.0, %v781
        %v783 = vrcp.pop %v753
        %v784 = vmul.f32 %v753, %v783
        %v785 = vsub.f32 1.0, %v784
        %v786 = vmul.f32 %v783, %v785
        %v787 = vadd.f32 %v783, %v786
        %vm788 = vweird.f32 %v753
        %vm789 = vweird.f32 %v783
        %vm790 = vmor %vm788, %vm789
        %v791 = vsel %vm790, %v783, %v787
        %v792 = vand.u32 2147483647, %v753
        %vm793 = vcmp.eq.f32.partialorder %v792, 8.507059e+37
        %v794 = vand.u32 %v753, 2147483648
        %v795 = vor.u32 1.1754944e-38, %v794
        %v796 = vsel %vm793, %v795, %v791
        %v797 = vmul.f32 1.0, %v796
        %v798 = vrcp.pop %v754
        %v799 = vmul.f32 %v754, %v798
        %v800 = vsub.f32 1.0, %v799
        %v801 = vmul.f32 %v798, %v800
        %v802 = vadd.f32 %v798, %v801
        %vm803 = vweird.f32 %v754
        %vm804 = vweird.f32 %v798
        %vm805 = vmor %vm803, %vm804
        %v806 = vsel %vm805, %v798, %v802
        %v807 = vand.u32 2147483647, %v754
        %vm808 = vcmp.eq.f32.partialorder %v807, 8.507059e+37
        %v809 = vand.u32 %v754, 2147483648
        %v810 = vor.u32 1.1754944e-38, %v809
        %v811 = vsel %vm808, %v810, %v806
        %v812 = vmul.f32 1.0, %v811
        %v813 = vrcp.pop %v755
        %v814 = vmul.f32 %v755, %v813
        %v815 = vsub.f32 1.0, %v814
        %v816 = vmul.f32 %v813, %v815
        %v817 = vadd.f32 %v813, %v816
        %vm818 = vweird.f32 %v755
        %vm819 = vweird.f32 %v813
        %vm820 = vmor %vm818, %vm819
        %v821 = vsel %vm820, %v813, %v817
        %v822 = vand.u32 2147483647, %v755
        %vm823 = vcmp.eq.f32.partialorder %v822, 8.507059e+37
        %v824 = vand.u32 %v755, 2147483648
        %v825 = vor.u32 1.1754944e-38, %v824
        %v826 = vsel %vm823, %v825, %v821
        %v827 = vmul.f32 1.0, %v826
        %v828 = vrcp.pop %v756
        %v829 = vmul.f32 %v756, %v828
        %v830 = vsub.f32 1.0, %v829
        %v831 = vmul.f32 %v828, %v830
        %v832 = vadd.f32 %v828, %v831
        %vm833 = vweird.f32 %v756
        %vm834 = vweird.f32 %v828
        %vm835 = vmor %vm833, %vm834
        %v836 = vsel %vm835, %v828, %v832
        %v837 = vand.u32 2147483647, %v756
        %vm838 = vcmp.eq.f32.partialorder %v837, 8.507059e+37
        %v839 = vand.u32 %v756, 2147483648
        %v840 = vor.u32 1.1754944e-38, %v839
        %v841 = vsel %vm838, %v840, %v836
        %v842 = vmul.f32 1.0, %v841
        %v843 = vrcp.pop %v757
        %v844 = vmul.f32 %v757, %v843
        %v845 = vsub.f32 1.0, %v844
        %v846 = vmul.f32 %v843, %v845
        %v847 = vadd.f32 %v843, %v846
        %vm848 = vweird.f32 %v757
        %vm849 = vweird.f32 %v843
        %vm850 = vmor %vm848, %vm849
        %v851 = vsel %vm850, %v843, %v847
        %v852 = vand.u32 2147483647, %v757
        %vm853 = vcmp.eq.f32.partialorder %v852, 8.507059e+37
        %v854 = vand.u32 %v757, 2147483648
        %v855 = vor.u32 1.1754944e-38, %v854
        %v856 = vsel %vm853, %v855, %v851
        %v857 = vmul.f32 1.0, %v856
        %v858 = vrcp.pop %v758
        %v859 = vmul.f32 %v758, %v858
        %v860 = vsub.f32 1.0, %v859
        %v861 = vmul.f32 %v858, %v860
        %v862 = vadd.f32 %v858, %v861
        %vm863 = vweird.f32 %v758
        %vm864 = vweird.f32 %v858
        %vm865 = vmor %vm863, %vm864
        %v866 = vsel %vm865, %v858, %v862
        %v867 = vand.u32 2147483647, %v758
        %vm868 = vcmp.eq.f32.partialorder %v867, 8.507059e+37
        %v869 = vand.u32 %v758, 2147483648
        %v870 = vor.u32 1.1754944e-38, %v869
        %v871 = vsel %vm868, %v870, %v866
        %v872 = vmul.f32 1.0, %v871
        %v873 = vrcp.pop %v759
        %v874 = vmul.f32 %v759, %v873
        %v875 = vsub.f32 1.0, %v874
        %v876 = vmul.f32 %v873, %v875
        %v877 = vadd.f32 %v873, %v876
        %vm878 = vweird.f32 %v759
        %vm879 = vweird.f32 %v873
        %vm880 = vmor %vm878, %vm879
        %v881 = vsel %vm880, %v873, %v877
        %v882 = vand.u32 2147483647, %v759
        %vm883 = vcmp.eq.f32.partialorder %v882, 8.507059e+37
        %v884 = vand.u32 %v759, 2147483648
        %v885 = vor.u32 1.1754944e-38, %v884
        %v886 = vsel %vm883, %v885, %v881
        %v887 = vmul.f32 1.0, %v886
        %v888 = vrcp.pop %v760
        %v889 = vmul.f32 %v760, %v888
        %v890 = vsub.f32 1.0, %v889
        %v891 = vmul.f32 %v888, %v890
        %v892 = vadd.f32 %v888, %v891
        %vm893 = vweird.f32 %v760
        %vm894 = vweird.f32 %v888
        %vm895 = vmor %vm893, %vm894
        %v896 = vsel %vm895, %v888, %v892
        %v897 = vand.u32 2147483647, %v760
        %vm898 = vcmp.eq.f32.partialorder %v897, 8.507059e+37
        %v899 = vand.u32 %v760, 2147483648
        %v900 = vor.u32 1.1754944e-38, %v899
        %v901 = vsel %vm898, %v900, %v896
        %v902 = vmul.f32 1.0, %v901
        %v903 = vrcp.pop %v761
        %v904 = vmul.f32 %v761, %v903
        %v905 = vsub.f32 1.0, %v904
        %v906 = vmul.f32 %v903, %v905
        %v907 = vadd.f32 %v903, %v906
        %vm908 = vweird.f32 %v761
        %vm909 = vweird.f32 %v903
        %vm910 = vmor %vm908, %vm909
        %v911 = vsel %vm910, %v903, %v907
        %v912 = vand.u32 2147483647, %v761
        %vm913 = vcmp.eq.f32.partialorder %v912, 8.507059e+37
        %v914 = vand.u32 %v761, 2147483648
        %v915 = vor.u32 1.1754944e-38, %v914
        %v916 = vsel %vm913, %v915, %v911
        %v917 = vmul.f32 1.0, %v916
        %v918 = vrcp.pop %v762
        %v919 = vmul.f32 %v762, %v918
        %v920 = vsub.f32 1.0, %v919
        %v921 = vmul.f32 %v918, %v920
        %v922 = vadd.f32 %v918, %v921
        %vm923 = vweird.f32 %v762
        %vm924 = vweird.f32 %v918
        %vm925 = vmor %vm923, %vm924
        %v926 = vsel %vm925, %v918, %v922
        %v927 = vand.u32 2147483647, %v762
        %vm928 = vcmp.eq.f32.partialorder %v927, 8.507059e+37
        %v929 = vand.u32 %v762, 2147483648
        %v930 = vor.u32 1.1754944e-38, %v929
        %v931 = vsel %vm928, %v930, %v926
        %v932 = vmul.f32 1.0, %v931
        %v933 = vrcp.pop %v763
        %v934 = vmul.f32 %v763, %v933
        %v935 = vsub.f32 1.0, %v934
        %v936 = vmul.f32 %v933, %v935
        %v937 = vadd.f32 %v933, %v936
        %vm938 = vweird.f32 %v763
        %vm939 = vweird.f32 %v933
        %vm940 = vmor %vm938, %vm939
        %v941 = vsel %vm940, %v933, %v937
        %v942 = vand.u32 2147483647, %v763
        %vm943 = vcmp.eq.f32.partialorder %v942, 8.507059e+37
        %v944 = vand.u32 %v763, 2147483648
        %v945 = vor.u32 1.1754944e-38, %v944
        %v946 = vsel %vm943, %v945, %v941
        %v947 = vmul.f32 1.0, %v946
        %v948 = vrcp.pop %v764
        %v949 = vmul.f32 %v764, %v948
        %v950 = vsub.f32 1.0, %v949
        %v951 = vmul.f32 %v948, %v950
        %v952 = vadd.f32 %v948, %v951
        %vm953 = vweird.f32 %v764
        %vm954 = vweird.f32 %v948
        %vm955 = vmor %vm953, %vm954
        %v956 = vsel %vm955, %v948, %v952
        %v957 = vand.u32 2147483647, %v764
        %vm958 = vcmp.eq.f32.partialorder %v957, 8.507059e+37
        %v959 = vand.u32 %v764, 2147483648
        %v960 = vor.u32 1.1754944e-38, %v959
        %v961 = vsel %vm958, %v960, %v956
        %v962 = vmul.f32 1.0, %v961
        %v963 = vrcp.pop %v765
        %v964 = vmul.f32 %v765, %v963
        %v965 = vsub.f32 1.0, %v964
        %v966 = vmul.f32 %v963, %v965
        %v967 = vadd.f32 %v963, %v966
        %vm968 = vweird.f32 %v765
        %vm969 = vweird.f32 %v963
        %vm970 = vmor %vm968, %vm969
        %v971 = vsel %vm970, %v963, %v967
        %v972 = vand.u32 2147483647, %v765
        %vm973 = vcmp.eq.f32.partialorder %v972, 8.507059e+37
        %v974 = vand.u32 %v765, 2147483648
        %v975 = vor.u32 1.1754944e-38, %v974
        %v976 = vsel %vm973, %v975, %v971
        %v977 = vmul.f32 1.0, %v976
        %v978 = vrcp.pop %v766
        %v979 = vmul.f32 %v766, %v978
        %v980 = vsub.f32 1.0, %v979
        %v981 = vmul.f32 %v978, %v980
        %v982 = vadd.f32 %v978, %v981
        %vm983 = vweird.f32 %v766
        %vm984 = vweird.f32 %v978
        %vm985 = vmor %vm983, %vm984
        %v986 = vsel %vm985, %v978, %v982
        %v987 = vand.u32 2147483647, %v766
        %vm988 = vcmp.eq.f32.partialorder %v987, 8.507059e+37
        %v989 = vand.u32 %v766, 2147483648
        %v990 = vor.u32 1.1754944e-38, %v989
        %v991 = vsel %vm988, %v990, %v986
        %v992 = vmul.f32 1.0, %v991
        %v993 = vrcp.pop %v767
        %v994 = vmul.f32 %v767, %v993
        %v995 = vsub.f32 1.0, %v994
        %v996 = vmul.f32 %v993, %v995
        %v997 = vadd.f32 %v993, %v996
        %vm998 = vweird.f32 %v767
        %vm999 = vweird.f32 %v993
        %vm1000 = vmor %vm998, %vm999
        %v1001 = vsel %vm1000, %v993, %v997
        %v1002 = vand.u32 2147483647, %v767
        %vm1003 = vcmp.eq.f32.partialorder %v1002, 8.507059e+37
        %v1004 = vand.u32 %v767, 2147483648
        %v1005 = vor.u32 1.1754944e-38, %v1004
        %v1006 = vsel %vm1003, %v1005, %v1001
        %v1007 = vmul.f32 1.0, %v1006
        %v1008 = vmul.f32 %v782, 1.0614054
        %v1009 = vmul.f32 %v797, 1.0614054
        %v1010 = vmul.f32 %v812, 1.0614054
        %v1011 = vmul.f32 %v827, 1.0614054
        %v1012 = vmul.f32 %v842, 1.0614054
        %v1013 = vmul.f32 %v857, 1.0614054
        %v1014 = vmul.f32 %v872, 1.0614054
        %v1015 = vmul.f32 %v887, 1.0614054
        %v1016 = vmul.f32 %v902, 1.0614054
        %v1017 = vmul.f32 %v917, 1.0614054
        %v1018 = vmul.f32 %v932, 1.0614054
        %v1019 = vmul.f32 %v947, 1.0614054
        %v1020 = vmul.f32 %v962, 1.0614054
        %v1021 = vmul.f32 %v977, 1.0614054
        %v1022 = vmul.f32 %v992, 1.0614054
        %v1023 = vmul.f32 %v1007, 1.0614054
        %v1024 = vadd.f32 %v1008, -1.4531521
        %v1025 = vadd.f32 %v1009, -1.4531521
        %v1026 = vadd.f32 %v1010, -1.4531521
        %v1027 = vadd.f32 %v1011, -1.4531521
        %v1028 = vadd.f32 %v1012, -1.4531521
        %v1029 = vadd.f32 %v1013, -1.4531521
        %v1030 = vadd.f32 %v1014, -1.4531521
        %v1031 = vadd.f32 %v1015, -1.4531521
        %v1032 = vadd.f32 %v1016, -1.4531521
        %v1033 = vadd.f32 %v1017, -1.4531521
        %v1034 = vadd.f32 %v1018, -1.4531521
        %v1035 = vadd.f32 %v1019, -1.4531521
        %v1036 = vadd.f32 %v1020, -1.4531521
        %v1037 = vadd.f32 %v1021, -1.4531521
        %v1038 = vadd.f32 %v1022, -1.4531521
        %v1039 = vadd.f32 %v1023, -1.4531521
        %v1040 = vmul.f32 %v1024, %v782
        %v1041 = vmul.f32 %v1025, %v797
        %v1042 = vmul.f32 %v1026, %v812
        %v1043 = vmul.f32 %v1027, %v827
        %v1044 = vmul.f32 %v1028, %v842
        %v1045 = vmul.f32 %v1029, %v857
        %v1046 = vmul.f32 %v1030, %v872
        %v1047 = vmul.f32 %v1031, %v887
        %v1048 = vmul.f32 %v1032, %v902
        %v1049 = vmul.f32 %v1033, %v917
        %v1050 = vmul.f32 %v1034, %v932
        %v1051 = vmul.f32 %v1035, %v947
        %v1052 = vmul.f32 %v1036, %v962
        %v1053 = vmul.f32 %v1037, %v977
        %v1054 = vmul.f32 %v1038, %v992
        %v1055 = vmul.f32 %v1039, %v1007
        %v1056 = vadd.f32 %v1040, 1.4214138
        %v1057 = vadd.f32 %v1041, 1.4214138
        %v1058 = vadd.f32 %v1042, 1.4214138
        %v1059 = vadd.f32 %v1043, 1.4214138
        %v1060 = vadd.f32 %v1044, 1.4214138
        %v1061 = vadd.f32 %v1045, 1.4214138
        %v1062 = vadd.f32 %v1046, 1.4214138
        %v1063 = vadd.f32 %v1047, 1.4214138
        %v1064 = vadd.f32 %v1048, 1.4214138
        %v1065 = vadd.f32 %v1049, 1.4214138
        %v1066 = vadd.f32 %v1050, 1.4214138
        %v1067 = vadd.f32 %v1051, 1.4214138
        %v1068 = vadd.f32 %v1052, 1.4214138
        %v1069 = vadd.f32 %v1053, 1.4214138
        %v1070 = vadd.f32 %v1054, 1.4214138
        %v1071 = vadd.f32 %v1055, 1.4214138
        %v1072 = vmul.f32 %v1056, %v782
        %v1073 = vmul.f32 %v1057, %v797
        %v1074 = vmul.f32 %v1058, %v812
        %v1075 = vmul.f32 %v1059, %v827
        %v1076 = vmul.f32 %v1060, %v842
        %v1077 = vmul.f32 %v1061, %v857
        %v1078 = vmul.f32 %v1062, %v872
        %v1079 = vmul.f32 %v1063, %v887
        %v1080 = vmul.f32 %v1064, %v902
        %v1081 = vmul.f32 %v1065, %v917
        %v1082 = vmul.f32 %v1066, %v932
        %v1083 = vmul.f32 %v1067, %v947
        %v1084 = vmul.f32 %v1068, %v962
        %v1085 = vmul.f32 %v1069, %v977
        %v1086 = vmul.f32 %v1070, %v992
        %v1087 = vmul.f32 %v1071, %v1007
        %v1088 = vadd.f32 %v1072, -0.28449672
        %v1089 = vadd.f32 %v1073, -0.28449672
        %v1090 = vadd.f32 %v1074, -0.28449672
        %v1091 = vadd.f32 %v1075, -0.28449672
        %v1092 = vadd.f32 %v1076, -0.28449672
        %v1093 = vadd.f32 %v1077, -0.28449672
        %v1094 = vadd.f32 %v1078, -0.28449672
        %v1095 = vadd.f32 %v1079, -0.28449672
        %v1096 = vadd.f32 %v1080, -0.28449672
        %v1097 = vadd.f32 %v1081, -0.28449672
        %v1098 = vadd.f32 %v1082, -0.28449672
        %v1099 = vadd.f32 %v1083, -0.28449672
        %v1100 = vadd.f32 %v1084, -0.28449672
        %v1101 = vadd.f32 %v1085, -0.28449672
        %v1102 = vadd.f32 %v1086, -0.28449672
        %v1103 = vadd.f32 %v1087, -0.28449672
        %v1104 = vmul.f32 %v1088, %v782
        %v1105 = vmul.f32 %v1089, %v797
        %v1106 = vmul.f32 %v1090, %v812
        %v1107 = vmul.f32 %v1091, %v827
        %v1108 = vmul.f32 %v1092, %v842
        %v1109 = vmul.f32 %v1093, %v857
        %v1110 = vmul.f32 %v1094, %v872
        %v1111 = vmul.f32 %v1095, %v887
        %v1112 = vmul.f32 %v1096, %v902
        %v1113 = vmul.f32 %v1097, %v917
        %v1114 = vmul.f32 %v1098, %v932
        %v1115 = vmul.f32 %v1099, %v947
        %v1116 = vmul.f32 %v1100, %v962
        %v1117 = vmul.f32 %v1101, %v977
        %v1118 = vmul.f32 %v1102, %v992
        %v1119 = vmul.f32 %v1103, %v1007
        %v1120 = vadd.f32 %v1104, 0.2548296
        %v1121 = vadd.f32 %v1105, 0.2548296
        %v1122 = vadd.f32 %v1106, 0.2548296
        %v1123 = vadd.f32 %v1107, 0.2548296
        %v1124 = vadd.f32 %v1108, 0.2548296
        %v1125 = vadd.f32 %v1109, 0.2548296
        %v1126 = vadd.f32 %v1110, 0.2548296
        %v1127 = vadd.f32 %v1111, 0.2548296
        %v1128 = vadd.f32 %v1112, 0.2548296
        %v1129 = vadd.f32 %v1113, 0.2548296
        %v1130 = vadd.f32 %v1114, 0.2548296
        %v1131 = vadd.f32 %v1115, 0.2548296
        %v1132 = vadd.f32 %v1116, 0.2548296
        %v1133 = vadd.f32 %v1117, 0.2548296
        %v1134 = vadd.f32 %v1118, 0.2548296
        %v1135 = vadd.f32 %v1119, 0.2548296
        %v1136 = vmul.f32 %v1120, %v782
        %v1137 = vmul.f32 %v1121, %v797
        %v1138 = vmul.f32 %v1122, %v812
        %v1139 = vmul.f32 %v1123, %v827
        %v1140 = vmul.f32 %v1124, %v842
        %v1141 = vmul.f32 %v1125, %v857
        %v1142 = vmul.f32 %v1126, %v872
        %v1143 = vmul.f32 %v1127, %v887
        %v1144 = vmul.f32 %v1128, %v902
        %v1145 = vmul.f32 %v1129, %v917
        %v1146 = vmul.f32 %v1130, %v932
        %v1147 = vmul.f32 %v1131, %v947
        %v1148 = vmul.f32 %v1132, %v962
        %v1149 = vmul.f32 %v1133, %v977
        %v1150 = vmul.f32 %v1134, %v992
        %v1151 = vmul.f32 %v1135, %v1007
        %v1152 = vsub.f32 0.0, %v720
        %v1153 = vsub.f32 0.0, %v721
        %v1154 = vsub.f32 0.0, %v722
        %v1155 = vsub.f32 0.0, %v723
        %v1156 = vsub.f32 0.0, %v724
        %v1157 = vsub.f32 0.0, %v725
        %v1158 = vsub.f32 0.0, %v726
        %v1159 = vsub.f32 0.0, %v727
        %v1160 = vsub.f32 0.0, %v728
        %v1161 = vsub.f32 0.0, %v729
        %v1162 = vsub.f32 0.0, %v730
        %v1163 = vsub.f32 0.0, %v731
        %v1164 = vsub.f32 0.0, %v732
        %v1165 = vsub.f32 0.0, %v733
        %v1166 = vsub.f32 0.0, %v734
        %v1167 = vsub.f32 0.0, %v735
        %v1168 = vmul.f32 %v1152, %v720
        %v1169 = vmul.f32 %v1153, %v721
        %v1170 = vmul.f32 %v1154, %v722
        %v1171 = vmul.f32 %v1155, %v723
        %v1172 = vmul.f32 %v1156, %v724
        %v1173 = vmul.f32 %v1157, %v725
        %v1174 = vmul.f32 %v1158, %v726
        %v1175 = vmul.f32 %v1159, %v727
        %v1176 = vmul.f32 %v1160, %v728
        %v1177 = vmul.f32 %v1161, %v729
        %v1178 = vmul.f32 %v1162, %v730
        %v1179 = vmul.f32 %v1163, %v731
        %v1180 = vmul.f32 %v1164, %v732
        %v1181 = vmul.f32 %v1165, %v733
        %v1182 = vmul.f32 %v1166, %v734
        %v1183 = vmul.f32 %v1167, %v735
        %v1184 = vmul.f32 %v1168, 1.442695
        %v1185 = vpow.pop %v1184
        %v1186 = vmul.f32 %v1169, 1.442695
        %v1187 = vpow.pop %v1186
        %v1188 = vmul.f32 %v1170, 1.442695
        %v1189 = vpow.pop %v1188
        %v1190 = vmul.f32 %v1171, 1.442695
        %v1191 = vpow.pop %v1190
        %v1192 = vmul.f32 %v1172, 1.442695
        %v1193 = vpow.pop %v1192
        %v1194 = vmul.f32 %v1173, 1.442695
        %v1195 = vpow.pop %v1194
        %v1196 = vmul.f32 %v1174, 1.442695
        %v1197 = vpow.pop %v1196
        %v1198 = vmul.f32 %v1175, 1.442695
        %v1199 = vpow.pop %v1198
        %v1200 = vmul.f32 %v1176, 1.442695
        %v1201 = vpow.pop %v1200
        %v1202 = vmul.f32 %v1177, 1.442695
        %v1203 = vpow.pop %v1202
        %v1204 = vmul.f32 %v1178, 1.442695
        %v1205 = vpow.pop %v1204
        %v1206 = vmul.f32 %v1179, 1.442695
        %v1207 = vpow.pop %v1206
        %v1208 = vmul.f32 %v1180, 1.442695
        %v1209 = vpow.pop %v1208
        %v1210 = vmul.f32 %v1181, 1.442695
        %v1211 = vpow.pop %v1210
        %v1212 = vmul.f32 %v1182, 1.442695
        %v1213 = vpow.pop %v1212
        %v1214 = vmul.f32 %v1183, 1.442695
        %v1215 = vpow.pop %v1214
        %v1216 = vmul.f32 %v1136, %v1185
        %v1217 = vmul.f32 %v1137, %v1187
        %v1218 = vmul.f32 %v1138, %v1189
        %v1219 = vmul.f32 %v1139, %v1191
        %v1220 = vmul.f32 %v1140, %v1193
        %v1221 = vmul.f32 %v1141, %v1195
        %v1222 = vmul.f32 %v1142, %v1197
        %v1223 = vmul.f32 %v1143, %v1199
        %v1224 = vmul.f32 %v1144, %v1201
        %v1225 = vmul.f32 %v1145, %v1203
        %v1226 = vmul.f32 %v1146, %v1205
        %v1227 = vmul.f32 %v1147, %v1207
        %v1228 = vmul.f32 %v1148, %v1209
        %v1229 = vmul.f32 %v1149, %v1211
        %v1230 = vmul.f32 %v1150, %v1213
        %v1231 = vmul.f32 %v1151, %v1215
        %v1232 = vsub.f32 1.0, %v1216
        %v1233 = vsub.f32 1.0, %v1217
        %v1234 = vsub.f32 1.0, %v1218
        %v1235 = vsub.f32 1.0, %v1219
        %v1236 = vsub.f32 1.0, %v1220
        %v1237 = vsub.f32 1.0, %v1221
        %v1238 = vsub.f32 1.0, %v1222
        %v1239 = vsub.f32 1.0, %v1223
        %v1240 = vsub.f32 1.0, %v1224
        %v1241 = vsub.f32 1.0, %v1225
        %v1242 = vsub.f32 1.0, %v1226
        %v1243 = vsub.f32 1.0, %v1227
        %v1244 = vsub.f32 1.0, %v1228
        %v1245 = vsub.f32 1.0, %v1229
        %v1246 = vsub.f32 1.0, %v1230
        %v1247 = vsub.f32 1.0, %v1231
        %v1248 = vmul.f32 %v704, %v1232
        %v1249 = vmul.f32 %v705, %v1233
        %v1250 = vmul.f32 %v706, %v1234
        %v1251 = vmul.f32 %v707, %v1235
        %v1252 = vmul.f32 %v708, %v1236
        %v1253 = vmul.f32 %v709, %v1237
        %v1254 = vmul.f32 %v710, %v1238
        %v1255 = vmul.f32 %v711, %v1239
        %v1256 = vmul.f32 %v712, %v1240
        %v1257 = vmul.f32 %v713, %v1241
        %v1258 = vmul.f32 %v714, %v1242
        %v1259 = vmul.f32 %v715, %v1243
        %v1260 = vmul.f32 %v716, %v1244
        %v1261 = vmul.f32 %v717, %v1245
        %v1262 = vmul.f32 %v718, %v1246
        %v1263 = vmul.f32 %v719, %v1247
        %v1264 = vadd.f32 %v1248, 1.0
        %v1265 = vadd.f32 %v1249, 1.0
        %v1266 = vadd.f32 %v1250, 1.0
        %v1267 = vadd.f32 %v1251, 1.0
        %v1268 = vadd.f32 %v1252, 1.0
        %v1269 = vadd.f32 %v1253, 1.0
        %v1270 = vadd.f32 %v1254, 1.0
        %v1271 = vadd.f32 %v1255, 1.0
        %v1272 = vadd.f32 %v1256, 1.0
        %v1273 = vadd.f32 %v1257, 1.0
        %v1274 = vadd.f32 %v1258, 1.0
        %v1275 = vadd.f32 %v1259, 1.0
        %v1276 = vadd.f32 %v1260, 1.0
        %v1277 = vadd.f32 %v1261, 1.0
        %v1278 = vadd.f32 %v1262, 1.0
        %v1279 = vadd.f32 %v1263, 1.0
        %v1280 = vmul.f32 %v656, %v1264
        %v1281 = vmul.f32 %v657, %v1265
        %v1282 = vmul.f32 %v658, %v1266
        %v1283 = vmul.f32 %v659, %v1267
        %v1284 = vmul.f32 %v660, %v1268
        %v1285 = vmul.f32 %v661, %v1269
        %v1286 = vmul.f32 %v662, %v1270
        %v1287 = vmul.f32 %v663, %v1271
        %v1288 = vmul.f32 %v664, %v1272
        %v1289 = vmul.f32 %v665, %v1273
        %v1290 = vmul.f32 %v666, %v1274
        %v1291 = vmul.f32 %v667, %v1275
        %v1292 = vmul.f32 %v668, %v1276
        %v1293 = vmul.f32 %v669, %v1277
        %v1294 = vmul.f32 %v670, %v1278
        %v1295 = vmul.f32 %v671, %v1279
        %v1296 = vld [vmem:[%s5] sm:$0xff]
        %v1297 = vld [vmem:[%s5 + $0x8] sm:$0xff]
        %v1298 = vld [vmem:[%s5 + $0x10] sm:$0xff]
        %v1299 = vld [vmem:[%s5 + $0x18] sm:$0xff]
        %v1300 = vld [vmem:[%s6] sm:$0xff]
        %v1301 = vld [vmem:[%s6 + $0x8] sm:$0xff]
        %v1302 = vld [vmem:[%s6 + $0x10] sm:$0xff]
        %v1303 = vld [vmem:[%s6 + $0x18] sm:$0xff]
        %1305 = vset.pattern.permute.xlu0 0
        %1306 = vperm.xlu0 %1305, %v1300
        %v1307 = vpop.permute.xlu0 %1306
        %1310 = vset.pattern.permute.xlu0 0
        %1311 = vperm.xlu0 %1310, %v1301
        %v1312 = vpop.permute.xlu0 %1311
        %1315 = vset.pattern.permute.xlu0 0
        %1316 = vperm.xlu0 %1315, %v1302
        %v1317 = vpop.permute.xlu0 %1316
        %1320 = vset.pattern.permute.xlu0 0
        %1321 = vperm.xlu0 %1320, %v1303
        %v1322 = vpop.permute.xlu0 %1321
        %1324 = vmatpush.msra.mxu0 %v1295
        %1325 = vmatpush.msra.mxu0 %v1294
        %1326 = vmatpush.msra.mxu0 %v1293
        %1327 = vmatpush.msra.mxu0 %v1292
        %1328 = vmatpush.msra.mxu0 %v1291
        %1329 = vmatpush.msra.mxu0 %v1290
        %1330 = vmatpush.msra.mxu0 %v1289
        %1331 = vmatpush.msra.mxu0 %v1288
        %1332 = vmatpush.msra.mxu0 %v1287
        %1333 = vmatpush.msra.mxu0 %v1286
        %1334 = vmatpush.msra.mxu0 %v1285
        %1335 = vmatpush.msra.mxu0 %v1284
        %1336 = vmatpush.msra.mxu0 %v1283
        %1337 = vmatpush.msra.mxu0 %v1282
        %1338 = vmatpush.msra.mxu0 %v1281
        %1339 = vmatpush.msra.mxu0 %v1280
        %1340 = vmatmul.f32.gmra.mxu0 %v1296
        %v1341 = vpop.f32.mrf.mxu0
        %v1342 = vadd.f32 %v1307, %v1341
        %1343 = vmatmul.f32.gmra.mxu0 %v1297
        %v1344 = vpop.f32.mrf.mxu0
        %v1345 = vadd.f32 %v1312, %v1344
        %1346 = vmatmul.f32.gmra.mxu0 %v1298
        %v1347 = vpop.f32.mrf.mxu0
        %v1348 = vadd.f32 %v1317, %v1347
        %1349 = vmatmul.f32.gmra.mxu0 %v1299
        %v1350 = vpop.f32.mrf.mxu0
        %v1351 = vadd.f32 %v1322, %v1350
        %1352 = vdwg.mxu0
        %v1353 = vadd.f32 %v320, %v1342
        %v1354 = vadd.f32 %v321, %v1345
        %v1355 = vadd.f32 %v322, %v1348
        %v1356 = vadd.f32 %v323, %v1351
        %1357 = vst [vmem:[%s319] sm:$0xff] %v1353
        %1358 = vst [vmem:[%s319 + $0x8] sm:$0xff] %v1354
        %1359 = vst [vmem:[%s319 + $0x10] sm:$0xff] %v1355
        %1360 = vst [vmem:[%s319 + $0x18] sm:$0xff] %v1356
        %s1361 = sand.u32 %s178, 1
        %s1362 = sand.u32 %s178, 1
        %s1363 = smul.addr %s1362, 32
        %s1364 = scalar_lea.vmem [#allocation3], %s1363
        // Predicated region
        $region87: #{swin_block_forward.3} parent=81 // pred_check
          %p1365 = pneg %p188
        $region88: #{swin_block_forward.3} parent=81 // pred_check_branch
          %1367 = sbr.rel (%p1365) target = $region90
        $region89: #{swin_block_forward.3} parent=81 // pred_region
          %s1368 = smul.addr %s18, 8
          %s1369 = scalar_lea.vmem %s7, %s1368
          // Predicated region
          $region91: #{swin_block_forward.3} parent=89 // pred_check
            _
          $region92: #{swin_block_forward.3} parent=89 // pred_check_branch
            %1371 = sbr.rel (0) target = $region94
          $region93: #{swin_block_forward.3} parent=89 // pred_region
            // Predicated region
            $region95: #{swin_block_forward.3} parent=93 // pred_check
              _
            $region96: #{swin_block_forward.3} parent=93 // pred_check_branch
              %1373 = sbr.rel (0) target = $region98
            $region97: #{swin_block_forward.3} parent=93 // pred_region
              // Predicated region
              $region110: #{swin_block_forward.3} parent=97 // pred_check
                _
              $region111: #{swin_block_forward.3} parent=97 // pred_check_branch
                %1395 = sbr.rel (0) target = $region113
              $region112: #{swin_block_forward.3} parent=97 // pred_region
                loop: start=0, step=1, limit=1
                $region114: #{swin_block_forward.3} parent=112 // loop_pre_header
                  _
                $region115: #{swin_block_forward.3} parent=112 // loop_header
                  %s1397 = sphi 0, %s1401
                  %p1398 = scmp.ge.s32.totalorder %s1397, 1
                  %s1402 = sphi %s1364, %s1364
                  %s1403 = sphi %s1369, %s1369
                $region116: #{swin_block_forward.3} parent=112 // loop_header_branch
                  %1400 = sbr.rel (%p1398) target = $region120
                $region117: #{swin_block_forward.3} parent=112 // loop_body
                  %v1404 = vld [vmem:[%s1402] sm:$0xff]
                  %1405 = vst [vmem:[%s1403] sm:$0xff] %v1404
                  %v1406 = vld [vmem:[%s1402 + $0x8] sm:$0xff]
                  %1407 = vst [vmem:[%s1403 + $0x20] sm:$0xff] %v1406
                  %v1408 = vld [vmem:[%s1402 + $0x10] sm:$0xff]
                  %1409 = vst [vmem:[%s1403 + $0x40] sm:$0xff] %v1408
                  %v1410 = vld [vmem:[%s1402 + $0x18] sm:$0xff]
                  %1411 = vst [vmem:[%s1403 + $0x60] sm:$0xff] %v1410
                $region118: #{swin_block_forward.3} parent=112 // loop_footer
                  %s1401 = sadd.s32 1, %s1397
                $region119: #{swin_block_forward.3} parent=112 // loop_footer_branch
                  %1396 = sbr.rel target = $region115
                $region120: #{swin_block_forward.3} parent=112 // loop_exit
                  _
              $region113: #{swin_block_forward.3} parent=97 // pred_fallthru
                _
              // Predicated region
              $region121: #{swin_block_forward.3} parent=97 // pred_check
                _
              $region122: #{swin_block_forward.3} parent=97 // pred_check_branch
                %1413 = sbr.rel target = $region124
              $region123: #{swin_block_forward.3} parent=97 // pred_region
                _
              $region124: #{swin_block_forward.3} parent=97 // pred_fallthru
                _
            $region98: #{swin_block_forward.3} parent=93 // pred_fallthru
              _
            // Predicated region
            $region99: #{swin_block_forward.3} parent=93 // pred_check
              _
            $region100: #{swin_block_forward.3} parent=93 // pred_check_branch
              %1375 = sbr.rel target = $region102
            $region101: #{swin_block_forward.3} parent=93 // pred_region
              %s1377 = ssub.s32 256, 1
              loop: start=0, step=1, limit=1
              $region103: #{swin_block_forward.3} parent=101 // loop_pre_header
                _
              $region104: #{swin_block_forward.3} parent=101 // loop_header
                %s1379 = sphi 0, %s1383
                %p1380 = scmp.ge.s32.totalorder %s1379, 1
                %s1384 = sphi %s1364, %s1364
                %s1385 = sphi %s1369, %s1369
              $region105: #{swin_block_forward.3} parent=101 // loop_header_branch
                %1382 = sbr.rel (%p1380) target = $region109
              $region106: #{swin_block_forward.3} parent=101 // loop_body
                %v1386 = vld [vmem:[%s1384] sm:%s1377]
                %1387 = vst [vmem:[%s1385] sm:%s1377] %v1386
                %v1388 = vld [vmem:[%s1384 + $0x8] sm:%s1377]
                %1389 = vst [vmem:[%s1385 + $0x20] sm:%s1377] %v1388
                %v1390 = vld [vmem:[%s1384 + $0x10] sm:%s1377]
                %1391 = vst [vmem:[%s1385 + $0x40] sm:%s1377] %v1390
                %v1392 = vld [vmem:[%s1384 + $0x18] sm:%s1377]
                %1393 = vst [vmem:[%s1385 + $0x60] sm:%s1377] %v1392
              $region107: #{swin_block_forward.3} parent=101 // loop_footer
                %s1383 = sadd.s32 1, %s1379
              $region108: #{swin_block_forward.3} parent=101 // loop_footer_branch
                %1378 = sbr.rel target = $region104
              $region109: #{swin_block_forward.3} parent=101 // loop_exit
                _
            $region102: #{swin_block_forward.3} parent=93 // pred_fallthru
              _
          $region94: #{swin_block_forward.3} parent=89 // pred_fallthru
            _
          %1414 = vnop
        $region90: #{swin_block_forward.3} parent=81 // pred_fallthru
          _
      $region82: #{swin_block_forward.3} parent=5 // pred_fallthru
        _
      %p1415 = scmp.le.s32.totalorder 2, %s13
      // Predicated region
      $region125: #{swin_block_forward.3} parent=5 // pred_check
        %p1416 = pneg %p1415
      $region126: #{swin_block_forward.3} parent=5 // pred_check_branch
        %1418 = sbr.rel (%p1416) target = $region128
      $region127: #{swin_block_forward.3} parent=5 // pred_region
        %s1419 = ssub.s32 %s13, 2
        // Predicated region
        $region129: #{swin_block_forward.3} parent=127 // pred_check
          %p1420 = pneg %p194
        $region130: #{swin_block_forward.3} parent=127 // pred_check_branch
          %1422 = sbr.rel (%p1420) target = $region132
        $region131: #{swin_block_forward.3} parent=127 // pred_region
          %s1423 = sand.u32 %s179, 1
          %s1424 = sand.u32 %s179, 1
          %s1425 = smul.addr %s1424, 32
          %s1426 = scalar_lea.vmem [#allocation3], %s1425
        $region132: #{swin_block_forward.3} parent=127 // pred_fallthru
          _
      $region128: #{swin_block_forward.3} parent=5 // pred_fallthru
        _
    $region6: #{swin_block_forward.3} parent=1 // loop_footer
      %s17 = sadd.s32 1, %s13
    $region7: #{swin_block_forward.3} parent=1 // loop_footer_branch
      %12 = sbr.rel target = $region3
    $region8: #{swin_block_forward.3} parent=1 // loop_exit
      _

// kernel: swin_block_forward.2
$region0: #{swin_block_forward.2}
  #allocation0 [shape = 'u32[]', space=smem, size = 0x4, offset = 0x4, fixed_abs, tag = 'smem constant byte address 0x4 - core index']
  #allocation1 [shape = 'u32[72,128]{1,0:T(1,128)}', space=vmem, size = 0x9000, scoped, tag = 'internal scratch']
  %s0 = inlined_call_operand.vmem [shape: f32[16,32,32], index: 0, kind: input, shape index: {}]
  %s1 = inlined_call_operand.vmem [shape: f32[1,32], index: 1, kind: input, shape index: {}]
  %s2 = inlined_call_operand.vmem [shape: f32[1,32], index: 2, kind: input, shape index: {}]
  %s3 = inlined_call_operand.vmem [shape: f32[32,96], index: 3, kind: input, shape index: {}]
  %s4 = inlined_call_operand.vmem [shape: f32[1,96], index: 4, kind: input, shape index: {}]
  %s5 = inlined_call_operand.vmem [shape: f32[32,32], index: 5, kind: input, shape index: {}]
  %s6 = inlined_call_operand.vmem [shape: f32[1,32], index: 6, kind: input, shape index: {}]
  %s7 = inlined_call_operand.vmem [shape: f32[4,8,32,32], index: 7, kind: input, shape index: {}]
  %s8 = inlined_call_operand.vmem [shape: f32[16,32,32], index: 8, kind: output, shape index: {}]
  %s9 = sld [smem:[#allocation0]]
  $region103: #{swin_block_forward.2} parent=0
    _
  %s11 = ssub.s32 1, %s9
  %s12 = scalar_select 0, %s11, %s9
  $region1: #{swin_block_forward.2} parent=0
    #allocation2 [shape = 'u8[524288]{0}', space=vmem, size = 0x80000, scoped, tag = 'input window, operand 7']
    loop: start=0, step=1, limit=6
    $region2: #{swin_block_forward.2} parent=1 // loop_pre_header
      _
    $region3: #{swin_block_forward.2} parent=1 // loop_header
      %s14 = sphi 0, %s18
      %p15 = scmp.ge.s32.totalorder %s14, 6
      %s21 = sphi 0, %s33
      %s22 = sphi 0, %s29
      %s23 = sphi 0, %s21
      %s24 = sphi 0, %s22
      %s25 = sphi 0, %s23
      %s26 = sphi 0, %s24
      %s40 = sphi 0, %s42
      %s43 = sphi 0, %s40
      %s44 = sphi 0, %s43
      %s60 = sphi 0, %s44
      %s64 = sphi 0, %s64
      %s66 = sphi 0, %s64
      %s67 = sphi 0, %s66
      %s81 = sphi 0, %s67
      %s85 = sphi 0, %s85
      %s87 = sphi 0, %s85
      %s88 = sphi 0, %s87
      %s102 = sphi 0, %s88
      %s106 = sphi 0, %s106
      %s108 = sphi 0, %s106
      %s109 = sphi 0, %s108
      %s123 = sphi 0, %s109
      %s127 = sphi 0, %s127
      %s129 = sphi 0, %s127
      %s130 = sphi 0, %s129
      %s144 = sphi 0, %s130
      %s148 = sphi 0, %s148
      %s150 = sphi 0, %s148
      %s151 = sphi 0, %s150
      %s165 = sphi 0, %s151
      %s169 = sphi 0, %s169
      %s171 = sphi 0, %s169
      %s172 = sphi 0, %s171
      %s186 = sphi 0, %s172
      %s192 = sphi 0, %s194
      %s195 = sphi 0, %s192
      %s196 = sphi 0, %s195
      %s212 = sphi 0, %s196
      %s222 = sphi 0, %s224
      %s225 = sphi 0, %s222
      %s226 = sphi 0, %s225
      %s242 = sphi 0, %s226
    $region4: #{swin_block_forward.2} parent=1 // loop_header_branch
      %17 = sbr.rel (%p15) target = $region8
    $region5: #{swin_block_forward.2} parent=1 // loop_body
      %s19 = ssub.s32 %s14, 1
      %s20 = ssub.s32 %s14, 2
      %s27 = sadd.s32 1, %s22
      %p28 = scmp.ge.s32.totalorder %s27, 2
      %s29 = scalar_select %p28, 0, %s27
      %s30 = sadd.s32 1, %s21
      %s31 = scalar_select %p28, %s30, %s21
      %p32 = scmp.ge.s32.totalorder %s31, 2
      %s33 = scalar_select %p32, 0, %s31
      %s34 = smul.u32 %s21, 2
      %s35 = sadd.s32 %s34, %s22
      %s36 = smul.u32 %s33, 2
      %s37 = sadd.s32 %s36, %s29
      %s38 = ssub.s32 %s35, %s37
      %p39 = scmp.eq.s32.totalorder %s38, 0
      %s41 = sadd.s32 %s40, 1
      %s42 = scalar_select %p39, %s40, %s41
      %p45 = pneg %p39
      %p46 = scmp.eq.s32.totalorder %s14, 3
      %p47 = por %p45, %p46
      %p48 = scmp.ne.s32.totalorder %s40, %s43
      %p49 = scmp.eq.s32.totalorder %s14, 0
      %p50 = por %p48, %p49
      %p51 = scmp.ne.s32.totalorder %s40, %s43
      %p52 = scmp.eq.s32.totalorder %s19, 3
      %p53 = por %p51, %p52
      %p54 = scmp.ne.s32.totalorder %s43, %s44
      %p55 = scmp.eq.s32.totalorder %s19, 0
      %p56 = por %p54, %p55
      %p57 = scmp.ne.s32.totalorder %s43, %s44
      %p58 = scmp.eq.s32.totalorder %s20, 3
      %p59 = por %p57, %p58
      %p61 = scmp.ne.s32.totalorder %s44, %s60
      %p62 = scmp.eq.s32.totalorder %s20, 0
      %p63 = por %p61, %p62
      %s65 = sadd.s32 %s64, 1
      %p68 = scmp.eq.s32.totalorder %s14, 3
      %p69 = scmp.ne.s32.totalorder %s64, %s66
      %p70 = scmp.eq.s32.totalorder %s14, 0
      %p71 = por %p69, %p70
      %p72 = scmp.ne.s32.totalorder %s64, %s66
      %p73 = scmp.eq.s32.totalorder %s19, 3
      %p74 = por %p72, %p73
      %p75 = scmp.ne.s32.totalorder %s66, %s67
      %p76 = scmp.eq.s32.totalorder %s19, 0
      %p77 = por %p75, %p76
      %p78 = scmp.ne.s32.totalorder %s66, %s67
      %p79 = scmp.eq.s32.totalorder %s20, 3
      %p80 = por %p78, %p79
      %p82 = scmp.ne.s32.totalorder %s67, %s81
      %p83 = scmp.eq.s32.totalorder %s20, 0
      %p84 = por %p82, %p83
      %s86 = sadd.s32 %s85, 1
      %p89 = scmp.eq.s32.totalorder %s14, 3
      %p90 = scmp.ne.s32.totalorder %s85, %s87
      %p91 = scmp.eq.s32.totalorder %s14, 0
      %p92 = por %p90, %p91
      %p93 = scmp.ne.s32.totalorder %s85, %s87
      %p94 = scmp.eq.s32.totalorder %s19, 3
      %p95 = por %p93, %p94
      %p96 = scmp.ne.s32.totalorder %s87, %s88
      %p97 = scmp.eq.s32.totalorder %s19, 0
      %p98 = por %p96, %p97
      %p99 = scmp.ne.s32.totalorder %s87, %s88
      %p100 = scmp.eq.s32.totalorder %s20, 3
      %p101 = por %p99, %p100
      %p103 = scmp.ne.s32.totalorder %s88, %s102
      %p104 = scmp.eq.s32.totalorder %s20, 0
      %p105 = por %p103, %p104
      %s107 = sadd.s32 %s106, 1
      %p110 = scmp.eq.s32.totalorder %s14, 3
      %p111 = scmp.ne.s32.totalorder %s106, %s108
      %p112 = scmp.eq.s32.totalorder %s14, 0
      %p113 = por %p111, %p112
      %p114 = scmp.ne.s32.totalorder %s106, %s108
      %p115 = scmp.eq.s32.totalorder %s19, 3
      %p116 = por %p114, %p115
      %p117 = scmp.ne.s32.totalorder %s108, %s109
      %p118 = scmp.eq.s32.totalorder %s19, 0
      %p119 = por %p117, %p118
      %p120 = scmp.ne.s32.totalorder %s108, %s109
      %p121 = scmp.eq.s32.totalorder %s20, 3
      %p122 = por %p120, %p121
      %p124 = scmp.ne.s32.totalorder %s109, %s123
      %p125 = scmp.eq.s32.totalorder %s20, 0
      %p126 = por %p124, %p125
      %s128 = sadd.s32 %s127, 1
      %p131 = scmp.eq.s32.totalorder %s14, 3
      %p132 = scmp.ne.s32.totalorder %s127, %s129
      %p133 = scmp.eq.s32.totalorder %s14, 0
      %p134 = por %p132, %p133
      %p135 = scmp.ne.s32.totalorder %s127, %s129
      %p136 = scmp.eq.s32.totalorder %s19, 3
      %p137 = por %p135, %p136
      %p138 = scmp.ne.s32.totalorder %s129, %s130
      %p139 = scmp.eq.s32.totalorder %s19, 0
      %p140 = por %p138, %p139
      %p141 = scmp.ne.s32.totalorder %s129, %s130
      %p142 = scmp.eq.s32.totalorder %s20, 3
      %p143 = por %p141, %p142
      %p145 = scmp.ne.s32.totalorder %s130, %s144
      %p146 = scmp.eq.s32.totalorder %s20, 0
      %p147 = por %p145, %p146
      %s149 = sadd.s32 %s148, 1
      %p152 = scmp.eq.s32.totalorder %s14, 3
      %p153 = scmp.ne.s32.totalorder %s148, %s150
      %p154 = scmp.eq.s32.totalorder %s14, 0
      %p155 = por %p153, %p154
      %p156 = scmp.ne.s32.totalorder %s148, %s150
      %p157 = scmp.eq.s32.totalorder %s19, 3
      %p158 = por %p156, %p157
      %p159 = scmp.ne.s32.totalorder %s150, %s151
      %p160 = scmp.eq.s32.totalorder %s19, 0
      %p161 = por %p159, %p160
      %p162 = scmp.ne.s32.totalorder %s150, %s151
      %p163 = scmp.eq.s32.totalorder %s20, 3
      %p164 = por %p162, %p163
      %p166 = scmp.ne.s32.totalorder %s151, %s165
      %p167 = scmp.eq.s32.totalorder %s20, 0
      %p168 = por %p166, %p167
      %s170 = sadd.s32 %s169, 1
      %p173 = scmp.eq.s32.totalorder %s14, 3
      %p174 = scmp.ne.s32.totalorder %s169, %s171
      %p175 = scmp.eq.s32.totalorder %s14, 0
      %p176 = por %p174, %p175
      %p177 = scmp.ne.s32.totalorder %s169, %s171
      %p178 = scmp.eq.s32.totalorder %s19, 3
      %p179 = por %p177, %p178
      %p180 = scmp.ne.s32.totalorder %s171, %s172
      %p181 = scmp.eq.s32.totalorder %s19, 0
      %p182 = por %p180, %p181
      %p183 = scmp.ne.s32.totalorder %s171, %s172
      %p184 = scmp.eq.s32.totalorder %s20, 3
      %p185 = por %p183, %p184
      %p187 = scmp.ne.s32.totalorder %s172, %s186
      %p188 = scmp.eq.s32.totalorder %s20, 0
      %p189 = por %p187, %p188
      %s190 = ssub.s32 %s22, %s29
      %p191 = scmp.eq.s32.totalorder %s190, 0
      %s193 = sadd.s32 %s192, 1
      %s194 = scalar_select %p191, %s192, %s193
      %p197 = pneg %p191
      %p198 = scmp.eq.s32.totalorder %s14, 3
      %p199 = por %p197, %p198
      %p200 = scmp.ne.s32.totalorder %s192, %s195
      %p201 = scmp.eq.s32.totalorder %s14, 0
      %p202 = por %p200, %p201
      %p203 = scmp.ne.s32.totalorder %s192, %s195
      %p204 = scmp.eq.s32.totalorder %s19, 3
      %p205 = por %p203, %p204
      %p206 = scmp.ne.s32.totalorder %s195, %s196
      %p207 = scmp.eq.s32.totalorder %s19, 0
      %p208 = por %p206, %p207
      %p209 = scmp.ne.s32.totalorder %s195, %s196
      %p210 = scmp.eq.s32.totalorder %s20, 3
      %p211 = por %p209, %p210
      %p213 = scmp.ne.s32.totalorder %s196, %s212
      %p214 = scmp.eq.s32.totalorder %s20, 0
      %p215 = por %p213, %p214
      %s216 = smul.u32 %s21, 2
      %s217 = sadd.s32 %s216, %s22
      %s218 = smul.u32 %s33, 2
      %s219 = sadd.s32 %s218, %s29
      %s220 = ssub.s32 %s217, %s219
      %p221 = scmp.eq.s32.totalorder %s220, 0
      %s223 = sadd.s32 %s222, 1
      %s224 = scalar_select %p221, %s222, %s223
      %p227 = pneg %p221
      %p228 = scmp.eq.s32.totalorder %s14, 3
      %p229 = por %p227, %p228
      %p230 = scmp.ne.s32.totalorder %s222, %s225
      %p231 = scmp.eq.s32.totalorder %s14, 0
      %p232 = por %p230, %p231
      %p233 = scmp.ne.s32.totalorder %s222, %s225
      %p234 = scmp.eq.s32.totalorder %s19, 3
      %p235 = por %p233, %p234
      %p236 = scmp.ne.s32.totalorder %s225, %s226
      %p237 = scmp.eq.s32.totalorder %s19, 0
      %p238 = por %p236, %p237
      %p239 = scmp.ne.s32.totalorder %s225, %s226
      %p240 = scmp.eq.s32.totalorder %s20, 3
      %p241 = por %p239, %p240
      %p243 = scmp.ne.s32.totalorder %s226, %s242
      %p244 = scmp.eq.s32.totalorder %s20, 0
      %p245 = por %p243, %p244
      %p246 = scmp.le.s32.totalorder 1, %s14
      %p247 = scmp.lt.s32.totalorder %s14, 5
      %p248 = pnand %p246, %p247
      %p249 = pneg %p248
      // Predicated region
      $region9: #{swin_block_forward.2} parent=5 // pred_check
        _
      $region10: #{swin_block_forward.2} parent=5 // pred_check_branch
        %251 = sbr.rel (%p248) target = $region12
      $region11: #{swin_block_forward.2} parent=5 // pred_region
        %s252 = ssub.s32 %s14, 1
        // Predicated region
        $region13: #{swin_block_forward.2} parent=11 // pred_check
          %p253 = pneg %p77
        $region14: #{swin_block_forward.2} parent=11 // pred_check_branch
          %255 = sbr.rel (%p253) target = $region16
        $region15: #{swin_block_forward.2} parent=11 // pred_region
          _
        $region16: #{swin_block_forward.2} parent=11 // pred_fallthru
          _
        // Predicated region
        $region17: #{swin_block_forward.2} parent=11 // pred_check
          %p256 = pneg %p98
        $region18: #{swin_block_forward.2} parent=11 // pred_check_branch
          %258 = sbr.rel (%p256) target = $region20
        $region19: #{swin_block_forward.2} parent=11 // pred_region
          _
        $region20: #{swin_block_forward.2} parent=11 // pred_fallthru
          _
        // Predicated region
        $region21: #{swin_block_forward.2} parent=11 // pred_check
          %p259 = pneg %p119
        $region22: #{swin_block_forward.2} parent=11 // pred_check_branch
          %261 = sbr.rel (%p259) target = $region24
        $region23: #{swin_block_forward.2} parent=11 // pred_region
          _
        $region24: #{swin_block_forward.2} parent=11 // pred_fallthru
          _
        // Predicated region
        $region25: #{swin_block_forward.2} parent=11 // pred_check
          %p262 = pneg %p140
        $region26: #{swin_block_forward.2} parent=11 // pred_check_branch
          %264 = sbr.rel (%p262) target = $region28
        $region27: #{swin_block_forward.2} parent=11 // pred_region
          _
        $region28: #{swin_block_forward.2} parent=11 // pred_fallthru
          _
        // Predicated region
        $region29: #{swin_block_forward.2} parent=11 // pred_check
          %p265 = pneg %p161
        $region30: #{swin_block_forward.2} parent=11 // pred_check_branch
          %267 = sbr.rel (%p265) target = $region32
        $region31: #{swin_block_forward.2} parent=11 // pred_region
          _
        $region32: #{swin_block_forward.2} parent=11 // pred_fallthru
          _
        // Predicated region
        $region33: #{swin_block_forward.2} parent=11 // pred_check
          %p268 = pneg %p182
        $region34: #{swin_block_forward.2} parent=11 // pred_check_branch
          %270 = sbr.rel (%p268) target = $region36
        $region35: #{swin_block_forward.2} parent=11 // pred_region
          _
        $region36: #{swin_block_forward.2} parent=11 // pred_fallthru
          _
      $region12: #{swin_block_forward.2} parent=5 // pred_fallthru
        _
      %p271 = scmp.lt.s32.totalorder %s14, 4
      // Predicated region
      $region37: #{swin_block_forward.2} parent=5 // pred_check
        %p272 = pneg %p271
      $region38: #{swin_block_forward.2} parent=5 // pred_check_branch
        %274 = sbr.rel (%p272) target = $region40
      $region39: #{swin_block_forward.2} parent=5 // pred_region
        // Predicated region
        $region41: #{swin_block_forward.2} parent=39 // pred_check
          %p275 = pneg %p50
        $region42: #{swin_block_forward.2} parent=39 // pred_check_branch
          %277 = sbr.rel (%p275) target = $region44
        $region43: #{swin_block_forward.2} parent=39 // pred_region
          %s278 = smul.u32 %s21, 2
          %s279 = sadd.s32 %s278, %s22
          %s280 = smul.u32 4, %s279
          %p281 = scmp.lt.s32.totalorder %s280, 15
          %s282 = scalar_select %p281, %s280, 15
          %s283 = smul.addr %s282, 4
          %s284 = smul.addr %s283, 8
          %s285 = scalar_lea.vmem %s0, %s284
          %s286 = smul.u32 %s21, 2
          %s287 = sadd.s32 %s286, %s22
          %s288 = smul.u32 4, %s287
        $region44: #{swin_block_forward.2} parent=39 // pred_fallthru
          _
        // Predicated region
        $region45: #{swin_block_forward.2} parent=39 // pred_check
          %p289 = pneg %p202
        $region46: #{swin_block_forward.2} parent=39 // pred_check_branch
          %291 = sbr.rel (%p289) target = $region48
        $region47: #{swin_block_forward.2} parent=39 // pred_region
          %s292 = sand.u32 %s192, 1
          %s293 = sand.u32 %s192, 1
          %s294 = smul.addr %s293, 512
          %s295 = scalar_lea.vmem [#allocation2], %s294
          %s296 = smul.u32 4, %s22
          %s297 = smul.addr %s296, 4
          %s298 = smul.addr %s297, 8
          %s299 = scalar_lea.vmem %s7, %s298
          // Predicated region
          $region49: #{swin_block_forward.2} parent=47 // pred_check
            _
          $region50: #{swin_block_forward.2} parent=47 // pred_check_branch
            %301 = sbr.rel (0) target = $region52
          $region51: #{swin_block_forward.2} parent=47 // pred_region
            // Predicated region
            $region53: #{swin_block_forward.2} parent=51 // pred_check
              _
            $region54: #{swin_block_forward.2} parent=51 // pred_check_branch
              %303 = sbr.rel (0) target = $region56
            $region55: #{swin_block_forward.2} parent=51 // pred_region
              // Predicated region
              $region68: #{swin_block_forward.2} parent=55 // pred_check
                _
              $region69: #{swin_block_forward.2} parent=55 // pred_check_branch
                %445 = sbr.rel (0) target = $region71
              $region70: #{swin_block_forward.2} parent=55 // pred_region
                loop: start=0, step=1, limit=1
                $region72: #{swin_block_forward.2} parent=70 // loop_pre_header
                  _
                $region73: #{swin_block_forward.2} parent=70 // loop_header
                  %s447 = sphi 0, %s451
                  %p448 = scmp.ge.s32.totalorder %s447, 1
                  %s452 = sphi %s299, %s299
                  %s453 = sphi %s295, %s295
                $region74: #{swin_block_forward.2} parent=70 // loop_header_branch
                  %450 = sbr.rel (%p448) target = $region78
                $region75: #{swin_block_forward.2} parent=70 // loop_body
                  %v454 = vld [vmem:[%s452] sm:$0xff]
                  %455 = vst [vmem:[%s453] sm:$0xff] %v454
                  %v456 = vld [vmem:[%s452 + $0x8] sm:$0xff]
                  %457 = vst [vmem:[%s453 + $0x8] sm:$0xff] %v456
                  %v458 = vld [vmem:[%s452 + $0x10] sm:$0xff]
                  %459 = vst [vmem:[%s453 + $0x10] sm:$0xff] %v458
                  %v460 = vld [vmem:[%s452 + $0x18] sm:$0xff]
                  %461 = vst [vmem:[%s453 + $0x18] sm:$0xff] %v460
                  %v462 = vld [vmem:[%s452 + $0x20] sm:$0xff]
                  %463 = vst [vmem:[%s453 + $0x20] sm:$0xff] %v462
                  %v464 = vld [vmem:[%s452 + $0x28] sm:$0xff]
                  %465 = vst [vmem:[%s453 + $0x28] sm:$0xff] %v464
                  %v466 = vld [vmem:[%s452 + $0x30] sm:$0xff]
                  %467 = vst [vmem:[%s453 + $0x30] sm:$0xff] %v466
                  %v468 = vld [vmem:[%s452 + $0x38] sm:$0xff]
                  %469 = vst [vmem:[%s453 + $0x38] sm:$0xff] %v468
                  %v470 = vld [vmem:[%s452 + $0x40] sm:$0xff]
                  %471 = vst [vmem:[%s453 + $0x40] sm:$0xff] %v470
                  %v472 = vld [vmem:[%s452 + $0x48] sm:$0xff]
                  %473 = vst [vmem:[%s453 + $0x48] sm:$0xff] %v472
                  %v474 = vld [vmem:[%s452 + $0x50] sm:$0xff]
                  %475 = vst [vmem:[%s453 + $0x50] sm:$0xff] %v474
                  %v476 = vld [vmem:[%s452 + $0x58] sm:$0xff]
                  %477 = vst [vmem:[%s453 + $0x58] sm:$0xff] %v476
                  %v478 = vld [vmem:[%s452 + $0x60] sm:$0xff]
                  %479 = vst [vmem:[%s453 + $0x60] sm:$0xff] %v478
                  %v480 = vld [vmem:[%s452 + $0x68] sm:$0xff]
                  %481 = vst [vmem:[%s453 + $0x68] sm:$0xff] %v480
                  %v482 = vld [vmem:[%s452 + $0x70] sm:$0xff]
                  %483 = vst [vmem:[%s453 + $0x70] sm:$0xff] %v482
                  %v484 = vld [vmem:[%s452 + $0x78] sm:$0xff]
                  %485 = vst [vmem:[%s453 + $0x78] sm:$0xff] %v484
                  %v486 = vld [vmem:[%s452 + $0x100] sm:$0xff]
                  %487 = vst [vmem:[%s453 + $0x80] sm:$0xff] %v486
                  %v488 = vld [vmem:[%s452 + $0x108] sm:$0xff]
                  %489 = vst [vmem:[%s453 + $0x88] sm:$0xff] %v488
                  %v490 = vld [vmem:[%s452 + $0x110] sm:$0xff]
                  %491 = vst [vmem:[%s453 + $0x90] sm:$0xff] %v490
                  %v492 = vld [vmem:[%s452 + $0x118] sm:$0xff]
                  %493 = vst [vmem:[%s453 + $0x98] sm:$0xff] %v492
                  %v494 = vld [vmem:[%s452 + $0x120] sm:$0xff]
                  %495 = vst [vmem:[%s453 + $0xa0] sm:$0xff] %v494
                  %v496 = vld [vmem:[%s452 + $0x128] sm:$0xff]
                  %497 = vst [vmem:[%s453 + $0xa8] sm:$0xff] %v496
                  %v498 = vld [vmem:[%s452 + $0x130] sm:$0xff]
                  %499 = vst [vmem:[%s453 + $0xb0] sm:$0xff] %v498
                  %v500 = vld [vmem:[%s452 + $0x138] sm:$0xff]
                  %501 = vst [vmem:[%s453 + $0xb8] sm:$0xff] %v500
                  %v502 = vld [vmem:[%s452 + $0x140] sm:$0xff]
                  %503 = vst [vmem:[%s453 + $0xc0] sm:$0xff] %v502
                  %v504 = vld [vmem:[%s452 + $0x148] sm:$0xff]
                  %505 = vst [vmem:[%s453 + $0xc8] sm:$0xff] %v504
                  %v506 = vld [vmem:[%s452 + $0x150] sm:$0xff]
                  %507 = vst [vmem:[%s453 + $0xd0] sm:$0xff] %v506
                  %v508 = vld [vmem:[%s452 + $0x158] sm:$0xff]
                  %509 = vst [vmem:[%s453 + $0xd8] sm:$0xff] %v508
                  %v510 = vld [vmem:[%s452 + $0x160] sm:$0xff]
                  %511 = vst [vmem:[%s453 + $0xe0] sm:$0xff] %v510
                  %v512 = vld [vmem:[%s452 + $0x168] sm:$0xff]
                  %513 = vst [vmem:[%s453 + $0xe8] sm:$0xff] %v512
                  %v514 = vld [vmem:[%s452 + $0x170] sm:$0xff]
                  %515 = vst [vmem:[%s453 + $0xf0] sm:$0xff] %v514
                  %v516 = vld [vmem:[%s452 + $0x178] sm:$0xff]
                  %517 = vst [vmem:[%s453 + $0xf8] sm:$0xff] %v516
                  %v518 = vld [vmem:[%s452 + $0x200] sm:$0xff]
                  %519 = vst [vmem:[%s453 + $0x100] sm:$0xff] %v518
                  %v520 = vld [vmem:[%s452 + $0x208] sm:$0xff]
                  %521 = vst [vmem:[%s453 + $0x108] sm:$0xff] %v520
                  %v522 = vld [vmem:[%s452 + $0x210] sm:$0xff]
                  %523 = vst [vmem:[%s453 + $0x110] sm:$0xff] %v522
                  %v524 = vld [vmem:[%s452 + $0x218] sm:$0xff]
                  %525 = vst [vmem:[%s453 + $0x118] sm:$0xff] %v524
                  %v526 = vld [vmem:[%s452 + $0x220] sm:$0xff]
                  %527 = vst [vmem:[%s453 + $0x120] sm:$0xff] %v526
                  %v528 = vld [vmem:[%s452 + $0x228] sm:$0xff]
                  %529 = vst [vmem:[%s453 + $0x128] sm:$0xff] %v528
                  %v530 = vld [vmem:[%s452 + $0x230] sm:$0xff]
                  %531 = vst [vmem:[%s453 + $0x130] sm:$0xff] %v530
                  %v532 = vld [vmem:[%s452 + $0x238] sm:$0xff]
                  %533 = vst [vmem:[%s453 + $0x138] sm:$0xff] %v532
                  %v534 = vld [vmem:[%s452 + $0x240] sm:$0xff]
                  %535 = vst [vmem:[%s453 + $0x140] sm:$0xff] %v534
                  %v536 = vld [vmem:[%s452 + $0x248] sm:$0xff]
                  %537 = vst [vmem:[%s453 + $0x148] sm:$0xff] %v536
                  %v538 = vld [vmem:[%s452 + $0x250] sm:$0xff]
                  %539 = vst [vmem:[%s453 + $0x150] sm:$0xff] %v538
                  %v540 = vld [vmem:[%s452 + $0x258] sm:$0xff]
                  %541 = vst [vmem:[%s453 + $0x158] sm:$0xff] %v540
                  %v542 = vld [vmem:[%s452 + $0x260] sm:$0xff]
                  %543 = vst [vmem:[%s453 + $0x160] sm:$0xff] %v542
                  %v544 = vld [vmem:[%s452 + $0x268] sm:$0xff]
                  %545 = vst [vmem:[%s453 + $0x168] sm:$0xff] %v544
                  %v546 = vld [vmem:[%s452 + $0x270] sm:$0xff]
                  %547 = vst [vmem:[%s453 + $0x170] sm:$0xff] %v546
                  %v548 = vld [vmem:[%s452 + $0x278] sm:$0xff]
                  %549 = vst [vmem:[%s453 + $0x178] sm:$0xff] %v548
                  %v550 = vld [vmem:[%s452 + $0x300] sm:$0xff]
                  %551 = vst [vmem:[%s453 + $0x180] sm:$0xff] %v550
                  %v552 = vld [vmem:[%s452 + $0x308] sm:$0xff]
                  %553 = vst [vmem:[%s453 + $0x188] sm:$0xff] %v552
                  %v554 = vld [vmem:[%s452 + $0x310] sm:$0xff]
                  %555 = vst [vmem:[%s453 + $0x190] sm:$0xff] %v554
                  %v556 = vld [vmem:[%s452 + $0x318] sm:$0xff]
                  %557 = vst [vmem:[%s453 + $0x198] sm:$0xff] %v556
                  %v558 = vld [vmem:[%s452 + $0x320] sm:$0xff]
                  %559 = vst [vmem:[%s453 + $0x1a0] sm:$0xff] %v558
                  %v560 = vld [vmem:[%s452 + $0x328] sm:$0xff]
                  %561 = vst [vmem:[%s453 + $0x1a8] sm:$0xff] %v560
                  %v562 = vld [vmem:[%s452 + $0x330] sm:$0xff]
                  %563 = vst [vmem:[%s453 + $0x1b0] sm:$0xff] %v562
                  %v564 = vld [vmem:[%s452 + $0x338] sm:$0xff]
                  %565 = vst [vmem:[%s453 + $0x1b8] sm:$0xff] %v564
                  %v566 = vld [vmem:[%s452 + $0x340] sm:$0xff]
                  %567 = vst [vmem:[%s453 + $0x1c0] sm:$0xff] %v566
                  %v568 = vld [vmem:[%s452 + $0x348] sm:$0xff]
                  %569 = vst [vmem:[%s453 + $0x1c8] sm:$0xff] %v568
                  %v570 = vld [vmem:[%s452 + $0x350] sm:$0xff]
                  %571 = vst [vmem:[%s453 + $0x1d0] sm:$0xff] %v570
                  %v572 = vld [vmem:[%s452 + $0x358] sm:$0xff]
                  %573 = vst [vmem:[%s453 + $0x1d8] sm:$0xff] %v572
                  %v574 = vld [vmem:[%s452 + $0x360] sm:$0xff]
                  %575 = vst [vmem:[%s453 + $0x1e0] sm:$0xff] %v574
                  %v576 = vld [vmem:[%s452 + $0x368] sm:$0xff]
                  %577 = vst [vmem:[%s453 + $0x1e8] sm:$0xff] %v576
                  %v578 = vld [vmem:[%s452 + $0x370] sm:$0xff]
                  %579 = vst [vmem:[%s453 + $0x1f0] sm:$0xff] %v578
                  %v580 = vld [vmem:[%s452 + $0x378] sm:$0xff]
                  %581 = vst [vmem:[%s453 + $0x1f8] sm:$0xff] %v580
                $region76: #{swin_block_forward.2} parent=70 // loop_footer
                  %s451 = sadd.s32 1, %s447
                $region77: #{swin_block_forward.2} parent=70 // loop_footer_branch
                  %446 = sbr.rel target = $region73
                $region78: #{swin_block_forward.2} parent=70 // loop_exit
                  _
              $region71: #{swin_block_forward.2} parent=55 // pred_fallthru
                _
              // Predicated region
              $region79: #{swin_block_forward.2} parent=55 // pred_check
                _
              $region80: #{swin_block_forward.2} parent=55 // pred_check_branch
                %583 = sbr.rel target = $region82
              $region81: #{swin_block_forward.2} parent=55 // pred_region
                _
              $region82: #{swin_block_forward.2} parent=55 // pred_fallthru
                _
            $region56: #{swin_block_forward.2} parent=51 // pred_fallthru
              _
            // Predicated region
            $region57: #{swin_block_forward.2} parent=51 // pred_check
              _
            $region58: #{swin_block_forward.2} parent=51 // pred_check_branch
              %305 = sbr.rel target = $region60
            $region59: #{swin_block_forward.2} parent=51 // pred_region
              %s307 = ssub.s32 256, 1
              loop: start=0, step=1, limit=1
              $region61: #{swin_block_forward.2} parent=59 // loop_pre_header
                _
              $region62: #{swin_block_forward.2} parent=59 // loop_header
                %s309 = sphi 0, %s313
                %p310 = scmp.ge.s32.totalorder %s309, 1
                %s314 = sphi %s299, %s299
                %s315 = sphi %s295, %s295
              $region63: #{swin_block_forward.2} parent=59 // loop_header_branch
                %312 = sbr.rel (%p310) target = $region67
              $region64: #{swin_block_forward.2} parent=59 // loop_body
                %v316 = vld [vmem:[%s314] sm:%s307]
                %317 = vst [vmem:[%s315] sm:%s307] %v316
                %v318 = vld [vmem:[%s314 + $0x8] sm:%s307]
                %319 = vst [vmem:[%s315 + $0x8] sm:%s307] %v318
                %v320 = vld [vmem:[%s314 + $0x10] sm:%s307]
                %321 = vst [vmem:[%s315 + $0x10] sm:%s307] %v320
                %v322 = vld [vmem:[%s314 + $0x18] sm:%s307]
                %323 = vst [vmem:[%s315 + $0x18] sm:%s307] %v322
                %v324 = vld [vmem:[%s314 + $0x20] sm:%s307]
                %325 = vst [vmem:[%s315 + $0x20] sm:%s307] %v324
                %v326 = vld [vmem:[%s314 + $0x28] sm:%s307]
                %327 = vst [vmem:[%s315 + $0x28] sm:%s307] %v326
                %v328 = vld [vmem:[%s314 + $0x30] sm:%s307]
                %329 = vst [vmem:[%s315 + $0x30] sm:%s307] %v328
                %v330 = vld [vmem:[%s314 + $0x38] sm:%s307]
                %331 = vst [vmem:[%s315 + $0x38] sm:%s307] %v330
                %v332 = vld [vmem:[%s314 + $0x40] sm:%s307]
                %333 = vst [vmem:[%s315 + $0x40] sm:%s307] %v332
                %v334 = vld [vmem:[%s314 + $0x48] sm:%s307]
                %335 = vst [vmem:[%s315 + $0x48] sm:%s307] %v334
                %v336 = vld [vmem:[%s314 + $0x50] sm:%s307]
                %337 = vst [vmem:[%s315 + $0x50] sm:%s307] %v336
                %v338 = vld [vmem:[%s314 + $0x58] sm:%s307]
                %339 = vst [vmem:[%s315 + $0x58] sm:%s307] %v338
                %v340 = vld [vmem:[%s314 + $0x60] sm:%s307]
                %341 = vst [vmem:[%s315 + $0x60] sm:%s307] %v340
                %v342 = vld [vmem:[%s314 + $0x68] sm:%s307]
                %343 = vst [vmem:[%s315 + $0x68] sm:%s307] %v342
                %v344 = vld [vmem:[%s314 + $0x70] sm:%s307]
                %345 = vst [vmem:[%s315 + $0x70] sm:%s307] %v344
                %v346 = vld [vmem:[%s314 + $0x78] sm:%s307]
                %347 = vst [vmem:[%s315 + $0x78] sm:%s307] %v346
                %v348 = vld [vmem:[%s314 + $0x100] sm:%s307]
                %349 = vst [vmem:[%s315 + $0x80] sm:%s307] %v348
                %v350 = vld [vmem:[%s314 + $0x108] sm:%s307]
                %351 = vst [vmem:[%s315 + $0x88] sm:%s307] %v350
                %v352 = vld [vmem:[%s314 + $0x110] sm:%s307]
                %353 = vst [vmem:[%s315 + $0x90] sm:%s307] %v352
                %v354 = vld [vmem:[%s314 + $0x118] sm:%s307]
                %355 = vst [vmem:[%s315 + $0x98] sm:%s307] %v354
                %v356 = vld [vmem:[%s314 + $0x120] sm:%s307]
                %357 = vst [vmem:[%s315 + $0xa0] sm:%s307] %v356
                %v358 = vld [vmem:[%s314 + $0x128] sm:%s307]
                %359 = vst [vmem:[%s315 + $0xa8] sm:%s307] %v358
                %v360 = vld [vmem:[%s314 + $0x130] sm:%s307]
                %361 = vst [vmem:[%s315 + $0xb0] sm:%s307] %v360
                %v362 = vld [vmem:[%s314 + $0x138] sm:%s307]
                %363 = vst [vmem:[%s315 + $0xb8] sm:%s307] %v362
                %v364 = vld [vmem:[%s314 + $0x140] sm:%s307]
                %365 = vst [vmem:[%s315 + $0xc0] sm:%s307] %v364
                %v366 = vld [vmem:[%s314 + $0x148] sm:%s307]
                %367 = vst [vmem:[%s315 + $0xc8] sm:%s307] %v366
                %v368 = vld [vmem:[%s314 + $0x150] sm:%s307]
                %369 = vst [vmem:[%s315 + $0xd0] sm:%s307] %v368
                %v370 = vld [vmem:[%s314 + $0x158] sm:%s307]
                %371 = vst [vmem:[%s315 + $0xd8] sm:%s307] %v370
                %v372 = vld [vmem:[%s314 + $0x160] sm:%s307]
                %373 = vst [vmem:[%s315 + $0xe0] sm:%s307] %v372
                %v374 = vld [vmem:[%s314 + $0x168] sm:%s307]
                %375 = vst [vmem:[%s315 + $0xe8] sm:%s307] %v374
                %v376 = vld [vmem:[%s314 + $0x170] sm:%s307]
                %377 = vst [vmem:[%s315 + $0xf0] sm:%s307] %v376
                %v378 = vld [vmem:[%s314 + $0x178] sm:%s307]
                %379 = vst [vmem:[%s315 + $0xf8] sm:%s307] %v378
                %v380 = vld [vmem:[%s314 + $0x200] sm:%s307]
                %381 = vst [vmem:[%s315 + $0x100] sm:%s307] %v380
                %v382 = vld [vmem:[%s314 + $0x208] sm:%s307]
                %383 = vst [vmem:[%s315 + $0x108] sm:%s307] %v382
                %v384 = vld [vmem:[%s314 + $0x210] sm:%s307]
                %385 = vst [vmem:[%s315 + $0x110] sm:%s307] %v384
                %v386 = vld [vmem:[%s314 + $0x218] sm:%s307]
                %387 = vst [vmem:[%s315 + $0x118] sm:%s307] %v386
                %v388 = vld [vmem:[%s314 + $0x220] sm:%s307]
                %389 = vst [vmem:[%s315 + $0x120] sm:%s307] %v388
                %v390 = vld [vmem:[%s314 + $0x228] sm:%s307]
                %391 = vst [vmem:[%s315 + $0x128] sm:%s307] %v390
                %v392 = vld [vmem:[%s314 + $0x230] sm:%s307]
                %393 = vst [vmem:[%s315 + $0x130] sm:%s307] %v392
                %v394 = vld [vmem:[%s314 + $0x238] sm:%s307]
                %395 = vst [vmem:[%s315 + $0x138] sm:%s307] %v394
                %v396 = vld [vmem:[%s314 + $0x240] sm:%s307]
                %397 = vst [vmem:[%s315 + $0x140] sm:%s307] %v396
                %v398 = vld [vmem:[%s314 + $0x248] sm:%s307]
                %399 = vst [vmem:[%s315 + $0x148] sm:%s307] %v398
                %v400 = vld [vmem:[%s314 + $0x250] sm:%s307]
                %401 = vst [vmem:[%s315 + $0x150] sm:%s307] %v400
                %v402 = vld [vmem:[%s314 + $0x258] sm:%s307]
                %403 = vst [vmem:[%s315 + $0x158] sm:%s307] %v402
                %v404 = vld [vmem:[%s314 + $0x260] sm:%s307]
                %405 = vst [vmem:[%s315 + $0x160] sm:%s307] %v404
                %v406 = vld [vmem:[%s314 + $0x268] sm:%s307]
                %407 = vst [vmem:[%s315 + $0x168] sm:%s307] %v406
                %v408 = vld [vmem:[%s314 + $0x270] sm:%s307]
                %409 = vst [vmem:[%s315 + $0x170] sm:%s307] %v408
                %v410 = vld [vmem:[%s314 + $0x278] sm:%s307]
                %411 = vst [vmem:[%s315 + $0x178] sm:%s307] %v410
                %v412 = vld [vmem:[%s314 + $0x300] sm:%s307]
                %413 = vst [vmem:[%s315 + $0x180] sm:%s307] %v412
                %v414 = vld [vmem:[%s314 + $0x308] sm:%s307]
                %415 = vst [vmem:[%s315 + $0x188] sm:%s307] %v414
                %v416 = vld [vmem:[%s314 + $0x310] sm:%s307]
                %417 = vst [vmem:[%s315 + $0x190] sm:%s307] %v416
                %v418 = vld [vmem:[%s314 + $0x318] sm:%s307]
                %419 = vst [vmem:[%s315 + $0x198] sm:%s307] %v418
                %v420 = vld [vmem:[%s314 + $0x320] sm:%s307]
                %421 = vst [vmem:[%s315 + $0x1a0] sm:%s307] %v420
                %v422 = vld [vmem:[%s314 + $0x328] sm:%s307]
                %423 = vst [vmem:[%s315 + $0x1a8] sm:%s307] %v422
                %v424 = vld [vmem:[%s314 + $0x330] sm:%s307]
                %425 = vst [vmem:[%s315 + $0x1b0] sm:%s307] %v424
                %v426 = vld [vmem:[%s314 + $0x338] sm:%s307]
                %427 = vst [vmem:[%s315 + $0x1b8] sm:%s307] %v426
                %v428 = vld [vmem:[%s314 + $0x340] sm:%s307]
                %429 = vst [vmem:[%s315 + $0x1c0] sm:%s307] %v428
                %v430 = vld [vmem:[%s314 + $0x348] sm:%s307]
                %431 = vst [vmem:[%s315 + $0x1c8] sm:%s307] %v430
                %v432 = vld [vmem:[%s314 + $0x350] sm:%s307]
                %433 = vst [vmem:[%s315 + $0x1d0] sm:%s307] %v432
                %v434 = vld [vmem:[%s314 + $0x358] sm:%s307]
                %435 = vst [vmem:[%s315 + $0x1d8] sm:%s307] %v434
                %v436 = vld [vmem:[%s314 + $0x360] sm:%s307]
                %437 = vst [vmem:[%s315 + $0x1e0] sm:%s307] %v436
                %v438 = vld [vmem:[%s314 + $0x368] sm:%s307]
                %439 = vst [vmem:[%s315 + $0x1e8] sm:%s307] %v438
                %v440 = vld [vmem:[%s314 + $0x370] sm:%s307]
                %441 = vst [vmem:[%s315 + $0x1f0] sm:%s307] %v440
                %v442 = vld [vmem:[%s314 + $0x378] sm:%s307]
                %443 = vst [vmem:[%s315 + $0x1f8] sm:%s307] %v442
              $region65: #{swin_block_forward.2} parent=59 // loop_footer
                %s313 = sadd.s32 1, %s309
              $region66: #{swin_block_forward.2} parent=59 // loop_footer_branch
                %308 = sbr.rel target = $region62
              $region67: #{swin_block_forward.2} parent=59 // loop_exit
                _
            $region60: #{swin_block_forward.2} parent=51 // pred_fallthru
              _
          $region52: #{swin_block_forward.2} parent=47 // pred_fallthru
            _
          %584 = vnop
        $region48: #{swin_block_forward.2} parent=39 // pred_fallthru
          _
      $region40: #{swin_block_forward.2} parent=5 // pred_fallthru
        _
      %p585 = scmp.le.s32.totalorder 1, %s14
      %p586 = scmp.lt.s32.totalorder %s14, 5
      %p587 = pnand %p585, %p586
      %p588 = pneg %p587
      // Predicated region
      $region83: #{swin_block_forward.2} parent=5 // pred_check
        _
      $region84: #{swin_block_forward.2} parent=5 // pred_check_branch
        %590 = sbr.rel (%p587) target = $region86
      $region85: #{swin_block_forward.2} parent=5 // pred_region
        %s591 = ssub.s32 %s14, 1
        %s592 = sand.u32 %s195, 1
        %s593 = sand.u32 %s195, 1
        %s594 = smul.addr %s593, 512
        %s595 = scalar_lea.vmem [#allocation2], %s594
        // Predicated region
        $region87: #{swin_block_forward.2} parent=85 // pred_check
          %p596 = pneg %p208
        $region88: #{swin_block_forward.2} parent=85 // pred_check_branch
          %598 = sbr.rel (%p596) target = $region90
        $region89: #{swin_block_forward.2} parent=85 // pred_region
          _
        $region90: #{swin_block_forward.2} parent=85 // pred_fallthru
          _
        %s599 = smul.u32 %s23, 2
        %s600 = sadd.s32 %s599, %s24
        %s601 = smul.u32 4, %s600
        %p602 = scmp.lt.s32.totalorder %s601, 15
        %s603 = scalar_select %p602, %s601, 15
        %s604 = smul.addr %s603, 4
        %s605 = smul.addr %s604, 8
        %s606 = scalar_lea.vmem %s0, %s605
        %p607 = pneg %p56
        %p608 = pneg %p53
        %p609 = pneg %p77
        %p610 = pneg %p74
        %p611 = pneg %p98
        %p612 = pneg %p95
        %p613 = pneg %p119
        %p614 = pneg %p116
        %p615 = pneg %p140
        %p616 = pneg %p137
        %p617 = pneg %p161
        %p618 = pneg %p158
        %p619 = pneg %p182
        %p620 = pneg %p179
        %s621 = sand.u32 %s195, 1
        %s622 = sand.u32 %s195, 1
        %s623 = smul.addr %s622, 512
        %s624 = scalar_lea.vmem [#allocation2], %s623
        %p625 = pneg %p208
        %p626 = pneg %p205
        %p627 = pneg %p238
        %p628 = pneg %p235
        %s629 = smul.u32 %s23, 2
        %s630 = sadd.s32 %s629, %s24
        %s631 = smul.u32 4, %s630
        %p632 = scmp.lt.s32.totalorder %s631, 15
        %s633 = scalar_select %p632, %s631, 15
        %s634 = smul.addr %s633, 4
        %s635 = smul.addr %s634, 8
        %s636 = scalar_lea.vmem %s8, %s635
        %s637 = smul.u32 %s23, 2
        %s638 = sadd.s32 %s637, %s24
        %s639 = smul.u32 4, %s638
        %p640 = scmp.lt.s32.totalorder %s639, 15
        %s641 = scalar_select %p640, %s639, 15
        %s642 = smul.addr %s641, 4
        %s643 = smul.addr %s642, 8
        %s644 = scalar_lea.vmem %s0, %s643
        %s645 = smul.u32 %s23, 2
        %s646 = sadd.s32 %s645, %s24
        %s647 = smul.u32 4, %s646
        %s648 = smul.u32 4, %s24
        %s649 = smul.u32 %s23, 2
        %s650 = sadd.s32 %s649, %s24
        %s651 = smul.u32 4, %s650
        %p652 = scmp.lt.s32.totalorder %s651, 15
        %s653 = scalar_select %p652, %s651, 15
        %s654 = smul.addr %s653, 4
        %s655 = smul.addr %s654, 8
        %s656 = scalar_lea.vmem %s8, %s655
        %s657 = smul.u32 %s23, 2
        %s658 = sadd.s32 %s657, %s24
        %s659 = smul.u32 4, %s658
        %v660 = vld [vmem:[%s644] sm:$0xff]
        %v661 = vld [vmem:[%s644 + $0x8] sm:$0xff]
        %v662 = vld [vmem:[%s644 + $0x10] sm:$0xff]
        %v663 = vld [vmem:[%s644 + $0x18] sm:$0xff]
        %v664 = vld [vmem:[%s644 + $0x20] sm:$0xff]
        %v665 = vld [vmem:[%s644 + $0x28] sm:$0xff]
        %v666 = vld [vmem:[%s644 + $0x30] sm:$0xff]
        %v667 = vld [vmem:[%s644 + $0x38] sm:$0xff]
        %v668 = vld [vmem:[%s644 + $0x40] sm:$0xff]
        %v669 = vld [vmem:[%s644 + $0x48] sm:$0xff]
        %v670 = vld [vmem:[%s644 + $0x50] sm:$0xff]
        %v671 = vld [vmem:[%s644 + $0x58] sm:$0xff]
        %v672 = vld [vmem:[%s644 + $0x60] sm:$0xff]
        %v673 = vld [vmem:[%s644 + $0x68] sm:$0xff]
        %v674 = vld [vmem:[%s644 + $0x70] sm:$0xff]
        %v675 = vld [vmem:[%s644 + $0x78] sm:$0xff]
        %v676 = vld [vmem:[%s1] sm:$0x1]
        %v677 = vld [vmem:[%s2] sm:$0x1]
        %vm678 = vcmask 261120
        %v679 = vsel %vm678, %v660, 0.0
        %680 = vadd.xlane.f32.xlu0 %v679
        %v681 = vpop.xlane.xlu0 %680
        %v682 = vsel %vm678, %v661, 0.0
        %683 = vadd.xlane.f32.xlu0 %v682
        %v684 = vpop.xlane.xlu0 %683
        %v685 = vsel %vm678, %v662, 0.0
        %686 = vadd.xlane.f32.xlu0 %v685
        %v687 = vpop.xlane.xlu0 %686
        %v688 = vsel %vm678, %v663, 0.0
        %689 = vadd.xlane.f32.xlu0 %v688
        %v690 = vpop.xlane.xlu0 %689
        %v691 = vsel %vm678, %v664, 0.0
        %692 = vadd.xlane.f32.xlu0 %v691
        %v693 = vpop.xlane.xlu0 %692
        %v694 = vsel %vm678, %v665, 0.0
        %695 = vadd.xlane.f32.xlu0 %v694
        %v696 = vpop.xlane.xlu0 %695
        %v697 = vsel %vm678, %v666, 0.0
        %698 = vadd.xlane.f32.xlu0 %v697
        %v699 = vpop.xlane.xlu0 %698
        %v700 = vsel %vm678, %v667, 0.0
        %701 = vadd.xlane.f32.xlu0 %v700
        %v702 = vpop.xlane.xlu0 %701
        %v703 = vsel %vm678, %v668, 0.0
        %704 = vadd.xlane.f32.xlu0 %v703
        %v705 = vpop.xlane.xlu0 %704
        %v706 = vsel %vm678, %v669, 0.0
        %707 = vadd.xlane.f32.xlu0 %v706
        %v708 = vpop.xlane.xlu0 %707
        %v709 = vsel %vm678, %v670, 0.0
        %710 = vadd.xlane.f32.xlu0 %v709
        %v711 = vpop.xlane.xlu0 %710
        %v712 = vsel %vm678, %v671, 0.0
        %713 = vadd.xlane.f32.xlu0 %v712
        %v714 = vpop.xlane.xlu0 %713
        %v715 = vsel %vm678, %v672, 0.0
        %716 = vadd.xlane.f32.xlu0 %v715
        %v717 = vpop.xlane.xlu0 %716
        %v718 = vsel %vm678, %v673, 0.0
        %719 = vadd.xlane.f32.xlu0 %v718
        %v720 = vpop.xlane.xlu0 %719
        %v721 = vsel %vm678, %v674, 0.0
        %722 = vadd.xlane.f32.xlu0 %v721
        %v723 = vpop.xlane.xlu0 %722
        %v724 = vsel %vm678, %v675, 0.0
        %725 = vadd.xlane.f32.xlu0 %v724
        %v726 = vpop.xlane.xlu0 %725
        %v727 = vrcp.pop 32.0
        %v728 = vmul.f32 32.0, %v727
        %v729 = vsub.f32 1.0, %v728
        %v730 = vmul.f32 %v727, %v729
        %v731 = vadd.f32 %v727, %v730
        %vm732 = vweird.f32 %v727
        %v733 = vsel %vm732, %v727, %v731
        %v734 = vmul.f32 %v681, %v733
        %v735 = vmul.f32 %v684, %v733
        %v736 = vmul.f32 %v687, %v733
        %v737 = vmul.f32 %v690, %v733
        %v738 = vmul.f32 %v693, %v733
        %v739 = vmul.f32 %v696, %v733
        %v740 = vmul.f32 %v699, %v733
        %v741 = vmul.f32 %v702, %v733
        %v742 = vmul.f32 %v705, %v733
        %v743 = vmul.f32 %v708, %v733
        %v744 = vmul.f32 %v711, %v733
        %v745 = vmul.f32 %v714, %v733
        %v746 = vmul.f32 %v717, %v733
        %v747 = vmul.f32 %v720, %v733
        %v748 = vmul.f32 %v723, %v733
        %v749 = vmul.f32 %v726, %v733
        %v750 = vsub.f32 %v660, %v734
        %v751 = vsub.f32 %v661, %v735
        %v752 = vsub.f32 %v662, %v736
        %v753 = vsub.f32 %v663, %v737
        %v754 = vsub.f32 %v664, %v738
        %v755 = vsub.f32 %v665, %v739
        %v756 = vsub.f32 %v666, %v740
        %v757 = vsub.f32 %v667, %v741
        %v758 = vsub.f32 %v668, %v742
        %v759 = vsub.f32 %v669, %v743
        %v760 = vsub.f32 %v670, %v744
        %v761 = vsub.f32 %v671, %v745
        %v762 = vsub.f32 %v672, %v746
        %v763 = vsub.f32 %v673, %v747
        %v764 = vsub.f32 %v674, %v748
        %v765 = vsub.f32 %v675, %v749
        %v766 = vmul.f32 %v750, %v750
        %v767 = vmul.f32 %v751, %v751
        %v768 = vmul.f32 %v752, %v752
        %v769 = vmul.f32 %v753, %v753
        %v770 = vmul.f32 %v754, %v754
        %v771 = vmul.f32 %v755, %v755
        %v772 = vmul.f32 %v756, %v756
        %v773 = vmul.f32 %v757, %v757
        %v774 = vmul.f32 %v758, %v758
        %v775 = vmul.f32 %v759, %v759
        %v776 = vmul.f32 %v760, %v760
        %v777 = vmul.f32 %v761, %v761
        %v778 = vmul.f32 %v762, %v762
        %v779 = vmul.f32 %v763, %v763
        %v780 = vmul.f32 %v764, %v764
        %v781 = vmul.f32 %v765, %v765
        %v782 = vsel %vm678, %v766, 0.0
        %783 = vadd.xlane.f32.xlu0 %v782
        %v784 = vpop.xlane.xlu0 %783
        %v785 = vsel %vm678, %v767, 0.0
        %786 = vadd.xlane.f32.xlu0 %v785
        %v787 = vpop.xlane.xlu0 %786
        %v788 = vsel %vm678, %v768, 0.0
        %789 = vadd.xlane.f32.xlu0 %v788
        %v790 = vpop.xlane.xlu0 %789
        %v791 = vsel %vm678, %v769, 0.0
        %792 = vadd.xlane.f32.xlu0 %v791
        %v793 = vpop.xlane.xlu0 %792
        %v794 = vsel %vm678, %v770, 0.0
        %795 = vadd.xlane.f32.xlu0 %v794
        %v796 = vpop.xlane.xlu0 %795
        %v797 = vsel %vm678, %v771, 0.0
        %798 = vadd.xlane.f32.xlu0 %v797
        %v799 = vpop.xlane.xlu0 %798
        %v800 = vsel %vm678, %v772, 0.0
        %801 = vadd.xlane.f32.xlu0 %v800
        %v802 = vpop.xlane.xlu0 %801
        %v803 = vsel %vm678, %v773, 0.0
        %804 = vadd.xlane.f32.xlu0 %v803
        %v805 = vpop.xlane.xlu0 %804
        %v806 = vsel %vm678, %v774, 0.0
        %807 = vadd.xlane.f32.xlu0 %v806
        %v808 = vpop.xlane.xlu0 %807
        %v809 = vsel %vm678, %v775, 0.0
        %810 = vadd.xlane.f32.xlu0 %v809
        %v811 = vpop.xlane.xlu0 %810
        %v812 = vsel %vm678, %v776, 0.0
        %813 = vadd.xlane.f32.xlu0 %v812
        %v814 = vpop.xlane.xlu0 %813
        %v815 = vsel %vm678, %v777, 0.0
        %816 = vadd.xlane.f32.xlu0 %v815
        %v817 = vpop.xlane.xlu0 %816
        %v818 = vsel %vm678, %v778, 0.0
        %819 = vadd.xlane.f32.xlu0 %v818
        %v820 = vpop.xlane.xlu0 %819
        %v821 = vsel %vm678, %v779, 0.0
        %822 = vadd.xlane.f32.xlu0 %v821
        %v823 = vpop.xlane.xlu0 %822
        %v824 = vsel %vm678, %v780, 0.0
        %825 = vadd.xlane.f32.xlu0 %v824
        %v826 = vpop.xlane.xlu0 %825
        %v827 = vsel %vm678, %v781, 0.0
        %828 = vadd.xlane.f32.xlu0 %v827
        %v829 = vpop.xlane.xlu0 %828
        %v830 = vmul.f32 %v784, %v733
        %v831 = vmul.f32 %v787, %v733
        %v832 = vmul.f32 %v790, %v733
        %v833 = vmul.f32 %v793, %v733
        %v834 = vmul.f32 %v796, %v733
        %v835 = vmul.f32 %v799, %v733
        %v836 = vmul.f32 %v802, %v733
        %v837 = vmul.f32 %v805, %v733
        %v838 = vmul.f32 %v808, %v733
        %v839 = vmul.f32 %v811, %v733
        %v840 = vmul.f32 %v814, %v733
        %v841 = vmul.f32 %v817, %v733
        %v842 = vmul.f32 %v820, %v733
        %v843 = vmul.f32 %v823, %v733
        %v844 = vmul.f32 %v826, %v733
        %v845 = vmul.f32 %v829, %v733
        %v846 = vadd.f32 %v830, 1e-05
        %v847 = vadd.f32 %v831, 1e-05
        %v848 = vadd.f32 %v832, 1e-05
        %v849 = vadd.f32 %v833, 1e-05
        %v850 = vadd.f32 %v834, 1e-05
        %v851 = vadd.f32 %v835, 1e-05
        %v852 = vadd.f32 %v836, 1e-05
        %v853 = vadd.f32 %v837, 1e-05
        %v854 = vadd.f32 %v838, 1e-05
        %v855 = vadd.f32 %v839, 1e-05
        %v856 = vadd.f32 %v840, 1e-05
        %v857 = vadd.f32 %v841, 1e-05
        %v858 = vadd.f32 %v842, 1e-05
        %v859 = vadd.f32 %v843, 1e-05
        %v860 = vadd.f32 %v844, 1e-05
        %v861 = vadd.f32 %v845, 1e-05
        %v862 = vrsqrt.pop %v846
        %v863 = vmul.f32 %v862, %v846
        %v864 = vmul.f32 %v863, %v862
        %v865 = vmul.f32 0.5, %v864
        %v866 = vsub.f32 1.5, %v865
        %v867 = vmul.f32 %v862, %v866
        %vm868 = vweird.f32 %v846
        %vm869 = vweird.f32 %v862
        %vm870 = vmor %vm868, %vm869
        %v871 = vsel %vm870, %v862, %v867
        %v872 = vrsqrt.pop %v847
        %v873 = vmul.f32 %v872, %v847
        %v874 = vmul.f32 %v873, %v872
        %v875 = vmul.f32 0.5, %v874
        %v876 = vsub.f32 1.5, %v875
        %v877 = vmul.f32 %v872, %v876
        %vm878 = vweird.f32 %v847
        %vm879 = vweird.f32 %v872
        %vm880 = vmor %vm878, %vm879
        %v881 = vsel %vm880, %v872, %v877
        %v882 = vrsqrt.pop %v848
        %v883 = vmul.f32 %v882, %v848
        %v884 = vmul.f32 %v883, %v882
        %v885 = vmul.f32 0.5, %v884
        %v886 = vsub.f32 1.5, %v885
        %v887 = vmul.f32 %v882, %v886
        %vm888 = vweird.f32 %v848
        %vm889 = vweird.f32 %v882
        %vm890 = vmor %vm888, %vm889
        %v891 = vsel %vm890, %v882, %v887
        %v892 = vrsqrt.pop %v849
        %v893 = vmul.f32 %v892, %v849
        %v894 = vmul.f32 %v893, %v892
        %v895 = vmul.f32 0.5, %v894
        %v896 = vsub.f32 1.5, %v895
        %v897 = vmul.f32 %v892, %v896
        %vm898 = vweird.f32 %v849
        %vm899 = vweird.f32 %v892
        %vm900 = vmor %vm898, %vm899
        %v901 = vsel %vm900, %v892, %v897
        %v902 = vrsqrt.pop %v850
        %v903 = vmul.f32 %v902, %v850
        %v904 = vmul.f32 %v903, %v902
        %v905 = vmul.f32 0.5, %v904
        %v906 = vsub.f32 1.5, %v905
        %v907 = vmul.f32 %v902, %v906
        %vm908 = vweird.f32 %v850
        %vm909 = vweird.f32 %v902
        %vm910 = vmor %vm908, %vm909
        %v911 = vsel %vm910, %v902, %v907
        %v912 = vrsqrt.pop %v851
        %v913 = vmul.f32 %v912, %v851
        %v914 = vmul.f32 %v913, %v912
        %v915 = vmul.f32 0.5, %v914
        %v916 = vsub.f32 1.5, %v915
        %v917 = vmul.f32 %v912, %v916
        %vm918 = vweird.f32 %v851
        %vm919 = vweird.f32 %v912
        %vm920 = vmor %vm918, %vm919
        %v921 = vsel %vm920, %v912, %v917
        %v922 = vrsqrt.pop %v852
        %v923 = vmul.f32 %v922, %v852
        %v924 = vmul.f32 %v923, %v922
        %v925 = vmul.f32 0.5, %v924
        %v926 = vsub.f32 1.5, %v925
        %v927 = vmul.f32 %v922, %v926
        %vm928 = vweird.f32 %v852
        %vm929 = vweird.f32 %v922
        %vm930 = vmor %vm928, %vm929
        %v931 = vsel %vm930, %v922, %v927
        %v932 = vrsqrt.pop %v853
        %v933 = vmul.f32 %v932, %v853
        %v934 = vmul.f32 %v933, %v932
        %v935 = vmul.f32 0.5, %v934
        %v936 = vsub.f32 1.5, %v935
        %v937 = vmul.f32 %v932, %v936
        %vm938 = vweird.f32 %v853
        %vm939 = vweird.f32 %v932
        %vm940 = vmor %vm938, %vm939
        %v941 = vsel %vm940, %v932, %v937
        %v942 = vrsqrt.pop %v854
        %v943 = vmul.f32 %v942, %v854
        %v944 = vmul.f32 %v943, %v942
        %v945 = vmul.f32 0.5, %v944
        %v946 = vsub.f32 1.5, %v945
        %v947 = vmul.f32 %v942, %v946
        %vm948 = vweird.f32 %v854
        %vm949 = vweird.f32 %v942
        %vm950 = vmor %vm948, %vm949
        %v951 = vsel %vm950, %v942, %v947
        %v952 = vrsqrt.pop %v855
        %v953 = vmul.f32 %v952, %v855
        %v954 = vmul.f32 %v953, %v952
        %v955 = vmul.f32 0.5, %v954
        %v956 = vsub.f32 1.5, %v955
        %v957 = vmul.f32 %v952, %v956
        %vm958 = vweird.f32 %v855
        %vm959 = vweird.f32 %v952
        %vm960 = vmor %vm958, %vm959
        %v961 = vsel %vm960, %v952, %v957
        %v962 = vrsqrt.pop %v856
        %v963 = vmul.f32 %v962, %v856
        %v964 = vmul.f32 %v963, %v962
        %v965 = vmul.f32 0.5, %v964
        %v966 = vsub.f32 1.5, %v965
        %v967 = vmul.f32 %v962, %v966
        %vm968 = vweird.f32 %v856
        %vm969 = vweird.f32 %v962
        %vm970 = vmor %vm968, %vm969
        %v971 = vsel %vm970, %v962, %v967
        %v972 = vrsqrt.pop %v857
        %v973 = vmul.f32 %v972, %v857
        %v974 = vmul.f32 %v973, %v972
        %v975 = vmul.f32 0.5, %v974
        %v976 = vsub.f32 1.5, %v975
        %v977 = vmul.f32 %v972, %v976
        %vm978 = vweird.f32 %v857
        %vm979 = vweird.f32 %v972
        %vm980 = vmor %vm978, %vm979
        %v981 = vsel %vm980, %v972, %v977
        %v982 = vrsqrt.pop %v858
        %v983 = vmul.f32 %v982, %v858
        %v984 = vmul.f32 %v983, %v982
        %v985 = vmul.f32 0.5, %v984
        %v986 = vsub.f32 1.5, %v985
        %v987 = vmul.f32 %v982, %v986
        %vm988 = vweird.f32 %v858
        %vm989 = vweird.f32 %v982
        %vm990 = vmor %vm988, %vm989
        %v991 = vsel %vm990, %v982, %v987
        %v992 = vrsqrt.pop %v859
        %v993 = vmul.f32 %v992, %v859
        %v994 = vmul.f32 %v993, %v992
        %v995 = vmul.f32 0.5, %v994
        %v996 = vsub.f32 1.5, %v995
        %v997 = vmul.f32 %v992, %v996
        %vm998 = vweird.f32 %v859
        %vm999 = vweird.f32 %v992
        %vm1000 = vmor %vm998, %vm999
        %v1001 = vsel %vm1000, %v992, %v997
        %v1002 = vrsqrt.pop %v860
        %v1003 = vmul.f32 %v1002, %v860
        %v1004 = vmul.f32 %v1003, %v1002
        %v1005 = vmul.f32 0.5, %v1004
        %v1006 = vsub.f32 1.5, %v1005
        %v1007 = vmul.f32 %v1002, %v1006
        %vm1008 = vweird.f32 %v860
        %vm1009 = vweird.f32 %v1002
        %vm1010 = vmor %vm1008, %vm1009
        %v1011 = vsel %vm1010, %v1002, %v1007
        %v1012 = vrsqrt.pop %v861
        %v1013 = vmul.f32 %v1012, %v861
        %v1014 = vmul.f32 %v1013, %v1012
        %v1015 = vmul.f32 0.5, %v1014
        %v1016 = vsub.f32 1.5, %v1015
        %v1017 = vmul.f32 %v1012, %v1016
        %vm1018 = vweird.f32 %v861
        %vm1019 = vweird.f32 %v1012
        %vm1020 = vmor %vm1018, %vm1019
        %v1021 = vsel %vm1020, %v1012, %v1017
        %v1022 = vmul.f32 %v750, %v871
        %v1023 = vmul.f32 %v751, %v881
        %v1024 = vmul.f32 %v752, %v891
        %v1025 = vmul.f32 %v753, %v901
        %v1026 = vmul.f32 %v754, %v911
        %v1027 = vmul.f32 %v755, %v921
        %v1028 = vmul.f32 %v756, %v931
        %v1029 = vmul.f32 %v757, %v941
        %v1030 = vmul.f32 %v758, %v951
        %v1031 = vmul.f32 %v759, %v961
        %v1032 = vmul.f32 %v760, %v971
        %v1033 = vmul.f32 %v761, %v981
        %v1034 = vmul.f32 %v762, %v991
        %v1035 = vmul.f32 %v763, %v1001
        %v1036 = vmul.f32 %v764, %v1011
        %v1037 = vmul.f32 %v765, %v1021
        %v1039 = vperm.slane %v676, 0
        %v1041 = vmul.f32 %v1022, %v1039
        %v1042 = vmul.f32 %v1023, %v1039
        %v1043 = vmul.f32 %v1024, %v1039
        %v1044 = vmul.f32 %v1025, %v1039
        %v1045 = vmul.f32 %v1026, %v1039
        %v1046 = vmul.f32 %v1027, %v1039
        %v1047 = vmul.f32 %v1028, %v1039
        %v1048 = vmul.f32 %v1029, %v1039
        %v1049 = vmul.f32 %v1030, %v1039
        %v1050 = vmul.f32 %v1031, %v1039
        %v1051 = vmul.f32 %v1032, %v1039
        %v1052 = vmul.f32 %v1033, %v1039
        %v1053 = vmul.f32 %v1034, %v1039
        %v1054 = vmul.f32 %v1035, %v1039
        %v1055 = vmul.f32 %v1036, %v1039
        %v1056 = vmul.f32 %v1037, %v1039
        %v1058 = vperm.slane %v677, 0
        %v1060 = vadd.f32 %v1041, %v1058
        %v1061 = vadd.f32 %v1042, %v1058
        %v1062 = vadd.f32 %v1043, %v1058
        %v1063 = vadd.f32 %v1044, %v1058
        %v1064 = vadd.f32 %v1045, %v1058
        %v1065 = vadd.f32 %v1046, %v1058
        %v1066 = vadd.f32 %v1047, %v1058
        %v1067 = vadd.f32 %v1048, %v1058
        %v1068 = vadd.f32 %v1049, %v1058
        %v1069 = vadd.f32 %v1050, %v1058
        %v1070 = vadd.f32 %v1051, %v1058
        %v1071 = vadd.f32 %v1052, %v1058
        %v1072 = vadd.f32 %v1053, %v1058
        %v1073 = vadd.f32 %v1054, %v1058
        %v1074 = vadd.f32 %v1055, %v1058
        %v1075 = vadd.f32 %v1056, %v1058
        %v1076 = vld [vmem:[%s3] sm:$0xff]
        %v1077 = vld [vmem:[%s3 + $0x8] sm:$0xff]
        %v1078 = vld [vmem:[%s3 + $0x10] sm:$0xff]
        %v1079 = vld [vmem:[%s3 + $0x18] sm:$0xff]
        %v1080 = vld [vmem:[%s4] sm:$0x1]
        %v1082 = vperm.slane %v1080, 0
        %v1085 = vsel %vm678, %v1060, 0
        %v1088 = vsel %vm678, %v1061, 0
        %v1091 = vsel %vm678, %v1062, 0
        %v1094 = vsel %vm678, %v1063, 0
        %v1097 = vsel %vm678, %v1064, 0
        %v1100 = vsel %vm678, %v1065, 0
        %v1103 = vsel %vm678, %v1066, 0
        %v1106 = vsel %vm678, %v1067, 0
        %v1109 = vsel %vm678, %v1068, 0
        %v1112 = vsel %vm678, %v1069, 0
        %v1115 = vsel %vm678, %v1070, 0
        %v1118 = vsel %vm678, %v1071, 0
        %v1121 = vsel %vm678, %v1072, 0
        %v1124 = vsel %vm678, %v1073, 0
        %v1127 = vsel %vm678, %v1074, 0
        %v1130 = vsel %vm678, %v1075, 0
        %1132 = vmatpush.msra.mxu0 0.0
        %1133 = vmatpush.msra.mxu0 0.0
        %1134 = vmatpush.msra.mxu0 0.0
        %1135 = vmatpush.msra.mxu0 0.0
        %1136 = vmatpush.msra.mxu0 0.0
        %1137 = vmatpush.msra.mxu0 0.0
        %1138 = vmatpush.msra.mxu0 0.0
        %1139 = vmatpush.msra.mxu0 0.0
        %1140 = vmatpush.msra.mxu0 0.0
        %1141 = vmatpush.msra.mxu0 0.0
        %1142 = vmatpush.msra.mxu0 0.0
        %1143 = vmatpush.msra.mxu0 0.0
        %1144 = vmatpush.msra.mxu0 %v1079
        %1145 = vmatpush.msra.mxu0 %v1078
        %1146 = vmatpush.msra.mxu0 %v1077
        %1147 = vmatpush.msra.mxu0 %v1076
        %1148 = vmatmul.f32.gmra.mxu0 %v1085
        %v1149 = vpop.f32.mrf.mxu0
        %v1150 = vadd.f32 %v1082, %v1149
        %1151 = vmatmul.f32.gmra.mxu0 %v1088
        %v1152 = vpop.f32.mrf.mxu0
        %v1153 = vadd.f32 %v1082, %v1152
        %1154 = vmatmul.f32.gmra.mxu0 %v1091
        %v1155 = vpop.f32.mrf.mxu0
        %v1156 = vadd.f32 %v1082, %v1155
        %1157 = vmatmul.f32.gmra.mxu0 %v1094
        %v1158 = vpop.f32.mrf.mxu0
        %v1159 = vadd.f32 %v1082, %v1158
        %1160 = vmatmul.f32.gmra.mxu0 %v1097
        %v1161 = vpop.f32.mrf.mxu0
        %v1162 = vadd.f32 %v1082, %v1161
        %1163 = vmatmul.f32.gmra.mxu0 %v1100
        %v1164 = vpop.f32.mrf.mxu0
        %v1165 = vadd.f32 %v1082, %v1164
        %1166 = vmatmul.f32.gmra.mxu0 %v1103
        %v1167 = vpop.f32.mrf.mxu0
        %v1168 = vadd.f32 %v1082, %v1167
        %1169 = vmatmul.f32.gmra.mxu0 %v1106
        %v1170 = vpop.f32.mrf.mxu0
        %v1171 = vadd.f32 %v1082, %v1170
        %1172 = vmatmul.f32.gmra.mxu0 %v1109
        %v1173 = vpop.f32.mrf.mxu0
        %v1174 = vadd.f32 %v1082, %v1173
        %1175 = vmatmul.f32.gmra.mxu0 %v1112
        %v1176 = vpop.f32.mrf.mxu0
        %v1177 = vadd.f32 %v1082, %v1176
        %1178 = vmatmul.f32.gmra.mxu0 %v1115
        %v1179 = vpop.f32.mrf.mxu0
        %v1180 = vadd.f32 %v1082, %v1179
        %1181 = vmatmul.f32.gmra.mxu0 %v1118
        %v1182 = vpop.f32.mrf.mxu0
        %v1183 = vadd.f32 %v1082, %v1182
        %1184 = vmatmul.f32.gmra.mxu0 %v1121
        %v1185 = vpop.f32.mrf.mxu0
        %v1186 = vadd.f32 %v1082, %v1185
        %1187 = vmatmul.f32.gmra.mxu0 %v1124
        %v1188 = vpop.f32.mrf.mxu0
        %v1189 = vadd.f32 %v1082, %v1188
        %1190 = vmatmul.f32.gmra.mxu0 %v1127
        %v1191 = vpop.f32.mrf.mxu0
        %v1192 = vadd.f32 %v1082, %v1191
        %1193 = vmatmul.f32.gmra.mxu0 %v1130
        %v1194 = vpop.f32.mrf.mxu0
        %v1195 = vadd.f32 %v1082, %v1194
        %1196 = vdwg.mxu0
        %1213 = vrot.lane.b32.xlu0 %v1150, 120
        %v1214 = vpop.permute.xlu0 %1213
        %1215 = vrot.lane.b32.xlu0 %v1153, 120
        %v1216 = vpop.permute.xlu0 %1215
        %1217 = vrot.lane.b32.xlu0 %v1156, 120
        %v1218 = vpop.permute.xlu0 %1217
        %1219 = vrot.lane.b32.xlu0 %v1159, 120
        %v1220 = vpop.permute.xlu0 %1219
        %1221 = vrot.lane.b32.xlu0 %v1162, 120
        %v1222 = vpop.permute.xlu0 %1221
        %1223 = vrot.lane.b32.xlu0 %v1165, 120
        %v1224 = vpop.permute.xlu0 %1223
        %1225 = vrot.lane.b32.xlu0 %v1168, 120
        %v1226 = vpop.permute.xlu0 %1225
        %1227 = vrot.lane.b32.xlu0 %v1171, 120
        %v1228 = vpop.permute.xlu0 %1227
        %1229 = vrot.lane.b32.xlu0 %v1174, 120
        %v1230 = vpop.permute.xlu0 %1229
        %1231 = vrot.lane.b32.xlu0 %v1177, 120
        %v1232 = vpop.permute.xlu0 %1231
        %1233 = vrot.lane.b32.xlu0 %v1180, 120
        %v1234 = vpop.permute.xlu0 %1233
        %1235 = vrot.lane.b32.xlu0 %v1183, 120
        %v1236 = vpop.permute.xlu0 %1235
        %1237 = vrot.lane.b32.xlu0 %v1186, 120
        %v1238 = vpop.permute.xlu0 %1237
        %1239 = vrot.lane.b32.xlu0 %v1189, 120
        %v1240 = vpop.permute.xlu0 %1239
        %1241 = vrot.lane.b32.xlu0 %v1192, 120
        %v1242 = vpop.permute.xlu0 %1241
        %1243 = vrot.lane.b32.xlu0 %v1195, 120
        %v1244 = vpop.permute.xlu0 %1243
        %1245 = vrot.lane.b32.xlu0 %v1150, 112
        %v1246 = vpop.permute.xlu0 %1245
        %1247 = vrot.lane.b32.xlu0 %v1153, 112
        %v1248 = vpop.permute.xlu0 %1247
        %1249 = vrot.lane.b32.xlu0 %v1156, 112
        %v1250 = vpop.permute.xlu0 %1249
        %1251 = vrot.lane.b32.xlu0 %v1159, 112
        %v1252 = vpop.permute.xlu0 %1251
        %1253 = vrot.lane.b32.xlu0 %v1162, 112
        %v1254 = vpop.permute.xlu0 %1253
        %1255 = vrot.lane.b32.xlu0 %v1165, 112
        %v1256 = vpop.permute.xlu0 %1255
        %1257 = vrot.lane.b32.xlu0 %v1168, 112
        %v1258 = vpop.permute.xlu0 %1257
        %1259 = vrot.lane.b32.xlu0 %v1171, 112
        %v1260 = vpop.permute.xlu0 %1259
        %1261 = vrot.lane.b32.xlu0 %v1174, 112
        %v1262 = vpop.permute.xlu0 %1261
        %1263 = vrot.lane.b32.xlu0 %v1177, 112
        %v1264 = vpop.permute.xlu0 %1263
        %1265 = vrot.lane.b32.xlu0 %v1180, 112
        %v1266 = vpop.permute.xlu0 %1265
        %1267 = vrot.lane.b32.xlu0 %v1183, 112
        %v1268 = vpop.permute.xlu0 %1267
        %1269 = vrot.lane.b32.xlu0 %v1186, 112
        %v1270 = vpop.permute.xlu0 %1269
        %1271 = vrot.lane.b32.xlu0 %v1189, 112
        %v1272 = vpop.permute.xlu0 %1271
        %1273 = vrot.lane.b32.xlu0 %v1192, 112
        %v1274 = vpop.permute.xlu0 %1273
        %1275 = vrot.lane.b32.xlu0 %v1195, 112
        %v1276 = vpop.permute.xlu0 %1275
        %1277 = vrot.lane.b32.xlu0 %v1150, 104
        %v1278 = vpop.permute.xlu0 %1277
        %1279 = vrot.lane.b32.xlu0 %v1153, 104
        %v1280 = vpop.permute.xlu0 %1279
        %1281 = vrot.lane.b32.xlu0 %v1156, 104
        %v1282 = vpop.permute.xlu0 %1281
        %1283 = vrot.lane.b32.xlu0 %v1159, 104
        %v1284 = vpop.permute.xlu0 %1283
        %1285 = vrot.lane.b32.xlu0 %v1162, 104
        %v1286 = vpop.permute.xlu0 %1285
        %1287 = vrot.lane.b32.xlu0 %v1165, 104
        %v1288 = vpop.permute.xlu0 %1287
        %1289 = vrot.lane.b32.xlu0 %v1168, 104
        %v1290 = vpop.permute.xlu0 %1289
        %1291 = vrot.lane.b32.xlu0 %v1171, 104
        %v1292 = vpop.permute.xlu0 %1291
        %1293 = vrot.lane.b32.xlu0 %v1174, 104
        %v1294 = vpop.permute.xlu0 %1293
        %1295 = vrot.lane.b32.xlu0 %v1177, 104
        %v1296 = vpop.permute.xlu0 %1295
        %1297 = vrot.lane.b32.xlu0 %v1180, 104
        %v1298 = vpop.permute.xlu0 %1297
        %1299 = vrot.lane.b32.xlu0 %v1183, 104
        %v1300 = vpop.permute.xlu0 %1299
        %1301 = vrot.lane.b32.xlu0 %v1186, 104
        %v1302 = vpop.permute.xlu0 %1301
        %1303 = vrot.lane.b32.xlu0 %v1189, 104
        %v1304 = vpop.permute.xlu0 %1303
        %1305 = vrot.lane.b32.xlu0 %v1192, 104
        %v1306 = vpop.permute.xlu0 %1305
        %1307 = vrot.lane.b32.xlu0 %v1195, 104
        %v1308 = vpop.permute.xlu0 %1307
        %v1309 = vld [vmem:[%s595] sm:$0xff]
        %v1310 = vld [vmem:[%s595 + $0x8] sm:$0xff]
        %v1311 = vld [vmem:[%s595 + $0x10] sm:$0xff]
        %v1312 = vld [vmem:[%s595 + $0x18] sm:$0xff]
        %v1313 = vld [vmem:[%s595 + $0x20] sm:$0xff]
        %v1314 = vld [vmem:[%s595 + $0x28] sm:$0xff]
        %v1315 = vld [vmem:[%s595 + $0x30] sm:$0xff]
        %v1316 = vld [vmem:[%s595 + $0x38] sm:$0xff]
        %v1317 = vld [vmem:[%s595 + $0x40] sm:$0xff]
        %v1318 = vld [vmem:[%s595 + $0x48] sm:$0xff]
        %v1319 = vld [vmem:[%s595 + $0x50] sm:$0xff]
        %v1320 = vld [vmem:[%s595 + $0x58] sm:$0xff]
        %v1321 = vld [vmem:[%s595 + $0x60] sm:$0xff]
        %v1322 = vld [vmem:[%s595 + $0x68] sm:$0xff]
        %v1323 = vld [vmem:[%s595 + $0x70] sm:$0xff]
        %v1324 = vld [vmem:[%s595 + $0x78] sm:$0xff]
        %v1325 = vld [vmem:[%s595 + $0x80] sm:$0xff]
        %v1326 = vld [vmem:[%s595 + $0x88] sm:$0xff]
        %v1327 = vld [vmem:[%s595 + $0x90] sm:$0xff]
        %v1328 = vld [vmem:[%s595 + $0x98] sm:$0xff]
        %v1329 = vld [vmem:[%s595 + $0xa0] sm:$0xff]
        %v1330 = vld [vmem:[%s595 + $0xa8] sm:$0xff]
        %v1331 = vld [vmem:[%s595 + $0xb0] sm:$0xff]
        %v1332 = vld [vmem:[%s595 + $0xb8] sm:$0xff]
        %v1333 = vld [vmem:[%s595 + $0xc0] sm:$0xff]
        %v1334 = vld [vmem:[%s595 + $0xc8] sm:$0xff]
        %v1335 = vld [vmem:[%s595 + $0xd0] sm:$0xff]
        %v1336 = vld [vmem:[%s595 + $0xd8] sm:$0xff]
        %v1337 = vld [vmem:[%s595 + $0xe0] sm:$0xff]
        %v1338 = vld [vmem:[%s595 + $0xe8] sm:$0xff]
        %v1339 = vld [vmem:[%s595 + $0xf0] sm:$0xff]
        %v1340 = vld [vmem:[%s595 + $0xf8] sm:$0xff]
        %v1341 = vld [vmem:[%s595 + $0x100] sm:$0xff]
        %v1342 = vld [vmem:[%s595 + $0x108] sm:$0xff]
        %v1343 = vld [vmem:[%s595 + $0x110] sm:$0xff]
        %v1344 = vld [vmem:[%s595 + $0x118] sm:$0xff]
        %v1345 = vld [vmem:[%s595 + $0x120] sm:$0xff]
        %v1346 = vld [vmem:[%s595 + $0x128] sm:$0xff]
        %v1347 = vld [vmem:[%s595 + $0x130] sm:$0xff]
        %v1348 = vld [vmem:[%s595 + $0x138] sm:$0xff]
        %v1349 = vld [vmem:[%s595 + $0x140] sm:$0xff]
        %v1350 = vld [vmem:[%s595 + $0x148] sm:$0xff]
        %v1351 = vld [vmem:[%s595 + $0x150] sm:$0xff]
        %v1352 = vld [vmem:[%s595 + $0x158] sm:$0xff]
        %v1353 = vld [vmem:[%s595 + $0x160] sm:$0xff]
        %v1354 = vld [vmem:[%s595 + $0x168] sm:$0xff]
        %v1355 = vld [vmem:[%s595 + $0x170] sm:$0xff]
        %v1356 = vld [vmem:[%s595 + $0x178] sm:$0xff]
        %v1357 = vld [vmem:[%s595 + $0x180] sm:$0xff]
        %v1358 = vld [vmem:[%s595 + $0x188] sm:$0xff]
        %v1359 = vld [vmem:[%s595 + $0x190] sm:$0xff]
        %v1360 = vld [vmem:[%s595 + $0x198] sm:$0xff]
        %v1361 = vld [vmem:[%s595 + $0x1a0] sm:$0xff]
        %v1362 = vld [vmem:[%s595 + $0x1a8] sm:$0xff]
        %v1363 = vld [vmem:[%s595 + $0x1b0] sm:$0xff]
        %v1364 = vld [vmem:[%s595 + $0x1b8] sm:$0xff]
        %v1365 = vld [vmem:[%s595 + $0x1c0] sm:$0xff]
        %v1366 = vld [vmem:[%s595 + $0x1c8] sm:$0xff]
        %v1367 = vld [vmem:[%s595 + $0x1d0] sm:$0xff]
        %v1368 = vld [vmem:[%s595 + $0x1d8] sm:$0xff]
        %v1369 = vld [vmem:[%s595 + $0x1e0] sm:$0xff]
        %v1370 = vld [vmem:[%s595 + $0x1e8] sm:$0xff]
        %v1371 = vld [vmem:[%s595 + $0x1f0] sm:$0xff]
        %v1372 = vld [vmem:[%s595 + $0x1f8] sm:$0xff]
        %1373 = vrot.lane.b32.xlu0 %v1150, 96
        %v1374 = vpop.permute.xlu0 %1373
        %1375 = vrot.lane.b32.xlu0 %v1153, 96
        %v1376 = vpop.permute.xlu0 %1375
        %1377 = vrot.lane.b32.xlu0 %v1156, 96
        %v1378 = vpop.permute.xlu0 %1377
        %1379 = vrot.lane.b32.xlu0 %v1159, 96
        %v1380 = vpop.permute.xlu0 %1379
        %vm1381 = vcmask 64512
        %v1382 = vsel %vm1381, %v1150, 0
        %v1384 = vsel %vm1381, %v1153, 0
        %v1386 = vsel %vm1381, %v1156, 0
        %v1388 = vsel %vm1381, %v1159, 0
        %v1390 = vsel %vm1381, %v1374, 0
        %v1392 = vsel %vm1381, %v1376, 0
        %v1394 = vsel %vm1381, %v1378, 0
        %v1396 = vsel %vm1381, %v1380, 0
        %1398 = vmatpush.xpose.msra.mxu0 0.0
        %1399 = vmatpush.xpose.msra.mxu0 0.0
        %1400 = vmatpush.xpose.msra.mxu0 0.0
        %1401 = vmatpush.xpose.msra.mxu0 0.0
        %1402 = vmatpush.xpose.msra.mxu0 0.0
        %1403 = vmatpush.xpose.msra.mxu0 0.0
        %1404 = vmatpush.xpose.msra.mxu0 0.0
        %1405 = vmatpush.xpose.msra.mxu0 0.0
        %1406 = vmatpush.xpose.msra.mxu0 0.0
        %1407 = vmatpush.xpose.msra.mxu0 0.0
        %1408 = vmatpush.xpose.msra.mxu0 0.0
        %1409 = vmatpush.xpose.msra.mxu0 0.0
        %1410 = vmatpush.xpose.msra.mxu0 %v1396
        %1411 = vmatpush.xpose.msra.mxu0 %v1394
        %1412 = vmatpush.xpose.msra.mxu0 %v1392
        %1413 = vmatpush.xpose.msra.mxu0 %v1390
        %1414 = vmatmul.f32.gmra.mxu0 %v1382
        %v1415 = vpop.f32.mrf.mxu0
        %v1416 = vadd.f32 %v1309, %v1415
        %1417 = vmatmul.f32.gmra.mxu0 %v1384
        %v1418 = vpop.f32.mrf.mxu0
        %v1419 = vadd.f32 %v1310, %v1418
        %1420 = vmatmul.f32.gmra.mxu0 %v1386
        %v1421 = vpop.f32.mrf.mxu0
        %v1422 = vadd.f32 %v1311, %v1421
        %1423 = vmatmul.f32.gmra.mxu0 %v1388
        %v1424 = vpop.f32.mrf.mxu0
        %v1425 = vadd.f32 %v1312, %v1424
        %1426 = vdwg.mxu0
        %1427 = vrot.lane.b32.xlu0 %v1162, 96
        %v1428 = vpop.permute.xlu0 %1427
        %1429 = vrot.lane.b32.xlu0 %v1165, 96
        %v1430 = vpop.permute.xlu0 %1429
        %1431 = vrot.lane.b32.xlu0 %v1168, 96
        %v1432 = vpop.permute.xlu0 %1431
        %1433 = vrot.lane.b32.xlu0 %v1171, 96
        %v1434 = vpop.permute.xlu0 %1433
        %v1435 = vsel %vm1381, %v1162, 0
        %v1437 = vsel %vm1381, %v1165, 0
        %v1439 = vsel %vm1381, %v1168, 0
        %v1441 = vsel %vm1381, %v1171, 0
        %v1443 = vsel %vm1381, %v1428, 0
        %v1445 = vsel %vm1381, %v1430, 0
        %v1447 = vsel %vm1381, %v1432, 0
        %v1449 = vsel %vm1381, %v1434, 0
        %1451 = vmatpush.xpose.msra.mxu0 0.0
        %1452 = vmatpush.xpose.msra.mxu0 0.0
        %1453 = vmatpush.xpose.msra.mxu0 0.0
        %1454 = vmatpush.xpose.msra.mxu0 0.0
        %1455 = vmatpush.xpose.msra.mxu0 0.0
        %1456 = vmatpush.xpose.msra.mxu0 0.0
        %1457 = vmatpush.xpose.msra.mxu0 0.0
        %1458 = vmatpush.xpose.msra.mxu0 0.0
        %1459 = vmatpush.xpose.msra.mxu0 0.0
        %1460 = vmatpush.xpose.msra.mxu0 0.0
        %1461 = vmatpush.xpose.msra.mxu0 0.0
        %1462 = vmatpush.xpose.msra.mxu0 0.0
        %1463 = vmatpush.xpose.msra.mxu0 %v1449
        %1464 = vmatpush.xpose.msra.mxu0 %v1447
        %1465 = vmatpush.xpose.msra.mxu0 %v1445
        %1466 = vmatpush.xpose.msra.mxu0 %v1443
        %1467 = vmatmul.f32.gmra.mxu0 %v1435
        %v1468 = vpop.f32.mrf.mxu0
        %v1469 = vadd.f32 %v1313, %v1468
        %1470 = vmatmul.f32.gmra.mxu0 %v1437
        %v1471 = vpop.f32.mrf.mxu0
        %v1472 = vadd.f32 %v1314, %v1471
        %1473 = vmatmul.f32.gmra.mxu0 %v1439
        %v1474 = vpop.f32.mrf.mxu0
        %v1475 = vadd.f32 %v1315, %v1474
        %1476 = vmatmul.f32.gmra.mxu0 %v1441
        %v1477 = vpop.f32.mrf.mxu0
        %v1478 = vadd.f32 %v1316, %v1477
        %1479 = vdwg.mxu0
        %1480 = vrot.lane.b32.xlu0 %v1174, 96
        %v1481 = vpop.permute.xlu0 %1480
        %1482 = vrot.lane.b32.xlu0 %v1177, 96
        %v1483 = vpop.permute.xlu0 %1482
        %1484 = vrot.lane.b32.xlu0 %v1180, 96
        %v1485 = vpop.permute.xlu0 %1484
        %1486 = vrot.lane.b32.xlu0 %v1183, 96
        %v1487 = vpop.permute.xlu0 %1486
        %v1488 = vsel %vm1381, %v1174, 0
        %v1490 = vsel %vm1381, %v1177, 0
        %v1492 = vsel %vm1381, %v1180, 0
        %v1494 = vsel %vm1381, %v1183, 0
        %v1496 = vsel %vm1381, %v1481, 0
        %v1498 = vsel %vm1381, %v1483, 0
        %v1500 = vsel %vm1381, %v1485, 0
        %v1502 = vsel %vm1381, %v1487, 0
        %1504 = vmatpush.xpose.msra.mxu0 0.0
        %1505 = vmatpush.xpose.msra.mxu0 0.0
        %1506 = vmatpush.xpose.msra.mxu0 0.0
        %1507 = vmatpush.xpose.msra.mxu0 0.0
        %1508 = vmatpush.xpose.msra.mxu0 0.0
        %1509 = vmatpush.xpose.msra.mxu0 0.0
        %1510 = vmatpush.xpose.msra.mxu0 0.0
        %1511 = vmatpush.xpose.msra.mxu0 0.0
        %1512 = vmatpush.xpose.msra.mxu0 0.0
        %1513 = vmatpush.xpose.msra.mxu0 0.0
        %1514 = vmatpush.xpose.msra.mxu0 0.0
        %1515 = vmatpush.xpose.msra.mxu0 0.0
        %1516 = vmatpush.xpose.msra.mxu0 %v1502
        %1517 = vmatpush.xpose.msra.mxu0 %v1500
        %1518 = vmatpush.xpose.msra.mxu0 %v1498
        %1519 = vmatpush.xpose.msra.mxu0 %v1496
        %1520 = vmatmul.f32.gmra.mxu0 %v1488
        %v1521 = vpop.f32.mrf.mxu0
        %v1522 = vadd.f32 %v1317, %v1521
        %1523 = vmatmul.f32.gmra.mxu0 %v1490
        %v1524 = vpop.f32.mrf.mxu0
        %v1525 = vadd.f32 %v1318, %v1524
        %1526 = vmatmul.f32.gmra.mxu0 %v1492
        %v1527 = vpop.f32.mrf.mxu0
        %v1528 = vadd.f32 %v1319, %v1527
        %1529 = vmatmul.f32.gmra.mxu0 %v1494
        %v1530 = vpop.f32.mrf.mxu0
        %v1531 = vadd.f32 %v1320, %v1530
        %1532 = vdwg.mxu0
        %1533 = vrot.lane.b32.xlu0 %v1186, 96
        %v1534 = vpop.permute.xlu0 %1533
        %1535 = vrot.lane.b32.xlu0 %v1189, 96
        %v1536 = vpop.permute.xlu0 %1535
        %1537 = vrot.lane.b32.xlu0 %v1192, 96
        %v1538 = vpop.permute.xlu0 %1537
        %1539 = vrot.lane.b32.xlu0 %v1195, 96
        %v1540 = vpop.permute.xlu0 %1539
        %v1541 = vsel %vm1381, %v1186, 0
        %v1543 = vsel %vm1381, %v1189, 0
        %v1545 = vsel %vm1381, %v1192, 0
        %v1547 = vsel %vm1381, %v1195, 0
        %v1549 = vsel %vm1381, %v1534, 0
        %v1551 = vsel %vm1381, %v1536, 0
        %v1553 = vsel %vm1381, %v1538, 0
        %v1555 = vsel %vm1381, %v1540, 0
        %1557 = vmatpush.xpose.msra.mxu0 0.0
        %1558 = vmatpush.xpose.msra.mxu0 0.0
        %1559 = vmatpush.xpose.msra.mxu0 0.0
        %1560 = vmatpush.xpose.msra.mxu0 0.0
        %1561 = vmatpush.xpose.msra.mxu0 0.0
        %1562 = vmatpush.xpose.msra.mxu0 0.0
        %1563 = vmatpush.xpose.msra.mxu0 0.0
        %1564 = vmatpush.xpose.msra.mxu0 0.0
        %1565 = vmatpush.xpose.msra.mxu0 0.0
        %1566 = vmatpush.xpose.msra.mxu0 0.0
        %1567 = vmatpush.xpose.msra.mxu0 0.0
        %1568 = vmatpush.xpose.msra.mxu0 0.0
        %1569 = vmatpush.xpose.msra.mxu0 %v1555
        %1570 = vmatpush.xpose.msra.mxu0 %v1553
        %1571 = vmatpush.xpose.msra.mxu0 %v1551
        %1572 = vmatpush.xpose.msra.mxu0 %v1549
        %1573 = vmatmul.f32.gmra.mxu0 %v1541
        %v1574 = vpop.f32.mrf.mxu0
        %v1575 = vadd.f32 %v1321, %v1574
        %1576 = vmatmul.f32.gmra.mxu0 %v1543
        %v1577 = vpop.f32.mrf.mxu0
        %v1578 = vadd.f32 %v1322, %v1577
        %1579 = vmatmul.f32.gmra.mxu0 %v1545
        %v1580 = vpop.f32.mrf.mxu0
        %v1581 = vadd.f32 %v1323, %v1580
        %1582 = vmatmul.f32.gmra.mxu0 %v1547
        %v1583 = vpop.f32.mrf.mxu0
        %v1584 = vadd.f32 %v1324, %v1583
        %1585 = vdwg.mxu0
        %1586 = vrot.lane.b32.xlu0 %v1214, 96
        %v1587 = vpop.permute.xlu0 %1586
        %1588 = vrot.lane.b32.xlu0 %v1216, 96
        %v1589 = vpop.permute.xlu0 %1588
        %1590 = vrot.lane.b32.xlu0 %v1218, 96
        %v1591 = vpop.permute.xlu0 %1590
        %1592 = vrot.lane.b32.xlu0 %v1220, 96
        %v1593 = vpop.permute.xlu0 %1592
        %v1594 = vsel %vm1381, %v1214, 0
        %v1596 = vsel %vm1381, %v1216, 0
        %v1598 = vsel %vm1381, %v1218, 0
        %v1600 = vsel %vm1381, %v1220, 0
        %v1602 = vsel %vm1381, %v1587, 0
        %v1604 = vsel %vm1381, %v1589, 0
        %v1606 = vsel %vm1381, %v1591, 0
        %v1608 = vsel %vm1381, %v1593, 0
        %1610 = vmatpush.xpose.msra.mxu0 0.0
        %1611 = vmatpush.xpose.msra.mxu0 0.0
        %1612 = vmatpush.xpose.msra.mxu0 0.0
        %1613 = vmatpush.xpose.msra.mxu0 0.0
        %1614 = vmatpush.xpose.msra.mxu0 0.0
        %1615 = vmatpush.xpose.msra.mxu0 0.0
        %1616 = vmatpush.xpose.msra.mxu0 0.0
        %1617 = vmatpush.xpose.msra.mxu0 0.0
        %1618 = vmatpush.xpose.msra.mxu0 0.0
        %1619 = vmatpush.xpose.msra.mxu0 0.0
        %1620 = vmatpush.xpose.msra.mxu0 0.0
        %1621 = vmatpush.xpose.msra.mxu0 0.0
        %1622 = vmatpush.xpose.msra.mxu0 %v1608
        %1623 = vmatpush.xpose.msra.mxu0 %v1606
        %1624 = vmatpush.xpose.msra.mxu0 %v1604
        %1625 = vmatpush.xpose.msra.mxu0 %v1602
        %1626 = vmatmul.f32.gmra.mxu0 %v1594
        %v1627 = vpop.f32.mrf.mxu0
        %v1628 = vadd.f32 %v1325, %v1627
        %1629 = vmatmul.f32.gmra.mxu0 %v1596
        %v1630 = vpop.f32.mrf.mxu0
        %v1631 = vadd.f32 %v1326, %v1630
        %1632 = vmatmul.f32.gmra.mxu0 %v1598
        %v1633 = vpop.f32.mrf.mxu0
        %v1634 = vadd.f32 %v1327, %v1633
        %1635 = vmatmul.f32.gmra.mxu0 %v1600
        %v1636 = vpop.f32.mrf.mxu0
        %v1637 = vadd.f32 %v1328, %v1636
        %1638 = vdwg.mxu0
        %1639 = vrot.lane.b32.xlu0 %v1222, 96
        %v1640 = vpop.permute.xlu0 %1639
        %1641 = vrot.lane.b32.xlu0 %v1224, 96
        %v1642 = vpop.permute.xlu0 %1641
        %1643 = vrot.lane.b32.xlu0 %v1226, 96
        %v1644 = vpop.permute.xlu0 %1643
        %1645 = vrot.lane.b32.xlu0 %v1228, 96
        %v1646 = vpop.permute.xlu0 %1645
        %v1647 = vsel %vm1381, %v1222, 0
        %v1649 = vsel %vm1381, %v1224, 0
        %v1651 = vsel %vm1381, %v1226, 0
        %v1653 = vsel %vm1381, %v1228, 0
        %v1655 = vsel %vm1381, %v1640, 0
        %v1657 = vsel %vm1381, %v1642, 0
        %v1659 = vsel %vm1381, %v1644, 0
        %v1661 = vsel %vm1381, %v1646, 0
        %1663 = vmatpush.xpose.msra.mxu0 0.0
        %1664 = vmatpush.xpose.msra.mxu0 0.0
        %1665 = vmatpush.xpose.msra.mxu0 0.0
        %1666 = vmatpush.xpose.msra.mxu0 0.0
        %1667 = vmatpush.xpose.msra.mxu0 0.0
        %1668 = vmatpush.xpose.msra.mxu0 0.0
        %1669 = vmatpush.xpose.msra.mxu0 0.0
        %1670 = vmatpush.xpose.msra.mxu0 0.0
        %1671 = vmatpush.xpose.msra.mxu0 0.0
        %1672 = vmatpush.xpose.msra.mxu0 0.0
        %1673 = vmatpush.xpose.msra.mxu0 0.0
        %1674 = vmatpush.xpose.msra.mxu0 0.0
        %1675 = vmatpush.xpose.msra.mxu0 %v1661
        %1676 = vmatpush.xpose.msra.mxu0 %v1659
        %1677 = vmatpush.xpose.msra.mxu0 %v1657
        %1678 = vmatpush.xpose.msra.mxu0 %v1655
        %1679 = vmatmul.f32.gmra.mxu0 %v1647
        %v1680 = vpop.f32.mrf.mxu0
        %v1681 = vadd.f32 %v1329, %v1680
        %1682 = vmatmul.f32.gmra.mxu0 %v1649
        %v1683 = vpop.f32.mrf.mxu0
        %v1684 = vadd.f32 %v1330, %v1683
        %1685 = vmatmul.f32.gmra.mxu0 %v1651
        %v1686 = vpop.f32.mrf.mxu0
        %v1687 = vadd.f32 %v1331, %v1686
        %1688 = vmatmul.f32.gmra.mxu0 %v1653
        %v1689 = vpop.f32.mrf.mxu0
        %v1690 = vadd.f32 %v1332, %v1689
        %1691 = vdwg.mxu0
        %1692 = vrot.lane.b32.xlu0 %v1230, 96
        %v1693 = vpop.permute.xlu0 %1692
        %1694 = vrot.lane.b32.xlu0 %v1232, 96
        %v1695 = vpop.permute.xlu0 %1694
        %1696 = vrot.lane.b32.xlu0 %v1234, 96
        %v1697 = vpop.permute.xlu0 %1696
        %1698 = vrot.lane.b32.xlu0 %v1236, 96
        %v1699 = vpop.permute.xlu0 %1698
        %v1700 = vsel %vm1381, %v1230, 0
        %v1702 = vsel %vm1381, %v1232, 0
        %v1704 = vsel %vm1381, %v1234, 0
        %v1706 = vsel %vm1381, %v1236, 0
        %v1708 = vsel %vm1381, %v1693, 0
        %v1710 = vsel %vm1381, %v1695, 0
        %v1712 = vsel %vm1381, %v1697, 0
        %v1714 = vsel %vm1381, %v1699, 0
        %1716 = vmatpush.xpose.msra.mxu0 0.0
        %1717 = vmatpush.xpose.msra.mxu0 0.0
        %1718 = vmatpush.xpose.msra.mxu0 0.0
        %1719 = vmatpush.xpose.msra.mxu0 0.0
        %1720 = vmatpush.xpose.msra.mxu0 0.0
        %1721 = vmatpush.xpose.msra.mxu0 0.0
        %1722 = vmatpush.xpose.msra.mxu0 0.0
        %1723 = vmatpush.xpose.msra.mxu0 0.0
        %1724 = vmatpush.xpose.msra.mxu0 0.0
        %1725 = vmatpush.xpose.msra.mxu0 0.0
        %1726 = vmatpush.xpose.msra.mxu0 0.0
        %1727 = vmatpush.xpose.msra.mxu0 0.0
        %1728 = vmatpush.xpose.msra.mxu0 %v1714
        %1729 = vmatpush.xpose.msra.mxu0 %v1712
        %1730 = vmatpush.xpose.msra.mxu0 %v1710
        %1731 = vmatpush.xpose.msra.mxu0 %v1708
        %1732 = vmatmul.f32.gmra.mxu0 %v1700
        %v1733 = vpop.f32.mrf.mxu0
        %v1734 = vadd.f32 %v1333, %v1733
        %1735 = vmatmul.f32.gmra.mxu0 %v1702
        %v1736 = vpop.f32.mrf.mxu0
        %v1737 = vadd.f32 %v1334, %v1736
        %1738 = vmatmul.f32.gmra.mxu0 %v1704
        %v1739 = vpop.f32.mrf.mxu0
        %v1740 = vadd.f32 %v1335, %v1739
        %1741 = vmatmul.f32.gmra.mxu0 %v1706
        %v1742 = vpop.f32.mrf.mxu0
        %v1743 = vadd.f32 %v1336, %v1742
        %1744 = vdwg.mxu0
        %1745 = vrot.lane.b32.xlu0 %v1238, 96
        %v1746 = vpop.permute.xlu0 %1745
        %1747 = vrot.lane.b32.xlu0 %v1240, 96
        %v1748 = vpop.permute.xlu0 %1747
        %1749 = vrot.lane.b32.xlu0 %v1242, 96
        %v1750 = vpop.permute.xlu0 %1749
        %1751 = vrot.lane.b32.xlu0 %v1244, 96
        %v1752 = vpop.permute.xlu0 %1751
        %v1753 = vsel %vm1381, %v1238, 0
        %v1755 = vsel %vm1381, %v1240, 0
        %v1757 = vsel %vm1381, %v1242, 0
        %v1759 = vsel %vm1381, %v1244, 0
        %v1761 = vsel %vm1381, %v1746, 0
        %v1763 = vsel %vm1381, %v1748, 0
        %v1765 = vsel %vm1381, %v1750, 0
        %v1767 = vsel %vm1381, %v1752, 0
        %1769 = vmatpush.xpose.msra.mxu0 0.0
        %1770 = vmatpush.xpose.msra.mxu0 0.0
        %1771 = vmatpush.xpose.msra.mxu0 0.0
        %1772 = vmatpush.xpose.msra.mxu0 0.0
        %1773 = vmatpush.xpose.msra.mxu0 0.0
        %1774 = vmatpush.xpose.msra.mxu0 0.0
        %1775 = vmatpush.xpose.msra.mxu0 0.0
        %1776 = vmatpush.xpose.msra.mxu0 0.0
        %1777 = vmatpush.xpose.msra.mxu0 0.0
        %1778 = vmatpush.xpose.msra.mxu0 0.0
        %1779 = vmatpush.xpose.msra.mxu0 0.0
        %1780 = vmatpush.xpose.msra.mxu0 0.0
        %1781 = vmatpush.xpose.msra.mxu0 %v1767
        %1782 = vmatpush.xpose.msra.mxu0 %v1765
        %1783 = vmatpush.xpose.msra.mxu0 %v1763
        %1784 = vmatpush.xpose.msra.mxu0 %v1761
        %1785 = vmatmul.f32.gmra.mxu0 %v1753
        %v1786 = vpop.f32.mrf.mxu0
        %v1787 = vadd.f32 %v1337, %v1786
        %1788 = vmatmul.f32.gmra.mxu0 %v1755
        %v1789 = vpop.f32.mrf.mxu0
        %v1790 = vadd.f32 %v1338, %v1789
        %1791 = vmatmul.f32.gmra.mxu0 %v1757
        %v1792 = vpop.f32.mrf.mxu0
        %v1793 = vadd.f32 %v1339, %v1792
        %1794 = vmatmul.f32.gmra.mxu0 %v1759
        %v1795 = vpop.f32.mrf.mxu0
        %v1796 = vadd.f32 %v1340, %v1795
        %1797 = vdwg.mxu0
        %1798 = vrot.lane.b32.xlu0 %v1246, 96
        %v1799 = vpop.permute.xlu0 %1798
        %1800 = vrot.lane.b32.xlu0 %v1248, 96
        %v1801 = vpop.permute.xlu0 %1800
        %1802 = vrot.lane.b32.xlu0 %v1250, 96
        %v1803 = vpop.permute.xlu0 %1802
        %1804 = vrot.lane.b32.xlu0 %v1252, 96
        %v1805 = vpop.permute.xlu0 %1804
        %v1806 = vsel %vm1381, %v1246, 0
        %v1808 = vsel %vm1381, %v1248, 0
        %v1810 = vsel %vm1381, %v1250, 0
        %v1812 = vsel %vm1381, %v1252, 0
        %v1814 = vsel %vm1381, %v1799, 0
        %v1816 = vsel %vm1381, %v1801, 0
        %v1818 = vsel %vm1381, %v1803, 0
        %v1820 = vsel %vm1381, %v1805, 0
        %1822 = vmatpush.xpose.msra.mxu0 0.0
        %1823 = vmatpush.xpose.msra.mxu0 0.0
        %1824 = vmatpush.xpose.msra.mxu0 0.0
        %1825 = vmatpush.xpose.msra.mxu0 0.0
        %1826 = vmatpush.xpose.msra.mxu0 0.0
        %1827 = vmatpush.xpose.msra.mxu0 0.0
        %1828 = vmatpush.xpose.msra.mxu0 0.0
        %1829 = vmatpush.xpose.msra.mxu0 0.0
        %1830 = vmatpush.xpose.msra.mxu0 0.0
        %1831 = vmatpush.xpose.msra.mxu0 0.0
        %1832 = vmatpush.xpose.msra.mxu0 0.0
        %1833 = vmatpush.xpose.msra.mxu0 0.0
        %1834 = vmatpush.xpose.msra.mxu0 %v1820
        %1835 = vmatpush.xpose.msra.mxu0 %v1818
        %1836 = vmatpush.xpose.msra.mxu0 %v1816
        %1837 = vmatpush.xpose.msra.mxu0 %v1814
        %1838 = vmatmul.f32.gmra.mxu0 %v1806
        %v1839 = vpop.f32.mrf.mxu0
        %v1840 = vadd.f32 %v1341, %v1839
        %1841 = vmatmul.f32.gmra.mxu0 %v1808
        %v1842 = vpop.f32.mrf.mxu0
        %v1843 = vadd.f32 %v1342, %v1842
        %1844 = vmatmul.f32.gmra.mxu0 %v1810
        %v1845 = vpop.f32.mrf.mxu0
        %v1846 = vadd.f32 %v1343, %v1845
        %1847 = vmatmul.f32.gmra.mxu0 %v1812
        %v1848 = vpop.f32.mrf.mxu0
        %v1849 = vadd.f32 %v1344, %v1848
        %1850 = vdwg.mxu0
        %1851 = vrot.lane.b32.xlu0 %v1254, 96
        %v1852 = vpop.permute.xlu0 %1851
        %1853 = vrot.lane.b32.xlu0 %v1256, 96
        %v1854 = vpop.permute.xlu0 %1853
        %1855 = vrot.lane.b32.xlu0 %v1258, 96
        %v1856 = vpop.permute.xlu0 %1855
        %1857 = vrot.lane.b32.xlu0 %v1260, 96
        %v1858 = vpop.permute.xlu0 %1857
        %v1859 = vsel %vm1381, %v1254, 0
        %v1861 = vsel %vm1381, %v1256, 0
        %v1863 = vsel %vm1381, %v1258, 0
        %v1865 = vsel %vm1381, %v1260, 0
        %v1867 = vsel %vm1381, %v1852, 0
        %v1869 = vsel %vm1381, %v1854, 0
        %v1871 = vsel %vm1381, %v1856, 0
        %v1873 = vsel %vm1381, %v1858, 0
        %1875 = vmatpush.xpose.msra.mxu0 0.0
        %1876 = vmatpush.xpose.msra.mxu0 0.0
        %1877 = vmatpush.xpose.msra.mxu0 0.0
        %1878 = vmatpush.xpose.msra.mxu0 0.0
        %1879 = vmatpush.xpose.msra.mxu0 0.0
        %1880 = vmatpush.xpose.msra.mxu0 0.0
        %1881 = vmatpush.xpose.msra.mxu0 0.0
        %1882 = vmatpush.xpose.msra.mxu0 0.0
        %1883 = vmatpush.xpose.msra.mxu0 0.0
        %1884 = vmatpush.xpose.msra.mxu0 0.0
        %1885 = vmatpush.xpose.msra.mxu0 0.0
        %1886 = vmatpush.xpose.msra.mxu0 0.0
        %1887 = vmatpush.xpose.msra.mxu0 %v1873
        %1888 = vmatpush.xpose.msra.mxu0 %v1871
        %1889 = vmatpush.xpose.msra.mxu0 %v1869
        %1890 = vmatpush.xpose.msra.mxu0 %v1867
        %1891 = vmatmul.f32.gmra.mxu0 %v1859
        %v1892 = vpop.f32.mrf.mxu0
        %v1893 = vadd.f32 %v1345, %v1892
        %1894 = vmatmul.f32.gmra.mxu0 %v1861
        %v1895 = vpop.f32.mrf.mxu0
        %v1896 = vadd.f32 %v1346, %v1895
        %1897 = vmatmul.f32.gmra.mxu0 %v1863
        %v1898 = vpop.f32.mrf.mxu0
        %v1899 = vadd.f32 %v1347, %v1898
        %1900 = vmatmul.f32.gmra.mxu0 %v1865
        %v1901 = vpop.f32.mrf.mxu0
        %v1902 = vadd.f32 %v1348, %v1901
        %1903 = vdwg.mxu0
        %1904 = vrot.lane.b32.xlu0 %v1262, 96
        %v1905 = vpop.permute.xlu0 %1904
        %1906 = vrot.lane.b32.xlu0 %v1264, 96
        %v1907 = vpop.permute.xlu0 %1906
        %1908 = vrot.lane.b32.xlu0 %v1266, 96
        %v1909 = vpop.permute.xlu0 %1908
        %1910 = vrot.lane.b32.xlu0 %v1268, 96
        %v1911 = vpop.permute.xlu0 %1910
        %v1912 = vsel %vm1381, %v1262, 0
        %v1914 = vsel %vm1381, %v1264, 0
        %v1916 = vsel %vm1381, %v1266, 0
        %v1918 = vsel %vm1381, %v1268, 0
        %v1920 = vsel %vm1381, %v1905, 0
        %v1922 = vsel %vm1381, %v1907, 0
        %v1924 = vsel %vm1381, %v1909, 0
        %v1926 = vsel %vm1381, %v1911, 0
        %1928 = vmatpush.xpose.msra.mxu0 0.0
        %1929 = vmatpush.xpose.msra.mxu0 0.0
        %1930 = vmatpush.xpose.msra.mxu0 0.0
        %1931 = vmatpush.xpose.msra.mxu0 0.0
        %1932 = vmatpush.xpose.msra.mxu0 0.0
        %1933 = vmatpush.xpose.msra.mxu0 0.0
        %1934 = vmatpush.xpose.msra.mxu0 0.0
        %1935 = vmatpush.xpose.msra.mxu0 0.0
        %1936 = vmatpush.xpose.msra.mxu0 0.0
        %1937 = vmatpush.xpose.msra.mxu0 0.0
        %1938 = vmatpush.xpose.msra.mxu0 0.0
        %1939 = vmatpush.xpose.msra.mxu0 0.0
        %1940 = vmatpush.xpose.msra.mxu0 %v1926
        %1941 = vmatpush.xpose.msra.mxu0 %v1924
        %1942 = vmatpush.xpose.msra.mxu0 %v1922
        %1943 = vmatpush.xpose.msra.mxu0 %v1920
        %1944 = vmatmul.f32.gmra.mxu0 %v1912
        %v1945 = vpop.f32.mrf.mxu0
        %v1946 = vadd.f32 %v1349, %v1945
        %1947 = vmatmul.f32.gmra.mxu0 %v1914
        %v1948 = vpop.f32.mrf.mxu0
        %v1949 = vadd.f32 %v1350, %v1948
        %1950 = vmatmul.f32.gmra.mxu0 %v1916
        %v1951 = vpop.f32.mrf.mxu0
        %v1952 = vadd.f32 %v1351, %v1951
        %1953 = vmatmul.f32.gmra.mxu0 %v1918
        %v1954 = vpop.f32.mrf.mxu0
        %v1955 = vadd.f32 %v1352, %v1954
        %1956 = vdwg.mxu0
        %1957 = vrot.lane.b32.xlu0 %v1270, 96
        %v1958 = vpop.permute.xlu0 %1957
        %1959 = vrot.lane.b32.xlu0 %v1272, 96
        %v1960 = vpop.permute.xlu0 %1959
        %1961 = vrot.lane.b32.xlu0 %v1274, 96
        %v1962 = vpop.permute.xlu0 %1961
        %1963 = vrot.lane.b32.xlu0 %v1276, 96
        %v1964 = vpop.permute.xlu0 %1963
        %v1965 = vsel %vm1381, %v1270, 0
        %v1967 = vsel %vm1381, %v1272, 0
        %v1969 = vsel %vm1381, %v1274, 0
        %v1971 = vsel %vm1381, %v1276, 0
        %v1973 = vsel %vm1381, %v1958, 0
        %v1975 = vsel %vm1381, %v1960, 0
        %v1977 = vsel %vm1381, %v1962, 0
        %v1979 = vsel %vm1381, %v1964, 0
        %1981 = vmatpush.xpose.msra.mxu0 0.0
        %1982 = vmatpush.xpose.msra.mxu0 0.0
        %1983 = vmatpush.xpose.msra.mxu0 0.0
        %1984 = vmatpush.xpose.msra.mxu0 0.0
        %1985 = vmatpush.xpose.msra.mxu0 0.0
        %1986 = vmatpush.xpose.msra.mxu0 0.0
        %1987 = vmatpush.xpose.msra.mxu0 0.0
        %1988 = vmatpush.xpose.msra.mxu0 0.0
        %1989 = vmatpush.xpose.msra.mxu0 0.0
        %1990 = vmatpush.xpose.msra.mxu0 0.0
        %1991 = vmatpush.xpose.msra.mxu0 0.0
        %1992 = vmatpush.xpose.msra.mxu0 0.0
        %1993 = vmatpush.xpose.msra.mxu0 %v1979
        %1994 = vmatpush.xpose.msra.mxu0 %v1977
        %1995 = vmatpush.xpose.msra.mxu0 %v1975
        %1996 = vmatpush.xpose.msra.mxu0 %v1973
        %1997 = vmatmul.f32.gmra.mxu0 %v1965
        %v1998 = vpop.f32.mrf.mxu0
        %v1999 = vadd.f32 %v1353, %v1998
        %2000 = vmatmul.f32.gmra.mxu0 %v1967
        %v2001 = vpop.f32.mrf.mxu0
        %v2002 = vadd.f32 %v1354, %v2001
        %2003 = vmatmul.f32.gmra.mxu0 %v1969
        %v2004 = vpop.f32.mrf.mxu0
        %v2005 = vadd.f32 %v1355, %v2004
        %2006 = vmatmul.f32.gmra.mxu0 %v1971
        %v2007 = vpop.f32.mrf.mxu0
        %v2008 = vadd.f32 %v1356, %v2007
        %2009 = vdwg.mxu0
        %2010 = vrot.lane.b32.xlu0 %v1278, 96
        %v2011 = vpop.permute.xlu0 %2010
        %2012 = vrot.lane.b32.xlu0 %v1280, 96
        %v2013 = vpop.permute.xlu0 %2012
        %2014 = vrot.lane.b32.xlu0 %v1282, 96
        %v2015 = vpop.permute.xlu0 %2014
        %2016 = vrot.lane.b32.xlu0 %v1284, 96
        %v2017 = vpop.permute.xlu0 %2016
        %v2018 = vsel %vm1381, %v1278, 0
        %v2020 = vsel %vm1381, %v1280, 0
        %v2022 = vsel %vm1381, %v1282, 0
        %v2024 = vsel %vm1381, %v1284, 0
        %v2026 = vsel %vm1381, %v2011, 0
        %v2028 = vsel %vm1381, %v2013, 0
        %v2030 = vsel %vm1381, %v2015, 0
        %v2032 = vsel %vm1381, %v2017, 0
        %2034 = vmatpush.xpose.msra.mxu0 0.0
        %2035 = vmatpush.xpose.msra.mxu0 0.0
        %2036 = vmatpush.xpose.msra.mxu0 0.0
        %2037 = vmatpush.xpose.msra.mxu0 0.0
        %2038 = vmatpush.xpose.msra.mxu0 0.0
        %2039 = vmatpush.xpose.msra.mxu0 0.0
        %2040 = vmatpush.xpose.msra.mxu0 0.0
        %2041 = vmatpush.xpose.msra.mxu0 0.0
        %2042 = vmatpush.xpose.msra.mxu0 0.0
        %2043 = vmatpush.xpose.msra.mxu0 0.0
        %2044 = vmatpush.xpose.msra.mxu0 0.0
        %2045 = vmatpush.xpose.msra.mxu0 0.0
        %2046 = vmatpush.xpose.msra.mxu0 %v2032
        %2047 = vmatpush.xpose.msra.mxu0 %v2030
        %2048 = vmatpush.xpose.msra.mxu0 %v2028
        %2049 = vmatpush.xpose.msra.mxu0 %v2026
        %2050 = vmatmul.f32.gmra.mxu0 %v2018
        %v2051 = vpop.f32.mrf.mxu0
        %v2052 = vadd.f32 %v1357, %v2051
        %2053 = vmatmul.f32.gmra.mxu0 %v2020
        %v2054 = vpop.f32.mrf.mxu0
        %v2055 = vadd.f32 %v1358, %v2054
        %2056 = vmatmul.f32.gmra.mxu0 %v2022
        %v2057 = vpop.f32.mrf.mxu0
        %v2058 = vadd.f32 %v1359, %v2057
        %2059 = vmatmul.f32.gmra.mxu0 %v2024
        %v2060 = vpop.f32.mrf.mxu0
        %v2061 = vadd.f32 %v1360, %v2060
        %2062 = vdwg.mxu0
        %2063 = vrot.lane.b32.xlu0 %v1286, 96
        %v2064 = vpop.permute.xlu0 %2063
        %2065 = vrot.lane.b32.xlu0 %v1288, 96
        %v2066 = vpop.permute.xlu0 %2065
        %2067 = vrot.lane.b32.xlu0 %v1290, 96
        %v2068 = vpop.permute.xlu0 %2067
        %2069 = vrot.lane.b32.xlu0 %v1292, 96
        %v2070 = vpop.permute.xlu0 %2069
        %v2071 = vsel %vm1381, %v1286, 0
        %v2073 = vsel %vm1381, %v1288, 0
        %v2075 = vsel %vm1381, %v1290, 0
        %v2077 = vsel %vm1381, %v1292, 0
        %v2079 = vsel %vm1381, %v2064, 0
        %v2081 = vsel %vm1381, %v2066, 0
        %v2083 = vsel %vm1381, %v2068, 0
        %v2085 = vsel %vm1381, %v2070, 0
        %2087 = vmatpush.xpose.msra.mxu0 0.0
        %2088 = vmatpush.xpose.msra.mxu0 0.0
        %2089 = vmatpush.xpose.msra.mxu0 0.0
        %2090 = vmatpush.xpose.msra.mxu0 0.0
        %2091 = vmatpush.xpose.msra.mxu0 0.0
        %2092 = vmatpush.xpose.msra.mxu0 0.0
        %2093 = vmatpush.xpose.msra.mxu0 0.0
        %2094 = vmatpush.xpose.msra.mxu0 0.0
        %2095 = vmatpush.xpose.msra.mxu0 0.0
        %2096 = vmatpush.xpose.msra.mxu0 0.0
        %2097 = vmatpush.xpose.msra.mxu0 0.0
        %2098 = vmatpush.xpose.msra.mxu0 0.0
        %2099 = vmatpush.xpose.msra.mxu0 %v2085
        %2100 = vmatpush.xpose.msra.mxu0 %v2083
        %2101 = vmatpush.xpose.msra.mxu0 %v2081
        %2102 = vmatpush.xpose.msra.mxu0 %v2079
        %2103 = vmatmul.f32.gmra.mxu0 %v2071
        %v2104 = vpop.f32.mrf.mxu0
        %v2105 = vadd.f32 %v1361, %v2104
        %2106 = vmatmul.f32.gmra.mxu0 %v2073
        %v2107 = vpop.f32.mrf.mxu0
        %v2108 = vadd.f32 %v1362, %v2107
        %2109 = vmatmul.f32.gmra.mxu0 %v2075
        %v2110 = vpop.f32.mrf.mxu0
        %v2111 = vadd.f32 %v1363, %v2110
        %2112 = vmatmul.f32.gmra.mxu0 %v2077
        %v2113 = vpop.f32.mrf.mxu0
        %v2114 = vadd.f32 %v1364, %v2113
        %2115 = vdwg.mxu0
        %2116 = vrot.lane.b32.xlu0 %v1294, 96
        %v2117 = vpop.permute.xlu0 %2116
        %2118 = vrot.lane.b32.xlu0 %v1296, 96
        %v2119 = vpop.permute.xlu0 %2118
        %2120 = vrot.lane.b32.xlu0 %v1298, 96
        %v2121 = vpop.permute.xlu0 %2120
        %2122 = vrot.lane.b32.xlu0 %v1300, 96
        %v2123 = vpop.permute.xlu0 %2122
        %v2124 = vsel %vm1381, %v1294, 0
        %v2126 = vsel %vm1381, %v1296, 0
        %v2128 = vsel %vm1381, %v1298, 0
        %v2130 = vsel %vm1381, %v1300, 0
        %v2132 = vsel %vm1381, %v2117, 0
        %v2134 = vsel %vm1381, %v2119, 0
        %v2136 = vsel %vm1381, %v2121, 0
        %v2138 = vsel %vm1381, %v2123, 0
        %2140 = vmatpush.xpose.msra.mxu0 0.0
        %2141 = vmatpush.xpose.msra.mxu0 0.0
        %2142 = vmatpush.xpose.msra.mxu0 0.0
        %2143 = vmatpush.xpose.msra.mxu0 0.0
        %2144 = vmatpush.xpose.msra.mxu0 0.0
        %2145 = vmatpush.xpose.msra.mxu0 0.0
        %2146 = vmatpush.xpose.msra.mxu0 0.0
        %2147 = vmatpush.xpose.msra.mxu0 0.0
        %2148 = vmatpush.xpose.msra.mxu0 0.0
        %2149 = vmatpush.xpose.msra.mxu0 0.0
        %2150 = vmatpush.xpose.msra.mxu0 0.0
        %2151 = vmatpush.xpose.msra.mxu0 0.0
        %2152 = vmatpush.xpose.msra.mxu0 %v2138
        %2153 = vmatpush.xpose.msra.mxu0 %v2136
        %2154 = vmatpush.xpose.msra.mxu0 %v2134
        %2155 = vmatpush.xpose.msra.mxu0 %v2132
        %2156 = vmatmul.f32.gmra.mxu0 %v2124
        %v2157 = vpop.f32.mrf.mxu0
        %v2158 = vadd.f32 %v1365, %v2157
        %2159 = vmatmul.f32.gmra.mxu0 %v2126
        %v2160 = vpop.f32.mrf.mxu0
        %v2161 = vadd.f32 %v1366, %v2160
        %2162 = vmatmul.f32.gmra.mxu0 %v2128
        %v2163 = vpop.f32.mrf.mxu0
        %v2164 = vadd.f32 %v1367, %v2163
        %2165 = vmatmul.f32.gmra.mxu0 %v2130
        %v2166 = vpop.f32.mrf.mxu0
        %v2167 = vadd.f32 %v1368, %v2166
        %2168 = vdwg.mxu0
        %2169 = vrot.lane.b32.xlu0 %v1302, 96
        %v2170 = vpop.permute.xlu0 %2169
        %2171 = vrot.lane.b32.xlu0 %v1304, 96
        %v2172 = vpop.permute.xlu0 %2171
        %2173 = vrot.lane.b32.xlu0 %v1306, 96
        %v2174 = vpop.permute.xlu0 %2173
        %2175 = vrot.lane.b32.xlu0 %v1308, 96
        %v2176 = vpop.permute.xlu0 %2175
        %v2177 = vsel %vm1381, %v1302, 0
        %v2179 = vsel %vm1381, %v1304, 0
        %v2181 = vsel %vm1381, %v1306, 0
        %v2183 = vsel %vm1381, %v1308, 0
        %v2185 = vsel %vm1381, %v2170, 0
        %v2187 = vsel %vm1381, %v2172, 0
        %v2189 = vsel %vm1381, %v2174, 0
        %v2191 = vsel %vm1381, %v2176, 0
        %2193 = vmatpush.xpose.msra.mxu0 0.0
        %2194 = vmatpush.xpose.msra.mxu0 0.0
        %2195 = vmatpush.xpose.msra.mxu0 0.0
        %2196 = vmatpush.xpose.msra.mxu0 0.0
        %2197 = vmatpush.xpose.msra.mxu0 0.0
        %2198 = vmatpush.xpose.msra.mxu0 0.0
        %2199 = vmatpush.xpose.msra.mxu0 0.0
        %2200 = vmatpush.xpose.msra.mxu0 0.0
        %2201 = vmatpush.xpose.msra.mxu0 0.0
        %2202 = vmatpush.xpose.msra.mxu0 0.0
        %2203 = vmatpush.xpose.msra.mxu0 0.0
        %2204 = vmatpush.xpose.msra.mxu0 0.0
        %2205 = vmatpush.xpose.msra.mxu0 %v2191
        %2206 = vmatpush.xpose.msra.mxu0 %v2189
        %2207 = vmatpush.xpose.msra.mxu0 %v2187
        %2208 = vmatpush.xpose.msra.mxu0 %v2185
        %2209 = vmatmul.f32.gmra.mxu0 %v2177
        %v2210 = vpop.f32.mrf.mxu0
        %v2211 = vadd.f32 %v1369, %v2210
        %2212 = vmatmul.f32.gmra.mxu0 %v2179
        %v2213 = vpop.f32.mrf.mxu0
        %v2214 = vadd.f32 %v1370, %v2213
        %2215 = vmatmul.f32.gmra.mxu0 %v2181
        %v2216 = vpop.f32.mrf.mxu0
        %v2217 = vadd.f32 %v1371, %v2216
        %2218 = vmatmul.f32.gmra.mxu0 %v2183
        %v2219 = vpop.f32.mrf.mxu0
        %v2220 = vadd.f32 %v1372, %v2219
        %2221 = vdwg.mxu0
        %v2222 = vsel %vm678, %v1416, -inf
        %2223 = vmax.xlane.f32.xlu0 %v2222
        %v2224 = vpop.xlane.xlu0 %2223
        %v2225 = vsel %vm678, %v1419, -inf
        %2226 = vmax.xlane.f32.xlu0 %v2225
        %v2227 = vpop.xlane.xlu0 %2226
        %v2228 = vsel %vm678, %v1422, -inf
        %2229 = vmax.xlane.f32.xlu0 %v2228
        %v2230 = vpop.xlane.xlu0 %2229
        %v2231 = vsel %vm678, %v1425, -inf
        %2232 = vmax.xlane.f32.xlu0 %v2231
        %v2233 = vpop.xlane.xlu0 %2232
        %v2234 = vsel %vm678, %v1469, -inf
        %2235 = vmax.xlane.f32.xlu0 %v2234
        %v2236 = vpop.xlane.xlu0 %2235
        %v2237 = vsel %vm678, %v1472, -inf
        %2238 = vmax.xlane.f32.xlu0 %v2237
        %v2239 = vpop.xlane.xlu0 %2238
        %v2240 = vsel %vm678, %v1475, -inf
        %2241 = vmax.xlane.f32.xlu0 %v2240
        %v2242 = vpop.xlane.xlu0 %2241
        %v2243 = vsel %vm678, %v1478, -inf
        %2244 = vmax.xlane.f32.xlu0 %v2243
        %v2245 = vpop.xlane.xlu0 %2244
        %v2246 = vsel %vm678, %v1522, -inf
        %2247 = vmax.xlane.f32.xlu0 %v2246
        %v2248 = vpop.xlane.xlu0 %2247
        %v2249 = vsel %vm678, %v1525, -inf
        %2250 = vmax.xlane.f32.xlu0 %v2249
        %v2251 = vpop.xlane.xlu0 %2250
        %v2252 = vsel %vm678, %v1528, -inf
        %2253 = vmax.xlane.f32.xlu0 %v2252
        %v2254 = vpop.xlane.xlu0 %2253
        %v2255 = vsel %vm678, %v1531, -inf
        %2256 = vmax.xlane.f32.xlu0 %v2255
        %v2257 = vpop.xlane.xlu0 %2256
        %v2258 = vsel %vm678, %v1575, -inf
        %2259 = vmax.xlane.f32.xlu0 %v2258
        %v2260 = vpop.xlane.xlu0 %2259
        %v2261 = vsel %vm678, %v1578, -inf
        %2262 = vmax.xlane.f32.xlu0 %v2261
        %v2263 = vpop.xlane.xlu0 %2262
        %v2264 = vsel %vm678, %v1581, -inf
        %2265 = vmax.xlane.f32.xlu0 %v2264
        %v2266 = vpop.xlane.xlu0 %2265
        %v2267 = vsel %vm678, %v1584, -inf
        %2268 = vmax.xlane.f32.xlu0 %v2267
        %v2269 = vpop.xlane.xlu0 %2268
        %v2270 = vsel %vm678, %v1628, -inf
        %2271 = vmax.xlane.f32.xlu0 %v2270
        %v2272 = vpop.xlane.xlu0 %2271
        %v2273 = vsel %vm678, %v1631, -inf
        %2274 = vmax.xlane.f32.xlu0 %v2273
        %v2275 = vpop.xlane.xlu0 %2274
        %v2276 = vsel %vm678, %v1634, -inf
        %2277 = vmax.xlane.f32.xlu0 %v2276
        %v2278 = vpop.xlane.xlu0 %2277
        %v2279 = vsel %vm678, %v1637, -inf
        %2280 = vmax.xlane.f32.xlu0 %v2279
        %v2281 = vpop.xlane.xlu0 %2280
        %v2282 = vsel %vm678, %v1681, -inf
        %2283 = vmax.xlane.f32.xlu0 %v2282
        %v2284 = vpop.xlane.xlu0 %2283
        %v2285 = vsel %vm678, %v1684, -inf
        %2286 = vmax.xlane.f32.xlu0 %v2285
        %v2287 = vpop.xlane.xlu0 %2286
        %v2288 = vsel %vm678, %v1687, -inf
        %2289 = vmax.xlane.f32.xlu0 %v2288
        %v2290 = vpop.xlane.xlu0 %2289
        %v2291 = vsel %vm678, %v1690, -inf
        %2292 = vmax.xlane.f32.xlu0 %v2291
        %v2293 = vpop.xlane.xlu0 %2292
        %v2294 = vsel %vm678, %v1734, -inf
        %2295 = vmax.xlane.f32.xlu0 %v2294
        %v2296 = vpop.xlane.xlu0 %2295
        %v2297 = vsel %vm678, %v1737, -inf
        %2298 = vmax.xlane.f32.xlu0 %v2297
        %v2299 = vpop.xlane.xlu0 %2298
        %v2300 = vsel %vm678, %v1740, -inf
        %2301 = vmax.xlane.f32.xlu0 %v2300
        %v2302 = vpop.xlane.xlu0 %2301
        %v2303 = vsel %vm678, %v1743, -inf
        %2304 = vmax.xlane.f32.xlu0 %v2303
        %v2305 = vpop.xlane.xlu0 %2304
        %v2306 = vsel %vm678, %v1787, -inf
        %2307 = vmax.xlane.f32.xlu0 %v2306
        %v2308 = vpop.xlane.xlu0 %2307
        %v2309 = vsel %vm678, %v1790, -inf
        %2310 = vmax.xlane.f32.xlu0 %v2309
        %v2311 = vpop.xlane.xlu0 %2310
        %v2312 = vsel %vm678, %v1793, -inf
        %2313 = vmax.xlane.f32.xlu0 %v2312
        %v2314 = vpop.xlane.xlu0 %2313
        %v2315 = vsel %vm678, %v1796, -inf
        %2316 = vmax.xlane.f32.xlu0 %v2315
        %v2317 = vpop.xlane.xlu0 %2316
        %v2318 = vsel %vm678, %v1840, -inf
        %2319 = vmax.xlane.f32.xlu0 %v2318
        %v2320 = vpop.xlane.xlu0 %2319
        %v2321 = vsel %vm678, %v1843, -inf
        %2322 = vmax.xlane.f32.xlu0 %v2321
        %v2323 = vpop.xlane.xlu0 %2322
        %v2324 = vsel %vm678, %v1846, -inf
        %2325 = vmax.xlane.f32.xlu0 %v2324
        %v2326 = vpop.xlane.xlu0 %2325
        %v2327 = vsel %vm678, %v1849, -inf
        %2328 = vmax.xlane.f32.xlu0 %v2327
        %v2329 = vpop.xlane.xlu0 %2328
        %v2330 = vsel %vm678, %v1893, -inf
        %2331 = vmax.xlane.f32.xlu0 %v2330
        %v2332 = vpop.xlane.xlu0 %2331
        %v2333 = vsel %vm678, %v1896, -inf
        %2334 = vmax.xlane.f32.xlu0 %v2333
        %v2335 = vpop.xlane.xlu0 %2334
        %v2336 = vsel %vm678, %v1899, -inf
        %2337 = vmax.xlane.f32.xlu0 %v2336
        %v2338 = vpop.xlane.xlu0 %2337
        %v2339 = vsel %vm678, %v1902, -inf
        %2340 = vmax.xlane.f32.xlu0 %v2339
        %v2341 = vpop.xlane.xlu0 %2340
        %v2342 = vsel %vm678, %v1946, -inf
        %2343 = vmax.xlane.f32.xlu0 %v2342
        %v2344 = vpop.xlane.xlu0 %2343
        %v2345 = vsel %vm678, %v1949, -inf
        %2346 = vmax.xlane.f32.xlu0 %v2345
        %v2347 = vpop.xlane.xlu0 %2346
        %v2348 = vsel %vm678, %v1952, -inf
        %2349 = vmax.xlane.f32.xlu0 %v2348
        %v2350 = vpop.xlane.xlu0 %2349
        %v2351 = vsel %vm678, %v1955, -inf
        %2352 = vmax.xlane.f32.xlu0 %v2351
        %v2353 = vpop.xlane.xlu0 %2352
        %v2354 = vsel %vm678, %v1999, -inf
        %2355 = vmax.xlane.f32.xlu0 %v2354
        %v2356 = vpop.xlane.xlu0 %2355
        %v2357 = vsel %vm678, %v2002, -inf
        %2358 = vmax.xlane.f32.xlu0 %v2357
        %v2359 = vpop.xlane.xlu0 %2358
        %v2360 = vsel %vm678, %v2005, -inf
        %2361 = vmax.xlane.f32.xlu0 %v2360
        %v2362 = vpop.xlane.xlu0 %2361
        %v2363 = vsel %vm678, %v2008, -inf
        %2364 = vmax.xlane.f32.xlu0 %v2363
        %v2365 = vpop.xlane.xlu0 %2364
        %v2366 = vsel %vm678, %v2052, -inf
        %2367 = vmax.xlane.f32.xlu0 %v2366
        %v2368 = vpop.xlane.xlu0 %2367
        %v2369 = vsel %vm678, %v2055, -inf
        %2370 = vmax.xlane.f32.xlu0 %v2369
        %v2371 = vpop.xlane.xlu0 %2370
        %v2372 = vsel %vm678, %v2058, -inf
        %2373 = vmax.xlane.f32.xlu0 %v2372
        %v2374 = vpop.xlane.xlu0 %2373
        %v2375 = vsel %vm678, %v2061, -inf
        %2376 = vmax.xlane.f32.xlu0 %v2375
        %v2377 = vpop.xlane.xlu0 %2376
        %v2378 = vsel %vm678, %v2105, -inf
        %2379 = vmax.xlane.f32.xlu0 %v2378
        %v2380 = vpop.xlane.xlu0 %2379
        %v2381 = vsel %vm678, %v2108, -inf
        %2382 = vmax.xlane.f32.xlu0 %v2381
        %v2383 = vpop.xlane.xlu0 %2382
        %v2384 = vsel %vm678, %v2111, -inf
        %2385 = vmax.xlane.f32.xlu0 %v2384
        %v2386 = vpop.xlane.xlu0 %2385
        %v2387 = vsel %vm678, %v2114, -inf
        %2388 = vmax.xlane.f32.xlu0 %v2387
        %v2389 = vpop.xlane.xlu0 %2388
        %v2390 = vsel %vm678, %v2158, -inf
        %2391 = vmax.xlane.f32.xlu0 %v2390
        %v2392 = vpop.xlane.xlu0 %2391
        %v2393 = vsel %vm678, %v2161, -inf
        %2394 = vmax.xlane.f32.xlu0 %v2393
        %v2395 = vpop.xlane.xlu0 %2394
        %v2396 = vsel %vm678, %v2164, -inf
        %2397 = vmax.xlane.f32.xlu0 %v2396
        %v2398 = vpop.xlane.xlu0 %2397
        %v2399 = vsel %vm678, %v2167, -inf
        %2400 = vmax.xlane.f32.xlu0 %v2399
        %v2401 = vpop.xlane.xlu0 %2400
        %v2402 = vsel %vm678, %v2211, -inf
        %2403 = vmax.xlane.f32.xlu0 %v2402
        %v2404 = vpop.xlane.xlu0 %2403
        %v2405 = vsel %vm678, %v2214, -inf
        %2406 = vmax.xlane.f32.xlu0 %v2405
        %v2407 = vpop.xlane.xlu0 %2406
        %v2408 = vsel %vm678, %v2217, -inf
        %2409 = vmax.xlane.f32.xlu0 %v2408
        %v2410 = vpop.xlane.xlu0 %2409
        %v2411 = vsel %vm678, %v2220, -inf
        %2412 = vmax.xlane.f32.xlu0 %v2411
        %v2413 = vpop.xlane.xlu0 %2412
        %v2414 = vsub.f32 %v1416, %v2224
        %v2415 = vsub.f32 %v1419, %v2227
        %v2416 = vsub.f32 %v1422, %v2230
        %v2417 = vsub.f32 %v1425, %v2233
        %v2418 = vsub.f32 %v1469, %v2236
        %v2419 = vsub.f32 %v1472, %v2239
        %v2420 = vsub.f32 %v1475, %v2242
        %v2421 = vsub.f32 %v1478, %v2245
        %v2422 = vsub.f32 %v1522, %v2248
        %v2423 = vsub.f32 %v1525, %v2251
        %v2424 = vsub.f32 %v1528, %v2254
        %v2425 = vsub.f32 %v1531, %v2257
        %v2426 = vsub.f32 %v1575, %v2260
        %v2427 = vsub.f32 %v1578, %v2263
        %v2428 = vsub.f32 %v1581, %v2266
        %v2429 = vsub.f32 %v1584, %v2269
        %v2430 = vsub.f32 %v1628, %v2272
        %v2431 = vsub.f32 %v1631, %v2275
        %v2432 = vsub.f32 %v1634, %v2278
        %v2433 = vsub.f32 %v1637, %v2281
        %v2434 = vsub.f32 %v1681, %v2284
        %v2435 = vsub.f32 %v1684, %v2287
        %v2436 = vsub.f32 %v1687, %v2290
        %v2437 = vsub.f32 %v1690, %v2293
        %v2438 = vsub.f32 %v1734, %v2296
        %v2439 = vsub.f32 %v1737, %v2299
        %v2440 = vsub.f32 %v1740, %v2302
        %v2441 = vsub.f32 %v1743, %v2305
        %v2442 = vsub.f32 %v1787, %v2308
        %v2443 = vsub.f32 %v1790, %v2311
        %v2444 = vsub.f32 %v1793, %v2314
        %v2445 = vsub.f32 %v1796, %v2317
        %v2446 = vsub.f32 %v1840, %v2320
        %v2447 = vsub.f32 %v1843, %v2323
        %v2448 = vsub.f32 %v1846, %v2326
        %v2449 = vsub.f32 %v1849, %v2329
        %v2450 = vsub.f32 %v1893, %v2332
        %v2451 = vsub.f32 %v1896, %v2335
        %v2452 = vsub.f32 %v1899, %v2338
        %v2453 = vsub.f32 %v1902, %v2341
        %v2454 = vsub.f32 %v1946, %v2344
        %v2455 = vsub.f32 %v1949, %v2347
        %v2456 = vsub.f32 %v1952, %v2350
        %v2457 = vsub.f32 %v1955, %v2353
        %v2458 = vsub.f32 %v1999, %v2356
        %v2459 = vsub.f32 %v2002, %v2359
        %v2460 = vsub.f32 %v2005, %v2362
        %v2461 = vsub.f32 %v2008, %v2365
        %v2462 = vsub.f32 %v2052, %v2368
        %v2463 = vsub.f32 %v2055, %v2371
        %v2464 = vsub.f32 %v2058, %v2374
        %v2465 = vsub.f32 %v2061, %v2377
        %v2466 = vsub.f32 %v2105, %v2380
        %v2467 = vsub.f32 %v2108, %v2383
        %v2468 = vsub.f32 %v2111, %v2386
        %v2469 = vsub.f32 %v2114, %v2389
        %v2470 = vsub.f32 %v2158, %v2392
        %v2471 = vsub.f32 %v2161, %v2395
        %v2472 = vsub.f32 %v2164, %v2398
        %v2473 = vsub.f32 %v2167, %v2401
        %v2474 = vsub.f32 %v2211, %v2404
        %v2475 = vsub.f32 %v2214, %v2407
        %v2476 = vsub.f32 %v2217, %v2410
        %v2477 = vsub.f32 %v2220, %v2413
        %v2478 = vmul.f32 %v2414, 1.442695
        %v2479 = vpow.pop %v2478
        %v2480 = vmul.f32 %v2415, 1.442695
        %v2481 = vpow.pop %v2480
        %v2482 = vmul.f32 %v2416, 1.442695
        %v2483 = vpow.pop %v2482
        %v2484 = vmul.f32 %v2417, 1.442695
        %v2485 = vpow.pop %v2484
        %v2486 = vmul.f32 %v2418, 1.442695
        %v2487 = vpow.pop %v2486
        %v2488 = vmul.f32 %v2419, 1.442695
        %v2489 = vpow.pop %v2488
        %v2490 = vmul.f32 %v2420, 1.442695
        %v2491 = vpow.pop %v2490
        %v2492 = vmul.f32 %v2421, 1.442695
        %v2493 = vpow.pop %v2492
        %v2494 = vmul.f32 %v2422, 1.442695
        %v2495 = vpow.pop %v2494
        %v2496 = vmul.f32 %v2423, 1.442695
        %v2497 = vpow.pop %v2496
        %v2498 = vmul.f32 %v2424, 1.442695
        %v2499 = vpow.pop %v2498
        %v2500 = vmul.f32 %v2425, 1.442695
        %v2501 = vpow.pop %v2500
        %v2502 = vmul.f32 %v2426, 1.442695
        %v2503 = vpow.pop %v2502
        %v2504 = vmul.f32 %v2427, 1.442695
        %v2505 = vpow.pop %v2504
        %v2506 = vmul.f32 %v2428, 1.442695
        %v2507 = vpow.pop %v2506
        %v2508 = vmul.f32 %v2429, 1.442695
        %v2509 = vpow.pop %v2508
        %v2510 = vmul.f32 %v2430, 1.442695
        %v2511 = vpow.pop %v2510
        %v2512 = vmul.f32 %v2431, 1.442695
        %v2513 = vpow.pop %v2512
        %v2514 = vmul.f32 %v2432, 1.442695
        %v2515 = vpow.pop %v2514
        %v2516 = vmul.f32 %v2433, 1.442695
        %v2517 = vpow.pop %v2516
        %v2518 = vmul.f32 %v2434, 1.442695
        %v2519 = vpow.pop %v2518
        %v2520 = vmul.f32 %v2435, 1.442695
        %v2521 = vpow.pop %v2520
        %v2522 = vmul.f32 %v2436, 1.442695
        %v2523 = vpow.pop %v2522
        %v2524 = vmul.f32 %v2437, 1.442695
        %v2525 = vpow.pop %v2524
        %v2526 = vmul.f32 %v2438, 1.442695
        %v2527 = vpow.pop %v2526
        %v2528 = vmul.f32 %v2439, 1.442695
        %v2529 = vpow.pop %v2528
        %v2530 = vmul.f32 %v2440, 1.442695
        %v2531 = vpow.pop %v2530
        %v2532 = vmul.f32 %v2441, 1.442695
        %v2533 = vpow.pop %v2532
        %v2534 = vmul.f32 %v2442, 1.442695
        %v2535 = vpow.pop %v2534
        %v2536 = vmul.f32 %v2443, 1.442695
        %v2537 = vpow.pop %v2536
        %v2538 = vmul.f32 %v2444, 1.442695
        %v2539 = vpow.pop %v2538
        %v2540 = vmul.f32 %v2445, 1.442695
        %v2541 = vpow.pop %v2540
        %v2542 = vmul.f32 %v2446, 1.442695
        %v2543 = vpow.pop %v2542
        %v2544 = vmul.f32 %v2447, 1.442695
        %v2545 = vpow.pop %v2544
        %v2546 = vmul.f32 %v2448, 1.442695
        %v2547 = vpow.pop %v2546
        %v2548 = vmul.f32 %v2449, 1.442695
        %v2549 = vpow.pop %v2548
        %v2550 = vmul.f32 %v2450, 1.442695
        %v2551 = vpow.pop %v2550
        %v2552 = vmul.f32 %v2451, 1.442695
        %v2553 = vpow.pop %v2552
        %v2554 = vmul.f32 %v2452, 1.442695
        %v2555 = vpow.pop %v2554
        %v2556 = vmul.f32 %v2453, 1.442695
        %v2557 = vpow.pop %v2556
        %v2558 = vmul.f32 %v2454, 1.442695
        %v2559 = vpow.pop %v2558
        %v2560 = vmul.f32 %v2455, 1.442695
        %v2561 = vpow.pop %v2560
        %v2562 = vmul.f32 %v2456, 1.442695
        %v2563 = vpow.pop %v2562
        %v2564 = vmul.f32 %v2457, 1.442695
        %v2565 = vpow.pop %v2564
        %v2566 = vmul.f32 %v2458, 1.442695
        %v2567 = vpow.pop %v2566
        %v2568 = vmul.f32 %v2459, 1.442695
        %v2569 = vpow.pop %v2568
        %v2570 = vmul.f32 %v2460, 1.442695
        %v2571 = vpow.pop %v2570
        %v2572 = vmul.f32 %v2461, 1.442695
        %v2573 = vpow.pop %v2572
        %v2574 = vmul.f32 %v2462, 1.442695
        %v2575 = vpow.pop %v2574
        %v2576 = vmul.f32 %v2463, 1.442695
        %v2577 = vpow.pop %v2576
        %v2578 = vmul.f32 %v2464, 1.442695
        %v2579 = vpow.pop %v2578
        %v2580 = vmul.f32 %v2465, 1.442695
        %v2581 = vpow.pop %v2580
        %v2582 = vmul.f32 %v2466, 1.442695
        %v2583 = vpow.pop %v2582
        %v2584 = vmul.f32 %v2467, 1.442695
        %v2585 = vpow.pop %v2584
        %v2586 = vmul.f32 %v2468, 1.442695
        %v2587 = vpow.pop %v2586
        %v2588 = vmul.f32 %v2469, 1.442695
        %v2589 = vpow.pop %v2588
        %v2590 = vmul.f32 %v2470, 1.442695
        %v2591 = vpow.pop %v2590
        %v2592 = vmul.f32 %v2471, 1.442695
        %v2593 = vpow.pop %v2592
        %v2594 = vmul.f32 %v2472, 1.442695
        %v2595 = vpow.pop %v2594
        %v2596 = vmul.f32 %v2473, 1.442695
        %v2597 = vpow.pop %v2596
        %v2598 = vmul.f32 %v2474, 1.442695
        %v2599 = vpow.pop %v2598
        %v2600 = vmul.f32 %v2475, 1.442695
        %v2601 = vpow.pop %v2600
        %v2602 = vmul.f32 %v2476, 1.442695
        %v2603 = vpow.pop %v2602
        %v2604 = vmul.f32 %v2477, 1.442695
        %v2605 = vpow.pop %v2604
        %v2606 = vsel %vm678, %v2479, 0.0
        %2607 = vadd.xlane.f32.xlu0 %v2606
        %v2608 = vpop.xlane.xlu0 %2607
        %v2609 = vsel %vm678, %v2481, 0.0
        %2610 = vadd.xlane.f32.xlu0 %v2609
        %v2611 = vpop.xlane.xlu0 %2610
        %v2612 = vsel %vm678, %v2483, 0.0
        %2613 = vadd.xlane.f32.xlu0 %v2612
        %v2614 = vpop.xlane.xlu0 %2613
        %v2615 = vsel %vm678, %v2485, 0.0
        %2616 = vadd.xlane.f32.xlu0 %v2615
        %v2617 = vpop.xlane.xlu0 %2616
        %v2618 = vsel %vm678, %v2487, 0.0
        %2619 = vadd.xlane.f32.xlu0 %v2618
        %v2620 = vpop.xlane.xlu0 %2619
        %v2621 = vsel %vm678, %v2489, 0.0
        %2622 = vadd.xlane.f32.xlu0 %v2621
        %v2623 = vpop.xlane.xlu0 %2622
        %v2624 = vsel %vm678, %v2491, 0.0
        %2625 = vadd.xlane.f32.xlu0 %v2624
        %v2626 = vpop.xlane.xlu0 %2625
        %v2627 = vsel %vm678, %v2493, 0.0
        %2628 = vadd.xlane.f32.xlu0 %v2627
        %v2629 = vpop.xlane.xlu0 %2628
        %v2630 = vsel %vm678, %v2495, 0.0
        %2631 = vadd.xlane.f32.xlu0 %v2630
        %v2632 = vpop.xlane.xlu0 %2631
        %v2633 = vsel %vm678, %v2497, 0.0
        %2634 = vadd.xlane.f32.xlu0 %v2633
        %v2635 = vpop.xlane.xlu0 %2634
        %v2636 = vsel %vm678, %v2499, 0.0
        %2637 = vadd.xlane.f32.xlu0 %v2636
        %v2638 = vpop.xlane.xlu0 %2637
        %v2639 = vsel %vm678, %v2501, 0.0
        %2640 = vadd.xlane.f32.xlu0 %v2639
        %v2641 = vpop.xlane.xlu0 %2640
        %v2642 = vsel %vm678, %v2503, 0.0
        %2643 = vadd.xlane.f32.xlu0 %v2642
        %v2644 = vpop.xlane.xlu0 %2643
        %v2645 = vsel %vm678, %v2505, 0.0
        %2646 = vadd.xlane.f32.xlu0 %v2645
        %v2647 = vpop.xlane.xlu0 %2646
        %v2648 = vsel %vm678, %v2507, 0.0
        %2649 = vadd.xlane.f32.xlu0 %v2648
        %v2650 = vpop.xlane.xlu0 %2649
        %v2651 = vsel %vm678, %v2509, 0.0
        %2652 = vadd.xlane.f32.xlu0 %v2651
        %v2653 = vpop.xlane.xlu0 %2652
        %v2654 = vsel %vm678, %v2511, 0.0
        %2655 = vadd.xlane.f32.xlu0 %v2654
        %v2656 = vpop.xlane.xlu0 %2655
        %v2657 = vsel %vm678, %v2513, 0.0
        %2658 = vadd.xlane.f32.xlu0 %v2657
        %v2659 = vpop.xlane.xlu0 %2658
        %v2660 = vsel %vm678, %v2515, 0.0
        %2661 = vadd.xlane.f32.xlu0 %v2660
        %v2662 = vpop.xlane.xlu0 %2661
        %v2663 = vsel %vm678, %v2517, 0.0
        %2664 = vadd.xlane.f32.xlu0 %v2663
        %v2665 = vpop.xlane.xlu0 %2664
        %v2666 = vsel %vm678, %v2519, 0.0
        %2667 = vadd.xlane.f32.xlu0 %v2666
        %v2668 = vpop.xlane.xlu0 %2667
        %v2669 = vsel %vm678, %v2521, 0.0
        %2670 = vadd.xlane.f32.xlu0 %v2669
        %v2671 = vpop.xlane.xlu0 %2670
        %v2672 = vsel %vm678, %v2523, 0.0
        %2673 = vadd.xlane.f32.xlu0 %v2672
        %v2674 = vpop.xlane.xlu0 %2673
        %v2675 = vsel %vm678, %v2525, 0.0
        %2676 = vadd.xlane.f32.xlu0 %v2675
        %v2677 = vpop.xlane.xlu0 %2676
        %v2678 = vsel %vm678, %v2527, 0.0
        %2679 = vadd.xlane.f32.xlu0 %v2678
        %v2680 = vpop.xlane.xlu0 %2679
        %v2681 = vsel %vm678, %v2529, 0.0
        %2682 = vadd.xlane.f32.xlu0 %v2681
        %v2683 = vpop.xlane.xlu0 %2682
        %v2684 = vsel %vm678, %v2531, 0.0
        %2685 = vadd.xlane.f32.xlu0 %v2684
        %v2686 = vpop.xlane.xlu0 %2685
        %v2687 = vsel %vm678, %v2533, 0.0
        %2688 = vadd.xlane.f32.xlu0 %v2687
        %v2689 = vpop.xlane.xlu0 %2688
        %v2690 = vsel %vm678, %v2535, 0.0
        %2691 = vadd.xlane.f32.xlu0 %v2690
        %v2692 = vpop.xlane.xlu0 %2691
        %v2693 = vsel %vm678, %v2537, 0.0
        %2694 = vadd.xlane.f32.xlu0 %v2693
        %v2695 = vpop.xlane.xlu0 %2694
        %v2696 = vsel %vm678, %v2539, 0.0
        %2697 = vadd.xlane.f32.xlu0 %v2696
        %v2698 = vpop.xlane.xlu0 %2697
        %v2699 = vsel %vm678, %v2541, 0.0
        %2700 = vadd.xlane.f32.xlu0 %v2699
        %v2701 = vpop.xlane.xlu0 %2700
        %v2702 = vsel %vm678, %v2543, 0.0
        %2703 = vadd.xlane.f32.xlu0 %v2702
        %v2704 = vpop.xlane.xlu0 %2703
        %v2705 = vsel %vm678, %v2545, 0.0
        %2706 = vadd.xlane.f32.xlu0 %v2705
        %v2707 = vpop.xlane.xlu0 %2706
        %v2708 = vsel %vm678, %v2547, 0.0
        %2709 = vadd.xlane.f32.xlu0 %v2708
        %v2710 = vpop.xlane.xlu0 %2709
        %v2711 = vsel %vm678, %v2549, 0.0
        %2712 = vadd.xlane.f32.xlu0 %v2711
        %v2713 = vpop.xlane.xlu0 %2712
        %v2714 = vsel %vm678, %v2551, 0.0
        %2715 = vadd.xlane.f32.xlu0 %v2714
        %v2716 = vpop.xlane.xlu0 %2715
        %v2717 = vsel %vm678, %v2553, 0.0
        %2718 = vadd.xlane.f32.xlu0 %v2717
        %v2719 = vpop.xlane.xlu0 %2718
        %v2720 = vsel %vm678, %v2555, 0.0
        %2721 = vadd.xlane.f32.xlu0 %v2720
        %v2722 = vpop.xlane.xlu0 %2721
        %v2723 = vsel %vm678, %v2557, 0.0
        %2724 = vadd.xlane.f32.xlu0 %v2723
        %v2725 = vpop.xlane.xlu0 %2724
        %v2726 = vsel %vm678, %v2559, 0.0
        %2727 = vadd.xlane.f32.xlu0 %v2726
        %v2728 = vpop.xlane.xlu0 %2727
        %v2729 = vsel %vm678, %v2561, 0.0
        %2730 = vadd.xlane.f32.xlu0 %v2729
        %v2731 = vpop.xlane.xlu0 %2730
        %v2732 = vsel %vm678, %v2563, 0.0
        %2733 = vadd.xlane.f32.xlu0 %v2732
        %v2734 = vpop.xlane.xlu0 %2733
        %v2735 = vsel %vm678, %v2565, 0.0
        %2736 = vadd.xlane.f32.xlu0 %v2735
        %v2737 = vpop.xlane.xlu0 %2736
        %v2738 = vsel %vm678, %v2567, 0.0
        %2739 = vadd.xlane.f32.xlu0 %v2738
        %v2740 = vpop.xlane.xlu0 %2739
        %v2741 = vsel %vm678, %v2569, 0.0
        %2742 = vadd.xlane.f32.xlu0 %v2741
        %v2743 = vpop.xlane.xlu0 %2742
        %v2744 = vsel %vm678, %v2571, 0.0
        %2745 = vadd.xlane.f32.xlu0 %v2744
        %v2746 = vpop.xlane.xlu0 %2745
        %v2747 = vsel %vm678, %v2573, 0.0
        %2748 = vadd.xlane.f32.xlu0 %v2747
        %v2749 = vpop.xlane.xlu0 %2748
        %v2750 = vsel %vm678, %v2575, 0.0
        %2751 = vadd.xlane.f32.xlu0 %v2750
        %v2752 = vpop.xlane.xlu0 %2751
        %v2753 = vsel %vm678, %v2577, 0.0
        %2754 = vadd.xlane.f32.xlu0 %v2753
        %v2755 = vpop.xlane.xlu0 %2754
        %v2756 = vsel %vm678, %v2579, 0.0
        %2757 = vadd.xlane.f32.xlu0 %v2756
        %v2758 = vpop.xlane.xlu0 %2757
        %v2759 = vsel %vm678, %v2581, 0.0
        %2760 = vadd.xlane.f32.xlu0 %v2759
        %v2761 = vpop.xlane.xlu0 %2760
        %v2762 = vsel %vm678, %v2583, 0.0
        %2763 = vadd.xlane.f32.xlu0 %v2762
        %v2764 = vpop.xlane.xlu0 %2763
        %v2765 = vsel %vm678, %v2585, 0.0
        %2766 = vadd.xlane.f32.xlu0 %v2765
        %v2767 = vpop.xlane.xlu0 %2766
        %v2768 = vsel %vm678, %v2587, 0.0
        %2769 = vadd.xlane.f32.xlu0 %v2768
        %v2770 = vpop.xlane.xlu0 %2769
        %v2771 = vsel %vm678, %v2589, 0.0
        %2772 = vadd.xlane.f32.xlu0 %v2771
        %v2773 = vpop.xlane.xlu0 %2772
        %v2774 = vsel %vm678, %v2591, 0.0
        %2775 = vadd.xlane.f32.xlu0 %v2774
        %v2776 = vpop.xlane.xlu0 %2775
        %v2777 = vsel %vm678, %v2593, 0.0
        %2778 = vadd.xlane.f32.xlu0 %v2777
        %v2779 = vpop.xlane.xlu0 %2778
        %v2780 = vsel %vm678, %v2595, 0.0
        %2781 = vadd.xlane.f32.xlu0 %v2780
        %v2782 = vpop.xlane.xlu0 %2781
        %v2783 = vsel %vm678, %v2597, 0.0
        %2784 = vadd.xlane.f32.xlu0 %v2783
        %v2785 = vpop.xlane.xlu0 %2784
        %v2786 = vsel %vm678, %v2599, 0.0
        %2787 = vadd.xlane.f32.xlu0 %v2786
        %v2788 = vpop.xlane.xlu0 %2787
        %v2789 = vsel %vm678, %v2601, 0.0
        %2790 = vadd.xlane.f32.xlu0 %v2789
        %v2791 = vpop.xlane.xlu0 %2790
        %v2792 = vsel %vm678, %v2603, 0.0
        %2793 = vadd.xlane.f32.xlu0 %v2792
        %v2794 = vpop.xlane.xlu0 %2793
        %v2795 = vsel %vm678, %v2605, 0.0
        %2796 = vadd.xlane.f32.xlu0 %v2795
        %v2797 = vpop.xlane.xlu0 %2796
        %v2798 = vrcp.pop %v2608
        %v2799 = vmul.f32 %v2608, %v2798
        %v2800 = vsub.f32 1.0, %v2799
        %v2801 = vmul.f32 %v2798, %v2800
        %v2802 = vadd.f32 %v2798, %v2801
        %vm2803 = vweird.f32 %v2608
        %vm2804 = vweird.f32 %v2798
        %vm2805 = vmor %vm2803, %vm2804
        %v2806 = vsel %vm2805, %v2798, %v2802
        %v2807 = vand.u32 2147483647, %v2608
        %vm2808 = vcmp.eq.f32.partialorder %v2807, 8.507059e+37
        %v2809 = vand.u32 %v2608, 2147483648
        %v2810 = vor.u32 1.1754944e-38, %v2809
        %v2811 = vsel %vm2808, %v2810, %v2806
        %v2812 = vmul.f32 %v2479, %v2811
        %v2813 = vrcp.pop %v2611
        %v2814 = vmul.f32 %v2611, %v2813
        %v2815 = vsub.f32 1.0, %v2814
        %v2816 = vmul.f32 %v2813, %v2815
        %v2817 = vadd.f32 %v2813, %v2816
        %vm2818 = vweird.f32 %v2611
        %vm2819 = vweird.f32 %v2813
        %vm2820 = vmor %vm2818, %vm2819
        %v2821 = vsel %vm2820, %v2813, %v2817
        %v2822 = vand.u32 2147483647, %v2611
        %vm2823 = vcmp.eq.f32.partialorder %v2822, 8.507059e+37
        %v2824 = vand.u32 %v2611, 2147483648
        %v2825 = vor.u32 1.1754944e-38, %v2824
        %v2826 = vsel %vm2823, %v2825, %v2821
        %v2827 = vmul.f32 %v2481, %v2826
        %v2828 = vrcp.pop %v2614
        %v2829 = vmul.f32 %v2614, %v2828
        %v2830 = vsub.f32 1.0, %v2829
        %v2831 = vmul.f32 %v2828, %v2830
        %v2832 = vadd.f32 %v2828, %v2831
        %vm2833 = vweird.f32 %v2614
        %vm2834 = vweird.f32 %v2828
        %vm2835 = vmor %vm2833, %vm2834
        %v2836 = vsel %vm2835, %v2828, %v2832
        %v2837 = vand.u32 2147483647, %v2614
        %vm2838 = vcmp.eq.f32.partialorder %v2837, 8.507059e+37
        %v2839 = vand.u32 %v2614, 2147483648
        %v2840 = vor.u32 1.1754944e-38, %v2839
        %v2841 = vsel %vm2838, %v2840, %v2836
        %v2842 = vmul.f32 %v2483, %v2841
        %v2843 = vrcp.pop %v2617
        %v2844 = vmul.f32 %v2617, %v2843
        %v2845 = vsub.f32 1.0, %v2844
        %v2846 = vmul.f32 %v2843, %v2845
        %v2847 = vadd.f32 %v2843, %v2846
        %vm2848 = vweird.f32 %v2617
        %vm2849 = vweird.f32 %v2843
        %vm2850 = vmor %vm2848, %vm2849
        %v2851 = vsel %vm2850, %v2843, %v2847
        %v2852 = vand.u32 2147483647, %v2617
        %vm2853 = vcmp.eq.f32.partialorder %v2852, 8.507059e+37
        %v2854 = vand.u32 %v2617, 2147483648
        %v2855 = vor.u32 1.1754944e-38, %v2854
        %v2856 = vsel %vm2853, %v2855, %v2851
        %v2857 = vmul.f32 %v2485, %v2856
        %v2858 = vrcp.pop %v2620
        %v2859 = vmul.f32 %v2620, %v2858
        %v2860 = vsub.f32 1.0, %v2859
        %v2861 = vmul.f32 %v2858, %v2860
        %v2862 = vadd.f32 %v2858, %v2861
        %vm2863 = vweird.f32 %v2620
        %vm2864 = vweird.f32 %v2858
        %vm2865 = vmor %vm2863, %vm2864
        %v2866 = vsel %vm2865, %v2858, %v2862
        %v2867 = vand.u32 2147483647, %v2620
        %vm2868 = vcmp.eq.f32.partialorder %v2867, 8.507059e+37
        %v2869 = vand.u32 %v2620, 2147483648
        %v2870 = vor.u32 1.1754944e-38, %v2869
        %v2871 = vsel %vm2868, %v2870, %v2866
        %v2872 = vmul.f32 %v2487, %v2871
        %v2873 = vrcp.pop %v2623
        %v2874 = vmul.f32 %v2623, %v2873
        %v2875 = vsub.f32 1.0, %v2874
        %v2876 = vmul.f32 %v2873, %v2875
        %v2877 = vadd.f32 %v2873, %v2876
        %vm2878 = vweird.f32 %v2623
        %vm2879 = vweird.f32 %v2873
        %vm2880 = vmor %vm2878, %vm2879
        %v2881 = vsel %vm2880, %v2873, %v2877
        %v2882 = vand.u32 2147483647, %v2623
        %vm2883 = vcmp.eq.f32.partialorder %v2882, 8.507059e+37
        %v2884 = vand.u32 %v2623, 2147483648
        %v2885 = vor.u32 1.1754944e-38, %v2884
        %v2886 = vsel %vm2883, %v2885, %v2881
        %v2887 = vmul.f32 %v2489, %v2886
        %v2888 = vrcp.pop %v2626
        %v2889 = vmul.f32 %v2626, %v2888
        %v2890 = vsub.f32 1.0, %v2889
        %v2891 = vmul.f32 %v2888, %v2890
        %v2892 = vadd.f32 %v2888, %v2891
        %vm2893 = vweird.f32 %v2626
        %vm2894 = vweird.f32 %v2888
        %vm2895 = vmor %vm2893, %vm2894
        %v2896 = vsel %vm2895, %v2888, %v2892
        %v2897 = vand.u32 2147483647, %v2626
        %vm2898 = vcmp.eq.f32.partialorder %v2897, 8.507059e+37
        %v2899 = vand.u32 %v2626, 2147483648
        %v2900 = vor.u32 1.1754944e-38, %v2899
        %v2901 = vsel %vm2898, %v2900, %v2896
        %v2902 = vmul.f32 %v2491, %v2901
        %v2903 = vrcp.pop %v2629
        %v2904 = vmul.f32 %v2629, %v2903
        %v2905 = vsub.f32 1.0, %v2904
        %v2906 = vmul.f32 %v2903, %v2905
        %v2907 = vadd.f32 %v2903, %v2906
        %vm2908 = vweird.f32 %v2629
        %vm2909 = vweird.f32 %v2903
        %vm2910 = vmor %vm2908, %vm2909
        %v2911 = vsel %vm2910, %v2903, %v2907
        %v2912 = vand.u32 2147483647, %v2629
        %vm2913 = vcmp.eq.f32.partialorder %v2912, 8.507059e+37
        %v2914 = vand.u32 %v2629, 2147483648
        %v2915 = vor.u32 1.1754944e-38, %v2914
        %v2916 = vsel %vm2913, %v2915, %v2911
        %v2917 = vmul.f32 %v2493, %v2916
        %v2918 = vrcp.pop %v2632
        %v2919 = vmul.f32 %v2632, %v2918
        %v2920 = vsub.f32 1.0, %v2919
        %v2921 = vmul.f32 %v2918, %v2920
        %v2922 = vadd.f32 %v2918, %v2921
        %vm2923 = vweird.f32 %v2632
        %vm2924 = vweird.f32 %v2918
        %vm2925 = vmor %vm2923, %vm2924
        %v2926 = vsel %vm2925, %v2918, %v2922
        %v2927 = vand.u32 2147483647, %v2632
        %vm2928 = vcmp.eq.f32.partialorder %v2927, 8.507059e+37
        %v2929 = vand.u32 %v2632, 2147483648
        %v2930 = vor.u32 1.1754944e-38, %v2929
        %v2931 = vsel %vm2928, %v2930, %v2926
        %v2932 = vmul.f32 %v2495, %v2931
        %v2933 = vrcp.pop %v2635
        %v2934 = vmul.f32 %v2635, %v2933
        %v2935 = vsub.f32 1.0, %v2934
        %v2936 = vmul.f32 %v2933, %v2935
        %v2937 = vadd.f32 %v2933, %v2936
        %vm2938 = vweird.f32 %v2635
        %vm2939 = vweird.f32 %v2933
        %vm2940 = vmor %vm2938, %vm2939
        %v2941 = vsel %vm2940, %v2933, %v2937
        %v2942 = vand.u32 2147483647, %v2635
        %vm2943 = vcmp.eq.f32.partialorder %v2942, 8.507059e+37
        %v2944 = vand.u32 %v2635, 2147483648
        %v2945 = vor.u32 1.1754944e-38, %v2944
        %v2946 = vsel %vm2943, %v2945, %v2941
        %v2947 = vmul.f32 %v2497, %v2946
        %v2948 = vrcp.pop %v2638
        %v2949 = vmul.f32 %v2638, %v2948
        %v2950 = vsub.f32 1.0, %v2949
        %v2951 = vmul.f32 %v2948, %v2950
        %v2952 = vadd.f32 %v2948, %v2951
        %vm2953 = vweird.f32 %v2638
        %vm2954 = vweird.f32 %v2948
        %vm2955 = vmor %vm2953, %vm2954
        %v2956 = vsel %vm2955, %v2948, %v2952
        %v2957 = vand.u32 2147483647, %v2638
        %vm2958 = vcmp.eq.f32.partialorder %v2957, 8.507059e+37
        %v2959 = vand.u32 %v2638, 2147483648
        %v2960 = vor.u32 1.1754944e-38, %v2959
        %v2961 = vsel %vm2958, %v2960, %v2956
        %v2962 = vmul.f32 %v2499, %v2961
        %v2963 = vrcp.pop %v2641
        %v2964 = vmul.f32 %v2641, %v2963
        %v2965 = vsub.f32 1.0, %v2964
        %v2966 = vmul.f32 %v2963, %v2965
        %v2967 = vadd.f32 %v2963, %v2966
        %vm2968 = vweird.f32 %v2641
        %vm2969 = vweird.f32 %v2963
        %vm2970 = vmor %vm2968, %vm2969
        %v2971 = vsel %vm2970, %v2963, %v2967
        %v2972 = vand.u32 2147483647, %v2641
        %vm2973 = vcmp.eq.f32.partialorder %v2972, 8.507059e+37
        %v2974 = vand.u32 %v2641, 2147483648
        %v2975 = vor.u32 1.1754944e-38, %v2974
        %v2976 = vsel %vm2973, %v2975, %v2971
        %v2977 = vmul.f32 %v2501, %v2976
        %v2978 = vrcp.pop %v2644
        %v2979 = vmul.f32 %v2644, %v2978
        %v2980 = vsub.f32 1.0, %v2979
        %v2981 = vmul.f32 %v2978, %v2980
        %v2982 = vadd.f32 %v2978, %v2981
        %vm2983 = vweird.f32 %v2644
        %vm2984 = vweird.f32 %v2978
        %vm2985 = vmor %vm2983, %vm2984
        %v2986 = vsel %vm2985, %v2978, %v2982
        %v2987 = vand.u32 2147483647, %v2644
        %vm2988 = vcmp.eq.f32.partialorder %v2987, 8.507059e+37
        %v2989 = vand.u32 %v2644, 2147483648
        %v2990 = vor.u32 1.1754944e-38, %v2989
        %v2991 = vsel %vm2988, %v2990, %v2986
        %v2992 = vmul.f32 %v2503, %v2991
        %v2993 = vrcp.pop %v2647
        %v2994 = vmul.f32 %v2647, %v2993
        %v2995 = vsub.f32 1.0, %v2994
        %v2996 = vmul.f32 %v2993, %v2995
        %v2997 = vadd.f32 %v2993, %v2996
        %vm2998 = vweird.f32 %v2647
        %vm2999 = vweird.f32 %v2993
        %vm3000 = vmor %vm2998, %vm2999
        %v3001 = vsel %vm3000, %v2993, %v2997
        %v3002 = vand.u32 2147483647, %v2647
        %vm3003 = vcmp.eq.f32.partialorder %v3002, 8.507059e+37
        %v3004 = vand.u32 %v2647, 2147483648
        %v3005 = vor.u32 1.1754944e-38, %v3004
        %v3006 = vsel %vm3003, %v3005, %v3001
        %v3007 = vmul.f32 %v2505, %v3006
        %v3008 = vrcp.pop %v2650
        %v3009 = vmul.f32 %v2650, %v3008
        %v3010 = vsub.f32 1.0, %v3009
        %v3011 = vmul.f32 %v3008, %v3010
        %v3012 = vadd.f32 %v3008, %v3011
        %vm3013 = vweird.f32 %v2650
        %vm3014 = vweird.f32 %v3008
        %vm3015 = vmor %vm3013, %vm3014
        %v3016 = vsel %vm3015, %v3008, %v3012
        %v3017 = vand.u32 2147483647, %v2650
        %vm3018 = vcmp.eq.f32.partialorder %v3017, 8.507059e+37
        %v3019 = vand.u32 %v2650, 2147483648
        %v3020 = vor.u32 1.1754944e-38, %v3019
        %v3021 = vsel %vm3018, %v3020, %v3016
        %v3022 = vmul.f32 %v2507, %v3021
        %v3023 = vrcp.pop %v2653
        %v3024 = vmul.f32 %v2653, %v3023
        %v3025 = vsub.f32 1.0, %v3024
        %v3026 = vmul.f32 %v3023, %v3025
        %v3027 = vadd.f32 %v3023, %v3026
        %vm3028 = vweird.f32 %v2653
        %vm3029 = vweird.f32 %v3023
        %vm3030 = vmor %vm3028, %vm3029
        %v3031 = vsel %vm3030, %v3023, %v3027
        %v3032 = vand.u32 2147483647, %v2653
        %vm3033 = vcmp.eq.f32.partialorder %v3032, 8.507059e+37
        %v3034 = vand.u32 %v2653, 2147483648
        %v3035 = vor.u32 1.1754944e-38, %v3034
        %v3036 = vsel %vm3033, %v3035, %v3031
        %v3037 = vmul.f32 %v2509, %v3036
        %v3038 = vrcp.pop %v2656
        %v3039 = vmul.f32 %v2656, %v3038
        %v3040 = vsub.f32 1.0, %v3039
        %v3041 = vmul.f32 %v3038, %v3040
        %v3042 = vadd.f32 %v3038, %v3041
        %vm3043 = vweird.f32 %v2656
        %vm3044 = vweird.f32 %v3038
        %vm3045 = vmor %vm3043, %vm3044
        %v3046 = vsel %vm3045, %v3038, %v3042
        %v3047 = vand.u32 2147483647, %v2656
        %vm3048 = vcmp.eq.f32.partialorder %v3047, 8.507059e+37
        %v3049 = vand.u32 %v2656, 2147483648
        %v3050 = vor.u32 1.1754944e-38, %v3049
        %v3051 = vsel %vm3048, %v3050, %v3046
        %v3052 = vmul.f32 %v2511, %v3051
        %v3053 = vrcp.pop %v2659
        %v3054 = vmul.f32 %v2659, %v3053
        %v3055 = vsub.f32 1.0, %v3054
        %v3056 = vmul.f32 %v3053, %v3055
        %v3057 = vadd.f32 %v3053, %v3056
        %vm3058 = vweird.f32 %v2659
        %vm3059 = vweird.f32 %v3053
        %vm3060 = vmor %vm3058, %vm3059
        %v3061 = vsel %vm3060, %v3053, %v3057
        %v3062 = vand.u32 2147483647, %v2659
        %vm3063 = vcmp.eq.f32.partialorder %v3062, 8.507059e+37
        %v3064 = vand.u32 %v2659, 2147483648
        %v3065 = vor.u32 1.1754944e-38, %v3064
        %v3066 = vsel %vm3063, %v3065, %v3061
        %v3067 = vmul.f32 %v2513, %v3066
        %v3068 = vrcp.pop %v2662
        %v3069 = vmul.f32 %v2662, %v3068
        %v3070 = vsub.f32 1.0, %v3069
        %v3071 = vmul.f32 %v3068, %v3070
        %v3072 = vadd.f32 %v3068, %v3071
        %vm3073 = vweird.f32 %v2662
        %vm3074 = vweird.f32 %v3068
        %vm3075 = vmor %vm3073, %vm3074
        %v3076 = vsel %vm3075, %v3068, %v3072
        %v3077 = vand.u32 2147483647, %v2662
        %vm3078 = vcmp.eq.f32.partialorder %v3077, 8.507059e+37
        %v3079 = vand.u32 %v2662, 2147483648
        %v3080 = vor.u32 1.1754944e-38, %v3079
        %v3081 = vsel %vm3078, %v3080, %v3076
        %v3082 = vmul.f32 %v2515, %v3081
        %v3083 = vrcp.pop %v2665
        %v3084 = vmul.f32 %v2665, %v3083
        %v3085 = vsub.f32 1.0, %v3084
        %v3086 = vmul.f32 %v3083, %v3085
        %v3087 = vadd.f32 %v3083, %v3086
        %vm3088 = vweird.f32 %v2665
        %vm3089 = vweird.f32 %v3083
        %vm3090 = vmor %vm3088, %vm3089
        %v3091 = vsel %vm3090, %v3083, %v3087
        %v3092 = vand.u32 2147483647, %v2665
        %vm3093 = vcmp.eq.f32.partialorder %v3092, 8.507059e+37
        %v3094 = vand.u32 %v2665, 2147483648
        %v3095 = vor.u32 1.1754944e-38, %v3094
        %v3096 = vsel %vm3093, %v3095, %v3091
        %v3097 = vmul.f32 %v2517, %v3096
        %v3098 = vrcp.pop %v2668
        %v3099 = vmul.f32 %v2668, %v3098
        %v3100 = vsub.f32 1.0, %v3099
        %v3101 = vmul.f32 %v3098, %v3100
        %v3102 = vadd.f32 %v3098, %v3101
        %vm3103 = vweird.f32 %v2668
        %vm3104 = vweird.f32 %v3098
        %vm3105 = vmor %vm3103, %vm3104
        %v3106 = vsel %vm3105, %v3098, %v3102
        %v3107 = vand.u32 2147483647, %v2668
        %vm3108 = vcmp.eq.f32.partialorder %v3107, 8.507059e+37
        %v3109 = vand.u32 %v2668, 2147483648
        %v3110 = vor.u32 1.1754944e-38, %v3109
        %v3111 = vsel %vm3108, %v3110, %v3106
        %v3112 = vmul.f32 %v2519, %v3111
        %v3113 = vrcp.pop %v2671
        %v3114 = vmul.f32 %v2671, %v3113
        %v3115 = vsub.f32 1.0, %v3114
        %v3116 = vmul.f32 %v3113, %v3115
        %v3117 = vadd.f32 %v3113, %v3116
        %vm3118 = vweird.f32 %v2671
        %vm3119 = vweird.f32 %v3113
        %vm3120 = vmor %vm3118, %vm3119
        %v3121 = vsel %vm3120, %v3113, %v3117
        %v3122 = vand.u32 2147483647, %v2671
        %vm3123 = vcmp.eq.f32.partialorder %v3122, 8.507059e+37
        %v3124 = vand.u32 %v2671, 2147483648
        %v3125 = vor.u32 1.1754944e-38, %v3124
        %v3126 = vsel %vm3123, %v3125, %v3121
        %v3127 = vmul.f32 %v2521, %v3126
        %v3128 = vrcp.pop %v2674
        %v3129 = vmul.f32 %v2674, %v3128
        %v3130 = vsub.f32 1.0, %v3129
        %v3131 = vmul.f32 %v3128, %v3130
        %v3132 = vadd.f32 %v3128, %v3131
        %vm3133 = vweird.f32 %v2674
        %vm3134 = vweird.f32 %v3128
        %vm3135 = vmor %vm3133, %vm3134
        %v3136 = vsel %vm3135, %v3128, %v3132
        %v3137 = vand.u32 2147483647, %v2674
        %vm3138 = vcmp.eq.f32.partialorder %v3137, 8.507059e+37
        %v3139 = vand.u32 %v2674, 2147483648
        %v3140 = vor.u32 1.1754944e-38, %v3139
        %v3141 = vsel %vm3138, %v3140, %v3136
        %v3142 = vmul.f32 %v2523, %v3141
        %v3143 = vrcp.pop %v2677
        %v3144 = vmul.f32 %v2677, %v3143
        %v3145 = vsub.f32 1.0, %v3144
        %v3146 = vmul.f32 %v3143, %v3145
        %v3147 = vadd.f32 %v3143, %v3146
        %vm3148 = vweird.f32 %v2677
        %vm3149 = vweird.f32 %v3143
        %vm3150 = vmor %vm3148, %vm3149
        %v3151 = vsel %vm3150, %v3143, %v3147
        %v3152 = vand.u32 2147483647, %v2677
        %vm3153 = vcmp.eq.f32.partialorder %v3152, 8.507059e+37
        %v3154 = vand.u32 %v2677, 2147483648
        %v3155 = vor.u32 1.1754944e-38, %v3154
        %v3156 = vsel %vm3153, %v3155, %v3151
        %v3157 = vmul.f32 %v2525, %v3156
        %v3158 = vrcp.pop %v2680
        %v3159 = vmul.f32 %v2680, %v3158
        %v3160 = vsub.f32 1.0, %v3159
        %v3161 = vmul.f32 %v3158, %v3160
        %v3162 = vadd.f32 %v3158, %v3161
        %vm3163 = vweird.f32 %v2680
        %vm3164 = vweird.f32 %v3158
        %vm3165 = vmor %vm3163, %vm3164
        %v3166 = vsel %vm3165, %v3158, %v3162
        %v3167 = vand.u32 2147483647, %v2680
        %vm3168 = vcmp.eq.f32.partialorder %v3167, 8.507059e+37
        %v3169 = vand.u32 %v2680, 2147483648
        %v3170 = vor.u32 1.1754944e-38, %v3169
        %v3171 = vsel %vm3168, %v3170, %v3166
        %v3172 = vmul.f32 %v2527, %v3171
        %v3173 = vrcp.pop %v2683
        %v3174 = vmul.f32 %v2683, %v3173
        %v3175 = vsub.f32 1.0, %v3174
        %v3176 = vmul.f32 %v3173, %v3175
        %v3177 = vadd.f32 %v3173, %v3176
        %vm3178 = vweird.f32 %v2683
        %vm3179 = vweird.f32 %v3173
        %vm3180 = vmor %vm3178, %vm3179
        %v3181 = vsel %vm3180, %v3173, %v3177
        %v3182 = vand.u32 2147483647, %v2683
        %vm3183 = vcmp.eq.f32.partialorder %v3182, 8.507059e+37
        %v3184 = vand.u32 %v2683, 2147483648
        %v3185 = vor.u32 1.1754944e-38, %v3184
        %v3186 = vsel %vm3183, %v3185, %v3181
        %v3187 = vmul.f32 %v2529, %v3186
        %v3188 = vrcp.pop %v2686
        %v3189 = vmul.f32 %v2686, %v3188
        %v3190 = vsub.f32 1.0, %v3189
        %v3191 = vmul.f32 %v3188, %v3190
        %v3192 = vadd.f32 %v3188, %v3191
        %vm3193 = vweird.f32 %v2686
        %vm3194 = vweird.f32 %v3188
        %vm3195 = vmor %vm3193, %vm3194
        %v3196 = vsel %vm3195, %v3188, %v3192
        %v3197 = vand.u32 2147483647, %v2686
        %vm3198 = vcmp.eq.f32.partialorder %v3197, 8.507059e+37
        %v3199 = vand.u32 %v2686, 2147483648
        %v3200 = vor.u32 1.1754944e-38, %v3199
        %v3201 = vsel %vm3198, %v3200, %v3196
        %v3202 = vmul.f32 %v2531, %v3201
        %v3203 = vrcp.pop %v2689
        %v3204 = vmul.f32 %v2689, %v3203
        %v3205 = vsub.f32 1.0, %v3204
        %v3206 = vmul.f32 %v3203, %v3205
        %v3207 = vadd.f32 %v3203, %v3206
        %vm3208 = vweird.f32 %v2689
        %vm3209 = vweird.f32 %v3203
        %vm3210 = vmor %vm3208, %vm3209
        %v3211 = vsel %vm3210, %v3203, %v3207
        %v3212 = vand.u32 2147483647, %v2689
        %vm3213 = vcmp.eq.f32.partialorder %v3212, 8.507059e+37
        %v3214 = vand.u32 %v2689, 2147483648
        %v3215 = vor.u32 1.1754944e-38, %v3214
        %v3216 = vsel %vm3213, %v3215, %v3211
        %v3217 = vmul.f32 %v2533, %v3216
        %v3218 = vrcp.pop %v2692
        %v3219 = vmul.f32 %v2692, %v3218
        %v3220 = vsub.f32 1.0, %v3219
        %v3221 = vmul.f32 %v3218, %v3220
        %v3222 = vadd.f32 %v3218, %v3221
        %vm3223 = vweird.f32 %v2692
        %vm3224 = vweird.f32 %v3218
        %vm3225 = vmor %vm3223, %vm3224
        %v3226 = vsel %vm3225, %v3218, %v3222
        %v3227 = vand.u32 2147483647, %v2692
        %vm3228 = vcmp.eq.f32.partialorder %v3227, 8.507059e+37
        %v3229 = vand.u32 %v2692, 2147483648
        %v3230 = vor.u32 1.1754944e-38, %v3229
        %v3231 = vsel %vm3228, %v3230, %v3226
        %v3232 = vmul.f32 %v2535, %v3231
        %v3233 = vrcp.pop %v2695
        %v3234 = vmul.f32 %v2695, %v3233
        %v3235 = vsub.f32 1.0, %v3234
        %v3236 = vmul.f32 %v3233, %v3235
        %v3237 = vadd.f32 %v3233, %v3236
        %vm3238 = vweird.f32 %v2695
        %vm3239 = vweird.f32 %v3233
        %vm3240 = vmor %vm3238, %vm3239
        %v3241 = vsel %vm3240, %v3233, %v3237
        %v3242 = vand.u32 2147483647, %v2695
        %vm3243 = vcmp.eq.f32.partialorder %v3242, 8.507059e+37
        %v3244 = vand.u32 %v2695, 2147483648
        %v3245 = vor.u32 1.1754944e-38, %v3244
        %v3246 = vsel %vm3243, %v3245, %v3241
        %v3247 = vmul.f32 %v2537, %v3246
        %v3248 = vrcp.pop %v2698
        %v3249 = vmul.f32 %v2698, %v3248
        %v3250 = vsub.f32 1.0, %v3249
        %v3251 = vmul.f32 %v3248, %v3250
        %v3252 = vadd.f32 %v3248, %v3251
        %vm3253 = vweird.f32 %v2698
        %vm3254 = vweird.f32 %v3248
        %vm3255 = vmor %vm3253, %vm3254
        %v3256 = vsel %vm3255, %v3248, %v3252
        %v3257 = vand.u32 2147483647, %v2698
        %vm3258 = vcmp.eq.f32.partialorder %v3257, 8.507059e+37
        %v3259 = vand.u32 %v2698, 2147483648
        %v3260 = vor.u32 1.1754944e-38, %v3259
        %v3261 = vsel %vm3258, %v3260, %v3256
        %v3262 = vmul.f32 %v2539, %v3261
        %v3263 = vrcp.pop %v2701
        %v3264 = vmul.f32 %v2701, %v3263
        %v3265 = vsub.f32 1.0, %v3264
        %v3266 = vmul.f32 %v3263, %v3265
        %v3267 = vadd.f32 %v3263, %v3266
        %vm3268 = vweird.f32 %v2701
        %vm3269 = vweird.f32 %v3263
        %vm3270 = vmor %vm3268, %vm3269
        %v3271 = vsel %vm3270, %v3263, %v3267
        %v3272 = vand.u32 2147483647, %v2701
        %vm3273 = vcmp.eq.f32.partialorder %v3272, 8.507059e+37
        %v3274 = vand.u32 %v2701, 2147483648
        %v3275 = vor.u32 1.1754944e-38, %v3274
        %v3276 = vsel %vm3273, %v3275, %v3271
        %v3277 = vmul.f32 %v2541, %v3276
        %v3278 = vrcp.pop %v2704
        %v3279 = vmul.f32 %v2704, %v3278
        %v3280 = vsub.f32 1.0, %v3279
        %v3281 = vmul.f32 %v3278, %v3280
        %v3282 = vadd.f32 %v3278, %v3281
        %vm3283 = vweird.f32 %v2704
        %vm3284 = vweird.f32 %v3278
        %vm3285 = vmor %vm3283, %vm3284
        %v3286 = vsel %vm3285, %v3278, %v3282
        %v3287 = vand.u32 2147483647, %v2704
        %vm3288 = vcmp.eq.f32.partialorder %v3287, 8.507059e+37
        %v3289 = vand.u32 %v2704, 2147483648
        %v3290 = vor.u32 1.1754944e-38, %v3289
        %v3291 = vsel %vm3288, %v3290, %v3286
        %v3292 = vmul.f32 %v2543, %v3291
        %v3293 = vrcp.pop %v2707
        %v3294 = vmul.f32 %v2707, %v3293
        %v3295 = vsub.f32 1.0, %v3294
        %v3296 = vmul.f32 %v3293, %v3295
        %v3297 = vadd.f32 %v3293, %v3296
        %vm3298 = vweird.f32 %v2707
        %vm3299 = vweird.f32 %v3293
        %vm3300 = vmor %vm3298, %vm3299
        %v3301 = vsel %vm3300, %v3293, %v3297
        %v3302 = vand.u32 2147483647, %v2707
        %vm3303 = vcmp.eq.f32.partialorder %v3302, 8.507059e+37
        %v3304 = vand.u32 %v2707, 2147483648
        %v3305 = vor.u32 1.1754944e-38, %v3304
        %v3306 = vsel %vm3303, %v3305, %v3301
        %v3307 = vmul.f32 %v2545, %v3306
        %v3308 = vrcp.pop %v2710
        %v3309 = vmul.f32 %v2710, %v3308
        %v3310 = vsub.f32 1.0, %v3309
        %v3311 = vmul.f32 %v3308, %v3310
        %v3312 = vadd.f32 %v3308, %v3311
        %vm3313 = vweird.f32 %v2710
        %vm3314 = vweird.f32 %v3308
        %vm3315 = vmor %vm3313, %vm3314
        %v3316 = vsel %vm3315, %v3308, %v3312
        %v3317 = vand.u32 2147483647, %v2710
        %vm3318 = vcmp.eq.f32.partialorder %v3317, 8.507059e+37
        %v3319 = vand.u32 %v2710, 2147483648
        %v3320 = vor.u32 1.1754944e-38, %v3319
        %v3321 = vsel %vm3318, %v3320, %v3316
        %v3322 = vmul.f32 %v2547, %v3321
        %v3323 = vrcp.pop %v2713
        %v3324 = vmul.f32 %v2713, %v3323
        %v3325 = vsub.f32 1.0, %v3324
        %v3326 = vmul.f32 %v3323, %v3325
        %v3327 = vadd.f32 %v3323, %v3326
        %vm3328 = vweird.f32 %v2713
        %vm3329 = vweird.f32 %v3323
        %vm3330 = vmor %vm3328, %vm3329
        %v3331 = vsel %vm3330, %v3323, %v3327
        %v3332 = vand.u32 2147483647, %v2713
        %vm3333 = vcmp.eq.f32.partialorder %v3332, 8.507059e+37
        %v3334 = vand.u32 %v2713, 2147483648
        %v3335 = vor.u32 1.1754944e-38, %v3334
        %v3336 = vsel %vm3333, %v3335, %v3331
        %v3337 = vmul.f32 %v2549, %v3336
        %v3338 = vrcp.pop %v2716
        %v3339 = vmul.f32 %v2716, %v3338
        %v3340 = vsub.f32 1.0, %v3339
        %v3341 = vmul.f32 %v3338, %v3340
        %v3342 = vadd.f32 %v3338, %v3341
        %vm3343 = vweird.f32 %v2716
        %vm3344 = vweird.f32 %v3338
        %vm3345 = vmor %vm3343, %vm3344
        %v3346 = vsel %vm3345, %v3338, %v3342
        %v3347 = vand.u32 2147483647, %v2716
        %vm3348 = vcmp.eq.f32.partialorder %v3347, 8.507059e+37
        %v3349 = vand.u32 %v2716, 2147483648
        %v3350 = vor.u32 1.1754944e-38, %v3349
        %v3351 = vsel %vm3348, %v3350, %v3346
        %v3352 = vmul.f32 %v2551, %v3351
        %v3353 = vrcp.pop %v2719
        %v3354 = vmul.f32 %v2719, %v3353
        %v3355 = vsub.f32 1.0, %v3354
        %v3356 = vmul.f32 %v3353, %v3355
        %v3357 = vadd.f32 %v3353, %v3356
        %vm3358 = vweird.f32 %v2719
        %vm3359 = vweird.f32 %v3353
        %vm3360 = vmor %vm3358, %vm3359
        %v3361 = vsel %vm3360, %v3353, %v3357
        %v3362 = vand.u32 2147483647, %v2719
        %vm3363 = vcmp.eq.f32.partialorder %v3362, 8.507059e+37
        %v3364 = vand.u32 %v2719, 2147483648
        %v3365 = vor.u32 1.1754944e-38, %v3364
        %v3366 = vsel %vm3363, %v3365, %v3361
        %v3367 = vmul.f32 %v2553, %v3366
        %v3368 = vrcp.pop %v2722
        %v3369 = vmul.f32 %v2722, %v3368
        %v3370 = vsub.f32 1.0, %v3369
        %v3371 = vmul.f32 %v3368, %v3370
        %v3372 = vadd.f32 %v3368, %v3371
        %vm3373 = vweird.f32 %v2722
        %vm3374 = vweird.f32 %v3368
        %vm3375 = vmor %vm3373, %vm3374
        %v3376 = vsel %vm3375, %v3368, %v3372
        %v3377 = vand.u32 2147483647, %v2722
        %vm3378 = vcmp.eq.f32.partialorder %v3377, 8.507059e+37
        %v3379 = vand.u32 %v2722, 2147483648
        %v3380 = vor.u32 1.1754944e-38, %v3379
        %v3381 = vsel %vm3378, %v3380, %v3376
        %v3382 = vmul.f32 %v2555, %v3381
        %v3383 = vrcp.pop %v2725
        %v3384 = vmul.f32 %v2725, %v3383
        %v3385 = vsub.f32 1.0, %v3384
        %v3386 = vmul.f32 %v3383, %v3385
        %v3387 = vadd.f32 %v3383, %v3386
        %vm3388 = vweird.f32 %v2725
        %vm3389 = vweird.f32 %v3383
        %vm3390 = vmor %vm3388, %vm3389
        %v3391 = vsel %vm3390, %v3383, %v3387
        %v3392 = vand.u32 2147483647, %v2725
        %vm3393 = vcmp.eq.f32.partialorder %v3392, 8.507059e+37
        %v3394 = vand.u32 %v2725, 2147483648
        %v3395 = vor.u32 1.1754944e-38, %v3394
        %v3396 = vsel %vm3393, %v3395, %v3391
        %v3397 = vmul.f32 %v2557, %v3396
        %v3398 = vrcp.pop %v2728
        %v3399 = vmul.f32 %v2728, %v3398
        %v3400 = vsub.f32 1.0, %v3399
        %v3401 = vmul.f32 %v3398, %v3400
        %v3402 = vadd.f32 %v3398, %v3401
        %vm3403 = vweird.f32 %v2728
        %vm3404 = vweird.f32 %v3398
        %vm3405 = vmor %vm3403, %vm3404
        %v3406 = vsel %vm3405, %v3398, %v3402
        %v3407 = vand.u32 2147483647, %v2728
        %vm3408 = vcmp.eq.f32.partialorder %v3407, 8.507059e+37
        %v3409 = vand.u32 %v2728, 2147483648
        %v3410 = vor.u32 1.1754944e-38, %v3409
        %v3411 = vsel %vm3408, %v3410, %v3406
        %v3412 = vmul.f32 %v2559, %v3411
        %v3413 = vrcp.pop %v2731
        %v3414 = vmul.f32 %v2731, %v3413
        %v3415 = vsub.f32 1.0, %v3414
        %v3416 = vmul.f32 %v3413, %v3415
        %v3417 = vadd.f32 %v3413, %v3416
        %vm3418 = vweird.f32 %v2731
        %vm3419 = vweird.f32 %v3413
        %vm3420 = vmor %vm3418, %vm3419
        %v3421 = vsel %vm3420, %v3413, %v3417
        %v3422 = vand.u32 2147483647, %v2731
        %vm3423 = vcmp.eq.f32.partialorder %v3422, 8.507059e+37
        %v3424 = vand.u32 %v2731, 2147483648
        %v3425 = vor.u32 1.1754944e-38, %v3424
        %v3426 = vsel %vm3423, %v3425, %v3421
        %v3427 = vmul.f32 %v2561, %v3426
        %v3428 = vrcp.pop %v2734
        %v3429 = vmul.f32 %v2734, %v3428
        %v3430 = vsub.f32 1.0, %v3429
        %v3431 = vmul.f32 %v3428, %v3430
        %v3432 = vadd.f32 %v3428, %v3431
        %vm3433 = vweird.f32 %v2734
        %vm3434 = vweird.f32 %v3428
        %vm3435 = vmor %vm3433, %vm3434
        %v3436 = vsel %vm3435, %v3428, %v3432
        %v3437 = vand.u32 2147483647, %v2734
        %vm3438 = vcmp.eq.f32.partialorder %v3437, 8.507059e+37
        %v3439 = vand.u32 %v2734, 2147483648
        %v3440 = vor.u32 1.1754944e-38, %v3439
        %v3441 = vsel %vm3438, %v3440, %v3436
        %v3442 = vmul.f32 %v2563, %v3441
        %v3443 = vrcp.pop %v2737
        %v3444 = vmul.f32 %v2737, %v3443
        %v3445 = vsub.f32 1.0, %v3444
        %v3446 = vmul.f32 %v3443, %v3445
        %v3447 = vadd.f32 %v3443, %v3446
        %vm3448 = vweird.f32 %v2737
        %vm3449 = vweird.f32 %v3443
        %vm3450 = vmor %vm3448, %vm3449
        %v3451 = vsel %vm3450, %v3443, %v3447
        %v3452 = vand.u32 2147483647, %v2737
        %vm3453 = vcmp.eq.f32.partialorder %v3452, 8.507059e+37
        %v3454 = vand.u32 %v2737, 2147483648
        %v3455 = vor.u32 1.1754944e-38, %v3454
        %v3456 = vsel %vm3453, %v3455, %v3451
        %v3457 = vmul.f32 %v2565, %v3456
        %v3458 = vrcp.pop %v2740
        %v3459 = vmul.f32 %v2740, %v3458
        %v3460 = vsub.f32 1.0, %v3459
        %v3461 = vmul.f32 %v3458, %v3460
        %v3462 = vadd.f32 %v3458, %v3461
        %vm3463 = vweird.f32 %v2740
        %vm3464 = vweird.f32 %v3458
        %vm3465 = vmor %vm3463, %vm3464
        %v3466 = vsel %vm3465, %v3458, %v3462
        %v3467 = vand.u32 2147483647, %v2740
        %vm3468 = vcmp.eq.f32.partialorder %v3467, 8.507059e+37
        %v3469 = vand.u32 %v2740, 2147483648
        %v3470 = vor.u32 1.1754944e-38, %v3469
        %v3471 = vsel %vm3468, %v3470, %v3466
        %v3472 = vmul.f32 %v2567, %v3471
        %v3473 = vrcp.pop %v2743
        %v3474 = vmul.f32 %v2743, %v3473
        %v3475 = vsub.f32 1.0, %v3474
        %v3476 = vmul.f32 %v3473, %v3475
        %v3477 = vadd.f32 %v3473, %v3476
        %vm3478 = vweird.f32 %v2743
        %vm3479 = vweird.f32 %v3473
        %vm3480 = vmor %vm3478, %vm3479
        %v3481 = vsel %vm3480, %v3473, %v3477
        %v3482 = vand.u32 2147483647, %v2743
        %vm3483 = vcmp.eq.f32.partialorder %v3482, 8.507059e+37
        %v3484 = vand.u32 %v2743, 2147483648
        %v3485 = vor.u32 1.1754944e-38, %v3484
        %v3486 = vsel %vm3483, %v3485, %v3481
        %v3487 = vmul.f32 %v2569, %v3486
        %v3488 = vrcp.pop %v2746
        %v3489 = vmul.f32 %v2746, %v3488
        %v3490 = vsub.f32 1.0, %v3489
        %v3491 = vmul.f32 %v3488, %v3490
        %v3492 = vadd.f32 %v3488, %v3491
        %vm3493 = vweird.f32 %v2746
        %vm3494 = vweird.f32 %v3488
        %vm3495 = vmor %vm3493, %vm3494
        %v3496 = vsel %vm3495, %v3488, %v3492
        %v3497 = vand.u32 2147483647, %v2746
        %vm3498 = vcmp.eq.f32.partialorder %v3497, 8.507059e+37
        %v3499 = vand.u32 %v2746, 2147483648
        %v3500 = vor.u32 1.1754944e-38, %v3499
        %v3501 = vsel %vm3498, %v3500, %v3496
        %v3502 = vmul.f32 %v2571, %v3501
        %v3503 = vrcp.pop %v2749
        %v3504 = vmul.f32 %v2749, %v3503
        %v3505 = vsub.f32 1.0, %v3504
        %v3506 = vmul.f32 %v3503, %v3505
        %v3507 = vadd.f32 %v3503, %v3506
        %vm3508 = vweird.f32 %v2749
        %vm3509 = vweird.f32 %v3503
        %vm3510 = vmor %vm3508, %vm3509
        %v3511 = vsel %vm3510, %v3503, %v3507
        %v3512 = vand.u32 2147483647, %v2749
        %vm3513 = vcmp.eq.f32.partialorder %v3512, 8.507059e+37
        %v3514 = vand.u32 %v2749, 2147483648
        %v3515 = vor.u32 1.1754944e-38, %v3514
        %v3516 = vsel %vm3513, %v3515, %v3511
        %v3517 = vmul.f32 %v2573, %v3516
        %v3518 = vrcp.pop %v2752
        %v3519 = vmul.f32 %v2752, %v3518
        %v3520 = vsub.f32 1.0, %v3519
        %v3521 = vmul.f32 %v3518, %v3520
        %v3522 = vadd.f32 %v3518, %v3521
        %vm3523 = vweird.f32 %v2752
        %vm3524 = vweird.f32 %v3518
        %vm3525 = vmor %vm3523, %vm3524
        %v3526 = vsel %vm3525, %v3518, %v3522
        %v3527 = vand.u32 2147483647, %v2752
        %vm3528 = vcmp.eq.f32.partialorder %v3527, 8.507059e+37
        %v3529 = vand.u32 %v2752, 2147483648
        %v3530 = vor.u32 1.1754944e-38, %v3529
        %v3531 = vsel %vm3528, %v3530, %v3526
        %v3532 = vmul.f32 %v2575, %v3531
        %v3533 = vrcp.pop %v2755
        %v3534 = vmul.f32 %v2755, %v3533
        %v3535 = vsub.f32 1.0, %v3534
        %v3536 = vmul.f32 %v3533, %v3535
        %v3537 = vadd.f32 %v3533, %v3536
        %vm3538 = vweird.f32 %v2755
        %vm3539 = vweird.f32 %v3533
        %vm3540 = vmor %vm3538, %vm3539
        %v3541 = vsel %vm3540, %v3533, %v3537
        %v3542 = vand.u32 2147483647, %v2755
        %vm3543 = vcmp.eq.f32.partialorder %v3542, 8.507059e+37
        %v3544 = vand.u32 %v2755, 2147483648
        %v3545 = vor.u32 1.1754944e-38, %v3544
        %v3546 = vsel %vm3543, %v3545, %v3541
        %v3547 = vmul.f32 %v2577, %v3546
        %v3548 = vrcp.pop %v2758
        %v3549 = vmul.f32 %v2758, %v3548
        %v3550 = vsub.f32 1.0, %v3549
        %v3551 = vmul.f32 %v3548, %v3550
        %v3552 = vadd.f32 %v3548, %v3551
        %vm3553 = vweird.f32 %v2758
        %vm3554 = vweird.f32 %v3548
        %vm3555 = vmor %vm3553, %vm3554
        %v3556 = vsel %vm3555, %v3548, %v3552
        %v3557 = vand.u32 2147483647, %v2758
        %vm3558 = vcmp.eq.f32.partialorder %v3557, 8.507059e+37
        %v3559 = vand.u32 %v2758, 2147483648
        %v3560 = vor.u32 1.1754944e-38, %v3559
        %v3561 = vsel %vm3558, %v3560, %v3556
        %v3562 = vmul.f32 %v2579, %v3561
        %v3563 = vrcp.pop %v2761
        %v3564 = vmul.f32 %v2761, %v3563
        %v3565 = vsub.f32 1.0, %v3564
        %v3566 = vmul.f32 %v3563, %v3565
        %v3567 = vadd.f32 %v3563, %v3566
        %vm3568 = vweird.f32 %v2761
        %vm3569 = vweird.f32 %v3563
        %vm3570 = vmor %vm3568, %vm3569
        %v3571 = vsel %vm3570, %v3563, %v3567
        %v3572 = vand.u32 2147483647, %v2761
        %vm3573 = vcmp.eq.f32.partialorder %v3572, 8.507059e+37
        %v3574 = vand.u32 %v2761, 2147483648
        %v3575 = vor.u32 1.1754944e-38, %v3574
        %v3576 = vsel %vm3573, %v3575, %v3571
        %v3577 = vmul.f32 %v2581, %v3576
        %v3578 = vrcp.pop %v2764
        %v3579 = vmul.f32 %v2764, %v3578
        %v3580 = vsub.f32 1.0, %v3579
        %v3581 = vmul.f32 %v3578, %v3580
        %v3582 = vadd.f32 %v3578, %v3581
        %vm3583 = vweird.f32 %v2764
        %vm3584 = vweird.f32 %v3578
        %vm3585 = vmor %vm3583, %vm3584
        %v3586 = vsel %vm3585, %v3578, %v3582
        %v3587 = vand.u32 2147483647, %v2764
        %vm3588 = vcmp.eq.f32.partialorder %v3587, 8.507059e+37
        %v3589 = vand.u32 %v2764, 2147483648
        %v3590 = vor.u32 1.1754944e-38, %v3589
        %v3591 = vsel %vm3588, %v3590, %v3586
        %v3592 = vmul.f32 %v2583, %v3591
        %v3593 = vrcp.pop %v2767
        %v3594 = vmul.f32 %v2767, %v3593
        %v3595 = vsub.f32 1.0, %v3594
        %v3596 = vmul.f32 %v3593, %v3595
        %v3597 = vadd.f32 %v3593, %v3596
        %vm3598 = vweird.f32 %v2767
        %vm3599 = vweird.f32 %v3593
        %vm3600 = vmor %vm3598, %vm3599
        %v3601 = vsel %vm3600, %v3593, %v3597
        %v3602 = vand.u32 2147483647, %v2767
        %vm3603 = vcmp.eq.f32.partialorder %v3602, 8.507059e+37
        %v3604 = vand.u32 %v2767, 2147483648
        %v3605 = vor.u32 1.1754944e-38, %v3604
        %v3606 = vsel %vm3603, %v3605, %v3601
        %v3607 = vmul.f32 %v2585, %v3606
        %v3608 = vrcp.pop %v2770
        %v3609 = vmul.f32 %v2770, %v3608
        %v3610 = vsub.f32 1.0, %v3609
        %v3611 = vmul.f32 %v3608, %v3610
        %v3612 = vadd.f32 %v3608, %v3611
        %vm3613 = vweird.f32 %v2770
        %vm3614 = vweird.f32 %v3608
        %vm3615 = vmor %vm3613, %vm3614
        %v3616 = vsel %vm3615, %v3608, %v3612
        %v3617 = vand.u32 2147483647, %v2770
        %vm3618 = vcmp.eq.f32.partialorder %v3617, 8.507059e+37
        %v3619 = vand.u32 %v2770, 2147483648
        %v3620 = vor.u32 1.1754944e-38, %v3619
        %v3621 = vsel %vm3618, %v3620, %v3616
        %v3622 = vmul.f32 %v2587, %v3621
        %v3623 = vrcp.pop %v2773
        %v3624 = vmul.f32 %v2773, %v3623
        %v3625 = vsub.f32 1.0, %v3624
        %v3626 = vmul.f32 %v3623, %v3625
        %v3627 = vadd.f32 %v3623, %v3626
        %vm3628 = vweird.f32 %v2773
        %vm3629 = vweird.f32 %v3623
        %vm3630 = vmor %vm3628, %vm3629
        %v3631 = vsel %vm3630, %v3623, %v3627
        %v3632 = vand.u32 2147483647, %v2773
        %vm3633 = vcmp.eq.f32.partialorder %v3632, 8.507059e+37
        %v3634 = vand.u32 %v2773, 2147483648
        %v3635 = vor.u32 1.1754944e-38, %v3634
        %v3636 = vsel %vm3633, %v3635, %v3631
        %v3637 = vmul.f32 %v2589, %v3636
        %v3638 = vrcp.pop %v2776
        %v3639 = vmul.f32 %v2776, %v3638
        %v3640 = vsub.f32 1.0, %v3639
        %v3641 = vmul.f32 %v3638, %v3640
        %v3642 = vadd.f32 %v3638, %v3641
        %vm3643 = vweird.f32 %v2776
        %vm3644 = vweird.f32 %v3638
        %vm3645 = vmor %vm3643, %vm3644
        %v3646 = vsel %vm3645, %v3638, %v3642
        %v3647 = vand.u32 2147483647, %v2776
        %vm3648 = vcmp.eq.f32.partialorder %v3647, 8.507059e+37
        %v3649 = vand.u32 %v2776, 2147483648
        %v3650 = vor.u32 1.1754944e-38, %v3649
        %v3651 = vsel %vm3648, %v3650, %v3646
        %v3652 = vmul.f32 %v2591, %v3651
        %v3653 = vrcp.pop %v2779
        %v3654 = vmul.f32 %v2779, %v3653
        %v3655 = vsub.f32 1.0, %v3654
        %v3656 = vmul.f32 %v3653, %v3655
        %v3657 = vadd.f32 %v3653, %v3656
        %vm3658 = vweird.f32 %v2779
        %vm3659 = vweird.f32 %v3653
        %vm3660 = vmor %vm3658, %vm3659
        %v3661 = vsel %vm3660, %v3653, %v3657
        %v3662 = vand.u32 2147483647, %v2779
        %vm3663 = vcmp.eq.f32.partialorder %v3662, 8.507059e+37
        %v3664 = vand.u32 %v2779, 2147483648
        %v3665 = vor.u32 1.1754944e-38, %v3664
        %v3666 = vsel %vm3663, %v3665, %v3661
        %v3667 = vmul.f32 %v2593, %v3666
        %v3668 = vrcp.pop %v2782
        %v3669 = vmul.f32 %v2782, %v3668
        %v3670 = vsub.f32 1.0, %v3669
        %v3671 = vmul.f32 %v3668, %v3670
        %v3672 = vadd.f32 %v3668, %v3671
        %vm3673 = vweird.f32 %v2782
        %vm3674 = vweird.f32 %v3668
        %vm3675 = vmor %vm3673, %vm3674
        %v3676 = vsel %vm3675, %v3668, %v3672
        %v3677 = vand.u32 2147483647, %v2782
        %vm3678 = vcmp.eq.f32.partialorder %v3677, 8.507059e+37
        %v3679 = vand.u32 %v2782, 2147483648
        %v3680 = vor.u32 1.1754944e-38, %v3679
        %v3681 = vsel %vm3678, %v3680, %v3676
        %v3682 = vmul.f32 %v2595, %v3681
        %v3683 = vrcp.pop %v2785
        %v3684 = vmul.f32 %v2785, %v3683
        %v3685 = vsub.f32 1.0, %v3684
        %v3686 = vmul.f32 %v3683, %v3685
        %v3687 = vadd.f32 %v3683, %v3686
        %vm3688 = vweird.f32 %v2785
        %vm3689 = vweird.f32 %v3683
        %vm3690 = vmor %vm3688, %vm3689
        %v3691 = vsel %vm3690, %v3683, %v3687
        %v3692 = vand.u32 2147483647, %v2785
        %vm3693 = vcmp.eq.f32.partialorder %v3692, 8.507059e+37
        %v3694 = vand.u32 %v2785, 2147483648
        %v3695 = vor.u32 1.1754944e-38, %v3694
        %v3696 = vsel %vm3693, %v3695, %v3691
        %v3697 = vmul.f32 %v2597, %v3696
        %v3698 = vrcp.pop %v2788
        %v3699 = vmul.f32 %v2788, %v3698
        %v3700 = vsub.f32 1.0, %v3699
        %v3701 = vmul.f32 %v3698, %v3700
        %v3702 = vadd.f32 %v3698, %v3701
        %vm3703 = vweird.f32 %v2788
        %vm3704 = vweird.f32 %v3698
        %vm3705 = vmor %vm3703, %vm3704
        %v3706 = vsel %vm3705, %v3698, %v3702
        %v3707 = vand.u32 2147483647, %v2788
        %vm3708 = vcmp.eq.f32.partialorder %v3707, 8.507059e+37
        %v3709 = vand.u32 %v2788, 2147483648
        %v3710 = vor.u32 1.1754944e-38, %v3709
        %v3711 = vsel %vm3708, %v3710, %v3706
        %v3712 = vmul.f32 %v2599, %v3711
        %v3713 = vrcp.pop %v2791
        %v3714 = vmul.f32 %v2791, %v3713
        %v3715 = vsub.f32 1.0, %v3714
        %v3716 = vmul.f32 %v3713, %v3715
        %v3717 = vadd.f32 %v3713, %v3716
        %vm3718 = vweird.f32 %v2791
        %vm3719 = vweird.f32 %v3713
        %vm3720 = vmor %vm3718, %vm3719
        %v3721 = vsel %vm3720, %v3713, %v3717
        %v3722 = vand.u32 2147483647, %v2791
        %vm3723 = vcmp.eq.f32.partialorder %v3722, 8.507059e+37
        %v3724 = vand.u32 %v2791, 2147483648
        %v3725 = vor.u32 1.1754944e-38, %v3724
        %v3726 = vsel %vm3723, %v3725, %v3721
        %v3727 = vmul.f32 %v2601, %v3726
        %v3728 = vrcp.pop %v2794
        %v3729 = vmul.f32 %v2794, %v3728
        %v3730 = vsub.f32 1.0, %v3729
        %v3731 = vmul.f32 %v3728, %v3730
        %v3732 = vadd.f32 %v3728, %v3731
        %vm3733 = vweird.f32 %v2794
        %vm3734 = vweird.f32 %v3728
        %vm3735 = vmor %vm3733, %vm3734
        %v3736 = vsel %vm3735, %v3728, %v3732
        %v3737 = vand.u32 2147483647, %v2794
        %vm3738 = vcmp.eq.f32.partialorder %v3737, 8.507059e+37
        %v3739 = vand.u32 %v2794, 2147483648
        %v3740 = vor.u32 1.1754944e-38, %v3739
        %v3741 = vsel %vm3738, %v3740, %v3736
        %v3742 = vmul.f32 %v2603, %v3741
        %v3743 = vrcp.pop %v2797
        %v3744 = vmul.f32 %v2797, %v3743
        %v3745 = vsub.f32 1.0, %v3744
        %v3746 = vmul.f32 %v3743, %v3745
        %v3747 = vadd.f32 %v3743, %v3746
        %vm3748 = vweird.f32 %v2797
        %vm3749 = vweird.f32 %v3743
        %vm3750 = vmor %vm3748, %vm3749
        %v3751 = vsel %vm3750, %v3743, %v3747
        %v3752 = vand.u32 2147483647, %v2797
        %vm3753 = vcmp.eq.f32.partialorder %v3752, 8.507059e+37
        %v3754 = vand.u32 %v2797, 2147483648
        %v3755 = vor.u32 1.1754944e-38, %v3754
        %v3756 = vsel %vm3753, %v3755, %v3751
        %v3757 = vmul.f32 %v2605, %v3756
        %3758 = vrot.lane.b32.xlu0 %v1150, 64
        %v3759 = vpop.permute.xlu0 %3758
        %3760 = vrot.lane.b32.xlu0 %v1153, 64
        %v3761 = vpop.permute.xlu0 %3760
        %3762 = vrot.lane.b32.xlu0 %v1156, 64
        %v3763 = vpop.permute.xlu0 %3762
        %3764 = vrot.lane.b32.xlu0 %v1159, 64
        %v3765 = vpop.permute.xlu0 %3764
        %v3771 = vsel %vm678, %v2812, 0
        %v3774 = vsel %vm678, %v2827, 0
        %v3777 = vsel %vm678, %v2842, 0
        %v3780 = vsel %vm678, %v2857, 0
        %3782 = vmatpush.msra.mxu0 0.0
        %3783 = vmatpush.msra.mxu0 0.0
        %3784 = vmatpush.msra.mxu0 0.0
        %3785 = vmatpush.msra.mxu0 0.0
        %3786 = vmatpush.msra.mxu0 0.0
        %3787 = vmatpush.msra.mxu0 0.0
        %3788 = vmatpush.msra.mxu0 0.0
        %3789 = vmatpush.msra.mxu0 0.0
        %3790 = vmatpush.msra.mxu0 0.0
        %3791 = vmatpush.msra.mxu0 0.0
        %3792 = vmatpush.msra.mxu0 0.0
        %3793 = vmatpush.msra.mxu0 0.0
        %3794 = vmatpush.msra.mxu0 %v3765
        %3795 = vmatpush.msra.mxu0 %v3763
        %3796 = vmatpush.msra.mxu0 %v3761
        %3797 = vmatpush.msra.mxu0 %v3759
        %3798 = vmatmul.f32.gmra.mxu0 %v3771
        %v3799 = vpop.f32.mrf.mxu0
        %v3800 = vadd.f32 0.0, %v3799
        %3801 = vmatmul.f32.gmra.mxu0 %v3774
        %v3802 = vpop.f32.mrf.mxu0
        %v3803 = vadd.f32 0.0, %v3802
        %3804 = vmatmul.f32.gmra.mxu0 %v3777
        %v3805 = vpop.f32.mrf.mxu0
        %v3806 = vadd.f32 0.0, %v3805
        %3807 = vmatmul.f32.gmra.mxu0 %v3780
        %v3808 = vpop.f32.mrf.mxu0
        %v3809 = vadd.f32 0.0, %v3808
        %3810 = vdwg.mxu0
        %3811 = vrot.lane.b32.xlu0 %v1162, 64
        %v3812 = vpop.permute.xlu0 %3811
        %3813 = vrot.lane.b32.xlu0 %v1165, 64
        %v3814 = vpop.permute.xlu0 %3813
        %3815 = vrot.lane.b32.xlu0 %v1168, 64
        %v3816 = vpop.permute.xlu0 %3815
        %3817 = vrot.lane.b32.xlu0 %v1171, 64
        %v3818 = vpop.permute.xlu0 %3817
        %v3824 = vsel %vm678, %v2872, 0
        %v3827 = vsel %vm678, %v2887, 0
        %v3830 = vsel %vm678, %v2902, 0
        %v3833 = vsel %vm678, %v2917, 0
        %3835 = vmatpush.msra.mxu0 0.0
        %3836 = vmatpush.msra.mxu0 0.0
        %3837 = vmatpush.msra.mxu0 0.0
        %3838 = vmatpush.msra.mxu0 0.0
        %3839 = vmatpush.msra.mxu0 0.0
        %3840 = vmatpush.msra.mxu0 0.0
        %3841 = vmatpush.msra.mxu0 0.0
        %3842 = vmatpush.msra.mxu0 0.0
        %3843 = vmatpush.msra.mxu0 0.0
        %3844 = vmatpush.msra.mxu0 0.0
        %3845 = vmatpush.msra.mxu0 0.0
        %3846 = vmatpush.msra.mxu0 0.0
        %3847 = vmatpush.msra.mxu0 %v3818
        %3848 = vmatpush.msra.mxu0 %v3816
        %3849 = vmatpush.msra.mxu0 %v3814
        %3850 = vmatpush.msra.mxu0 %v3812
        %3851 = vmatmul.f32.gmra.mxu0 %v3824
        %v3852 = vpop.f32.mrf.mxu0
        %v3853 = vadd.f32 0.0, %v3852
        %3854 = vmatmul.f32.gmra.mxu0 %v3827
        %v3855 = vpop.f32.mrf.mxu0
        %v3856 = vadd.f32 0.0, %v3855
        %3857 = vmatmul.f32.gmra.mxu0 %v3830
        %v3858 = vpop.f32.mrf.mxu0
        %v3859 = vadd.f32 0.0, %v3858
        %3860 = vmatmul.f32.gmra.mxu0 %v3833
        %v3861 = vpop.f32.mrf.mxu0
        %v3862 = vadd.f32 0.0, %v3861
        %3863 = vdwg.mxu0
        %3864 = vrot.lane.b32.xlu0 %v1174, 64
        %v3865 = vpop.permute.xlu0 %3864
        %3866 = vrot.lane.b32.xlu0 %v1177, 64
        %v3867 = vpop.permute.xlu0 %3866
        %3868 = vrot.lane.b32.xlu0 %v1180, 64
        %v3869 = vpop.permute.xlu0 %3868
        %3870 = vrot.lane.b32.xlu0 %v1183, 64
        %v3871 = vpop.permute.xlu0 %3870
        %v3877 = vsel %vm678, %v2932, 0
        %v3880 = vsel %vm678, %v2947, 0
        %v3883 = vsel %vm678, %v2962, 0
        %v3886 = vsel %vm678, %v2977, 0
        %3888 = vmatpush.msra.mxu0 0.0
        %3889 = vmatpush.msra.mxu0 0.0
        %3890 = vmatpush.msra.mxu0 0.0
        %3891 = vmatpush.msra.mxu0 0.0
        %3892 = vmatpush.msra.mxu0 0.0
        %3893 = vmatpush.msra.mxu0 0.0
        %3894 = vmatpush.msra.mxu0 0.0
        %3895 = vmatpush.msra.mxu0 0.0
        %3896 = vmatpush.msra.mxu0 0.0
        %3897 = vmatpush.msra.mxu0 0.0
        %3898 = vmatpush.msra.mxu0 0.0
        %3899 = vmatpush.msra.mxu0 0.0
        %3900 = vmatpush.msra.mxu0 %v3871
        %3901 = vmatpush.msra.mxu0 %v3869
        %3902 = vmatpush.msra.mxu0 %v3867
        %3903 = vmatpush.msra.mxu0 %v3865
        %3904 = vmatmul.f32.gmra.mxu0 %v3877
        %v3905 = vpop.f32.mrf.mxu0
        %v3906 = vadd.f32 0.0, %v3905
        %3907 = vmatmul.f32.gmra.mxu0 %v3880
        %v3908 = vpop.f32.mrf.mxu0
        %v3909 = vadd.f32 0.0, %v3908
        %3910 = vmatmul.f32.gmra.mxu0 %v3883
        %v3911 = vpop.f32.mrf.mxu0
        %v3912 = vadd.f32 0.0, %v3911
        %3913 = vmatmul.f32.gmra.mxu0 %v3886
        %v3914 = vpop.f32.mrf.mxu0
        %v3915 = vadd.f32 0.0, %v3914
        %3916 = vdwg.mxu0
        %3917 = vrot.lane.b32.xlu0 %v1186, 64
        %v3918 = vpop.permute.xlu0 %3917
        %3919 = vrot.lane.b32.xlu0 %v1189, 64
        %v3920 = vpop.permute.xlu0 %3919
        %3921 = vrot.lane.b32.xlu0 %v1192, 64
        %v3922 = vpop.permute.xlu0 %3921
        %3923 = vrot.lane.b32.xlu0 %v1195, 64
        %v3924 = vpop.permute.xlu0 %3923
        %v3930 = vsel %vm678, %v2992, 0
        %v3933 = vsel %vm678, %v3007, 0
        %v3936 = vsel %vm678, %v3022, 0
        %v3939 = vsel %vm678, %v3037, 0
        %3941 = vmatpush.msra.mxu0 0.0
        %3942 = vmatpush.msra.mxu0 0.0
        %3943 = vmatpush.msra.mxu0 0.0
        %3944 = vmatpush.msra.mxu0 0.0
        %3945 = vmatpush.msra.mxu0 0.0
        %3946 = vmatpush.msra.mxu0 0.0
        %3947 = vmatpush.msra.mxu0 0.0
        %3948 = vmatpush.msra.mxu0 0.0
        %3949 = vmatpush.msra.mxu0 0.0
        %3950 = vmatpush.msra.mxu0 0.0
        %3951 = vmatpush.msra.mxu0 0.0
        %3952 = vmatpush.msra.mxu0 0.0
        %3953 = vmatpush.msra.mxu0 %v3924
        %3954 = vmatpush.msra.mxu0 %v3922
        %3955 = vmatpush.msra.mxu0 %v3920
        %3956 = vmatpush.msra.mxu0 %v3918
        %3957 = vmatmul.f32.gmra.mxu0 %v3930
        %v3958 = vpop.f32.mrf.mxu0
        %v3959 = vadd.f32 0.0, %v3958
        %3960 = vmatmul.f32.gmra.mxu0 %v3933
        %v3961 = vpop.f32.mrf.mxu0
        %v3962 = vadd.f32 0.0, %v3961
        %3963 = vmatmul.f32.gmra.mxu0 %v3936
        %v3964 = vpop.f32.mrf.mxu0
        %v3965 = vadd.f32 0.0, %v3964
        %3966 = vmatmul.f32.gmra.mxu0 %v3939
        %v3967 = vpop.f32.mrf.mxu0
        %v3968 = vadd.f32 0.0, %v3967
        %3969 = vdwg.mxu0
        %3970 = vrot.lane.b32.xlu0 %v1214, 64
        %v3971 = vpop.permute.xlu0 %3970
        %3972 = vrot.lane.b32.xlu0 %v1216, 64
        %v3973 = vpop.permute.xlu0 %3972
        %3974 = vrot.lane.b32.xlu0 %v1218, 64
        %v3975 = vpop.permute.xlu0 %3974
        %3976 = vrot.lane.b32.xlu0 %v1220, 64
        %v3977 = vpop.permute.xlu0 %3976
        %v3983 = vsel %vm678, %v3052, 0
        %v3986 = vsel %vm678, %v3067, 0
        %v3989 = vsel %vm678, %v3082, 0
        %v3992 = vsel %vm678, %v3097, 0
        %3994 = vmatpush.msra.mxu0 0.0
        %3995 = vmatpush.msra.mxu0 0.0
        %3996 = vmatpush.msra.mxu0 0.0
        %3997 = vmatpush.msra.mxu0 0.0
        %3998 = vmatpush.msra.mxu0 0.0
        %3999 = vmatpush.msra.mxu0 0.0
        %4000 = vmatpush.msra.mxu0 0.0
        %4001 = vmatpush.msra.mxu0 0.0
        %4002 = vmatpush.msra.mxu0 0.0
        %4003 = vmatpush.msra.mxu0 0.0
        %4004 = vmatpush.msra.mxu0 0.0
        %4005 = vmatpush.msra.mxu0 0.0
        %4006 = vmatpush.msra.mxu0 %v3977
        %4007 = vmatpush.msra.mxu0 %v3975
        %4008 = vmatpush.msra.mxu0 %v3973
        %4009 = vmatpush.msra.mxu0 %v3971
        %4010 = vmatmul.f32.gmra.mxu0 %v3983
        %v4011 = vpop.f32.mrf.mxu0
        %v4012 = vadd.f32 0.0, %v4011
        %4013 = vmatmul.f32.gmra.mxu0 %v3986
        %v4014 = vpop.f32.mrf.mxu0
        %v4015 = vadd.f32 0.0, %v4014
        %4016 = vmatmul.f32.gmra.mxu0 %v3989
        %v4017 = vpop.f32.mrf.mxu0
        %v4018 = vadd.f32 0.0, %v4017
        %4019 = vmatmul.f32.gmra.mxu0 %v3992
        %v4020 = vpop.f32.mrf.mxu0
        %v4021 = vadd.f32 0.0, %v4020
        %4022 = vdwg.mxu0
        %4023 = vrot.lane.b32.xlu0 %v1222, 64
        %v4024 = vpop.permute.xlu0 %4023
        %4025 = vrot.lane.b32.xlu0 %v1224, 64
        %v4026 = vpop.permute.xlu0 %4025
        %4027 = vrot.lane.b32.xlu0 %v1226, 64
        %v4028 = vpop.permute.xlu0 %4027
        %4029 = vrot.lane.b32.xlu0 %v1228, 64
        %v4030 = vpop.permute.xlu0 %4029
        %v4036 = vsel %vm678, %v3112, 0
        %v4039 = vsel %vm678, %v3127, 0
        %v4042 = vsel %vm678, %v3142, 0
        %v4045 = vsel %vm678, %v3157, 0
        %4047 = vmatpush.msra.mxu0 0.0
        %4048 = vmatpush.msra.mxu0 0.0
        %4049 = vmatpush.msra.mxu0 0.0
        %4050 = vmatpush.msra.mxu0 0.0
        %4051 = vmatpush.msra.mxu0 0.0
        %4052 = vmatpush.msra.mxu0 0.0
        %4053 = vmatpush.msra.mxu0 0.0
        %4054 = vmatpush.msra.mxu0 0.0
        %4055 = vmatpush.msra.mxu0 0.0
        %4056 = vmatpush.msra.mxu0 0.0
        %4057 = vmatpush.msra.mxu0 0.0
        %4058 = vmatpush.msra.mxu0 0.0
        %4059 = vmatpush.msra.mxu0 %v4030
        %4060 = vmatpush.msra.mxu0 %v4028
        %4061 = vmatpush.msra.mxu0 %v4026
        %4062 = vmatpush.msra.mxu0 %v4024
        %4063 = vmatmul.f32.gmra.mxu0 %v4036
        %v4064 = vpop.f32.mrf.mxu0
        %v4065 = vadd.f32 0.0, %v4064
        %4066 = vmatmul.f32.gmra.mxu0 %v4039
        %v4067 = vpop.f32.mrf.mxu0
        %v4068 = vadd.f32 0.0, %v4067
        %4069 = vmatmul.f32.gmra.mxu0 %v4042
        %v4070 = vpop.f32.mrf.mxu0
        %v4071 = vadd.f32 0.0, %v4070
        %4072 = vmatmul.f32.gmra.mxu0 %v4045
        %v4073 = vpop.f32.mrf.mxu0
        %v4074 = vadd.f32 0.0, %v4073
        %4075 = vdwg.mxu0
        %4076 = vrot.lane.b32.xlu0 %v1230, 64
        %v4077 = vpop.permute.xlu0 %4076
        %4078 = vrot.lane.b32.xlu0 %v1232, 64
        %v4079 = vpop.permute.xlu0 %4078
        %4080 = vrot.lane.b32.xlu0 %v1234, 64
        %v4081 = vpop.permute.xlu0 %4080
        %4082 = vrot.lane.b32.xlu0 %v1236, 64
        %v4083 = vpop.permute.xlu0 %4082
        %v4089 = vsel %vm678, %v3172, 0
        %v4092 = vsel %vm678, %v3187, 0
        %v4095 = vsel %vm678, %v3202, 0
        %v4098 = vsel %vm678, %v3217, 0
        %4100 = vmatpush.msra.mxu0 0.0
        %4101 = vmatpush.msra.mxu0 0.0
        %4102 = vmatpush.msra.mxu0 0.0
        %4103 = vmatpush.msra.mxu0 0.0
        %4104 = vmatpush.msra.mxu0 0.0
        %4105 = vmatpush.msra.mxu0 0.0
        %4106 = vmatpush.msra.mxu0 0.0
        %4107 = vmatpush.msra.mxu0 0.0
        %4108 = vmatpush.msra.mxu0 0.0
        %4109 = vmatpush.msra.mxu0 0.0
        %4110 = vmatpush.msra.mxu0 0.0
        %4111 = vmatpush.msra.mxu0 0.0
        %4112 = vmatpush.msra.mxu0 %v4083
        %4113 = vmatpush.msra.mxu0 %v4081
        %4114 = vmatpush.msra.mxu0 %v4079
        %4115 = vmatpush.msra.mxu0 %v4077
        %4116 = vmatmul.f32.gmra.mxu0 %v4089
        %v4117 = vpop.f32.mrf.mxu0
        %v4118 = vadd.f32 0.0, %v4117
        %4119 = vmatmul.f32.gmra.mxu0 %v4092
        %v4120 = vpop.f32.mrf.mxu0
        %v4121 = vadd.f32 0.0, %v4120
        %4122 = vmatmul.f32.gmra.mxu0 %v4095
        %v4123 = vpop.f32.mrf.mxu0
        %v4124 = vadd.f32 0.0, %v4123
        %4125 = vmatmul.f32.gmra.mxu0 %v4098
        %v4126 = vpop.f32.mrf.mxu0
        %v4127 = vadd.f32 0.0, %v4126
        %4128 = vdwg.mxu0
        %4129 = vrot.lane.b32.xlu0 %v1238, 64
        %v4130 = vpop.permute.xlu0 %4129
        %4131 = vrot.lane.b32.xlu0 %v1240, 64
        %v4132 = vpop.permute.xlu0 %4131
        %4133 = vrot.lane.b32.xlu0 %v1242, 64
        %v4134 = vpop.permute.xlu0 %4133
        %4135 = vrot.lane.b32.xlu0 %v1244, 64
        %v4136 = vpop.permute.xlu0 %4135
        %v4142 = vsel %vm678, %v3232, 0
        %v4145 = vsel %vm678, %v3247, 0
        %v4148 = vsel %vm678, %v3262, 0
        %v4151 = vsel %vm678, %v3277, 0
        %4153 = vmatpush.msra.mxu0 0.0
        %4154 = vmatpush.msra.mxu0 0.0
        %4155 = vmatpush.msra.mxu0 0.0
        %4156 = vmatpush.msra.mxu0 0.0
        %4157 = vmatpush.msra.mxu0 0.0
        %4158 = vmatpush.msra.mxu0 0.0
        %4159 = vmatpush.msra.mxu0 0.0
        %4160 = vmatpush.msra.mxu0 0.0
        %4161 = vmatpush.msra.mxu0 0.0
        %4162 = vmatpush.msra.mxu0 0.0
        %4163 = vmatpush.msra.mxu0 0.0
        %4164 = vmatpush.msra.mxu0 0.0
        %4165 = vmatpush.msra.mxu0 %v4136
        %4166 = vmatpush.msra.mxu0 %v4134
        %4167 = vmatpush.msra.mxu0 %v4132
        %4168 = vmatpush.msra.mxu0 %v4130
        %4169 = vmatmul.f32.gmra.mxu0 %v4142
        %v4170 = vpop.f32.mrf.mxu0
        %v4171 = vadd.f32 0.0, %v4170
        %4172 = vmatmul.f32.gmra.mxu0 %v4145
        %v4173 = vpop.f32.mrf.mxu0
        %v4174 = vadd.f32 0.0, %v4173
        %4175 = vmatmul.f32.gmra.mxu0 %v4148
        %v4176 = vpop.f32.mrf.mxu0
        %v4177 = vadd.f32 0.0, %v4176
        %4178 = vmatmul.f32.gmra.mxu0 %v4151
        %v4179 = vpop.f32.mrf.mxu0
        %v4180 = vadd.f32 0.0, %v4179
        %4181 = vdwg.mxu0
        %4182 = vrot.lane.b32.xlu0 %v1246, 64
        %v4183 = vpop.permute.xlu0 %4182
        %4184 = vrot.lane.b32.xlu0 %v1248, 64
        %v4185 = vpop.permute.xlu0 %4184
        %4186 = vrot.lane.b32.xlu0 %v1250, 64
        %v4187 = vpop.permute.xlu0 %4186
        %4188 = vrot.lane.b32.xlu0 %v1252, 64
        %v4189 = vpop.permute.xlu0 %4188
        %v4195 = vsel %vm678, %v3292, 0
        %v4198 = vsel %vm678, %v3307, 0
        %v4201 = vsel %vm678, %v3322, 0
        %v4204 = vsel %vm678, %v3337, 0
        %4206 = vmatpush.msra.mxu0 0.0
        %4207 = vmatpush.msra.mxu0 0.0
        %4208 = vmatpush.msra.mxu0 0.0
        %4209 = vmatpush.msra.mxu0 0.0
        %4210 = vmatpush.msra.mxu0 0.0
        %4211 = vmatpush.msra.mxu0 0.0
        %4212 = vmatpush.msra.mxu0 0.0
        %4213 = vmatpush.msra.mxu0 0.0
        %4214 = vmatpush.msra.mxu0 0.0
        %4215 = vmatpush.msra.mxu0 0.0
        %4216 = vmatpush.msra.mxu0 0.0
        %4217 = vmatpush.msra.mxu0 0.0
        %4218 = vmatpush.msra.mxu0 %v4189
        %4219 = vmatpush.msra.mxu0 %v4187
        %4220 = vmatpush.msra.mxu0 %v4185
        %4221 = vmatpush.msra.mxu0 %v4183
        %4222 = vmatmul.f32.gmra.mxu0 %v4195
        %v4223 = vpop.f32.mrf.mxu0
        %v4224 = vadd.f32 0.0, %v4223
        %4225 = vmatmul.f32.gmra.mxu0 %v4198
        %v4226 = vpop.f32.mrf.mxu0
        %v4227 = vadd.f32 0.0, %v4226
        %4228 = vmatmul.f32.gmra.mxu0 %v4201
        %v4229 = vpop.f32.mrf.mxu0
        %v4230 = vadd.f32 0.0, %v4229
        %4231 = vmatmul.f32.gmra.mxu0 %v4204
        %v4232 = vpop.f32.mrf.mxu0
        %v4233 = vadd.f32 0.0, %v4232
        %4234 = vdwg.mxu0
        %4235 = vrot.lane.b32.xlu0 %v1254, 64
        %v4236 = vpop.permute.xlu0 %4235
        %4237 = vrot.lane.b32.xlu0 %v1256, 64
        %v4238 = vpop.permute.xlu0 %4237
        %4239 = vrot.lane.b32.xlu0 %v1258, 64
        %v4240 = vpop.permute.xlu0 %4239
        %4241 = vrot.lane.b32.xlu0 %v1260, 64
        %v4242 = vpop.permute.xlu0 %4241
        %v4248 = vsel %vm678, %v3352, 0
        %v4251 = vsel %vm678, %v3367, 0
        %v4254 = vsel %vm678, %v3382, 0
        %v4257 = vsel %vm678, %v3397, 0
        %4259 = vmatpush.msra.mxu0 0.0
        %4260 = vmatpush.msra.mxu0 0.0
        %4261 = vmatpush.msra.mxu0 0.0
        %4262 = vmatpush.msra.mxu0 0.0
        %4263 = vmatpush.msra.mxu0 0.0
        %4264 = vmatpush.msra.mxu0 0.0
        %4265 = vmatpush.msra.mxu0 0.0
        %4266 = vmatpush.msra.mxu0 0.0
        %4267 = vmatpush.msra.mxu0 0.0
        %4268 = vmatpush.msra.mxu0 0.0
        %4269 = vmatpush.msra.mxu0 0.0
        %4270 = vmatpush.msra.mxu0 0.0
        %4271 = vmatpush.msra.mxu0 %v4242
        %4272 = vmatpush.msra.mxu0 %v4240
        %4273 = vmatpush.msra.mxu0 %v4238
        %4274 = vmatpush.msra.mxu0 %v4236
        %4275 = vmatmul.f32.gmra.mxu0 %v4248
        %v4276 = vpop.f32.mrf.mxu0
        %v4277 = vadd.f32 0.0, %v4276
        %4278 = vmatmul.f32.gmra.mxu0 %v4251
        %v4279 = vpop.f32.mrf.mxu0
        %v4280 = vadd.f32 0.0, %v4279
        %4281 = vmatmul.f32.gmra.mxu0 %v4254
        %v4282 = vpop.f32.mrf.mxu0
        %v4283 = vadd.f32 0.0, %v4282
        %4284 = vmatmul.f32.gmra.mxu0 %v4257
        %v4285 = vpop.f32.mrf.mxu0
        %v4286 = vadd.f32 0.0, %v4285
        %4287 = vdwg.mxu0
        %4288 = vrot.lane.b32.xlu0 %v1262, 64
        %v4289 = vpop.permute.xlu0 %4288
        %4290 = vrot.lane.b32.xlu0 %v1264, 64
        %v4291 = vpop.permute.xlu0 %4290
        %4292 = vrot.lane.b32.xlu0 %v1266, 64
        %v4293 = vpop.permute.xlu0 %4292
        %4294 = vrot.lane.b32.xlu0 %v1268, 64
        %v4295 = vpop.permute.xlu0 %4294
        %v4301 = vsel %vm678, %v3412, 0
        %v4304 = vsel %vm678, %v3427, 0
        %v4307 = vsel %vm678, %v3442, 0
        %v4310 = vsel %vm678, %v3457, 0
        %4312 = vmatpush.msra.mxu0 0.0
        %4313 = vmatpush.msra.mxu0 0.0
        %4314 = vmatpush.msra.mxu0 0.0
        %4315 = vmatpush.msra.mxu0 0.0
        %4316 = vmatpush.msra.mxu0 0.0
        %4317 = vmatpush.msra.mxu0 0.0
        %4318 = vmatpush.msra.mxu0 0.0
        %4319 = vmatpush.msra.mxu0 0.0
        %4320 = vmatpush.msra.mxu0 0.0
        %4321 = vmatpush.msra.mxu0 0.0
        %4322 = vmatpush.msra.mxu0 0.0
        %4323 = vmatpush.msra.mxu0 0.0
        %4324 = vmatpush.msra.mxu0 %v4295
        %4325 = vmatpush.msra.mxu0 %v4293
        %4326 = vmatpush.msra.mxu0 %v4291
        %4327 = vmatpush.msra.mxu0 %v4289
        %4328 = vmatmul.f32.gmra.mxu0 %v4301
        %v4329 = vpop.f32.mrf.mxu0
        %v4330 = vadd.f32 0.0, %v4329
        %4331 = vmatmul.f32.gmra.mxu0 %v4304
        %v4332 = vpop.f32.mrf.mxu0
        %v4333 = vadd.f32 0.0, %v4332
        %4334 = vmatmul.f32.gmra.mxu0 %v4307
        %v4335 = vpop.f32.mrf.mxu0
        %v4336 = vadd.f32 0.0, %v4335
        %4337 = vmatmul.f32.gmra.mxu0 %v4310
        %v4338 = vpop.f32.mrf.mxu0
        %v4339 = vadd.f32 0.0, %v4338
        %4340 = vdwg.mxu0
        %4341 = vrot.lane.b32.xlu0 %v1270, 64
        %v4342 = vpop.permute.xlu0 %4341
        %4343 = vrot.lane.b32.xlu0 %v1272, 64
        %v4344 = vpop.permute.xlu0 %4343
        %4345 = vrot.lane.b32.xlu0 %v1274, 64
        %v4346 = vpop.permute.xlu0 %4345
        %4347 = vrot.lane.b32.xlu0 %v1276, 64
        %v4348 = vpop.permute.xlu0 %4347
        %v4354 = vsel %vm678, %v3472, 0
        %v4357 = vsel %vm678, %v3487, 0
        %v4360 = vsel %vm678, %v3502, 0
        %v4363 = vsel %vm678, %v3517, 0
        %4365 = vmatpush.msra.mxu0 0.0
        %4366 = vmatpush.msra.mxu0 0.0
        %4367 = vmatpush.msra.mxu0 0.0
        %4368 = vmatpush.msra.mxu0 0.0
        %4369 = vmatpush.msra.mxu0 0.0
        %4370 = vmatpush.msra.mxu0 0.0
        %4371 = vmatpush.msra.mxu0 0.0
        %4372 = vmatpush.msra.mxu0 0.0
        %4373 = vmatpush.msra.mxu0 0.0
        %4374 = vmatpush.msra.mxu0 0.0
        %4375 = vmatpush.msra.mxu0 0.0
        %4376 = vmatpush.msra.mxu0 0.0
        %4377 = vmatpush.msra.mxu0 %v4348
        %4378 = vmatpush.msra.mxu0 %v4346
        %4379 = vmatpush.msra.mxu0 %v4344
        %4380 = vmatpush.msra.mxu0 %v4342
        %4381 = vmatmul.f32.gmra.mxu0 %v4354
        %v4382 = vpop.f32.mrf.mxu0
        %v4383 = vadd.f32 0.0, %v4382
        %4384 = vmatmul.f32.gmra.mxu0 %v4357
        %v4385 = vpop.f32.mrf.mxu0
        %v4386 = vadd.f32 0.0, %v4385
        %4387 = vmatmul.f32.gmra.mxu0 %v4360
        %v4388 = vpop.f32.mrf.mxu0
        %v4389 = vadd.f32 0.0, %v4388
        %4390 = vmatmul.f32.gmra.mxu0 %v4363
        %v4391 = vpop.f32.mrf.mxu0
        %v4392 = vadd.f32 0.0, %v4391
        %4393 = vdwg.mxu0
        %4394 = vrot.lane.b32.xlu0 %v1278, 64
        %v4395 = vpop.permute.xlu0 %4394
        %4396 = vrot.lane.b32.xlu0 %v1280, 64
        %v4397 = vpop.permute.xlu0 %4396
        %4398 = vrot.lane.b32.xlu0 %v1282, 64
        %v4399 = vpop.permute.xlu0 %4398
        %4400 = vrot.lane.b32.xlu0 %v1284, 64
        %v4401 = vpop.permute.xlu0 %4400
        %v4407 = vsel %vm678, %v3532, 0
        %v4410 = vsel %vm678, %v3547, 0
        %v4413 = vsel %vm678, %v3562, 0
        %v4416 = vsel %vm678, %v3577, 0
        %4418 = vmatpush.msra.mxu0 0.0
        %4419 = vmatpush.msra.mxu0 0.0
        %4420 = vmatpush.msra.mxu0 0.0
        %4421 = vmatpush.msra.mxu0 0.0
        %4422 = vmatpush.msra.mxu0 0.0
        %4423 = vmatpush.msra.mxu0 0.0
        %4424 = vmatpush.msra.mxu0 0.0
        %4425 = vmatpush.msra.mxu0 0.0
        %4426 = vmatpush.msra.mxu0 0.0
        %4427 = vmatpush.msra.mxu0 0.0
        %4428 = vmatpush.msra.mxu0 0.0
        %4429 = vmatpush.msra.mxu0 0.0
        %4430 = vmatpush.msra.mxu0 %v4401
        %4431 = vmatpush.msra.mxu0 %v4399
        %4432 = vmatpush.msra.mxu0 %v4397
        %4433 = vmatpush.msra.mxu0 %v4395
        %4434 = vmatmul.f32.gmra.mxu0 %v4407
        %v4435 = vpop.f32.mrf.mxu0
        %v4436 = vadd.f32 0.0, %v4435
        %4437 = vmatmul.f32.gmra.mxu0 %v4410
        %v4438 = vpop.f32.mrf.mxu0
        %v4439 = vadd.f32 0.0, %v4438
        %4440 = vmatmul.f32.gmra.mxu0 %v4413
        %v4441 = vpop.f32.mrf.mxu0
        %v4442 = vadd.f32 0.0, %v4441
        %4443 = vmatmul.f32.gmra.mxu0 %v4416
        %v4444 = vpop.f32.mrf.mxu0
        %v4445 = vadd.f32 0.0, %v4444
        %4446 = vdwg.mxu0
        %4447 = vrot.lane.b32.xlu0 %v1286, 64
        %v4448 = vpop.permute.xlu0 %4447
        %4449 = vrot.lane.b32.xlu0 %v1288, 64
        %v4450 = vpop.permute.xlu0 %4449
        %4451 = vrot.lane.b32.xlu0 %v1290, 64
        %v4452 = vpop.permute.xlu0 %4451
        %4453 = vrot.lane.b32.xlu0 %v1292, 64
        %v4454 = vpop.permute.xlu0 %4453
        %v4460 = vsel %vm678, %v3592, 0
        %v4463 = vsel %vm678, %v3607, 0
        %v4466 = vsel %vm678, %v3622, 0
        %v4469 = vsel %vm678, %v3637, 0
        %4471 = vmatpush.msra.mxu0 0.0
        %4472 = vmatpush.msra.mxu0 0.0
        %4473 = vmatpush.msra.mxu0 0.0
        %4474 = vmatpush.msra.mxu0 0.0
        %4475 = vmatpush.msra.mxu0 0.0
        %4476 = vmatpush.msra.mxu0 0.0
        %4477 = vmatpush.msra.mxu0 0.0
        %4478 = vmatpush.msra.mxu0 0.0
        %4479 = vmatpush.msra.mxu0 0.0
        %4480 = vmatpush.msra.mxu0 0.0
        %4481 = vmatpush.msra.mxu0 0.0
        %4482 = vmatpush.msra.mxu0 0.0
        %4483 = vmatpush.msra.mxu0 %v4454
        %4484 = vmatpush.msra.mxu0 %v4452
        %4485 = vmatpush.msra.mxu0 %v4450
        %4486 = vmatpush.msra.mxu0 %v4448
        %4487 = vmatmul.f32.gmra.mxu0 %v4460
        %v4488 = vpop.f32.mrf.mxu0
        %v4489 = vadd.f32 0.0, %v4488
        %4490 = vmatmul.f32.gmra.mxu0 %v4463
        %v4491 = vpop.f32.mrf.mxu0
        %v4492 = vadd.f32 0.0, %v4491
        %4493 = vmatmul.f32.gmra.mxu0 %v4466
        %v4494 = vpop.f32.mrf.mxu0
        %v4495 = vadd.f32 0.0, %v4494
        %4496 = vmatmul.f32.gmra.mxu0 %v4469
        %v4497 = vpop.f32.mrf.mxu0
        %v4498 = vadd.f32 0.0, %v4497
        %4499 = vdwg.mxu0
        %4500 = vrot.lane.b32.xlu0 %v1294, 64
        %v4501 = vpop.permute.xlu0 %4500
        %4502 = vrot.lane.b32.xlu0 %v1296, 64
        %v4503 = vpop.permute.xlu0 %4502
        %4504 = vrot.lane.b32.xlu0 %v1298, 64
        %v4505 = vpop.permute.xlu0 %4504
        %4506 = vrot.lane.b32.xlu0 %v1300, 64
        %v4507 = vpop.permute.xlu0 %4506
        %v4513 = vsel %vm678, %v3652, 0
        %v4516 = vsel %vm678, %v3667, 0
        %v4519 = vsel %vm678, %v3682, 0
        %v4522 = vsel %vm678, %v3697, 0
        %4524 = vmatpush.msra.mxu0 0.0
        %4525 = vmatpush.msra.mxu0 0.0
        %4526 = vmatpush.msra.mxu0 0.0
        %4527 = vmatpush.msra.mxu0 0.0
        %4528 = vmatpush.msra.mxu0 0.0
        %4529 = vmatpush.msra.mxu0 0.0
        %4530 = vmatpush.msra.mxu0 0.0
        %4531 = vmatpush.msra.mxu0 0.0
        %4532 = vmatpush.msra.mxu0 0.0
        %4533 = vmatpush.msra.mxu0 0.0
        %4534 = vmatpush.msra.mxu0 0.0
        %4535 = vmatpush.msra.mxu0 0.0
        %4536 = vmatpush.msra.mxu0 %v4507
        %4537 = vmatpush.msra.mxu0 %v4505
        %4538 = vmatpush.msra.mxu0 %v4503
        %4539 = vmatpush.msra.mxu0 %v4501
        %4540 = vmatmul.f32.gmra.mxu0 %v4513
        %v4541 = vpop.f32.mrf.mxu0
        %v4542 = vadd.f32 0.0, %v4541
        %4543 = vmatmul.f32.gmra.mxu0 %v4516
        %v4544 = vpop.f32.mrf.mxu0
        %v4545 = vadd.f32 0.0, %v4544
        %4546 = vmatmul.f32.gmra.mxu0 %v4519
        %v4547 = vpop.f32.mrf.mxu0
        %v4548 = vadd.f32 0.0, %v4547
        %4549 = vmatmul.f32.gmra.mxu0 %v4522
        %v4550 = vpop.f32.mrf.mxu0
        %v4551 = vadd.f32 0.0, %v4550
        %4552 = vdwg.mxu0
        %4553 = vrot.lane.b32.xlu0 %v1302, 64
        %v4554 = vpop.permute.xlu0 %4553
        %4555 = vrot.lane.b32.xlu0 %v1304, 64
        %v4556 = vpop.permute.xlu0 %4555
        %4557 = vrot.lane.b32.xlu0 %v1306, 64
        %v4558 = vpop.permute.xlu0 %4557
        %4559 = vrot.lane.b32.xlu0 %v1308, 64
        %v4560 = vpop.permute.xlu0 %4559
        %v4566 = vsel %vm678, %v3712, 0
        %v4569 = vsel %vm678, %v3727, 0
        %v4572 = vsel %vm678, %v3742, 0
        %v4575 = vsel %vm678, %v3757, 0
        %4577 = vmatpush.msra.mxu0 0.0
        %4578 = vmatpush.msra.mxu0 0.0
        %4579 = vmatpush.msra.mxu0 0.0
        %4580 = vmatpush.msra.mxu0 0.0
        %4581 = vmatpush.msra.mxu0 0.0
        %4582 = vmatpush.msra.mxu0 0.0
        %4583 = vmatpush.msra.mxu0 0.0
        %4584 = vmatpush.msra.mxu0 0.0
        %4585 = vmatpush.msra.mxu0 0.0
        %4586 = vmatpush.msra.mxu0 0.0
        %4587 = vmatpush.msra.mxu0 0.0
        %4588 = vmatpush.msra.mxu0 0.0
        %4589 = vmatpush.msra.mxu0 %v4560
        %4590 = vmatpush.msra.mxu0 %v4558
        %4591 = vmatpush.msra.mxu0 %v4556
        %4592 = vmatpush.msra.mxu0 %v4554
        %4593 = vmatmul.f32.gmra.mxu0 %v4566
        %v4594 = vpop.f32.mrf.mxu0
        %v4595 = vadd.f32 0.0, %v4594
        %4596 = vmatmul.f32.gmra.mxu0 %v4569
        %v4597 = vpop.f32.mrf.mxu0
        %v4598 = vadd.f32 0.0, %v4597
        %4599 = vmatmul.f32.gmra.mxu0 %v4572
        %v4600 = vpop.f32.mrf.mxu0
        %v4601 = vadd.f32 0.0, %v4600
        %4602 = vmatmul.f32.gmra.mxu0 %v4575
        %v4603 = vpop.f32.mrf.mxu0
        %v4604 = vadd.f32 0.0, %v4603
        %4605 = vdwg.mxu0
        %v4606 = vld [vmem:[%s5] sm:$0xff]
        %v4607 = vld [vmem:[%s5 + $0x8] sm:$0xff]
        %v4608 = vld [vmem:[%s5 + $0x10] sm:$0xff]
        %v4609 = vld [vmem:[%s5 + $0x18] sm:$0xff]
        %v4611 = vsel %vm1381, %v4012, 0
        %v4614 = vsel %vm1381, %v4015, 0
        %v4617 = vsel %vm1381, %v4018, 0
        %v4620 = vsel %vm1381, %v4021, 0
        %v4623 = vsel %vm1381, %v4065, 0
        %v4626 = vsel %vm1381, %v4068, 0
        %v4629 = vsel %vm1381, %v4071, 0
        %v4632 = vsel %vm1381, %v4074, 0
        %v4635 = vsel %vm1381, %v4118, 0
        %v4638 = vsel %vm1381, %v4121, 0
        %v4641 = vsel %vm1381, %v4124, 0
        %v4644 = vsel %vm1381, %v4127, 0
        %v4647 = vsel %vm1381, %v4171, 0
        %v4650 = vsel %vm1381, %v4174, 0
        %v4653 = vsel %vm1381, %v4177, 0
        %v4656 = vsel %vm1381, %v4180, 0
        %4658 = vmatpush.msra.mxu0 0.0
        %4659 = vmatpush.msra.mxu0 0.0
        %4660 = vmatpush.msra.mxu0 0.0
        %4661 = vmatpush.msra.mxu0 0.0
        %4662 = vmatpush.msra.mxu0 0.0
        %4663 = vmatpush.msra.mxu0 0.0
        %4664 = vmatpush.msra.mxu0 0.0
        %4665 = vmatpush.msra.mxu0 0.0
        %4666 = vmatpush.msra.mxu0 0.0
        %4667 = vmatpush.msra.mxu0 0.0
        %4668 = vmatpush.msra.mxu0 0.0
        %4669 = vmatpush.msra.mxu0 0.0
        %4670 = vmatpush.msra.mxu0 0.0
        %4671 = vmatpush.msra.mxu0 0.0
        %4672 = vmatpush.msra.mxu0 0.0
        %4673 = vmatpush.msra.mxu0 %v4607
        %4674 = vmatmul.f32.gmra.mxu0 %v4611
        %v4675 = vpop.f32.mrf.mxu0
        %v4676 = vadd.f32 0.0, %v4675
        %4677 = vmatmul.f32.gmra.mxu0 %v4614
        %v4678 = vpop.f32.mrf.mxu0
        %v4679 = vadd.f32 0.0, %v4678
        %4680 = vmatmul.f32.gmra.mxu0 %v4617
        %v4681 = vpop.f32.mrf.mxu0
        %v4682 = vadd.f32 0.0, %v4681
        %4683 = vmatmul.f32.gmra.mxu0 %v4620
        %v4684 = vpop.f32.mrf.mxu0
        %v4685 = vadd.f32 0.0, %v4684
        %4686 = vmatmul.f32.gmra.mxu0 %v4623
        %v4687 = vpop.f32.mrf.mxu0
        %v4688 = vadd.f32 0.0, %v4687
        %4689 = vmatmul.f32.gmra.mxu0 %v4626
        %v4690 = vpop.f32.mrf.mxu0
        %v4691 = vadd.f32 0.0, %v4690
        %4692 = vmatmul.f32.gmra.mxu0 %v4629
        %v4693 = vpop.f32.mrf.mxu0
        %v4694 = vadd.f32 0.0, %v4693
        %4695 = vmatmul.f32.gmra.mxu0 %v4632
        %v4696 = vpop.f32.mrf.mxu0
        %v4697 = vadd.f32 0.0, %v4696
        %4698 = vmatmul.f32.gmra.mxu0 %v4635
        %v4699 = vpop.f32.mrf.mxu0
        %v4700 = vadd.f32 0.0, %v4699
        %4701 = vmatmul.f32.gmra.mxu0 %v4638
        %v4702 = vpop.f32.mrf.mxu0
        %v4703 = vadd.f32 0.0, %v4702
        %4704 = vmatmul.f32.gmra.mxu0 %v4641
        %v4705 = vpop.f32.mrf.mxu0
        %v4706 = vadd.f32 0.0, %v4705
        %4707 = vmatmul.f32.gmra.mxu0 %v4644
        %v4708 = vpop.f32.mrf.mxu0
        %v4709 = vadd.f32 0.0, %v4708
        %4710 = vmatmul.f32.gmra.mxu0 %v4647
        %v4711 = vpop.f32.mrf.mxu0
        %v4712 = vadd.f32 0.0, %v4711
        %4713 = vmatmul.f32.gmra.mxu0 %v4650
        %v4714 = vpop.f32.mrf.mxu0
        %v4715 = vadd.f32 0.0, %v4714
        %4716 = vmatmul.f32.gmra.mxu0 %v4653
        %v4717 = vpop.f32.mrf.mxu0
        %v4718 = vadd.f32 0.0, %v4717
        %4719 = vmatmul.f32.gmra.mxu0 %v4656
        %v4720 = vpop.f32.mrf.mxu0
        %v4721 = vadd.f32 0.0, %v4720
        %4722 = vdwg.mxu0
        %v4724 = vsel %vm1381, %v3800, 0
        %v4727 = vsel %vm1381, %v3803, 0
        %v4730 = vsel %vm1381, %v3806, 0
        %v4733 = vsel %vm1381, %v3809, 0
        %v4736 = vsel %vm1381, %v3853, 0
        %v4739 = vsel %vm1381, %v3856, 0
        %v4742 = vsel %vm1381, %v3859, 0
        %v4745 = vsel %vm1381, %v3862, 0
        %v4748 = vsel %vm1381, %v3906, 0
        %v4751 = vsel %vm1381, %v3909, 0
        %v4754 = vsel %vm1381, %v3912, 0
        %v4757 = vsel %vm1381, %v3915, 0
        %v4760 = vsel %vm1381, %v3959, 0
        %v4763 = vsel %vm1381, %v3962, 0
        %v4766 = vsel %vm1381, %v3965, 0
        %v4769 = vsel %vm1381, %v3968, 0
        %4771 = vmatpush.msra.mxu0 0.0
        %4772 = vmatpush.msra.mxu0 0.0
        %4773 = vmatpush.msra.mxu0 0.0
        %4774 = vmatpush.msra.mxu0 0.0
        %4775 = vmatpush.msra.mxu0 0.0
        %4776 = vmatpush.msra.mxu0 0.0
        %4777 = vmatpush.msra.mxu0 0.0
        %4778 = vmatpush.msra.mxu0 0.0
        %4779 = vmatpush.msra.mxu0 0.0
        %4780 = vmatpush.msra.mxu0 0.0
        %4781 = vmatpush.msra.mxu0 0.0
        %4782 = vmatpush.msra.mxu0 0.0
        %4783 = vmatpush.msra.mxu0 0.0
        %4784 = vmatpush.msra.mxu0 0.0
        %4785 = vmatpush.msra.mxu0 0.0
        %4786 = vmatpush.msra.mxu0 %v4606
        %4787 = vmatmul.f32.gmra.mxu0 %v4724
        %v4788 = vpop.f32.mrf.mxu0
        %v4789 = vadd.f32 %v4676, %v4788
        %4790 = vmatmul.f32.gmra.mxu0 %v4727
        %v4791 = vpop.f32.mrf.mxu0
        %v4792 = vadd.f32 %v4679, %v4791
        %4793 = vmatmul.f32.gmra.mxu0 %v4730
        %v4794 = vpop.f32.mrf.mxu0
        %v4795 = vadd.f32 %v4682, %v4794
        %4796 = vmatmul.f32.gmra.mxu0 %v4733
        %v4797 = vpop.f32.mrf.mxu0
        %v4798 = vadd.f32 %v4685, %v4797
        %4799 = vmatmul.f32.gmra.mxu0 %v4736
        %v4800 = vpop.f32.mrf.mxu0
        %v4801 = vadd.f32 %v4688, %v4800
        %4802 = vmatmul.f32.gmra.mxu0 %v4739
        %v4803 = vpop.f32.mrf.mxu0
        %v4804 = vadd.f32 %v4691, %v4803
        %4805 = vmatmul.f32.gmra.mxu0 %v4742
        %v4806 = vpop.f32.mrf.mxu0
        %v4807 = vadd.f32 %v4694, %v4806
        %4808 = vmatmul.f32.gmra.mxu0 %v4745
        %v4809 = vpop.f32.mrf.mxu0
        %v4810 = vadd.f32 %v4697, %v4809
        %4811 = vmatmul.f32.gmra.mxu0 %v4748
        %v4812 = vpop.f32.mrf.mxu0
        %v4813 = vadd.f32 %v4700, %v4812
        %4814 = vmatmul.f32.gmra.mxu0 %v4751
        %v4815 = vpop.f32.mrf.mxu0
        %v4816 = vadd.f32 %v4703, %v4815
        %4817 = vmatmul.f32.gmra.mxu0 %v4754
        %v4818 = vpop.f32.mrf.mxu0
        %v4819 = vadd.f32 %v4706, %v4818
        %4820 = vmatmul.f32.gmra.mxu0 %v4757
        %v4821 = vpop.f32.mrf.mxu0
        %v4822 = vadd.f32 %v4709, %v4821
        %4823 = vmatmul.f32.gmra.mxu0 %v4760
        %v4824 = vpop.f32.mrf.mxu0
        %v4825 = vadd.f32 %v4712, %v4824
        %4826 = vmatmul.f32.gmra.mxu0 %v4763
        %v4827 = vpop.f32.mrf.mxu0
        %v4828 = vadd.f32 %v4715, %v4827
        %4829 = vmatmul.f32.gmra.mxu0 %v4766
        %v4830 = vpop.f32.mrf.mxu0
        %v4831 = vadd.f32 %v4718, %v4830
        %4832 = vmatmul.f32.gmra.mxu0 %v4769
        %v4833 = vpop.f32.mrf.mxu0
        %v4834 = vadd.f32 %v4721, %v4833
        %4835 = vdwg.mxu0
        %v4837 = vsel %vm1381, %v4224, 0
        %v4840 = vsel %vm1381, %v4227, 0
        %v4843 = vsel %vm1381, %v4230, 0
        %v4846 = vsel %vm1381, %v4233, 0
        %v4849 = vsel %vm1381, %v4277, 0
        %v4852 = vsel %vm1381, %v4280, 0
        %v4855 = vsel %vm1381, %v4283, 0
        %v4858 = vsel %vm1381, %v4286, 0
        %v4861 = vsel %vm1381, %v4330, 0
        %v4864 = vsel %vm1381, %v4333, 0
        %v4867 = vsel %vm1381, %v4336, 0
        %v4870 = vsel %vm1381, %v4339, 0
        %v4873 = vsel %vm1381, %v4383, 0
        %v4876 = vsel %vm1381, %v4386, 0
        %v4879 = vsel %vm1381, %v4389, 0
        %v4882 = vsel %vm1381, %v4392, 0
        %4884 = vmatpush.msra.mxu0 0.0
        %4885 = vmatpush.msra.mxu0 0.0
        %4886 = vmatpush.msra.mxu0 0.0
        %4887 = vmatpush.msra.mxu0 0.0
        %4888 = vmatpush.msra.mxu0 0.0
        %4889 = vmatpush.msra.mxu0 0.0
        %4890 = vmatpush.msra.mxu0 0.0
        %4891 = vmatpush.msra.mxu0 0.0
        %4892 = vmatpush.msra.mxu0 0.0
        %4893 = vmatpush.msra.mxu0 0.0
        %4894 = vmatpush.msra.mxu0 0.0
        %4895 = vmatpush.msra.mxu0 0.0
        %4896 = vmatpush.msra.mxu0 0.0
        %4897 = vmatpush.msra.mxu0 0.0
        %4898 = vmatpush.msra.mxu0 0.0
        %4899 = vmatpush.msra.mxu0 %v4608
        %4900 = vmatmul.f32.gmra.mxu0 %v4837
        %v4901 = vpop.f32.mrf.mxu0
        %v4902 = vadd.f32 0.0, %v4901
        %4903 = vmatmul.f32.gmra.mxu0 %v4840
        %v4904 = vpop.f32.mrf.mxu0
        %v4905 = vadd.f32 0.0, %v4904
        %4906 = vmatmul.f32.gmra.mxu0 %v4843
        %v4907 = vpop.f32.mrf.mxu0
        %v4908 = vadd.f32 0.0, %v4907
        %4909 = vmatmul.f32.gmra.mxu0 %v4846
        %v4910 = vpop.f32.mrf.mxu0
        %v4911 = vadd.f32 0.0, %v4910
        %4912 = vmatmul.f32.gmra.mxu0 %v4849
        %v4913 = vpop.f32.mrf.mxu0
        %v4914 = vadd.f32 0.0, %v4913
        %4915 = vmatmul.f32.gmra.mxu0 %v4852
        %v4916 = vpop.f32.mrf.mxu0
        %v4917 = vadd.f32 0.0, %v4916
        %4918 = vmatmul.f32.gmra.mxu0 %v4855
        %v4919 = vpop.f32.mrf.mxu0
        %v4920 = vadd.f32 0.0, %v4919
        %4921 = vmatmul.f32.gmra.mxu0 %v4858
        %v4922 = vpop.f32.mrf.mxu0
        %v4923 = vadd.f32 0.0, %v4922
        %4924 = vmatmul.f32.gmra.mxu0 %v4861
        %v4925 = vpop.f32.mrf.mxu0
        %v4926 = vadd.f32 0.0, %v4925
        %4927 = vmatmul.f32.gmra.mxu0 %v4864
        %v4928 = vpop.f32.mrf.mxu0
        %v4929 = vadd.f32 0.0, %v4928
        %4930 = vmatmul.f32.gmra.mxu0 %v4867
        %v4931 = vpop.f32.mrf.mxu0
        %v4932 = vadd.f32 0.0, %v4931
        %4933 = vmatmul.f32.gmra.mxu0 %v4870
        %v4934 = vpop.f32.mrf.mxu0
        %v4935 = vadd.f32 0.0, %v4934
        %4936 = vmatmul.f32.gmra.mxu0 %v4873
        %v4937 = vpop.f32.mrf.mxu0
        %v4938 = vadd.f32 0.0, %v4937
        %4939 = vmatmul.f32.gmra.mxu0 %v4876
        %v4940 = vpop.f32.mrf.mxu0
        %v4941 = vadd.f32 0.0, %v4940
        %4942 = vmatmul.f32.gmra.mxu0 %v4879
        %v4943 = vpop.f32.mrf.mxu0
        %v4944 = vadd.f32 0.0, %v4943
        %4945 = vmatmul.f32.gmra.mxu0 %v4882
        %v4946 = vpop.f32.mrf.mxu0
        %v4947 = vadd.f32 0.0, %v4946
        %4948 = vdwg.mxu0
        %v4949 = vadd.f32 %v4789, %v4902
        %v4950 = vadd.f32 %v4792, %v4905
        %v4951 = vadd.f32 %v4795, %v4908
        %v4952 = vadd.f32 %v4798, %v4911
        %v4953 = vadd.f32 %v4801, %v4914
        %v4954 = vadd.f32 %v4804, %v4917
        %v4955 = vadd.f32 %v4807, %v4920
        %v4956 = vadd.f32 %v4810, %v4923
        %v4957 = vadd.f32 %v4813, %v4926
        %v4958 = vadd.f32 %v4816, %v4929
        %v4959 = vadd.f32 %v4819, %v4932
        %v4960 = vadd.f32 %v4822, %v4935
        %v4961 = vadd.f32 %v4825, %v4938
        %v4962 = vadd.f32 %v4828, %v4941
        %v4963 = vadd.f32 %v4831, %v4944
        %v4964 = vadd.f32 %v4834, %v4947
        %v4966 = vsel %vm1381, %v4436, 0
        %v4969 = vsel %vm1381, %v4439, 0
        %v4972 = vsel %vm1381, %v4442, 0
        %v4975 = vsel %vm1381, %v4445, 0
        %v4978 = vsel %vm1381, %v4489, 0
        %v4981 = vsel %vm1381, %v4492, 0
        %v4984 = vsel %vm1381, %v4495, 0
        %v4987 = vsel %vm1381, %v4498, 0
        %v4990 = vsel %vm1381, %v4542, 0
        %v4993 = vsel %vm1381, %v4545, 0
        %v4996 = vsel %vm1381, %v4548, 0
        %v4999 = vsel %vm1381, %v4551, 0
        %v5002 = vsel %vm1381, %v4595, 0
        %v5005 = vsel %vm1381, %v4598, 0
        %v5008 = vsel %vm1381, %v4601, 0
        %v5011 = vsel %vm1381, %v4604, 0
        %5013 = vmatpush.msra.mxu0 0.0
        %5014 = vmatpush.msra.mxu0 0.0
        %5015 = vmatpush.msra.mxu0 0.0
        %5016 = vmatpush.msra.mxu0 0.0
        %5017 = vmatpush.msra.mxu0 0.0
        %5018 = vmatpush.msra.mxu0 0.0
        %5019 = vmatpush.msra.mxu0 0.0
        %5020 = vmatpush.msra.mxu0 0.0
        %5021 = vmatpush.msra.mxu0 0.0
        %5022 = vmatpush.msra.mxu0 0.0
        %5023 = vmatpush.msra.mxu0 0.0
        %5024 = vmatpush.msra.mxu0 0.0
        %5025 = vmatpush.msra.mxu0 0.0
        %5026 = vmatpush.msra.mxu0 0.0
        %5027 = vmatpush.msra.mxu0 0.0
        %5028 = vmatpush.msra.mxu0 %v4609
        %5029 = vmatmul.f32.gmra.mxu0 %v4966
        %v5030 = vpop.f32.mrf.mxu0
        %v5031 = vadd.f32 0.0, %v5030
        %5032 = vmatmul.f32.gmra.mxu0 %v4969
        %v5033 = vpop.f32.mrf.mxu0
        %v5034 = vadd.f32 0.0, %v5033
        %5035 = vmatmul.f32.gmra.mxu0 %v4972
        %v5036 = vpop.f32.mrf.mxu0
        %v5037 = vadd.f32 0.0, %v5036
        %5038 = vmatmul.f32.gmra.mxu0 %v4975
        %v5039 = vpop.f32.mrf.mxu0
        %v5040 = vadd.f32 0.0, %v5039
        %5041 = vmatmul.f32.gmra.mxu0 %v4978
        %v5042 = vpop.f32.mrf.mxu0
        %v5043 = vadd.f32 0.0, %v5042
        %5044 = vmatmul.f32.gmra.mxu0 %v4981
        %v5045 = vpop.f32.mrf.mxu0
        %v5046 = vadd.f32 0.0, %v5045
        %5047 = vmatmul.f32.gmra.mxu0 %v4984
        %v5048 = vpop.f32.mrf.mxu0
        %v5049 = vadd.f32 0.0, %v5048
        %5050 = vmatmul.f32.gmra.mxu0 %v4987
        %v5051 = vpop.f32.mrf.mxu0
        %v5052 = vadd.f32 0.0, %v5051
        %5053 = vmatmul.f32.gmra.mxu0 %v4990
        %v5054 = vpop.f32.mrf.mxu0
        %v5055 = vadd.f32 0.0, %v5054
        %5056 = vmatmul.f32.gmra.mxu0 %v4993
        %v5057 = vpop.f32.mrf.mxu0
        %v5058 = vadd.f32 0.0, %v5057
        %5059 = vmatmul.f32.gmra.mxu0 %v4996
        %v5060 = vpop.f32.mrf.mxu0
        %v5061 = vadd.f32 0.0, %v5060
        %5062 = vmatmul.f32.gmra.mxu0 %v4999
        %v5063 = vpop.f32.mrf.mxu0
        %v5064 = vadd.f32 0.0, %v5063
        %5065 = vmatmul.f32.gmra.mxu0 %v5002
        %v5066 = vpop.f32.mrf.mxu0
        %v5067 = vadd.f32 0.0, %v5066
        %5068 = vmatmul.f32.gmra.mxu0 %v5005
        %v5069 = vpop.f32.mrf.mxu0
        %v5070 = vadd.f32 0.0, %v5069
        %5071 = vmatmul.f32.gmra.mxu0 %v5008
        %v5072 = vpop.f32.mrf.mxu0
        %v5073 = vadd.f32 0.0, %v5072
        %5074 = vmatmul.f32.gmra.mxu0 %v5011
        %v5075 = vpop.f32.mrf.mxu0
        %v5076 = vadd.f32 0.0, %v5075
        %5077 = vdwg.mxu0
        %v5078 = vadd.f32 %v4949, %v5031
        %v5079 = vadd.f32 %v4950, %v5034
        %v5080 = vadd.f32 %v4951, %v5037
        %v5081 = vadd.f32 %v4952, %v5040
        %v5082 = vadd.f32 %v4953, %v5043
        %v5083 = vadd.f32 %v4954, %v5046
        %v5084 = vadd.f32 %v4955, %v5049
        %v5085 = vadd.f32 %v4956, %v5052
        %v5086 = vadd.f32 %v4957, %v5055
        %v5087 = vadd.f32 %v4958, %v5058
        %v5088 = vadd.f32 %v4959, %v5061
        %v5089 = vadd.f32 %v4960, %v5064
        %v5090 = vadd.f32 %v4961, %v5067
        %v5091 = vadd.f32 %v4962, %v5070
        %v5092 = vadd.f32 %v4963, %v5073
        %v5093 = vadd.f32 %v4964, %v5076
        %v5094 = vld [vmem:[%s6] sm:$0x1]
        %v5096 = vperm.slane %v5094, 0
        %v5098 = vadd.f32 %v5078, %v5096
        %v5099 = vadd.f32 %v5079, %v5096
        %v5100 = vadd.f32 %v5080, %v5096
        %v5101 = vadd.f32 %v5081, %v5096
        %v5102 = vadd.f32 %v5082, %v5096
        %v5103 = vadd.f32 %v5083, %v5096
        %v5104 = vadd.f32 %v5084, %v5096
        %v5105 = vadd.f32 %v5085, %v5096
        %v5106 = vadd.f32 %v5086, %v5096
        %v5107 = vadd.f32 %v5087, %v5096
        %v5108 = vadd.f32 %v5088, %v5096
        %v5109 = vadd.f32 %v5089, %v5096
        %v5110 = vadd.f32 %v5090, %v5096
        %v5111 = vadd.f32 %v5091, %v5096
        %v5112 = vadd.f32 %v5092, %v5096
        %v5113 = vadd.f32 %v5093, %v5096
        %v5114 = vadd.f32 %v5098, %v660
        %v5115 = vadd.f32 %v5099, %v661
        %v5116 = vadd.f32 %v5100, %v662
        %v5117 = vadd.f32 %v5101, %v663
        %v5118 = vadd.f32 %v5102, %v664
        %v5119 = vadd.f32 %v5103, %v665
        %v5120 = vadd.f32 %v5104, %v666
        %v5121 = vadd.f32 %v5105, %v667
        %v5122 = vadd.f32 %v5106, %v668
        %v5123 = vadd.f32 %v5107, %v669
        %v5124 = vadd.f32 %v5108, %v670
        %v5125 = vadd.f32 %v5109, %v671
        %v5126 = vadd.f32 %v5110, %v672
        %v5127 = vadd.f32 %v5111, %v673
        %v5128 = vadd.f32 %v5112, %v674
        %v5129 = vadd.f32 %v5113, %v675
        %5130 = vst.msk [vmem:[%s656] sm:$0xff] %vm678, %v5114
        %5131 = vst.msk [vmem:[%s656 + $0x8] sm:$0xff] %vm678, %v5115
        %5132 = vst.msk [vmem:[%s656 + $0x10] sm:$0xff] %vm678, %v5116
        %5133 = vst.msk [vmem:[%s656 + $0x18] sm:$0xff] %vm678, %v5117
        %5134 = vst.msk [vmem:[%s656 + $0x20] sm:$0xff] %vm678, %v5118
        %5135 = vst.msk [vmem:[%s656 + $0x28] sm:$0xff] %vm678, %v5119
        %5136 = vst.msk [vmem:[%s656 + $0x30] sm:$0xff] %vm678, %v5120
        %5137 = vst.msk [vmem:[%s656 + $0x38] sm:$0xff] %vm678, %v5121
        %5138 = vst.msk [vmem:[%s656 + $0x40] sm:$0xff] %vm678, %v5122
        %5139 = vst.msk [vmem:[%s656 + $0x48] sm:$0xff] %vm678, %v5123
        %5140 = vst.msk [vmem:[%s656 + $0x50] sm:$0xff] %vm678, %v5124
        %5141 = vst.msk [vmem:[%s656 + $0x58] sm:$0xff] %vm678, %v5125
        %5142 = vst.msk [vmem:[%s656 + $0x60] sm:$0xff] %vm678, %v5126
        %5143 = vst.msk [vmem:[%s656 + $0x68] sm:$0xff] %vm678, %v5127
        %5144 = vst.msk [vmem:[%s656 + $0x70] sm:$0xff] %vm678, %v5128
        %5145 = vst.msk [vmem:[%s656 + $0x78] sm:$0xff] %vm678, %v5129
        %s5146 = smul.u32 %s23, 2
        %s5147 = sadd.s32 %s5146, %s24
        %s5148 = smul.u32 4, %s5147
        %p5149 = scmp.lt.s32.totalorder %s5148, 15
        %s5150 = scalar_select %p5149, %s5148, 15
        %s5151 = smul.addr %s5150, 4
        %s5152 = smul.addr %s5151, 8
        %s5153 = scalar_lea.vmem %s8, %s5152
        // Predicated region
        $region91: #{swin_block_forward.2} parent=85 // pred_check
          %p5154 = pneg %p235
        $region92: #{swin_block_forward.2} parent=85 // pred_check_branch
          %5156 = sbr.rel (%p5154) target = $region94
        $region93: #{swin_block_forward.2} parent=85 // pred_region
          %s5157 = smul.u32 %s23, 2
          %s5158 = sadd.s32 %s5157, %s24
          %s5159 = smul.u32 4, %s5158
        $region94: #{swin_block_forward.2} parent=85 // pred_fallthru
          _
      $region86: #{swin_block_forward.2} parent=5 // pred_fallthru
        _
      %p5160 = scmp.le.s32.totalorder 2, %s14
      // Predicated region
      $region95: #{swin_block_forward.2} parent=5 // pred_check
        %p5161 = pneg %p5160
      $region96: #{swin_block_forward.2} parent=5 // pred_check_branch
        %5163 = sbr.rel (%p5161) target = $region98
      $region97: #{swin_block_forward.2} parent=5 // pred_region
        %s5164 = ssub.s32 %s14, 2
        // Predicated region
        $region99: #{swin_block_forward.2} parent=97 // pred_check
          %p5165 = pneg %p241
        $region100: #{swin_block_forward.2} parent=97 // pred_check_branch
          %5167 = sbr.rel (%p5165) target = $region102
        $region101: #{swin_block_forward.2} parent=97 // pred_region
          %s5168 = smul.u32 %s25, 2
          %s5169 = sadd.s32 %s5168, %s26
          %s5170 = smul.u32 4, %s5169
          %p5171 = scmp.lt.s32.totalorder %s5170, 15
          %s5172 = scalar_select %p5171, %s5170, 15
          %s5173 = smul.addr %s5172, 4
          %s5174 = smul.addr %s5173, 8
          %s5175 = scalar_lea.vmem %s8, %s5174
        $region102: #{swin_block_forward.2} parent=97 // pred_fallthru
          _
      $region98: #{swin_block_forward.2} parent=5 // pred_fallthru
        _
    $region6: #{swin_block_forward.2} parent=1 // loop_footer
      %s18 = sadd.s32 1, %s14
    $region7: #{swin_block_forward.2} parent=1 // loop_footer_branch
      %13 = sbr.rel target = $region3
    $region8: #{swin_block_forward.2} parent=1 // loop_exit
      _

</llo_original>
